<compile_context>
chip_gen: v7x
topology: tpu7x:2x2x1
jax: 0.10.0
libtpu: 0.0.40
codegen_flags: <defaults>
</compile_context>

<pallas_src>
import functools

import jax
import jax.numpy as jnp
from jax.experimental import pallas as pl
from jax.experimental.pallas import tpu as pltpu

EPS = 1e-5
VMEM_LIMIT = 48 * 1024 * 1024   # under v7x's 64 MiB physical VMEM; plenty on v5e/v6e


# ------------------------------- small helpers ------------------------------ #

def _round_up(x, m):
    return (x + m - 1) // m * m


def _cpad(c):
    """Channel padding: lane-dense (multiple of 128) for wide layers, as-is otherwise."""
    return c if (c % 128 == 0 or c <= 64) else _round_up(c, 128)


def _cparams(dims):
    return pltpu.CompilerParams(dimension_semantics=dims, vmem_limit_bytes=VMEM_LIMIT)


def _matmul_row_tile(M):
    """Row tile for the im2col matmul path: a divisor of M (mult of 16, then 8) <= 256;
    otherwise pad M up to a multiple of 128."""
    for mult in (16, 8):
        best = 0
        d = mult
        while d <= 256:
            if M % d == 0:
                best = d
            d += mult
        if best:
            return best, M
    if M <= 256:
        return M, M
    return 128, _round_up(M, 128)


def _ew_tile(M):
    """Row tile for elementwise passes: as large as possible (<= 4096), dividing M."""
    if M <= 4096:
        return M
    for d in range(4096, 7, -8):
        if M % d == 0:
            return d
    return M


def _pick_th(H, W, cap=16):
    """Row-chunk height for the halo conv path (None -> fall back to im2col)."""
    if W % 8 != 0:
        return None
    best = None
    for th in range(1, min(H, cap) + 1):
        if H % th == 0:
            best = th
    return best


# ----------------------------- Pallas kernel bodies ------------------------- #

def _matmul_stats_kernel(a_ref, b_ref, bias_ref, o_ref, st_ref, *, m_true, tm):
    """(tm,K) bf16 @ (K,tn) bf16 (full contraction, no k grid axis), bias add, bf16 store,
    with BatchNorm partial statistics fused into the epilogue (padded rows masked)."""
    i = pl.program_id(0)
    y = jnp.dot(a_ref[...], b_ref[...], preferred_element_type=jnp.float32) + bias_ref[...]
    o_ref[...] = y.astype(o_ref.dtype)
    rows = jax.lax.broadcasted_iota(jnp.int32, y.shape, 0) + i * tm
    yv = jnp.where(rows < m_true, y, 0.0)
    s = jnp.sum(yv, axis=0, keepdims=True)
    ss = jnp.sum(yv * yv, axis=0, keepdims=True)
    st_ref[...] = jnp.concatenate([s, ss], axis=0)[None]


def _conv3x3_tap_kernel(x_ref, w_ref, bias_ref, o_ref, st_ref, *, th, W):
    """3x3 stride-1 conv on one row-chunk (with 2-row halo): the 9 (dy,dx) taps are
    accumulated in-kernel from the NHWC block; BN partial stats fused into the epilogue."""
    x = x_ref[0]                                          # (th+2, W+2, Cin) bf16
    acc = None
    for dy in range(3):
        rows = x[dy:dy + th]                              # (th, W+2, Cin)
        for dx in range(3):
            tap = rows[:, dx:dx + W, :].reshape(th * W, -1)
            p = jnp.dot(tap, w_ref[3 * dy + dx], preferred_element_type=jnp.float32)
            acc = p if acc is None else acc + p
    y = acc + bias_ref[...]
    o_ref[...] = y.astype(o_ref.dtype)
    s = jnp.sum(y, axis=0, keepdims=True)
    ss = jnp.sum(y * y, axis=0, keepdims=True)
    st_ref[...] = jnp.concatenate([s, ss], axis=0)[None]


def _bn_relu_kernel(y_ref, s_ref, b_ref, o_ref):
    y = y_ref[...].astype(jnp.float32)
    o_ref[...] = jnp.maximum(y * s_ref[...] + b_ref[...], 0.0).astype(o_ref.dtype)


def _residual_tail_kernel(y_ref, s2_ref, b2_ref, x_ref, s3_ref, b3_ref, o_ref):
    """relu( BN3(shortcut) + relu(BN2(conv2-out)) ) in one pass over both slabs."""
    y = jnp.maximum(y_ref[...].astype(jnp.float32) * s2_ref[...] + b2_ref[...], 0.0)
    x = x_ref[...].astype(jnp.float32) * s3_ref[...] + b3_ref[...]
    o_ref[...] = jnp.maximum(x + y, 0.0).astype(o_ref.dtype)


# ------------------------------ kernel wrappers ------------------------------ #

def matmul_bias_stats(a, wmat, bias, out_dtype=jnp.bfloat16):
    M, K = a.shape
    Ncol = wmat.shape[1]
    tm, Mpad = _matmul_row_tile(M)
    if Mpad != M:
        a = jnp.pad(a, ((0, Mpad - M), (0, 0)))
    tn = 128 if Ncol % 128 == 0 else Ncol
    gm, gn = Mpad // tm, Ncol // tn
    y, stats = pl.pallas_call(
        functools.partial(_matmul_stats_kernel, m_true=M, tm=tm),
        out_shape=(jax.ShapeDtypeStruct((Mpad, Ncol), out_dtype),
                   jax.ShapeDtypeStruct((gm, 2, Ncol), jnp.float32)),
        grid=(gm, gn),
        in_specs=[pl.BlockSpec((tm, K), lambda i, j: (i, 0)),
                  pl.BlockSpec((K, tn), lambda i, j: (0, j)),
                  pl.BlockSpec((1, tn), lambda i, j: (0, j))],
        out_specs=(pl.BlockSpec((tm, tn), lambda i, j: (i, j)),
                   pl.BlockSpec((1, 2, tn), lambda i, j: (i, 0, j))),
        compiler_params=_cparams(("parallel", "parallel")),
    )(a, wmat, bias)
    return y, stats


def _im2col(x, k, stride, pad):
    N, H, W, C = x.shape
    xp = jnp.pad(x, ((0, 0), (pad, pad), (pad, pad), (0, 0))) if pad else x
    Hp, Wp = H + 2 * pad, W + 2 * pad
    Ho = (Hp - k) // stride + 1
    Wo = (Wp - k) // stride + 1
    cols = [xp[:, dy:dy + stride * (Ho - 1) + 1:stride,
               dx:dx + stride * (Wo - 1) + 1:stride, :]
            for dy in range(k) for dx in range(k)]
    patches = jnp.stack(cols, axis=3)                     # (N, Ho, Wo, k*k, C)
    return patches.reshape(N * Ho * Wo, k * k * C), (N, Ho, Wo)


def _pad_weights(w, cin_pad, cout_pad):
    Cout, Cin, _, _ = w.shape
    wt = jnp.transpose(w, (2, 3, 1, 0))                   # (k, k, Cin, Cout)
    return jnp.pad(wt, ((0, 0), (0, 0), (0, cin_pad - Cin), (0, cout_pad - Cout)))


def conv_matmul(x, w, b, stride, pad, cout_pad, out_dtype=jnp.bfloat16):
    """Conv2d via im2col + fused-stats MXU matmul (7x7, 1x1 and fallback 3x3 convs)."""
    Cout, Cin, k, _ = w.shape
    cin_pad = x.shape[-1]
    a, (N, Ho, Wo) = _im2col(x.astype(jnp.bfloat16), k, stride, pad)
    wmat = _pad_weights(w, cin_pad, cout_pad).reshape(k * k * cin_pad, cout_pad)
    bias = jnp.pad(b, (0, cout_pad - Cout)).reshape(1, cout_pad).astype(jnp.float32)
    y, stats = matmul_bias_stats(a, wmat.astype(jnp.bfloat16), bias, out_dtype)
    M = N * Ho * Wo
    if y.shape[0] != M:
        y = y[:M]
    return y, stats, (N, Ho, Wo, cout_pad), M


def conv3x3_halo(x, w, b, cout_pad, th):
    """3x3 stride-1 conv with in-kernel 9-tap accumulation (no im2col HBM slab)."""
    N, H, W, Cp = x.shape
    Cout = w.shape[0]
    xp = jnp.pad(x, ((0, 0), (1, 1), (1, 1), (0, 0)))
    nh = H // th
    xh = jnp.stack([xp[:, t * th:t * th + th + 2] for t in range(nh)], axis=1)
    xh = xh.reshape(N * nh, th + 2, W + 2, Cp).astype(jnp.bfloat16)

    wk = _pad_weights(w, Cp, cout_pad).reshape(9, Cp, cout_pad).astype(jnp.bfloat16)
    bias = jnp.pad(b, (0, cout_pad - Cout)).reshape(1, cout_pad).astype(jnp.float32)

    T = N * nh
    tn = 128 if cout_pad % 128 == 0 else cout_pad
    gn = cout_pad // tn
    M = N * H * W
    y, stats = pl.pallas_call(
        functools.partial(_conv3x3_tap_kernel, th=th, W=W),
        out_shape=(jax.ShapeDtypeStruct((M, cout_pad), jnp.bfloat16),
                   jax.ShapeDtypeStruct((T, 2, cout_pad), jnp.float32)),
        grid=(T, gn),
        in_specs=[pl.BlockSpec((1, th + 2, W + 2, Cp), lambda t, j: (t, 0, 0, 0)),
                  pl.BlockSpec((9, Cp, tn), lambda t, j: (0, 0, j)),
                  pl.BlockSpec((1, tn), lambda t, j: (0, j))],
        out_specs=(pl.BlockSpec((th * W, tn), lambda t, j: (t, j)),
                   pl.BlockSpec((1, 2, tn), lambda t, j: (t, 0, j))),
        compiler_params=_cparams(("parallel", "parallel")),
    )(xh, wk, bias)
    return y, stats, (N, H, W, cout_pad), M


def conv3x3(x, w, b, stride, cout_pad):
    if stride == 1:
        th = _pick_th(x.shape[1], x.shape[2])
        if th is not None:
            return conv3x3_halo(x, w, b, cout_pad, th)
    return conv_matmul(x, w, b, stride, 1, cout_pad)


def bn_scale_shift(stats, m_true, gamma, beta, cout_pad):
    """Training-mode BatchNorm2d finalize: per-channel scale/shift from fused partial stats."""
    Cout = gamma.shape[0]
    g = jnp.pad(gamma, (0, cout_pad - Cout))
    be = jnp.pad(beta, (0, cout_pad - Cout))
    tot = jnp.sum(stats, axis=0)                          # (2, cout_pad)  tiny finalize
    mean = tot[0] / m_true
    var = jnp.maximum(tot[1] / m_true - mean * mean, 0.0)  # biased var (torch train mode)
    scale = g * jax.lax.rsqrt(var + EPS)
    shift = be - mean * scale
    return (scale.reshape(1, cout_pad).astype(jnp.float32),
            shift.reshape(1, cout_pad).astype(jnp.float32))


def bn_relu(y, scale, shift):
    M, C = y.shape
    te = _ew_tile(M)
    return pl.pallas_call(
        _bn_relu_kernel,
        out_shape=jax.ShapeDtypeStruct((M, C), jnp.bfloat16),
        grid=(M // te,),
        in_specs=[pl.BlockSpec((te, C), lambda i: (i, 0)),
                  pl.BlockSpec((1, C), lambda i: (0, 0)),
                  pl.BlockSpec((1, C), lambda i: (0, 0))],
        out_specs=pl.BlockSpec((te, C), lambda i: (i, 0)),
        compiler_params=_cparams(("parallel",)),
    )(y, scale, shift)


def residual_tail(y2, s2, b2, xs, s3, b3):
    assert y2.shape == xs.shape, (y2.shape, xs.shape)
    M, C = y2.shape
    te = _ew_tile(M)
    return pl.pallas_call(
        _residual_tail_kernel,
        out_shape=jax.ShapeDtypeStruct((M, C), jnp.bfloat16),
        grid=(M // te,),
        in_specs=[pl.BlockSpec((te, C), lambda i: (i, 0)),
                  pl.BlockSpec((1, C), lambda i: (0, 0)),
                  pl.BlockSpec((1, C), lambda i: (0, 0)),
                  pl.BlockSpec((te, C), lambda i: (i, 0)),
                  pl.BlockSpec((1, C), lambda i: (0, 0)),
                  pl.BlockSpec((1, C), lambda i: (0, 0))],
        out_specs=pl.BlockSpec((te, C), lambda i: (i, 0)),
        compiler_params=_cparams(("parallel",)),
    )(y2, s2, b2, xs, s3, b3)


# ------------------------------ parameter init ------------------------------- #

def init_conv(key, cout, cin, k):
    kw, kb = jax.random.split(key)
    fan_out = cout * k * k   # kaiming_normal_(mode='fan_out', nonlinearity='relu')
    w = jax.random.normal(kw, (cout, cin, k, k), jnp.float32) * jnp.sqrt(2.0 / fan_out)
    b = jax.random.normal(kb, (cout,), jnp.float32) * 0.01
    return w, b


def make_residual_params(key, cin, cout, stride):
    k1, k2, k3 = jax.random.split(key, 3)
    p = {}
    p["w1"], p["b1"] = init_conv(k1, cout, cin, 3)
    p["w2"], p["b2"] = init_conv(k2, cout, cout, 3)
    p["g1"], p["be1"] = jnp.ones((cout,), jnp.float32), jnp.zeros((cout,), jnp.float32)
    p["g2"], p["be2"] = jnp.ones((cout,), jnp.float32), jnp.zeros((cout,), jnp.float32)
    if stride != 1:
        p["wd"], p["bd"] = init_conv(k3, cout, cin, 1)
        p["g3"], p["be3"] = jnp.ones((cout,), jnp.float32), jnp.zeros((cout,), jnp.float32)
    return p


def make_encoder_params(key, output_dim=128):
    ks = jax.random.split(key, 8)
    params = {}
    params["conv1_w"], params["conv1_b"] = init_conv(ks[0], 64, 3, 7)
    params["norm1_g"] = jnp.ones((64,), jnp.float32)
    params["norm1_be"] = jnp.zeros((64,), jnp.float32)
    params["layer1"] = [make_residual_params(ks[1], 64, 64, 1),
                        make_residual_params(ks[2], 64, 64, 1)]
    params["layer2"] = [make_residual_params(ks[3], 64, 96, 2),
                        make_residual_params(ks[4], 96, 96, 1)]
    params["layer3"] = [make_residual_params(ks[5], 96, 128, 2),
                        make_residual_params(ks[6], 128, 128, 1)]
    params["conv2_w"], params["conv2_b"] = init_conv(ks[7], output_dim, 128, 1)
    return params


# -------------------------------- forward pass -------------------------------- #

def residual_block(x, p, stride, cout):
    cout_pad = _cpad(cout)

    # conv1 -> BN1 -> ReLU  (stats fused into conv; normalize+relu is one elementwise pass)
    y1, st1, shp1, M1 = conv3x3(x, p["w1"], p["b1"], stride, cout_pad)
    s1, b1 = bn_scale_shift(st1, M1, p["g1"], p["be1"], cout_pad)
    x1 = bn_relu(y1, s1, b1).reshape(shp1)

    # conv2 -> BN2 stats (normalize + relu folded into the residual-tail kernel)
    y2, st2, shp2, M2 = conv3x3(x1, p["w2"], p["b2"], 1, cout_pad)
    s2, b2 = bn_scale_shift(st2, M2, p["g2"], p["be2"], cout_pad)

    # shortcut path
    if stride != 1:
        xs, st3, _, Md = conv_matmul(x, p["wd"], p["bd"], stride, 0, cout_pad)
        s3, b3 = bn_scale_shift(st3, Md, p["g3"], p["be3"], cout_pad)
    else:
        # identity shortcut (this architecture always has cin == cout when stride == 1)
        xs = x.reshape(-1, x.shape[-1])
        s3 = jnp.ones((1, cout_pad), jnp.float32)
        b3 = jnp.zeros((1, cout_pad), jnp.float32)

    out = residual_tail(y2, s2, b2, xs, s3, b3)   # relu(shortcut + relu(bn2(y2)))
    return out.reshape(shp2)


LAYER_CFG = (("layer1", 64, 1), ("layer2", 96, 2), ("layer3", 128, 2))


def basic_encoder_forward(x_nchw, params, output_dim=128):
    x = jnp.transpose(x_nchw, (0, 2, 3, 1)).astype(jnp.bfloat16)     # NCHW -> NHWC

    # conv1 (7x7 / stride 2 / pad 3) -> BN -> ReLU
    y, st, shp, M = conv_matmul(x, params["conv1_w"], params["conv1_b"], 2, 3, 64)
    s, b = bn_scale_shift(st, M, params["norm1_g"], params["norm1_be"], 64)
    x = bn_relu(y, s, b).reshape(shp)

    for name, cout, stride0 in LAYER_CFG:
        blocks = params[name]
        x = residual_block(x, blocks[0], stride0, cout)
        x = residual_block(x, blocks[1], 1, cout)

    # conv2 (1x1, bias only; dropout=0.0 -> identity).  Final output kept in f32.
    cout_pad = _cpad(output_dim)
    y, _, shp, M = conv_matmul(x, params["conv2_w"], params["conv2_b"], 1, 0, cout_pad,
                               out_dtype=jnp.float32)
    out = y.reshape(shp)[..., :output_dim]
    return jnp.transpose(out, (0, 3, 1, 2))                           # NHWC -> NCHW


# ------------------------------------ main ------------------------------------ #

if __name__ == "__main__":
    key = jax.random.PRNGKey(0)
    kx, kp = jax.random.split(key)
    x = jax.random.normal(kx, (2, 3, 16, 16), jnp.float32)   # NCHW like the PyTorch module
    params = make_encoder_params(kp, output_dim=128)

    fwd = jax.jit(lambda inp: basic_encoder_forward(inp, params))
    out = jax.block_until_ready(fwd(x))

    assert out.shape == (2, 128, 2, 2), out.shape
    assert bool(jnp.all(jnp.isfinite(out)))
    print("KERNEL_OK")
</pallas_src>

<mosaic_0001>
module attributes {stable_mosaic.version = 11 : i64} {
  func.func @_matmul_stats_kernel(%arg0: i32, %arg1: i32, %arg2: memref<128x147xbf16, #tpu.memory_space<vmem>>, %arg3: memref<147x64xbf16, #tpu.memory_space<vmem>>, %arg4: memref<1x64xf32, #tpu.memory_space<vmem>>, %arg5: memref<128x64xbf16, #tpu.memory_space<vmem>>, %arg6: memref<1x2x64xf32, #tpu.memory_space<vmem>>) attributes {dimension_semantics = [#tpu.dimension_semantics<parallel>, #tpu.dimension_semantics<parallel>], iteration_bounds = array<i64: 1, 1>, scalar_prefetch = 0 : i64, scratch_operands = 0 : i64, tpu.core_type = #tpu.core_type<tc>, window_params = [{transform_indices = @transform_0, window_bounds = array<i64: 128, 147>}, {transform_indices = @transform_1, window_bounds = array<i64: 147, 64>}, {transform_indices = @transform_2, window_bounds = array<i64: 1, 64>}, {transform_indices = @transform_3, window_bounds = array<i64: 128, 64>}, {transform_indices = @transform_4, window_bounds = array<i64: 1, 2, 64>}]} {
    %c0 = arith.constant 0 : index
    %c0_0 = arith.constant 0 : index
    %0 = vector.load %arg2[%c0, %c0_0] : memref<128x147xbf16, #tpu.memory_space<vmem>>, vector<128x147xbf16>
    %c0_1 = arith.constant 0 : index
    %c0_2 = arith.constant 0 : index
    %1 = vector.load %arg3[%c0_1, %c0_2] : memref<147x64xbf16, #tpu.memory_space<vmem>>, vector<147x64xbf16>
    %cst = arith.constant dense<0.000000e+00> : vector<128x64xf32>
    %2 = tpu.matmul %0, %1, %cst {dimension_numbers = #tpu.dot_dimension_numbers<[1], [0], [0], [1], [0, 0, 1, 1], [], []>} : vector<128x147xbf16>, vector<147x64xbf16>, vector<128x64xf32> -> vector<128x64xf32>
    %c0_3 = arith.constant 0 : index
    %c0_4 = arith.constant 0 : index
    %3 = vector.load %arg4[%c0_3, %c0_4] : memref<1x64xf32, #tpu.memory_space<vmem>>, vector<1x64xf32>
    %4 = vector.broadcast %3 : vector<1x64xf32> to vector<128x64xf32>
    %5 = arith.addf %2, %4 : vector<128x64xf32>
    %6 = arith.truncf %5 : vector<128x64xf32> to vector<128x64xbf16>
    %c0_5 = arith.constant 0 : index
    %c0_6 = arith.constant 0 : index
    %7 = vector.load %arg5[%c0_5, %c0_6] : memref<128x64xbf16, #tpu.memory_space<vmem>>, vector<128x64xbf16>
    tpu.vector_store %arg5[%c0_5, %c0_6], %6 {strides = array<i32>} : memref<128x64xbf16, #tpu.memory_space<vmem>>, vector<128x64xbf16>,
    %8 = tpu.iota {dimensions = array<i32: 0>} : vector<128x64xi32>
    %c128_i32 = arith.constant 128 : i32
    %9 = arith.muli %arg0, %c128_i32 : i32
    %10 = vector.broadcast %9 : i32 to vector<128x64xi32>
    %11 = arith.addi %8, %10 : vector<128x64xi32>
    %c128_i32_7 = arith.constant 128 : i32
    %12 = vector.broadcast %c128_i32_7 : i32 to vector<128x64xi32>
    %13 = arith.cmpi slt, %11, %12 : vector<128x64xi32>
    %cst_8 = arith.constant 0.000000e+00 : f32
    %14 = vector.broadcast %cst_8 : f32 to vector<128x64xf32>
    %15 = arith.select %13, %5, %14 : vector<128x64xi1>, vector<128x64xf32>
    %cst_9 = arith.constant dense<0.000000e+00> : vector<64xf32>
    %16 = vector.multi_reduction <add>, %15, %cst_9 [0] : vector<128x64xf32> to vector<64xf32>
    %17 = vector.shape_cast %16 : vector<64xf32> to vector<1x64xf32>
    %18 = arith.mulf %15, %15 : vector<128x64xf32>
    %cst_10 = arith.constant dense<0.000000e+00> : vector<64xf32>
    %19 = vector.multi_reduction <add>, %18, %cst_10 [0] : vector<128x64xf32> to vector<64xf32>
    %20 = vector.shape_cast %19 : vector<64xf32> to vector<1x64xf32>
    %21 = tpu.concatenate %17, %20 in 0 : vector<1x64xf32>, vector<1x64xf32> -> vector<2x64xf32>
    %22 = vector.shape_cast %21 : vector<2x64xf32> to vector<1x2x64xf32>
    %c0_11 = arith.constant 0 : index
    %c0_12 = arith.constant 0 : index
    %c0_13 = arith.constant 0 : index
    %23 = vector.load %arg6[%c0_11, %c0_12, %c0_13] : memref<1x2x64xf32, #tpu.memory_space<vmem>>, vector<1x2x64xf32>
    tpu.vector_store %arg6[%c0_11, %c0_12, %c0_13], %22 {strides = array<i32>} : memref<1x2x64xf32, #tpu.memory_space<vmem>>, vector<1x2x64xf32>,
    return
  }
  func.func @transform_0(%arg0: i32, %arg1: i32) -> (i32, i32) {
    %c0_i32 = arith.constant 0 : i32
    %c0_i32_0 = arith.constant 0 : i32
    return %arg0, %c0_i32 : i32, i32
  }
  func.func @transform_1(%arg0: i32, %arg1: i32) -> (i32, i32) {
    %c0_i32 = arith.constant 0 : i32
    %c0_i32_0 = arith.constant 0 : i32
    return %c0_i32, %arg1 : i32, i32
  }
  func.func @transform_2(%arg0: i32, %arg1: i32) -> (i32, i32) {
    %c0_i32 = arith.constant 0 : i32
    %c0_i32_0 = arith.constant 0 : i32
    return %c0_i32, %arg1 : i32, i32
  }
  func.func @transform_3(%arg0: i32, %arg1: i32) -> (i32, i32) {
    %c0_i32 = arith.constant 0 : i32
    return %arg0, %arg1 : i32, i32
  }
  func.func @transform_4(%arg0: i32, %arg1: i32) -> (i32, i32, i32) {
    %c0_i32 = arith.constant 0 : i32
    %c0_i32_0 = arith.constant 0 : i32
    return %arg0, %c0_i32, %arg1 : i32, i32, i32
  }
}

module attributes {stable_mosaic.version = 11 : i64} {
  func.func @_bn_relu_kernel(%arg0: i32, %arg1: memref<128x64xbf16, #tpu.memory_space<vmem>>, %arg2: memref<1x64xf32, #tpu.memory_space<vmem>>, %arg3: memref<1x64xf32, #tpu.memory_space<vmem>>, %arg4: memref<128x64xbf16, #tpu.memory_space<vmem>>) attributes {dimension_semantics = [#tpu.dimension_semantics<parallel>], iteration_bounds = array<i64: 1>, scalar_prefetch = 0 : i64, scratch_operands = 0 : i64, tpu.core_type = #tpu.core_type<tc>, window_params = [{transform_indices = @transform_0, window_bounds = array<i64: 128, 64>}, {pipeline_mode = #tpu.pipeline_mode<synchronous>, transform_indices = @transform_1, window_bounds = array<i64: 1, 64>}, {pipeline_mode = #tpu.pipeline_mode<synchronous>, transform_indices = @transform_2, window_bounds = array<i64: 1, 64>}, {transform_indices = @transform_3, window_bounds = array<i64: 128, 64>}]} {
    %c0 = arith.constant 0 : index
    %c0_0 = arith.constant 0 : index
    %0 = vector.load %arg1[%c0, %c0_0] : memref<128x64xbf16, #tpu.memory_space<vmem>>, vector<128x64xbf16>
    %1 = arith.extf %0 : vector<128x64xbf16> to vector<128x64xf32>
    %c0_1 = arith.constant 0 : index
    %c0_2 = arith.constant 0 : index
    %2 = vector.load %arg2[%c0_1, %c0_2] : memref<1x64xf32, #tpu.memory_space<vmem>>, vector<1x64xf32>
    %3 = vector.broadcast %2 : vector<1x64xf32> to vector<128x64xf32>
    %4 = arith.mulf %1, %3 : vector<128x64xf32>
    %c0_3 = arith.constant 0 : index
    %c0_4 = arith.constant 0 : index
    %5 = vector.load %arg3[%c0_3, %c0_4] : memref<1x64xf32, #tpu.memory_space<vmem>>, vector<1x64xf32>
    %6 = vector.broadcast %5 : vector<1x64xf32> to vector<128x64xf32>
    %7 = arith.addf %4, %6 : vector<128x64xf32>
    %cst = arith.constant 0.000000e+00 : f32
    %8 = vector.broadcast %cst : f32 to vector<128x64xf32>
    %9 = arith.maximumf %7, %8 : vector<128x64xf32>
    %10 = arith.truncf %9 : vector<128x64xf32> to vector<128x64xbf16>
    %c0_5 = arith.constant 0 : index
    %c0_6 = arith.constant 0 : index
    %11 = vector.load %arg4[%c0_5, %c0_6] : memref<128x64xbf16, #tpu.memory_space<vmem>>, vector<128x64xbf16>
    tpu.vector_store %arg4[%c0_5, %c0_6], %10 {strides = array<i32>} : memref<128x64xbf16, #tpu.memory_space<vmem>>, vector<128x64xbf16>,
    return
  }
  func.func @transform_0(%arg0: i32) -> (i32, i32) {
    %c0_i32 = arith.constant 0 : i32
    %c0_i32_0 = arith.constant 0 : i32
    return %arg0, %c0_i32 : i32, i32
  }
  func.func @transform_1(%arg0: i32) -> (i32, i32) {
    %c0_i32 = arith.constant 0 : i32
    %c0_i32_0 = arith.constant 0 : i32
    %c0_i32_1 = arith.constant 0 : i32
    return %c0_i32, %c0_i32_0 : i32, i32
  }
  func.func @transform_2(%arg0: i32) -> (i32, i32) {
    %c0_i32 = arith.constant 0 : i32
    %c0_i32_0 = arith.constant 0 : i32
    %c0_i32_1 = arith.constant 0 : i32
    return %c0_i32, %c0_i32_0 : i32, i32
  }
  func.func @transform_3(%arg0: i32) -> (i32, i32) {
    %c0_i32 = arith.constant 0 : i32
    %c0_i32_0 = arith.constant 0 : i32
    return %arg0, %c0_i32 : i32, i32
  }
}

module attributes {stable_mosaic.version = 11 : i64} {
  func.func @_conv3x3_tap_kernel(%arg0: i32, %arg1: i32, %arg2: memref<1x10x10x64xbf16, #tpu.memory_space<vmem>>, %arg3: memref<9x64x64xbf16, #tpu.memory_space<vmem>>, %arg4: memref<1x64xf32, #tpu.memory_space<vmem>>, %arg5: memref<64x64xbf16, #tpu.memory_space<vmem>>, %arg6: memref<1x2x64xf32, #tpu.memory_space<vmem>>) attributes {dimension_semantics = [#tpu.dimension_semantics<parallel>, #tpu.dimension_semantics<parallel>], iteration_bounds = array<i64: 2, 1>, scalar_prefetch = 0 : i64, scratch_operands = 0 : i64, tpu.core_type = #tpu.core_type<tc>, window_params = [{transform_indices = @transform_0, window_bounds = array<i64: 1, 10, 10, 64>}, {transform_indices = @transform_1, window_bounds = array<i64: 9, 64, 64>}, {transform_indices = @transform_2, window_bounds = array<i64: 1, 64>}, {transform_indices = @transform_3, window_bounds = array<i64: 64, 64>}, {transform_indices = @transform_4, window_bounds = array<i64: 1, 2, 64>}]} {
    %c0 = arith.constant 0 : index
    %c0_0 = arith.constant 0 : index
    %c0_1 = arith.constant 0 : index
    %c0_2 = arith.constant 0 : index
    %0 = vector.load %arg2[%c0, %c0_0, %c0_1, %c0_2] : memref<1x10x10x64xbf16, #tpu.memory_space<vmem>>, vector<1x10x10x64xbf16>
    %1 = vector.shape_cast %0 : vector<1x10x10x64xbf16> to vector<10x10x64xbf16>
    %2 = vector.extract_strided_slice %1 {offsets = [0, 0, 0], sizes = [8, 10, 64], strides = [1, 1, 1]} : vector<10x10x64xbf16> to vector<8x10x64xbf16>
    %3 = vector.extract_strided_slice %2 {offsets = [0, 0, 0], sizes = [8, 8, 64], strides = [1, 1, 1]} : vector<8x10x64xbf16> to vector<8x8x64xbf16>
    %4 = vector.shape_cast %3 : vector<8x8x64xbf16> to vector<64x64xbf16>
    %c0_3 = arith.constant 0 : index
    %c0_4 = arith.constant 0 : index
    %c0_5 = arith.constant 0 : index
    %5 = vector.load %arg3[%c0_3, %c0_4, %c0_5] : memref<9x64x64xbf16, #tpu.memory_space<vmem>>, vector<1x64x64xbf16>
    %6 = vector.shape_cast %5 : vector<1x64x64xbf16> to vector<64x64xbf16>
    %cst = arith.constant dense<0.000000e+00> : vector<64x64xf32>
    %7 = tpu.matmul %4, %6, %cst {dimension_numbers = #tpu.dot_dimension_numbers<[1], [0], [0], [1], [0, 0, 1, 1], [], []>} : vector<64x64xbf16>, vector<64x64xbf16>, vector<64x64xf32> -> vector<64x64xf32>
    %8 = vector.extract_strided_slice %2 {offsets = [0, 1, 0], sizes = [8, 8, 64], strides = [1, 1, 1]} : vector<8x10x64xbf16> to vector<8x8x64xbf16>
    %9 = vector.shape_cast %8 : vector<8x8x64xbf16> to vector<64x64xbf16>
    %c1 = arith.constant 1 : index
    %c0_6 = arith.constant 0 : index
    %c0_7 = arith.constant 0 : index
    %10 = vector.load %arg3[%c1, %c0_6, %c0_7] : memref<9x64x64xbf16, #tpu.memory_space<vmem>>, vector<1x64x64xbf16>
    %11 = vector.shape_cast %10 : vector<1x64x64xbf16> to vector<64x64xbf16>
    %cst_8 = arith.constant dense<0.000000e+00> : vector<64x64xf32>
    %12 = tpu.matmul %9, %11, %cst_8 {dimension_numbers = #tpu.dot_dimension_numbers<[1], [0], [0], [1], [0, 0, 1, 1], [], []>} : vector<64x64xbf16>, vector<64x64xbf16>, vector<64x64xf32> -> vector<64x64xf32>
    %13 = arith.addf %7, %12 : vector<64x64xf32>
    %14 = vector.extract_strided_slice %2 {offsets = [0, 2, 0], sizes = [8, 8, 64], strides = [1, 1, 1]} : vector<8x10x64xbf16> to vector<8x8x64xbf16>
    %15 = vector.shape_cast %14 : vector<8x8x64xbf16> to vector<64x64xbf16>
    %c2 = arith.constant 2 : index
    %c0_9 = arith.constant 0 : index
    %c0_10 = arith.constant 0 : index
    %16 = vector.load %arg3[%c2, %c0_9, %c0_10] : memref<9x64x64xbf16, #tpu.memory_space<vmem>>, vector<1x64x64xbf16>
    %17 = vector.shape_cast %16 : vector<1x64x64xbf16> to vector<64x64xbf16>
    %cst_11 = arith.constant dense<0.000000e+00> : vector<64x64xf32>
    %18 = tpu.matmul %15, %17, %cst_11 {dimension_numbers = #tpu.dot_dimension_numbers<[1], [0], [0], [1], [0, 0, 1, 1], [], []>} : vector<64x64xbf16>, vector<64x64xbf16>, vector<64x64xf32> -> vector<64x64xf32>
    %19 = arith.addf %13, %18 : vector<64x64xf32>
    %20 = vector.extract_strided_slice %1 {offsets = [1, 0, 0], sizes = [8, 10, 64], strides = [1, 1, 1]} : vector<10x10x64xbf16> to vector<8x10x64xbf16>
    %21 = vector.extract_strided_slice %20 {offsets = [0, 0, 0], sizes = [8, 8, 64], strides = [1, 1, 1]} : vector<8x10x64xbf16> to vector<8x8x64xbf16>
    %22 = vector.shape_cast %21 : vector<8x8x64xbf16> to vector<64x64xbf16>
    %c3 = arith.constant 3 : index
    %c0_12 = arith.constant 0 : index
    %c0_13 = arith.constant 0 : index
    %23 = vector.load %arg3[%c3, %c0_12, %c0_13] : memref<9x64x64xbf16, #tpu.memory_space<vmem>>, vector<1x64x64xbf16>
    %24 = vector.shape_cast %23 : vector<1x64x64xbf16> to vector<64x64xbf16>
    %cst_14 = arith.constant dense<0.000000e+00> : vector<64x64xf32>
    %25 = tpu.matmul %22, %24, %cst_14 {dimension_numbers = #tpu.dot_dimension_numbers<[1], [0], [0], [1], [0, 0, 1, 1], [], []>} : vector<64x64xbf16>, vector<64x64xbf16>, vector<64x64xf32> -> vector<64x64xf32>
    %26 = arith.addf %19, %25 : vector<64x64xf32>
    %27 = vector.extract_strided_slice %20 {offsets = [0, 1, 0], sizes = [8, 8, 64], strides = [1, 1, 1]} : vector<8x10x64xbf16> to vector<8x8x64xbf16>
    %28 = vector.shape_cast %27 : vector<8x8x64xbf16> to vector<64x64xbf16>
    %c4 = arith.constant 4 : index
    %c0_15 = arith.constant 0 : index
    %c0_16 = arith.constant 0 : index
    %29 = vector.load %arg3[%c4, %c0_15, %c0_16] : memref<9x64x64xbf16, #tpu.memory_space<vmem>>, vector<1x64x64xbf16>
    %30 = vector.shape_cast %29 : vector<1x64x64xbf16> to vector<64x64xbf16>
    %cst_17 = arith.constant dense<0.000000e+00> : vector<64x64xf32>
    %31 = tpu.matmul %28, %30, %cst_17 {dimension_numbers = #tpu.dot_dimension_numbers<[1], [0], [0], [1], [0, 0, 1, 1], [], []>} : vector<64x64xbf16>, vector<64x64xbf16>, vector<64x64xf32> -> vector<64x64xf32>
    %32 = arith.addf %26, %31 : vector<64x64xf32>
    %33 = vector.extract_strided_slice %20 {offsets = [0, 2, 0], sizes = [8, 8, 64], strides = [1, 1, 1]} : vector<8x10x64xbf16> to vector<8x8x64xbf16>
    %34 = vector.shape_cast %33 : vector<8x8x64xbf16> to vector<64x64xbf16>
    %c5 = arith.constant 5 : index
    %c0_18 = arith.constant 0 : index
    %c0_19 = arith.constant 0 : index
    %35 = vector.load %arg3[%c5, %c0_18, %c0_19] : memref<9x64x64xbf16, #tpu.memory_space<vmem>>, vector<1x64x64xbf16>
    %36 = vector.shape_cast %35 : vector<1x64x64xbf16> to vector<64x64xbf16>
    %cst_20 = arith.constant dense<0.000000e+00> : vector<64x64xf32>
    %37 = tpu.matmul %34, %36, %cst_20 {dimension_numbers = #tpu.dot_dimension_numbers<[1], [0], [0], [1], [0, 0, 1, 1], [], []>} : vector<64x64xbf16>, vector<64x64xbf16>, vector<64x64xf32> -> vector<64x64xf32>
    %38 = arith.addf %32, %37 : vector<64x64xf32>
    %39 = vector.extract_strided_slice %1 {offsets = [2, 0, 0], sizes = [8, 10, 64], strides = [1, 1, 1]} : vector<10x10x64xbf16> to vector<8x10x64xbf16>
    %40 = vector.extract_strided_slice %39 {offsets = [0, 0, 0], sizes = [8, 8, 64], strides = [1, 1, 1]} : vector<8x10x64xbf16> to vector<8x8x64xbf16>
    %41 = vector.shape_cast %40 : vector<8x8x64xbf16> to vector<64x64xbf16>
    %c6 = arith.constant 6 : index
    %c0_21 = arith.constant 0 : index
    %c0_22 = arith.constant 0 : index
    %42 = vector.load %arg3[%c6, %c0_21, %c0_22] : memref<9x64x64xbf16, #tpu.memory_space<vmem>>, vector<1x64x64xbf16>
    %43 = vector.shape_cast %42 : vector<1x64x64xbf16> to vector<64x64xbf16>
    %cst_23 = arith.constant dense<0.000000e+00> : vector<64x64xf32>
    %44 = tpu.matmul %41, %43, %cst_23 {dimension_numbers = #tpu.dot_dimension_numbers<[1], [0], [0], [1], [0, 0, 1, 1], [], []>} : vector<64x64xbf16>, vector<64x64xbf16>, vector<64x64xf32> -> vector<64x64xf32>
    %45 = arith.addf %38, %44 : vector<64x64xf32>
    %46 = vector.extract_strided_slice %39 {offsets = [0, 1, 0], sizes = [8, 8, 64], strides = [1, 1, 1]} : vector<8x10x64xbf16> to vector<8x8x64xbf16>
    %47 = vector.shape_cast %46 : vector<8x8x64xbf16> to vector<64x64xbf16>
    %c7 = arith.constant 7 : index
    %c0_24 = arith.constant 0 : index
    %c0_25 = arith.constant 0 : index
    %48 = vector.load %arg3[%c7, %c0_24, %c0_25] : memref<9x64x64xbf16, #tpu.memory_space<vmem>>, vector<1x64x64xbf16>
    %49 = vector.shape_cast %48 : vector<1x64x64xbf16> to vector<64x64xbf16>
    %cst_26 = arith.constant dense<0.000000e+00> : vector<64x64xf32>
    %50 = tpu.matmul %47, %49, %cst_26 {dimension_numbers = #tpu.dot_dimension_numbers<[1], [0], [0], [1], [0, 0, 1, 1], [], []>} : vector<64x64xbf16>, vector<64x64xbf16>, vector<64x64xf32> -> vector<64x64xf32>
    %51 = arith.addf %45, %50 : vector<64x64xf32>
    %52 = vector.extract_strided_slice %39 {offsets = [0, 2, 0], sizes = [8, 8, 64], strides = [1, 1, 1]} : vector<8x10x64xbf16> to vector<8x8x64xbf16>
    %53 = vector.shape_cast %52 : vector<8x8x64xbf16> to vector<64x64xbf16>
    %c8 = arith.constant 8 : index
    %c0_27 = arith.constant 0 : index
    %c0_28 = arith.constant 0 : index
    %54 = vector.load %arg3[%c8, %c0_27, %c0_28] : memref<9x64x64xbf16, #tpu.memory_space<vmem>>, vector<1x64x64xbf16>
    %55 = vector.shape_cast %54 : vector<1x64x64xbf16> to vector<64x64xbf16>
    %cst_29 = arith.constant dense<0.000000e+00> : vector<64x64xf32>
    %56 = tpu.matmul %53, %55, %cst_29 {dimension_numbers = #tpu.dot_dimension_numbers<[1], [0], [0], [1], [0, 0, 1, 1], [], []>} : vector<64x64xbf16>, vector<64x64xbf16>, vector<64x64xf32> -> vector<64x64xf32>
    %57 = arith.addf %51, %56 : vector<64x64xf32>
    %c0_30 = arith.constant 0 : index
    %c0_31 = arith.constant 0 : index
    %58 = vector.load %arg4[%c0_30, %c0_31] : memref<1x64xf32, #tpu.memory_space<vmem>>, vector<1x64xf32>
    %59 = vector.broadcast %58 : vector<1x64xf32> to vector<64x64xf32>
    %60 = arith.addf %57, %59 : vector<64x64xf32>
    %61 = arith.truncf %60 : vector<64x64xf32> to vector<64x64xbf16>
    %c0_32 = arith.constant 0 : index
    %c0_33 = arith.constant 0 : index
    %62 = vector.load %arg5[%c0_32, %c0_33] : memref<64x64xbf16, #tpu.memory_space<vmem>>, vector<64x64xbf16>
    tpu.vector_store %arg5[%c0_32, %c0_33], %61 {strides = array<i32>} : memref<64x64xbf16, #tpu.memory_space<vmem>>, vector<64x64xbf16>,
    %cst_34 = arith.constant dense<0.000000e+00> : vector<64xf32>
    %63 = vector.multi_reduction <add>, %60, %cst_34 [0] : vector<64x64xf32> to vector<64xf32>
    %64 = vector.shape_cast %63 : vector<64xf32> to vector<1x64xf32>
    %65 = arith.mulf %60, %60 : vector<64x64xf32>
    %cst_35 = arith.constant dense<0.000000e+00> : vector<64xf32>
    %66 = vector.multi_reduction <add>, %65, %cst_35 [0] : vector<64x64xf32> to vector<64xf32>
    %67 = vector.shape_cast %66 : vector<64xf32> to vector<1x64xf32>
    %68 = tpu.concatenate %64, %67 in 0 : vector<1x64xf32>, vector<1x64xf32> -> vector<2x64xf32>
    %69 = vector.shape_cast %68 : vector<2x64xf32> to vector<1x2x64xf32>
    %c0_36 = arith.constant 0 : index
    %c0_37 = arith.constant 0 : index
    %c0_38 = arith.constant 0 : index
    %70 = vector.load %arg6[%c0_36, %c0_37, %c0_38] : memref<1x2x64xf32, #tpu.memory_space<vmem>>, vector<1x2x64xf32>
    tpu.vector_store %arg6[%c0_36, %c0_37, %c0_38], %69 {strides = array<i32>} : memref<1x2x64xf32, #tpu.memory_space<vmem>>, vector<1x2x64xf32>,
    return
  }
  func.func @transform_0(%arg0: i32, %arg1: i32) -> (i32, i32, i32, i32) {
    %c0_i32 = arith.constant 0 : i32
    %c0_i32_0 = arith.constant 0 : i32
    %c0_i32_1 = arith.constant 0 : i32
    %c0_i32_2 = arith.constant 0 : i32
    return %arg0, %c0_i32, %c0_i32_0, %c0_i32_1 : i32, i32, i32, i32
  }
  func.func @transform_1(%arg0: i32, %arg1: i32) -> (i32, i32, i32) {
    %c0_i32 = arith.constant 0 : i32
    %c0_i32_0 = arith.constant 0 : i32
    %c0_i32_1 = arith.constant 0 : i32
    return %c0_i32, %c0_i32_0, %arg1 : i32, i32, i32
  }
  func.func @transform_2(%arg0: i32, %arg1: i32) -> (i32, i32) {
    %c0_i32 = arith.constant 0 : i32
    %c0_i32_0 = arith.constant 0 : i32
    return %c0_i32, %arg1 : i32, i32
  }
  func.func @transform_3(%arg0: i32, %arg1: i32) -> (i32, i32) {
    %c0_i32 = arith.constant 0 : i32
    return %arg0, %arg1 : i32, i32
  }
  func.func @transform_4(%arg0: i32, %arg1: i32) -> (i32, i32, i32) {
    %c0_i32 = arith.constant 0 : i32
    %c0_i32_0 = arith.constant 0 : i32
    return %arg0, %c0_i32, %arg1 : i32, i32, i32
  }
}

module attributes {stable_mosaic.version = 11 : i64} {
  func.func @_residual_tail_kernel(%arg0: i32, %arg1: memref<128x64xbf16, #tpu.memory_space<vmem>>, %arg2: memref<1x64xf32, #tpu.memory_space<vmem>>, %arg3: memref<1x64xf32, #tpu.memory_space<vmem>>, %arg4: memref<128x64xbf16, #tpu.memory_space<vmem>>, %arg5: memref<1x64xf32, #tpu.memory_space<vmem>>, %arg6: memref<1x64xf32, #tpu.memory_space<vmem>>, %arg7: memref<128x64xbf16, #tpu.memory_space<vmem>>) attributes {dimension_semantics = [#tpu.dimension_semantics<parallel>], iteration_bounds = array<i64: 1>, scalar_prefetch = 0 : i64, scratch_operands = 0 : i64, tpu.core_type = #tpu.core_type<tc>, window_params = [{transform_indices = @transform_0, window_bounds = array<i64: 128, 64>}, {pipeline_mode = #tpu.pipeline_mode<synchronous>, transform_indices = @transform_1, window_bounds = array<i64: 1, 64>}, {pipeline_mode = #tpu.pipeline_mode<synchronous>, transform_indices = @transform_2, window_bounds = array<i64: 1, 64>}, {transform_indices = @transform_3, window_bounds = array<i64: 128, 64>}, {pipeline_mode = #tpu.pipeline_mode<synchronous>, transform_indices = @transform_4, window_bounds = array<i64: 1, 64>}, {pipeline_mode = #tpu.pipeline_mode<synchronous>, transform_indices = @transform_5, window_bounds = array<i64: 1, 64>}, {transform_indices = @transform_6, window_bounds = array<i64: 128, 64>}]} {
    %c0 = arith.constant 0 : index
    %c0_0 = arith.constant 0 : index
    %0 = vector.load %arg1[%c0, %c0_0] : memref<128x64xbf16, #tpu.memory_space<vmem>>, vector<128x64xbf16>
    %1 = arith.extf %0 : vector<128x64xbf16> to vector<128x64xf32>
    %c0_1 = arith.constant 0 : index
    %c0_2 = arith.constant 0 : index
    %2 = vector.load %arg2[%c0_1, %c0_2] : memref<1x64xf32, #tpu.memory_space<vmem>>, vector<1x64xf32>
    %3 = vector.broadcast %2 : vector<1x64xf32> to vector<128x64xf32>
    %4 = arith.mulf %1, %3 : vector<128x64xf32>
    %c0_3 = arith.constant 0 : index
    %c0_4 = arith.constant 0 : index
    %5 = vector.load %arg3[%c0_3, %c0_4] : memref<1x64xf32, #tpu.memory_space<vmem>>, vector<1x64xf32>
    %6 = vector.broadcast %5 : vector<1x64xf32> to vector<128x64xf32>
    %7 = arith.addf %4, %6 : vector<128x64xf32>
    %cst = arith.constant 0.000000e+00 : f32
    %8 = vector.broadcast %cst : f32 to vector<128x64xf32>
    %9 = arith.maximumf %7, %8 : vector<128x64xf32>
    %c0_5 = arith.constant 0 : index
    %c0_6 = arith.constant 0 : index
    %10 = vector.load %arg4[%c0_5, %c0_6] : memref<128x64xbf16, #tpu.memory_space<vmem>>, vector<128x64xbf16>
    %11 = arith.extf %10 : vector<128x64xbf16> to vector<128x64xf32>
    %c0_7 = arith.constant 0 : index
    %c0_8 = arith.constant 0 : index
    %12 = vector.load %arg5[%c0_7, %c0_8] : memref<1x64xf32, #tpu.memory_space<vmem>>, vector<1x64xf32>
    %13 = vector.broadcast %12 : vector<1x64xf32> to vector<128x64xf32>
    %14 = arith.mulf %11, %13 : vector<128x64xf32>
    %c0_9 = arith.constant 0 : index
    %c0_10 = arith.constant 0 : index
    %15 = vector.load %arg6[%c0_9, %c0_10] : memref<1x64xf32, #tpu.memory_space<vmem>>, vector<1x64xf32>
    %16 = vector.broadcast %15 : vector<1x64xf32> to vector<128x64xf32>
    %17 = arith.addf %14, %16 : vector<128x64xf32>
    %18 = arith.addf %17, %9 : vector<128x64xf32>
    %cst_11 = arith.constant 0.000000e+00 : f32
    %19 = vector.broadcast %cst_11 : f32 to vector<128x64xf32>
    %20 = arith.maximumf %18, %19 : vector<128x64xf32>
    %21 = arith.truncf %20 : vector<128x64xf32> to vector<128x64xbf16>
    %c0_12 = arith.constant 0 : index
    %c0_13 = arith.constant 0 : index
    %22 = vector.load %arg7[%c0_12, %c0_13] : memref<128x64xbf16, #tpu.memory_space<vmem>>, vector<128x64xbf16>
    tpu.vector_store %arg7[%c0_12, %c0_13], %21 {strides = array<i32>} : memref<128x64xbf16, #tpu.memory_space<vmem>>, vector<128x64xbf16>,
    return
  }
  func.func @transform_0(%arg0: i32) -> (i32, i32) {
    %c0_i32 = arith.constant 0 : i32
    %c0_i32_0 = arith.constant 0 : i32
    return %arg0, %c0_i32 : i32, i32
  }
  func.func @transform_1(%arg0: i32) -> (i32, i32) {
    %c0_i32 = arith.constant 0 : i32
    %c0_i32_0 = arith.constant 0 : i32
    %c0_i32_1 = arith.constant 0 : i32
    return %c0_i32, %c0_i32_0 : i32, i32
  }
  func.func @transform_2(%arg0: i32) -> (i32, i32) {
    %c0_i32 = arith.constant 0 : i32
    %c0_i32_0 = arith.constant 0 : i32
    %c0_i32_1 = arith.constant 0 : i32
    return %c0_i32, %c0_i32_0 : i32, i32
  }
  func.func @transform_3(%arg0: i32) -> (i32, i32) {
    %c0_i32 = arith.constant 0 : i32
    %c0_i32_0 = arith.constant 0 : i32
    return %arg0, %c0_i32 : i32, i32
  }
  func.func @transform_4(%arg0: i32) -> (i32, i32) {
    %c0_i32 = arith.constant 0 : i32
    %c0_i32_0 = arith.constant 0 : i32
    %c0_i32_1 = arith.constant 0 : i32
    return %c0_i32, %c0_i32_0 : i32, i32
  }
  func.func @transform_5(%arg0: i32) -> (i32, i32) {
    %c0_i32 = arith.constant 0 : i32
    %c0_i32_0 = arith.constant 0 : i32
    %c0_i32_1 = arith.constant 0 : i32
    return %c0_i32, %c0_i32_0 : i32, i32
  }
  func.func @transform_6(%arg0: i32) -> (i32, i32) {
    %c0_i32 = arith.constant 0 : i32
    %c0_i32_0 = arith.constant 0 : i32
    return %arg0, %c0_i32 : i32, i32
  }
}

module attributes {stable_mosaic.version = 11 : i64} {
  func.func @_matmul_stats_kernel(%arg0: i32, %arg1: i32, %arg2: memref<32x576xbf16, #tpu.memory_space<vmem>>, %arg3: memref<576x128xbf16, #tpu.memory_space<vmem>>, %arg4: memref<1x128xf32, #tpu.memory_space<vmem>>, %arg5: memref<32x128xbf16, #tpu.memory_space<vmem>>, %arg6: memref<1x2x128xf32, #tpu.memory_space<vmem>>) attributes {dimension_semantics = [#tpu.dimension_semantics<parallel>, #tpu.dimension_semantics<parallel>], iteration_bounds = array<i64: 1, 1>, scalar_prefetch = 0 : i64, scratch_operands = 0 : i64, tpu.core_type = #tpu.core_type<tc>, window_params = [{transform_indices = @transform_0, window_bounds = array<i64: 32, 576>}, {transform_indices = @transform_1, window_bounds = array<i64: 576, 128>}, {transform_indices = @transform_2, window_bounds = array<i64: 1, 128>}, {transform_indices = @transform_3, window_bounds = array<i64: 32, 128>}, {transform_indices = @transform_4, window_bounds = array<i64: 1, 2, 128>}]} {
    %c0 = arith.constant 0 : index
    %c0_0 = arith.constant 0 : index
    %0 = vector.load %arg2[%c0, %c0_0] : memref<32x576xbf16, #tpu.memory_space<vmem>>, vector<32x576xbf16>
    %c0_1 = arith.constant 0 : index
    %c0_2 = arith.constant 0 : index
    %1 = vector.load %arg3[%c0_1, %c0_2] : memref<576x128xbf16, #tpu.memory_space<vmem>>, vector<576x128xbf16>
    %cst = arith.constant dense<0.000000e+00> : vector<32x128xf32>
    %2 = tpu.matmul %0, %1, %cst {dimension_numbers = #tpu.dot_dimension_numbers<[1], [0], [0], [1], [0, 0, 1, 1], [], []>} : vector<32x576xbf16>, vector<576x128xbf16>, vector<32x128xf32> -> vector<32x128xf32>
    %c0_3 = arith.constant 0 : index
    %c0_4 = arith.constant 0 : index
    %3 = vector.load %arg4[%c0_3, %c0_4] : memref<1x128xf32, #tpu.memory_space<vmem>>, vector<1x128xf32>
    %4 = vector.broadcast %3 : vector<1x128xf32> to vector<32x128xf32>
    %5 = arith.addf %2, %4 : vector<32x128xf32>
    %6 = arith.truncf %5 : vector<32x128xf32> to vector<32x128xbf16>
    %c0_5 = arith.constant 0 : index
    %c0_6 = arith.constant 0 : index
    %7 = vector.load %arg5[%c0_5, %c0_6] : memref<32x128xbf16, #tpu.memory_space<vmem>>, vector<32x128xbf16>
    tpu.vector_store %arg5[%c0_5, %c0_6], %6 {strides = array<i32>} : memref<32x128xbf16, #tpu.memory_space<vmem>>, vector<32x128xbf16>,
    %8 = tpu.iota {dimensions = array<i32: 0>} : vector<32x128xi32>
    %c32_i32 = arith.constant 32 : i32
    %9 = arith.muli %arg0, %c32_i32 : i32
    %10 = vector.broadcast %9 : i32 to vector<32x128xi32>
    %11 = arith.addi %8, %10 : vector<32x128xi32>
    %c32_i32_7 = arith.constant 32 : i32
    %12 = vector.broadcast %c32_i32_7 : i32 to vector<32x128xi32>
    %13 = arith.cmpi slt, %11, %12 : vector<32x128xi32>
    %cst_8 = arith.constant 0.000000e+00 : f32
    %14 = vector.broadcast %cst_8 : f32 to vector<32x128xf32>
    %15 = arith.select %13, %5, %14 : vector<32x128xi1>, vector<32x128xf32>
    %cst_9 = arith.constant dense<0.000000e+00> : vector<128xf32>
    %16 = vector.multi_reduction <add>, %15, %cst_9 [0] : vector<32x128xf32> to vector<128xf32>
    %17 = vector.shape_cast %16 : vector<128xf32> to vector<1x128xf32>
    %18 = arith.mulf %15, %15 : vector<32x128xf32>
    %cst_10 = arith.constant dense<0.000000e+00> : vector<128xf32>
    %19 = vector.multi_reduction <add>, %18, %cst_10 [0] : vector<32x128xf32> to vector<128xf32>
    %20 = vector.shape_cast %19 : vector<128xf32> to vector<1x128xf32>
    %21 = tpu.concatenate %17, %20 in 0 : vector<1x128xf32>, vector<1x128xf32> -> vector<2x128xf32>
    %22 = vector.shape_cast %21 : vector<2x128xf32> to vector<1x2x128xf32>
    %c0_11 = arith.constant 0 : index
    %c0_12 = arith.constant 0 : index
    %c0_13 = arith.constant 0 : index
    %23 = vector.load %arg6[%c0_11, %c0_12, %c0_13] : memref<1x2x128xf32, #tpu.memory_space<vmem>>, vector<1x2x128xf32>
    tpu.vector_store %arg6[%c0_11, %c0_12, %c0_13], %22 {strides = array<i32>} : memref<1x2x128xf32, #tpu.memory_space<vmem>>, vector<1x2x128xf32>,
    return
  }
  func.func @transform_0(%arg0: i32, %arg1: i32) -> (i32, i32) {
    %c0_i32 = arith.constant 0 : i32
    %c0_i32_0 = arith.constant 0 : i32
    return %arg0, %c0_i32 : i32, i32
  }
  func.func @transform_1(%arg0: i32, %arg1: i32) -> (i32, i32) {
    %c0_i32 = arith.constant 0 : i32
    %c0_i32_0 = arith.constant 0 : i32
    return %c0_i32, %arg1 : i32, i32
  }
  func.func @transform_2(%arg0: i32, %arg1: i32) -> (i32, i32) {
    %c0_i32 = arith.constant 0 : i32
    %c0_i32_0 = arith.constant 0 : i32
    return %c0_i32, %arg1 : i32, i32
  }
  func.func @transform_3(%arg0: i32, %arg1: i32) -> (i32, i32) {
    %c0_i32 = arith.constant 0 : i32
    return %arg0, %arg1 : i32, i32
  }
  func.func @transform_4(%arg0: i32, %arg1: i32) -> (i32, i32, i32) {
    %c0_i32 = arith.constant 0 : i32
    %c0_i32_0 = arith.constant 0 : i32
    return %arg0, %c0_i32, %arg1 : i32, i32, i32
  }
}

module attributes {stable_mosaic.version = 11 : i64} {
  func.func @_bn_relu_kernel(%arg0: i32, %arg1: memref<32x128xbf16, #tpu.memory_space<vmem>>, %arg2: memref<1x128xf32, #tpu.memory_space<vmem>>, %arg3: memref<1x128xf32, #tpu.memory_space<vmem>>, %arg4: memref<32x128xbf16, #tpu.memory_space<vmem>>) attributes {dimension_semantics = [#tpu.dimension_semantics<parallel>], iteration_bounds = array<i64: 1>, scalar_prefetch = 0 : i64, scratch_operands = 0 : i64, tpu.core_type = #tpu.core_type<tc>, window_params = [{transform_indices = @transform_0, window_bounds = array<i64: 32, 128>}, {pipeline_mode = #tpu.pipeline_mode<synchronous>, transform_indices = @transform_1, window_bounds = array<i64: 1, 128>}, {pipeline_mode = #tpu.pipeline_mode<synchronous>, transform_indices = @transform_2, window_bounds = array<i64: 1, 128>}, {transform_indices = @transform_3, window_bounds = array<i64: 32, 128>}]} {
    %c0 = arith.constant 0 : index
    %c0_0 = arith.constant 0 : index
    %0 = vector.load %arg1[%c0, %c0_0] : memref<32x128xbf16, #tpu.memory_space<vmem>>, vector<32x128xbf16>
    %1 = arith.extf %0 : vector<32x128xbf16> to vector<32x128xf32>
    %c0_1 = arith.constant 0 : index
    %c0_2 = arith.constant 0 : index
    %2 = vector.load %arg2[%c0_1, %c0_2] : memref<1x128xf32, #tpu.memory_space<vmem>>, vector<1x128xf32>
    %3 = vector.broadcast %2 : vector<1x128xf32> to vector<32x128xf32>
    %4 = arith.mulf %1, %3 : vector<32x128xf32>
    %c0_3 = arith.constant 0 : index
    %c0_4 = arith.constant 0 : index
    %5 = vector.load %arg3[%c0_3, %c0_4] : memref<1x128xf32, #tpu.memory_space<vmem>>, vector<1x128xf32>
    %6 = vector.broadcast %5 : vector<1x128xf32> to vector<32x128xf32>
    %7 = arith.addf %4, %6 : vector<32x128xf32>
    %cst = arith.constant 0.000000e+00 : f32
    %8 = vector.broadcast %cst : f32 to vector<32x128xf32>
    %9 = arith.maximumf %7, %8 : vector<32x128xf32>
    %10 = arith.truncf %9 : vector<32x128xf32> to vector<32x128xbf16>
    %c0_5 = arith.constant 0 : index
    %c0_6 = arith.constant 0 : index
    %11 = vector.load %arg4[%c0_5, %c0_6] : memref<32x128xbf16, #tpu.memory_space<vmem>>, vector<32x128xbf16>
    tpu.vector_store %arg4[%c0_5, %c0_6], %10 {strides = array<i32>} : memref<32x128xbf16, #tpu.memory_space<vmem>>, vector<32x128xbf16>,
    return
  }
  func.func @transform_0(%arg0: i32) -> (i32, i32) {
    %c0_i32 = arith.constant 0 : i32
    %c0_i32_0 = arith.constant 0 : i32
    return %arg0, %c0_i32 : i32, i32
  }
  func.func @transform_1(%arg0: i32) -> (i32, i32) {
    %c0_i32 = arith.constant 0 : i32
    %c0_i32_0 = arith.constant 0 : i32
    %c0_i32_1 = arith.constant 0 : i32
    return %c0_i32, %c0_i32_0 : i32, i32
  }
  func.func @transform_2(%arg0: i32) -> (i32, i32) {
    %c0_i32 = arith.constant 0 : i32
    %c0_i32_0 = arith.constant 0 : i32
    %c0_i32_1 = arith.constant 0 : i32
    return %c0_i32, %c0_i32_0 : i32, i32
  }
  func.func @transform_3(%arg0: i32) -> (i32, i32) {
    %c0_i32 = arith.constant 0 : i32
    %c0_i32_0 = arith.constant 0 : i32
    return %arg0, %c0_i32 : i32, i32
  }
}

module attributes {stable_mosaic.version = 11 : i64} {
  func.func @_matmul_stats_kernel(%arg0: i32, %arg1: i32, %arg2: memref<32x64xbf16, #tpu.memory_space<vmem>>, %arg3: memref<64x128xbf16, #tpu.memory_space<vmem>>, %arg4: memref<1x128xf32, #tpu.memory_space<vmem>>, %arg5: memref<32x128xbf16, #tpu.memory_space<vmem>>, %arg6: memref<1x2x128xf32, #tpu.memory_space<vmem>>) attributes {dimension_semantics = [#tpu.dimension_semantics<parallel>, #tpu.dimension_semantics<parallel>], iteration_bounds = array<i64: 1, 1>, scalar_prefetch = 0 : i64, scratch_operands = 0 : i64, tpu.core_type = #tpu.core_type<tc>, window_params = [{transform_indices = @transform_0, window_bounds = array<i64: 32, 64>}, {transform_indices = @transform_1, window_bounds = array<i64: 64, 128>}, {transform_indices = @transform_2, window_bounds = array<i64: 1, 128>}, {transform_indices = @transform_3, window_bounds = array<i64: 32, 128>}, {transform_indices = @transform_4, window_bounds = array<i64: 1, 2, 128>}]} {
    %c0 = arith.constant 0 : index
    %c0_0 = arith.constant 0 : index
    %0 = vector.load %arg2[%c0, %c0_0] : memref<32x64xbf16, #tpu.memory_space<vmem>>, vector<32x64xbf16>
    %c0_1 = arith.constant 0 : index
    %c0_2 = arith.constant 0 : index
    %1 = vector.load %arg3[%c0_1, %c0_2] : memref<64x128xbf16, #tpu.memory_space<vmem>>, vector<64x128xbf16>
    %cst = arith.constant dense<0.000000e+00> : vector<32x128xf32>
    %2 = tpu.matmul %0, %1, %cst {dimension_numbers = #tpu.dot_dimension_numbers<[1], [0], [0], [1], [0, 0, 1, 1], [], []>} : vector<32x64xbf16>, vector<64x128xbf16>, vector<32x128xf32> -> vector<32x128xf32>
    %c0_3 = arith.constant 0 : index
    %c0_4 = arith.constant 0 : index
    %3 = vector.load %arg4[%c0_3, %c0_4] : memref<1x128xf32, #tpu.memory_space<vmem>>, vector<1x128xf32>
    %4 = vector.broadcast %3 : vector<1x128xf32> to vector<32x128xf32>
    %5 = arith.addf %2, %4 : vector<32x128xf32>
    %6 = arith.truncf %5 : vector<32x128xf32> to vector<32x128xbf16>
    %c0_5 = arith.constant 0 : index
    %c0_6 = arith.constant 0 : index
    %7 = vector.load %arg5[%c0_5, %c0_6] : memref<32x128xbf16, #tpu.memory_space<vmem>>, vector<32x128xbf16>
    tpu.vector_store %arg5[%c0_5, %c0_6], %6 {strides = array<i32>} : memref<32x128xbf16, #tpu.memory_space<vmem>>, vector<32x128xbf16>,
    %8 = tpu.iota {dimensions = array<i32: 0>} : vector<32x128xi32>
    %c32_i32 = arith.constant 32 : i32
    %9 = arith.muli %arg0, %c32_i32 : i32
    %10 = vector.broadcast %9 : i32 to vector<32x128xi32>
    %11 = arith.addi %8, %10 : vector<32x128xi32>
    %c32_i32_7 = arith.constant 32 : i32
    %12 = vector.broadcast %c32_i32_7 : i32 to vector<32x128xi32>
    %13 = arith.cmpi slt, %11, %12 : vector<32x128xi32>
    %cst_8 = arith.constant 0.000000e+00 : f32
    %14 = vector.broadcast %cst_8 : f32 to vector<32x128xf32>
    %15 = arith.select %13, %5, %14 : vector<32x128xi1>, vector<32x128xf32>
    %cst_9 = arith.constant dense<0.000000e+00> : vector<128xf32>
    %16 = vector.multi_reduction <add>, %15, %cst_9 [0] : vector<32x128xf32> to vector<128xf32>
    %17 = vector.shape_cast %16 : vector<128xf32> to vector<1x128xf32>
    %18 = arith.mulf %15, %15 : vector<32x128xf32>
    %cst_10 = arith.constant dense<0.000000e+00> : vector<128xf32>
    %19 = vector.multi_reduction <add>, %18, %cst_10 [0] : vector<32x128xf32> to vector<128xf32>
    %20 = vector.shape_cast %19 : vector<128xf32> to vector<1x128xf32>
    %21 = tpu.concatenate %17, %20 in 0 : vector<1x128xf32>, vector<1x128xf32> -> vector<2x128xf32>
    %22 = vector.shape_cast %21 : vector<2x128xf32> to vector<1x2x128xf32>
    %c0_11 = arith.constant 0 : index
    %c0_12 = arith.constant 0 : index
    %c0_13 = arith.constant 0 : index
    %23 = vector.load %arg6[%c0_11, %c0_12, %c0_13] : memref<1x2x128xf32, #tpu.memory_space<vmem>>, vector<1x2x128xf32>
    tpu.vector_store %arg6[%c0_11, %c0_12, %c0_13], %22 {strides = array<i32>} : memref<1x2x128xf32, #tpu.memory_space<vmem>>, vector<1x2x128xf32>,
    return
  }
  func.func @transform_0(%arg0: i32, %arg1: i32) -> (i32, i32) {
    %c0_i32 = arith.constant 0 : i32
    %c0_i32_0 = arith.constant 0 : i32
    return %arg0, %c0_i32 : i32, i32
  }
  func.func @transform_1(%arg0: i32, %arg1: i32) -> (i32, i32) {
    %c0_i32 = arith.constant 0 : i32
    %c0_i32_0 = arith.constant 0 : i32
    return %c0_i32, %arg1 : i32, i32
  }
  func.func @transform_2(%arg0: i32, %arg1: i32) -> (i32, i32) {
    %c0_i32 = arith.constant 0 : i32
    %c0_i32_0 = arith.constant 0 : i32
    return %c0_i32, %arg1 : i32, i32
  }
  func.func @transform_3(%arg0: i32, %arg1: i32) -> (i32, i32) {
    %c0_i32 = arith.constant 0 : i32
    return %arg0, %arg1 : i32, i32
  }
  func.func @transform_4(%arg0: i32, %arg1: i32) -> (i32, i32, i32) {
    %c0_i32 = arith.constant 0 : i32
    %c0_i32_0 = arith.constant 0 : i32
    return %arg0, %c0_i32, %arg1 : i32, i32, i32
  }
}

module attributes {stable_mosaic.version = 11 : i64} {
  func.func @_matmul_stats_kernel(%arg0: i32, %arg1: i32, %arg2: memref<32x1152xbf16, #tpu.memory_space<vmem>>, %arg3: memref<1152x128xbf16, #tpu.memory_space<vmem>>, %arg4: memref<1x128xf32, #tpu.memory_space<vmem>>, %arg5: memref<32x128xbf16, #tpu.memory_space<vmem>>, %arg6: memref<1x2x128xf32, #tpu.memory_space<vmem>>) attributes {dimension_semantics = [#tpu.dimension_semantics<parallel>, #tpu.dimension_semantics<parallel>], iteration_bounds = array<i64: 1, 1>, scalar_prefetch = 0 : i64, scratch_operands = 0 : i64, tpu.core_type = #tpu.core_type<tc>, window_params = [{transform_indices = @transform_0, window_bounds = array<i64: 32, 1152>}, {transform_indices = @transform_1, window_bounds = array<i64: 1152, 128>}, {transform_indices = @transform_2, window_bounds = array<i64: 1, 128>}, {transform_indices = @transform_3, window_bounds = array<i64: 32, 128>}, {transform_indices = @transform_4, window_bounds = array<i64: 1, 2, 128>}]} {
    %c0 = arith.constant 0 : index
    %c0_0 = arith.constant 0 : index
    %0 = vector.load %arg2[%c0, %c0_0] : memref<32x1152xbf16, #tpu.memory_space<vmem>>, vector<32x1152xbf16>
    %c0_1 = arith.constant 0 : index
    %c0_2 = arith.constant 0 : index
    %1 = vector.load %arg3[%c0_1, %c0_2] : memref<1152x128xbf16, #tpu.memory_space<vmem>>, vector<1152x128xbf16>
    %cst = arith.constant dense<0.000000e+00> : vector<32x128xf32>
    %2 = tpu.matmul %0, %1, %cst {dimension_numbers = #tpu.dot_dimension_numbers<[1], [0], [0], [1], [0, 0, 1, 1], [], []>} : vector<32x1152xbf16>, vector<1152x128xbf16>, vector<32x128xf32> -> vector<32x128xf32>
    %c0_3 = arith.constant 0 : index
    %c0_4 = arith.constant 0 : index
    %3 = vector.load %arg4[%c0_3, %c0_4] : memref<1x128xf32, #tpu.memory_space<vmem>>, vector<1x128xf32>
    %4 = vector.broadcast %3 : vector<1x128xf32> to vector<32x128xf32>
    %5 = arith.addf %2, %4 : vector<32x128xf32>
    %6 = arith.truncf %5 : vector<32x128xf32> to vector<32x128xbf16>
    %c0_5 = arith.constant 0 : index
    %c0_6 = arith.constant 0 : index
    %7 = vector.load %arg5[%c0_5, %c0_6] : memref<32x128xbf16, #tpu.memory_space<vmem>>, vector<32x128xbf16>
    tpu.vector_store %arg5[%c0_5, %c0_6], %6 {strides = array<i32>} : memref<32x128xbf16, #tpu.memory_space<vmem>>, vector<32x128xbf16>,
    %8 = tpu.iota {dimensions = array<i32: 0>} : vector<32x128xi32>
    %c32_i32 = arith.constant 32 : i32
    %9 = arith.muli %arg0, %c32_i32 : i32
    %10 = vector.broadcast %9 : i32 to vector<32x128xi32>
    %11 = arith.addi %8, %10 : vector<32x128xi32>
    %c32_i32_7 = arith.constant 32 : i32
    %12 = vector.broadcast %c32_i32_7 : i32 to vector<32x128xi32>
    %13 = arith.cmpi slt, %11, %12 : vector<32x128xi32>
    %cst_8 = arith.constant 0.000000e+00 : f32
    %14 = vector.broadcast %cst_8 : f32 to vector<32x128xf32>
    %15 = arith.select %13, %5, %14 : vector<32x128xi1>, vector<32x128xf32>
    %cst_9 = arith.constant dense<0.000000e+00> : vector<128xf32>
    %16 = vector.multi_reduction <add>, %15, %cst_9 [0] : vector<32x128xf32> to vector<128xf32>
    %17 = vector.shape_cast %16 : vector<128xf32> to vector<1x128xf32>
    %18 = arith.mulf %15, %15 : vector<32x128xf32>
    %cst_10 = arith.constant dense<0.000000e+00> : vector<128xf32>
    %19 = vector.multi_reduction <add>, %18, %cst_10 [0] : vector<32x128xf32> to vector<128xf32>
    %20 = vector.shape_cast %19 : vector<128xf32> to vector<1x128xf32>
    %21 = tpu.concatenate %17, %20 in 0 : vector<1x128xf32>, vector<1x128xf32> -> vector<2x128xf32>
    %22 = vector.shape_cast %21 : vector<2x128xf32> to vector<1x2x128xf32>
    %c0_11 = arith.constant 0 : index
    %c0_12 = arith.constant 0 : index
    %c0_13 = arith.constant 0 : index
    %23 = vector.load %arg6[%c0_11, %c0_12, %c0_13] : memref<1x2x128xf32, #tpu.memory_space<vmem>>, vector<1x2x128xf32>
    tpu.vector_store %arg6[%c0_11, %c0_12, %c0_13], %22 {strides = array<i32>} : memref<1x2x128xf32, #tpu.memory_space<vmem>>, vector<1x2x128xf32>,
    return
  }
  func.func @transform_0(%arg0: i32, %arg1: i32) -> (i32, i32) {
    %c0_i32 = arith.constant 0 : i32
    %c0_i32_0 = arith.constant 0 : i32
    return %arg0, %c0_i32 : i32, i32
  }
  func.func @transform_1(%arg0: i32, %arg1: i32) -> (i32, i32) {
    %c0_i32 = arith.constant 0 : i32
    %c0_i32_0 = arith.constant 0 : i32
    return %c0_i32, %arg1 : i32, i32
  }
  func.func @transform_2(%arg0: i32, %arg1: i32) -> (i32, i32) {
    %c0_i32 = arith.constant 0 : i32
    %c0_i32_0 = arith.constant 0 : i32
    return %c0_i32, %arg1 : i32, i32
  }
  func.func @transform_3(%arg0: i32, %arg1: i32) -> (i32, i32) {
    %c0_i32 = arith.constant 0 : i32
    return %arg0, %arg1 : i32, i32
  }
  func.func @transform_4(%arg0: i32, %arg1: i32) -> (i32, i32, i32) {
    %c0_i32 = arith.constant 0 : i32
    %c0_i32_0 = arith.constant 0 : i32
    return %arg0, %c0_i32, %arg1 : i32, i32, i32
  }
}

module attributes {stable_mosaic.version = 11 : i64} {
  func.func @_residual_tail_kernel(%arg0: i32, %arg1: memref<32x128xbf16, #tpu.memory_space<vmem>>, %arg2: memref<1x128xf32, #tpu.memory_space<vmem>>, %arg3: memref<1x128xf32, #tpu.memory_space<vmem>>, %arg4: memref<32x128xbf16, #tpu.memory_space<vmem>>, %arg5: memref<1x128xf32, #tpu.memory_space<vmem>>, %arg6: memref<1x128xf32, #tpu.memory_space<vmem>>, %arg7: memref<32x128xbf16, #tpu.memory_space<vmem>>) attributes {dimension_semantics = [#tpu.dimension_semantics<parallel>], iteration_bounds = array<i64: 1>, scalar_prefetch = 0 : i64, scratch_operands = 0 : i64, tpu.core_type = #tpu.core_type<tc>, window_params = [{transform_indices = @transform_0, window_bounds = array<i64: 32, 128>}, {pipeline_mode = #tpu.pipeline_mode<synchronous>, transform_indices = @transform_1, window_bounds = array<i64: 1, 128>}, {pipeline_mode = #tpu.pipeline_mode<synchronous>, transform_indices = @transform_2, window_bounds = array<i64: 1, 128>}, {transform_indices = @transform_3, window_bounds = array<i64: 32, 128>}, {pipeline_mode = #tpu.pipeline_mode<synchronous>, transform_indices = @transform_4, window_bounds = array<i64: 1, 128>}, {pipeline_mode = #tpu.pipeline_mode<synchronous>, transform_indices = @transform_5, window_bounds = array<i64: 1, 128>}, {transform_indices = @transform_6, window_bounds = array<i64: 32, 128>}]} {
    %c0 = arith.constant 0 : index
    %c0_0 = arith.constant 0 : index
    %0 = vector.load %arg1[%c0, %c0_0] : memref<32x128xbf16, #tpu.memory_space<vmem>>, vector<32x128xbf16>
    %1 = arith.extf %0 : vector<32x128xbf16> to vector<32x128xf32>
    %c0_1 = arith.constant 0 : index
    %c0_2 = arith.constant 0 : index
    %2 = vector.load %arg2[%c0_1, %c0_2] : memref<1x128xf32, #tpu.memory_space<vmem>>, vector<1x128xf32>
    %3 = vector.broadcast %2 : vector<1x128xf32> to vector<32x128xf32>
    %4 = arith.mulf %1, %3 : vector<32x128xf32>
    %c0_3 = arith.constant 0 : index
    %c0_4 = arith.constant 0 : index
    %5 = vector.load %arg3[%c0_3, %c0_4] : memref<1x128xf32, #tpu.memory_space<vmem>>, vector<1x128xf32>
    %6 = vector.broadcast %5 : vector<1x128xf32> to vector<32x128xf32>
    %7 = arith.addf %4, %6 : vector<32x128xf32>
    %cst = arith.constant 0.000000e+00 : f32
    %8 = vector.broadcast %cst : f32 to vector<32x128xf32>
    %9 = arith.maximumf %7, %8 : vector<32x128xf32>
    %c0_5 = arith.constant 0 : index
    %c0_6 = arith.constant 0 : index
    %10 = vector.load %arg4[%c0_5, %c0_6] : memref<32x128xbf16, #tpu.memory_space<vmem>>, vector<32x128xbf16>
    %11 = arith.extf %10 : vector<32x128xbf16> to vector<32x128xf32>
    %c0_7 = arith.constant 0 : index
    %c0_8 = arith.constant 0 : index
    %12 = vector.load %arg5[%c0_7, %c0_8] : memref<1x128xf32, #tpu.memory_space<vmem>>, vector<1x128xf32>
    %13 = vector.broadcast %12 : vector<1x128xf32> to vector<32x128xf32>
    %14 = arith.mulf %11, %13 : vector<32x128xf32>
    %c0_9 = arith.constant 0 : index
    %c0_10 = arith.constant 0 : index
    %15 = vector.load %arg6[%c0_9, %c0_10] : memref<1x128xf32, #tpu.memory_space<vmem>>, vector<1x128xf32>
    %16 = vector.broadcast %15 : vector<1x128xf32> to vector<32x128xf32>
    %17 = arith.addf %14, %16 : vector<32x128xf32>
    %18 = arith.addf %17, %9 : vector<32x128xf32>
    %cst_11 = arith.constant 0.000000e+00 : f32
    %19 = vector.broadcast %cst_11 : f32 to vector<32x128xf32>
    %20 = arith.maximumf %18, %19 : vector<32x128xf32>
    %21 = arith.truncf %20 : vector<32x128xf32> to vector<32x128xbf16>
    %c0_12 = arith.constant 0 : index
    %c0_13 = arith.constant 0 : index
    %22 = vector.load %arg7[%c0_12, %c0_13] : memref<32x128xbf16, #tpu.memory_space<vmem>>, vector<32x128xbf16>
    tpu.vector_store %arg7[%c0_12, %c0_13], %21 {strides = array<i32>} : memref<32x128xbf16, #tpu.memory_space<vmem>>, vector<32x128xbf16>,
    return
  }
  func.func @transform_0(%arg0: i32) -> (i32, i32) {
    %c0_i32 = arith.constant 0 : i32
    %c0_i32_0 = arith.constant 0 : i32
    return %arg0, %c0_i32 : i32, i32
  }
  func.func @transform_1(%arg0: i32) -> (i32, i32) {
    %c0_i32 = arith.constant 0 : i32
    %c0_i32_0 = arith.constant 0 : i32
    %c0_i32_1 = arith.constant 0 : i32
    return %c0_i32, %c0_i32_0 : i32, i32
  }
  func.func @transform_2(%arg0: i32) -> (i32, i32) {
    %c0_i32 = arith.constant 0 : i32
    %c0_i32_0 = arith.constant 0 : i32
    %c0_i32_1 = arith.constant 0 : i32
    return %c0_i32, %c0_i32_0 : i32, i32
  }
  func.func @transform_3(%arg0: i32) -> (i32, i32) {
    %c0_i32 = arith.constant 0 : i32
    %c0_i32_0 = arith.constant 0 : i32
    return %arg0, %c0_i32 : i32, i32
  }
  func.func @transform_4(%arg0: i32) -> (i32, i32) {
    %c0_i32 = arith.constant 0 : i32
    %c0_i32_0 = arith.constant 0 : i32
    %c0_i32_1 = arith.constant 0 : i32
    return %c0_i32, %c0_i32_0 : i32, i32
  }
  func.func @transform_5(%arg0: i32) -> (i32, i32) {
    %c0_i32 = arith.constant 0 : i32
    %c0_i32_0 = arith.constant 0 : i32
    %c0_i32_1 = arith.constant 0 : i32
    return %c0_i32, %c0_i32_0 : i32, i32
  }
  func.func @transform_6(%arg0: i32) -> (i32, i32) {
    %c0_i32 = arith.constant 0 : i32
    %c0_i32_0 = arith.constant 0 : i32
    return %arg0, %c0_i32 : i32, i32
  }
}

module attributes {stable_mosaic.version = 11 : i64} {
  func.func @_matmul_stats_kernel(%arg0: i32, %arg1: i32, %arg2: memref<8x1152xbf16, #tpu.memory_space<vmem>>, %arg3: memref<1152x128xbf16, #tpu.memory_space<vmem>>, %arg4: memref<1x128xf32, #tpu.memory_space<vmem>>, %arg5: memref<8x128xbf16, #tpu.memory_space<vmem>>, %arg6: memref<1x2x128xf32, #tpu.memory_space<vmem>>) attributes {dimension_semantics = [#tpu.dimension_semantics<parallel>, #tpu.dimension_semantics<parallel>], iteration_bounds = array<i64: 1, 1>, scalar_prefetch = 0 : i64, scratch_operands = 0 : i64, tpu.core_type = #tpu.core_type<tc>, window_params = [{transform_indices = @transform_0, window_bounds = array<i64: 8, 1152>}, {transform_indices = @transform_1, window_bounds = array<i64: 1152, 128>}, {transform_indices = @transform_2, window_bounds = array<i64: 1, 128>}, {transform_indices = @transform_3, window_bounds = array<i64: 8, 128>}, {transform_indices = @transform_4, window_bounds = array<i64: 1, 2, 128>}]} {
    %c0 = arith.constant 0 : index
    %c0_0 = arith.constant 0 : index
    %0 = vector.load %arg2[%c0, %c0_0] : memref<8x1152xbf16, #tpu.memory_space<vmem>>, vector<8x1152xbf16>
    %c0_1 = arith.constant 0 : index
    %c0_2 = arith.constant 0 : index
    %1 = vector.load %arg3[%c0_1, %c0_2] : memref<1152x128xbf16, #tpu.memory_space<vmem>>, vector<1152x128xbf16>
    %cst = arith.constant dense<0.000000e+00> : vector<8x128xf32>
    %2 = tpu.matmul %0, %1, %cst {dimension_numbers = #tpu.dot_dimension_numbers<[1], [0], [0], [1], [0, 0, 1, 1], [], []>} : vector<8x1152xbf16>, vector<1152x128xbf16>, vector<8x128xf32> -> vector<8x128xf32>
    %c0_3 = arith.constant 0 : index
    %c0_4 = arith.constant 0 : index
    %3 = vector.load %arg4[%c0_3, %c0_4] : memref<1x128xf32, #tpu.memory_space<vmem>>, vector<1x128xf32>
    %4 = vector.broadcast %3 : vector<1x128xf32> to vector<8x128xf32>
    %5 = arith.addf %2, %4 : vector<8x128xf32>
    %6 = arith.truncf %5 : vector<8x128xf32> to vector<8x128xbf16>
    %c0_5 = arith.constant 0 : index
    %c0_6 = arith.constant 0 : index
    %7 = vector.load %arg5[%c0_5, %c0_6] : memref<8x128xbf16, #tpu.memory_space<vmem>>, vector<8x128xbf16>
    tpu.vector_store %arg5[%c0_5, %c0_6], %6 {strides = array<i32>} : memref<8x128xbf16, #tpu.memory_space<vmem>>, vector<8x128xbf16>,
    %8 = tpu.iota {dimensions = array<i32: 0>} : vector<8x128xi32>
    %c8_i32 = arith.constant 8 : i32
    %9 = arith.muli %arg0, %c8_i32 : i32
    %10 = vector.broadcast %9 : i32 to vector<8x128xi32>
    %11 = arith.addi %8, %10 : vector<8x128xi32>
    %c8_i32_7 = arith.constant 8 : i32
    %12 = vector.broadcast %c8_i32_7 : i32 to vector<8x128xi32>
    %13 = arith.cmpi slt, %11, %12 : vector<8x128xi32>
    %cst_8 = arith.constant 0.000000e+00 : f32
    %14 = vector.broadcast %cst_8 : f32 to vector<8x128xf32>
    %15 = arith.select %13, %5, %14 : vector<8x128xi1>, vector<8x128xf32>
    %cst_9 = arith.constant dense<0.000000e+00> : vector<128xf32>
    %16 = vector.multi_reduction <add>, %15, %cst_9 [0] : vector<8x128xf32> to vector<128xf32>
    %17 = vector.shape_cast %16 : vector<128xf32> to vector<1x128xf32>
    %18 = arith.mulf %15, %15 : vector<8x128xf32>
    %cst_10 = arith.constant dense<0.000000e+00> : vector<128xf32>
    %19 = vector.multi_reduction <add>, %18, %cst_10 [0] : vector<8x128xf32> to vector<128xf32>
    %20 = vector.shape_cast %19 : vector<128xf32> to vector<1x128xf32>
    %21 = tpu.concatenate %17, %20 in 0 : vector<1x128xf32>, vector<1x128xf32> -> vector<2x128xf32>
    %22 = vector.shape_cast %21 : vector<2x128xf32> to vector<1x2x128xf32>
    %c0_11 = arith.constant 0 : index
    %c0_12 = arith.constant 0 : index
    %c0_13 = arith.constant 0 : index
    %23 = vector.load %arg6[%c0_11, %c0_12, %c0_13] : memref<1x2x128xf32, #tpu.memory_space<vmem>>, vector<1x2x128xf32>
    tpu.vector_store %arg6[%c0_11, %c0_12, %c0_13], %22 {strides = array<i32>} : memref<1x2x128xf32, #tpu.memory_space<vmem>>, vector<1x2x128xf32>,
    return
  }
  func.func @transform_0(%arg0: i32, %arg1: i32) -> (i32, i32) {
    %c0_i32 = arith.constant 0 : i32
    %c0_i32_0 = arith.constant 0 : i32
    return %arg0, %c0_i32 : i32, i32
  }
  func.func @transform_1(%arg0: i32, %arg1: i32) -> (i32, i32) {
    %c0_i32 = arith.constant 0 : i32
    %c0_i32_0 = arith.constant 0 : i32
    return %c0_i32, %arg1 : i32, i32
  }
  func.func @transform_2(%arg0: i32, %arg1: i32) -> (i32, i32) {
    %c0_i32 = arith.constant 0 : i32
    %c0_i32_0 = arith.constant 0 : i32
    return %c0_i32, %arg1 : i32, i32
  }
  func.func @transform_3(%arg0: i32, %arg1: i32) -> (i32, i32) {
    %c0_i32 = arith.constant 0 : i32
    return %arg0, %arg1 : i32, i32
  }
  func.func @transform_4(%arg0: i32, %arg1: i32) -> (i32, i32, i32) {
    %c0_i32 = arith.constant 0 : i32
    %c0_i32_0 = arith.constant 0 : i32
    return %arg0, %c0_i32, %arg1 : i32, i32, i32
  }
}

module attributes {stable_mosaic.version = 11 : i64} {
  func.func @_bn_relu_kernel(%arg0: i32, %arg1: memref<8x128xbf16, #tpu.memory_space<vmem>>, %arg2: memref<1x128xf32, #tpu.memory_space<vmem>>, %arg3: memref<1x128xf32, #tpu.memory_space<vmem>>, %arg4: memref<8x128xbf16, #tpu.memory_space<vmem>>) attributes {dimension_semantics = [#tpu.dimension_semantics<parallel>], iteration_bounds = array<i64: 1>, scalar_prefetch = 0 : i64, scratch_operands = 0 : i64, tpu.core_type = #tpu.core_type<tc>, window_params = [{transform_indices = @transform_0, window_bounds = array<i64: 8, 128>}, {pipeline_mode = #tpu.pipeline_mode<synchronous>, transform_indices = @transform_1, window_bounds = array<i64: 1, 128>}, {pipeline_mode = #tpu.pipeline_mode<synchronous>, transform_indices = @transform_2, window_bounds = array<i64: 1, 128>}, {transform_indices = @transform_3, window_bounds = array<i64: 8, 128>}]} {
    %c0 = arith.constant 0 : index
    %c0_0 = arith.constant 0 : index
    %0 = vector.load %arg1[%c0, %c0_0] : memref<8x128xbf16, #tpu.memory_space<vmem>>, vector<8x128xbf16>
    %1 = arith.extf %0 : vector<8x128xbf16> to vector<8x128xf32>
    %c0_1 = arith.constant 0 : index
    %c0_2 = arith.constant 0 : index
    %2 = vector.load %arg2[%c0_1, %c0_2] : memref<1x128xf32, #tpu.memory_space<vmem>>, vector<1x128xf32>
    %3 = vector.broadcast %2 : vector<1x128xf32> to vector<8x128xf32>
    %4 = arith.mulf %1, %3 : vector<8x128xf32>
    %c0_3 = arith.constant 0 : index
    %c0_4 = arith.constant 0 : index
    %5 = vector.load %arg3[%c0_3, %c0_4] : memref<1x128xf32, #tpu.memory_space<vmem>>, vector<1x128xf32>
    %6 = vector.broadcast %5 : vector<1x128xf32> to vector<8x128xf32>
    %7 = arith.addf %4, %6 : vector<8x128xf32>
    %cst = arith.constant 0.000000e+00 : f32
    %8 = vector.broadcast %cst : f32 to vector<8x128xf32>
    %9 = arith.maximumf %7, %8 : vector<8x128xf32>
    %10 = arith.truncf %9 : vector<8x128xf32> to vector<8x128xbf16>
    %c0_5 = arith.constant 0 : index
    %c0_6 = arith.constant 0 : index
    %11 = vector.load %arg4[%c0_5, %c0_6] : memref<8x128xbf16, #tpu.memory_space<vmem>>, vector<8x128xbf16>
    tpu.vector_store %arg4[%c0_5, %c0_6], %10 {strides = array<i32>} : memref<8x128xbf16, #tpu.memory_space<vmem>>, vector<8x128xbf16>,
    return
  }
  func.func @transform_0(%arg0: i32) -> (i32, i32) {
    %c0_i32 = arith.constant 0 : i32
    %c0_i32_0 = arith.constant 0 : i32
    return %arg0, %c0_i32 : i32, i32
  }
  func.func @transform_1(%arg0: i32) -> (i32, i32) {
    %c0_i32 = arith.constant 0 : i32
    %c0_i32_0 = arith.constant 0 : i32
    %c0_i32_1 = arith.constant 0 : i32
    return %c0_i32, %c0_i32_0 : i32, i32
  }
  func.func @transform_2(%arg0: i32) -> (i32, i32) {
    %c0_i32 = arith.constant 0 : i32
    %c0_i32_0 = arith.constant 0 : i32
    %c0_i32_1 = arith.constant 0 : i32
    return %c0_i32, %c0_i32_0 : i32, i32
  }
  func.func @transform_3(%arg0: i32) -> (i32, i32) {
    %c0_i32 = arith.constant 0 : i32
    %c0_i32_0 = arith.constant 0 : i32
    return %arg0, %c0_i32 : i32, i32
  }
}

module attributes {stable_mosaic.version = 11 : i64} {
  func.func @_matmul_stats_kernel(%arg0: i32, %arg1: i32, %arg2: memref<8x128xbf16, #tpu.memory_space<vmem>>, %arg3: memref<128x128xbf16, #tpu.memory_space<vmem>>, %arg4: memref<1x128xf32, #tpu.memory_space<vmem>>, %arg5: memref<8x128xbf16, #tpu.memory_space<vmem>>, %arg6: memref<1x2x128xf32, #tpu.memory_space<vmem>>) attributes {dimension_semantics = [#tpu.dimension_semantics<parallel>, #tpu.dimension_semantics<parallel>], iteration_bounds = array<i64: 1, 1>, scalar_prefetch = 0 : i64, scratch_operands = 0 : i64, tpu.core_type = #tpu.core_type<tc>, window_params = [{transform_indices = @transform_0, window_bounds = array<i64: 8, 128>}, {transform_indices = @transform_1, window_bounds = array<i64: 128, 128>}, {transform_indices = @transform_2, window_bounds = array<i64: 1, 128>}, {transform_indices = @transform_3, window_bounds = array<i64: 8, 128>}, {transform_indices = @transform_4, window_bounds = array<i64: 1, 2, 128>}]} {
    %c0 = arith.constant 0 : index
    %c0_0 = arith.constant 0 : index
    %0 = vector.load %arg2[%c0, %c0_0] : memref<8x128xbf16, #tpu.memory_space<vmem>>, vector<8x128xbf16>
    %c0_1 = arith.constant 0 : index
    %c0_2 = arith.constant 0 : index
    %1 = vector.load %arg3[%c0_1, %c0_2] : memref<128x128xbf16, #tpu.memory_space<vmem>>, vector<128x128xbf16>
    %cst = arith.constant dense<0.000000e+00> : vector<8x128xf32>
    %2 = tpu.matmul %0, %1, %cst {dimension_numbers = #tpu.dot_dimension_numbers<[1], [0], [0], [1], [0, 0, 1, 1], [], []>} : vector<8x128xbf16>, vector<128x128xbf16>, vector<8x128xf32> -> vector<8x128xf32>
    %c0_3 = arith.constant 0 : index
    %c0_4 = arith.constant 0 : index
    %3 = vector.load %arg4[%c0_3, %c0_4] : memref<1x128xf32, #tpu.memory_space<vmem>>, vector<1x128xf32>
    %4 = vector.broadcast %3 : vector<1x128xf32> to vector<8x128xf32>
    %5 = arith.addf %2, %4 : vector<8x128xf32>
    %6 = arith.truncf %5 : vector<8x128xf32> to vector<8x128xbf16>
    %c0_5 = arith.constant 0 : index
    %c0_6 = arith.constant 0 : index
    %7 = vector.load %arg5[%c0_5, %c0_6] : memref<8x128xbf16, #tpu.memory_space<vmem>>, vector<8x128xbf16>
    tpu.vector_store %arg5[%c0_5, %c0_6], %6 {strides = array<i32>} : memref<8x128xbf16, #tpu.memory_space<vmem>>, vector<8x128xbf16>,
    %8 = tpu.iota {dimensions = array<i32: 0>} : vector<8x128xi32>
    %c8_i32 = arith.constant 8 : i32
    %9 = arith.muli %arg0, %c8_i32 : i32
    %10 = vector.broadcast %9 : i32 to vector<8x128xi32>
    %11 = arith.addi %8, %10 : vector<8x128xi32>
    %c8_i32_7 = arith.constant 8 : i32
    %12 = vector.broadcast %c8_i32_7 : i32 to vector<8x128xi32>
    %13 = arith.cmpi slt, %11, %12 : vector<8x128xi32>
    %cst_8 = arith.constant 0.000000e+00 : f32
    %14 = vector.broadcast %cst_8 : f32 to vector<8x128xf32>
    %15 = arith.select %13, %5, %14 : vector<8x128xi1>, vector<8x128xf32>
    %cst_9 = arith.constant dense<0.000000e+00> : vector<128xf32>
    %16 = vector.multi_reduction <add>, %15, %cst_9 [0] : vector<8x128xf32> to vector<128xf32>
    %17 = vector.shape_cast %16 : vector<128xf32> to vector<1x128xf32>
    %18 = arith.mulf %15, %15 : vector<8x128xf32>
    %cst_10 = arith.constant dense<0.000000e+00> : vector<128xf32>
    %19 = vector.multi_reduction <add>, %18, %cst_10 [0] : vector<8x128xf32> to vector<128xf32>
    %20 = vector.shape_cast %19 : vector<128xf32> to vector<1x128xf32>
    %21 = tpu.concatenate %17, %20 in 0 : vector<1x128xf32>, vector<1x128xf32> -> vector<2x128xf32>
    %22 = vector.shape_cast %21 : vector<2x128xf32> to vector<1x2x128xf32>
    %c0_11 = arith.constant 0 : index
    %c0_12 = arith.constant 0 : index
    %c0_13 = arith.constant 0 : index
    %23 = vector.load %arg6[%c0_11, %c0_12, %c0_13] : memref<1x2x128xf32, #tpu.memory_space<vmem>>, vector<1x2x128xf32>
    tpu.vector_store %arg6[%c0_11, %c0_12, %c0_13], %22 {strides = array<i32>} : memref<1x2x128xf32, #tpu.memory_space<vmem>>, vector<1x2x128xf32>,
    return
  }
  func.func @transform_0(%arg0: i32, %arg1: i32) -> (i32, i32) {
    %c0_i32 = arith.constant 0 : i32
    %c0_i32_0 = arith.constant 0 : i32
    return %arg0, %c0_i32 : i32, i32
  }
  func.func @transform_1(%arg0: i32, %arg1: i32) -> (i32, i32) {
    %c0_i32 = arith.constant 0 : i32
    %c0_i32_0 = arith.constant 0 : i32
    return %c0_i32, %arg1 : i32, i32
  }
  func.func @transform_2(%arg0: i32, %arg1: i32) -> (i32, i32) {
    %c0_i32 = arith.constant 0 : i32
    %c0_i32_0 = arith.constant 0 : i32
    return %c0_i32, %arg1 : i32, i32
  }
  func.func @transform_3(%arg0: i32, %arg1: i32) -> (i32, i32) {
    %c0_i32 = arith.constant 0 : i32
    return %arg0, %arg1 : i32, i32
  }
  func.func @transform_4(%arg0: i32, %arg1: i32) -> (i32, i32, i32) {
    %c0_i32 = arith.constant 0 : i32
    %c0_i32_0 = arith.constant 0 : i32
    return %arg0, %c0_i32, %arg1 : i32, i32, i32
  }
}

module attributes {stable_mosaic.version = 11 : i64} {
  func.func @_residual_tail_kernel(%arg0: i32, %arg1: memref<8x128xbf16, #tpu.memory_space<vmem>>, %arg2: memref<1x128xf32, #tpu.memory_space<vmem>>, %arg3: memref<1x128xf32, #tpu.memory_space<vmem>>, %arg4: memref<8x128xbf16, #tpu.memory_space<vmem>>, %arg5: memref<1x128xf32, #tpu.memory_space<vmem>>, %arg6: memref<1x128xf32, #tpu.memory_space<vmem>>, %arg7: memref<8x128xbf16, #tpu.memory_space<vmem>>) attributes {dimension_semantics = [#tpu.dimension_semantics<parallel>], iteration_bounds = array<i64: 1>, scalar_prefetch = 0 : i64, scratch_operands = 0 : i64, tpu.core_type = #tpu.core_type<tc>, window_params = [{transform_indices = @transform_0, window_bounds = array<i64: 8, 128>}, {pipeline_mode = #tpu.pipeline_mode<synchronous>, transform_indices = @transform_1, window_bounds = array<i64: 1, 128>}, {pipeline_mode = #tpu.pipeline_mode<synchronous>, transform_indices = @transform_2, window_bounds = array<i64: 1, 128>}, {transform_indices = @transform_3, window_bounds = array<i64: 8, 128>}, {pipeline_mode = #tpu.pipeline_mode<synchronous>, transform_indices = @transform_4, window_bounds = array<i64: 1, 128>}, {pipeline_mode = #tpu.pipeline_mode<synchronous>, transform_indices = @transform_5, window_bounds = array<i64: 1, 128>}, {transform_indices = @transform_6, window_bounds = array<i64: 8, 128>}]} {
    %c0 = arith.constant 0 : index
    %c0_0 = arith.constant 0 : index
    %0 = vector.load %arg1[%c0, %c0_0] : memref<8x128xbf16, #tpu.memory_space<vmem>>, vector<8x128xbf16>
    %1 = arith.extf %0 : vector<8x128xbf16> to vector<8x128xf32>
    %c0_1 = arith.constant 0 : index
    %c0_2 = arith.constant 0 : index
    %2 = vector.load %arg2[%c0_1, %c0_2] : memref<1x128xf32, #tpu.memory_space<vmem>>, vector<1x128xf32>
    %3 = vector.broadcast %2 : vector<1x128xf32> to vector<8x128xf32>
    %4 = arith.mulf %1, %3 : vector<8x128xf32>
    %c0_3 = arith.constant 0 : index
    %c0_4 = arith.constant 0 : index
    %5 = vector.load %arg3[%c0_3, %c0_4] : memref<1x128xf32, #tpu.memory_space<vmem>>, vector<1x128xf32>
    %6 = vector.broadcast %5 : vector<1x128xf32> to vector<8x128xf32>
    %7 = arith.addf %4, %6 : vector<8x128xf32>
    %cst = arith.constant 0.000000e+00 : f32
    %8 = vector.broadcast %cst : f32 to vector<8x128xf32>
    %9 = arith.maximumf %7, %8 : vector<8x128xf32>
    %c0_5 = arith.constant 0 : index
    %c0_6 = arith.constant 0 : index
    %10 = vector.load %arg4[%c0_5, %c0_6] : memref<8x128xbf16, #tpu.memory_space<vmem>>, vector<8x128xbf16>
    %11 = arith.extf %10 : vector<8x128xbf16> to vector<8x128xf32>
    %c0_7 = arith.constant 0 : index
    %c0_8 = arith.constant 0 : index
    %12 = vector.load %arg5[%c0_7, %c0_8] : memref<1x128xf32, #tpu.memory_space<vmem>>, vector<1x128xf32>
    %13 = vector.broadcast %12 : vector<1x128xf32> to vector<8x128xf32>
    %14 = arith.mulf %11, %13 : vector<8x128xf32>
    %c0_9 = arith.constant 0 : index
    %c0_10 = arith.constant 0 : index
    %15 = vector.load %arg6[%c0_9, %c0_10] : memref<1x128xf32, #tpu.memory_space<vmem>>, vector<1x128xf32>
    %16 = vector.broadcast %15 : vector<1x128xf32> to vector<8x128xf32>
    %17 = arith.addf %14, %16 : vector<8x128xf32>
    %18 = arith.addf %17, %9 : vector<8x128xf32>
    %cst_11 = arith.constant 0.000000e+00 : f32
    %19 = vector.broadcast %cst_11 : f32 to vector<8x128xf32>
    %20 = arith.maximumf %18, %19 : vector<8x128xf32>
    %21 = arith.truncf %20 : vector<8x128xf32> to vector<8x128xbf16>
    %c0_12 = arith.constant 0 : index
    %c0_13 = arith.constant 0 : index
    %22 = vector.load %arg7[%c0_12, %c0_13] : memref<8x128xbf16, #tpu.memory_space<vmem>>, vector<8x128xbf16>
    tpu.vector_store %arg7[%c0_12, %c0_13], %21 {strides = array<i32>} : memref<8x128xbf16, #tpu.memory_space<vmem>>, vector<8x128xbf16>,
    return
  }
  func.func @transform_0(%arg0: i32) -> (i32, i32) {
    %c0_i32 = arith.constant 0 : i32
    %c0_i32_0 = arith.constant 0 : i32
    return %arg0, %c0_i32 : i32, i32
  }
  func.func @transform_1(%arg0: i32) -> (i32, i32) {
    %c0_i32 = arith.constant 0 : i32
    %c0_i32_0 = arith.constant 0 : i32
    %c0_i32_1 = arith.constant 0 : i32
    return %c0_i32, %c0_i32_0 : i32, i32
  }
  func.func @transform_2(%arg0: i32) -> (i32, i32) {
    %c0_i32 = arith.constant 0 : i32
    %c0_i32_0 = arith.constant 0 : i32
    %c0_i32_1 = arith.constant 0 : i32
    return %c0_i32, %c0_i32_0 : i32, i32
  }
  func.func @transform_3(%arg0: i32) -> (i32, i32) {
    %c0_i32 = arith.constant 0 : i32
    %c0_i32_0 = arith.constant 0 : i32
    return %arg0, %c0_i32 : i32, i32
  }
  func.func @transform_4(%arg0: i32) -> (i32, i32) {
    %c0_i32 = arith.constant 0 : i32
    %c0_i32_0 = arith.constant 0 : i32
    %c0_i32_1 = arith.constant 0 : i32
    return %c0_i32, %c0_i32_0 : i32, i32
  }
  func.func @transform_5(%arg0: i32) -> (i32, i32) {
    %c0_i32 = arith.constant 0 : i32
    %c0_i32_0 = arith.constant 0 : i32
    %c0_i32_1 = arith.constant 0 : i32
    return %c0_i32, %c0_i32_0 : i32, i32
  }
  func.func @transform_6(%arg0: i32) -> (i32, i32) {
    %c0_i32 = arith.constant 0 : i32
    %c0_i32_0 = arith.constant 0 : i32
    return %arg0, %c0_i32 : i32, i32
  }
}

module attributes {stable_mosaic.version = 11 : i64} {
  func.func @_matmul_stats_kernel(%arg0: i32, %arg1: i32, %arg2: memref<8x128xbf16, #tpu.memory_space<vmem>>, %arg3: memref<128x128xbf16, #tpu.memory_space<vmem>>, %arg4: memref<1x128xf32, #tpu.memory_space<vmem>>, %arg5: memref<8x128xf32, #tpu.memory_space<vmem>>, %arg6: memref<1x2x128xf32, #tpu.memory_space<vmem>>) attributes {dimension_semantics = [#tpu.dimension_semantics<parallel>, #tpu.dimension_semantics<parallel>], iteration_bounds = array<i64: 1, 1>, scalar_prefetch = 0 : i64, scratch_operands = 0 : i64, tpu.core_type = #tpu.core_type<tc>, window_params = [{transform_indices = @transform_0, window_bounds = array<i64: 8, 128>}, {transform_indices = @transform_1, window_bounds = array<i64: 128, 128>}, {transform_indices = @transform_2, window_bounds = array<i64: 1, 128>}, {transform_indices = @transform_3, window_bounds = array<i64: 8, 128>}, {transform_indices = @transform_4, window_bounds = array<i64: 1, 2, 128>}]} {
    %c0 = arith.constant 0 : index
    %c0_0 = arith.constant 0 : index
    %0 = vector.load %arg2[%c0, %c0_0] : memref<8x128xbf16, #tpu.memory_space<vmem>>, vector<8x128xbf16>
    %c0_1 = arith.constant 0 : index
    %c0_2 = arith.constant 0 : index
    %1 = vector.load %arg3[%c0_1, %c0_2] : memref<128x128xbf16, #tpu.memory_space<vmem>>, vector<128x128xbf16>
    %cst = arith.constant dense<0.000000e+00> : vector<8x128xf32>
    %2 = tpu.matmul %0, %1, %cst {dimension_numbers = #tpu.dot_dimension_numbers<[1], [0], [0], [1], [0, 0, 1, 1], [], []>} : vector<8x128xbf16>, vector<128x128xbf16>, vector<8x128xf32> -> vector<8x128xf32>
    %c0_3 = arith.constant 0 : index
    %c0_4 = arith.constant 0 : index
    %3 = vector.load %arg4[%c0_3, %c0_4] : memref<1x128xf32, #tpu.memory_space<vmem>>, vector<1x128xf32>
    %4 = vector.broadcast %3 : vector<1x128xf32> to vector<8x128xf32>
    %5 = arith.addf %2, %4 : vector<8x128xf32>
    %c0_5 = arith.constant 0 : index
    %c0_6 = arith.constant 0 : index
    %6 = vector.load %arg5[%c0_5, %c0_6] : memref<8x128xf32, #tpu.memory_space<vmem>>, vector<8x128xf32>
    tpu.vector_store %arg5[%c0_5, %c0_6], %5 {strides = array<i32>} : memref<8x128xf32, #tpu.memory_space<vmem>>, vector<8x128xf32>,
    %7 = tpu.iota {dimensions = array<i32: 0>} : vector<8x128xi32>
    %c8_i32 = arith.constant 8 : i32
    %8 = arith.muli %arg0, %c8_i32 : i32
    %9 = vector.broadcast %8 : i32 to vector<8x128xi32>
    %10 = arith.addi %7, %9 : vector<8x128xi32>
    %c8_i32_7 = arith.constant 8 : i32
    %11 = vector.broadcast %c8_i32_7 : i32 to vector<8x128xi32>
    %12 = arith.cmpi slt, %10, %11 : vector<8x128xi32>
    %cst_8 = arith.constant 0.000000e+00 : f32
    %13 = vector.broadcast %cst_8 : f32 to vector<8x128xf32>
    %14 = arith.select %12, %5, %13 : vector<8x128xi1>, vector<8x128xf32>
    %cst_9 = arith.constant dense<0.000000e+00> : vector<128xf32>
    %15 = vector.multi_reduction <add>, %14, %cst_9 [0] : vector<8x128xf32> to vector<128xf32>
    %16 = vector.shape_cast %15 : vector<128xf32> to vector<1x128xf32>
    %17 = arith.mulf %14, %14 : vector<8x128xf32>
    %cst_10 = arith.constant dense<0.000000e+00> : vector<128xf32>
    %18 = vector.multi_reduction <add>, %17, %cst_10 [0] : vector<8x128xf32> to vector<128xf32>
    %19 = vector.shape_cast %18 : vector<128xf32> to vector<1x128xf32>
    %20 = tpu.concatenate %16, %19 in 0 : vector<1x128xf32>, vector<1x128xf32> -> vector<2x128xf32>
    %21 = vector.shape_cast %20 : vector<2x128xf32> to vector<1x2x128xf32>
    %c0_11 = arith.constant 0 : index
    %c0_12 = arith.constant 0 : index
    %c0_13 = arith.constant 0 : index
    %22 = vector.load %arg6[%c0_11, %c0_12, %c0_13] : memref<1x2x128xf32, #tpu.memory_space<vmem>>, vector<1x2x128xf32>
    tpu.vector_store %arg6[%c0_11, %c0_12, %c0_13], %21 {strides = array<i32>} : memref<1x2x128xf32, #tpu.memory_space<vmem>>, vector<1x2x128xf32>,
    return
  }
  func.func @transform_0(%arg0: i32, %arg1: i32) -> (i32, i32) {
    %c0_i32 = arith.constant 0 : i32
    %c0_i32_0 = arith.constant 0 : i32
    return %arg0, %c0_i32 : i32, i32
  }
  func.func @transform_1(%arg0: i32, %arg1: i32) -> (i32, i32) {
    %c0_i32 = arith.constant 0 : i32
    %c0_i32_0 = arith.constant 0 : i32
    return %c0_i32, %arg1 : i32, i32
  }
  func.func @transform_2(%arg0: i32, %arg1: i32) -> (i32, i32) {
    %c0_i32 = arith.constant 0 : i32
    %c0_i32_0 = arith.constant 0 : i32
    return %c0_i32, %arg1 : i32, i32
  }
  func.func @transform_3(%arg0: i32, %arg1: i32) -> (i32, i32) {
    %c0_i32 = arith.constant 0 : i32
    return %arg0, %arg1 : i32, i32
  }
  func.func @transform_4(%arg0: i32, %arg1: i32) -> (i32, i32, i32) {
    %c0_i32 = arith.constant 0 : i32
    %c0_i32_0 = arith.constant 0 : i32
    return %arg0, %c0_i32, %arg1 : i32, i32, i32
  }
}

</mosaic_0001>

<llo_original>
// kernel: _lambda_.30
$region0: #{_lambda_.30}
  #allocation0 [shape = 'u32[]', space=smem, size = 0x4, offset = 0x4, fixed_abs, tag = 'smem constant byte address 0x4 - core index']
  #allocation1 [shape = 'u32[144,128]{1,0:T(1,128)}', space=vmem, size = 0x12000, scoped, tag = 'internal scratch']
  %s0 = inlined_call_operand.vmem [shape: bf16[128,64], index: 0, kind: input, shape index: {}]
  %s1 = inlined_call_operand.vmem [shape: f32[1,64], index: 1, kind: input, shape index: {}]
  %s2 = inlined_call_operand.vmem [shape: f32[1,64], index: 2, kind: input, shape index: {}]
  %s3 = inlined_call_operand.vmem [shape: bf16[128,64], index: 3, kind: output, shape index: {}]
  %s4 = sld [smem:[#allocation0]]
  $region22: #{_lambda_.30} parent=0
    _
  %s6 = ssub.s32 1, %s4
  %s7 = scalar_select 0, %s6, %s4
  // Predicated region
  $region2: #{_lambda_.30} parent=0 // pred_check
    _
  $region3: #{_lambda_.30} parent=0 // pred_check_branch
    %9 = sbr.rel (0) target = $region5
  $region4: #{_lambda_.30} parent=0 // pred_region
    _
  $region5: #{_lambda_.30} parent=0 // pred_fallthru
    _
  // Predicated region
  $region6: #{_lambda_.30} parent=0 // pred_check
    _
  $region7: #{_lambda_.30} parent=0 // pred_check_branch
    %11 = sbr.rel (0) target = $region9
  $region8: #{_lambda_.30} parent=0 // pred_region
    _
  $region9: #{_lambda_.30} parent=0 // pred_fallthru
    _
  // Predicated region
  $region10: #{_lambda_.30} parent=0 // pred_check
    _
  $region11: #{_lambda_.30} parent=0 // pred_check_branch
    %13 = sbr.rel (0) target = $region13
  $region12: #{_lambda_.30} parent=0 // pred_region
    _
  $region13: #{_lambda_.30} parent=0 // pred_fallthru
    _
  %v14 = vld [vmem:[%s0] sm:$0xf]
  %v15 = vld [vmem:[%s0 + $0x4] sm:$0xf]
  %v16 = vld [vmem:[%s0 + $0x8] sm:$0xf]
  %v17 = vld [vmem:[%s0 + $0xc] sm:$0xf]
  %v18 = vld [vmem:[%s0 + $0x10] sm:$0xf]
  %v19 = vld [vmem:[%s0 + $0x14] sm:$0xf]
  %v20 = vld [vmem:[%s0 + $0x18] sm:$0xf]
  %v21 = vld [vmem:[%s0 + $0x1c] sm:$0xf]
  %v22 = vld [vmem:[%s0 + $0x20] sm:$0xf]
  %v23 = vld [vmem:[%s0 + $0x24] sm:$0xf]
  %v24 = vld [vmem:[%s0 + $0x28] sm:$0xf]
  %v25 = vld [vmem:[%s0 + $0x2c] sm:$0xf]
  %v26 = vld [vmem:[%s0 + $0x30] sm:$0xf]
  %v27 = vld [vmem:[%s0 + $0x34] sm:$0xf]
  %v28 = vld [vmem:[%s0 + $0x38] sm:$0xf]
  %v29 = vld [vmem:[%s0 + $0x3c] sm:$0xf]
  %v30 = vunpack.c.l.bf16 %v14
  %v31 = vunpack.c.l.bf16 %v15
  %v32 = vunpack.c.l.bf16 %v16
  %v33 = vunpack.c.l.bf16 %v17
  %v34 = vunpack.c.l.bf16 %v18
  %v35 = vunpack.c.l.bf16 %v19
  %v36 = vunpack.c.l.bf16 %v20
  %v37 = vunpack.c.l.bf16 %v21
  %v38 = vunpack.c.l.bf16 %v22
  %v39 = vunpack.c.l.bf16 %v23
  %v40 = vunpack.c.l.bf16 %v24
  %v41 = vunpack.c.l.bf16 %v25
  %v42 = vunpack.c.l.bf16 %v26
  %v43 = vunpack.c.l.bf16 %v27
  %v44 = vunpack.c.l.bf16 %v28
  %v45 = vunpack.c.l.bf16 %v29
  %v46 = vld [vmem:[%s1] sm:$0x1]
  %v48 = vlaneseq
  %v49 = vshrl.u32 %v48, 7
  %v50 = vsub.s32 0, %v49
  %v51 = vrot.slane %v46, %v50
  %v53 = vmul.f32 %v30, %v51
  %v54 = vmul.f32 %v31, %v51
  %v55 = vmul.f32 %v32, %v51
  %v56 = vmul.f32 %v33, %v51
  %v57 = vmul.f32 %v34, %v51
  %v58 = vmul.f32 %v35, %v51
  %v59 = vmul.f32 %v36, %v51
  %v60 = vmul.f32 %v37, %v51
  %v61 = vmul.f32 %v38, %v51
  %v62 = vmul.f32 %v39, %v51
  %v63 = vmul.f32 %v40, %v51
  %v64 = vmul.f32 %v41, %v51
  %v65 = vmul.f32 %v42, %v51
  %v66 = vmul.f32 %v43, %v51
  %v67 = vmul.f32 %v44, %v51
  %v68 = vmul.f32 %v45, %v51
  %v69 = vld [vmem:[%s2] sm:$0x1]
  %v71 = vlaneseq
  %v72 = vshrl.u32 %v71, 7
  %v73 = vsub.s32 0, %v72
  %v74 = vrot.slane %v69, %v73
  %v76 = vadd.f32 %v53, %v74
  %v77 = vadd.f32 %v54, %v74
  %v78 = vadd.f32 %v55, %v74
  %v79 = vadd.f32 %v56, %v74
  %v80 = vadd.f32 %v57, %v74
  %v81 = vadd.f32 %v58, %v74
  %v82 = vadd.f32 %v59, %v74
  %v83 = vadd.f32 %v60, %v74
  %v84 = vadd.f32 %v61, %v74
  %v85 = vadd.f32 %v62, %v74
  %v86 = vadd.f32 %v63, %v74
  %v87 = vadd.f32 %v64, %v74
  %v88 = vadd.f32 %v65, %v74
  %v89 = vadd.f32 %v66, %v74
  %v90 = vadd.f32 %v67, %v74
  %v91 = vadd.f32 %v68, %v74
  %v92 = vmax.f32 %v76, 0.0
  %v93 = vmax.f32 %v77, 0.0
  %v94 = vmax.f32 %v78, 0.0
  %v95 = vmax.f32 %v79, 0.0
  %v96 = vmax.f32 %v80, 0.0
  %v97 = vmax.f32 %v81, 0.0
  %v98 = vmax.f32 %v82, 0.0
  %v99 = vmax.f32 %v83, 0.0
  %v100 = vmax.f32 %v84, 0.0
  %v101 = vmax.f32 %v85, 0.0
  %v102 = vmax.f32 %v86, 0.0
  %v103 = vmax.f32 %v87, 0.0
  %v104 = vmax.f32 %v88, 0.0
  %v105 = vmax.f32 %v89, 0.0
  %v106 = vmax.f32 %v90, 0.0
  %v107 = vmax.f32 %v91, 0.0
  %v108 = vpack.c.bf16 %v93, %v92
  %v109 = vpack.c.bf16 %v95, %v94
  %v110 = vpack.c.bf16 %v97, %v96
  %v111 = vpack.c.bf16 %v99, %v98
  %v112 = vpack.c.bf16 %v101, %v100
  %v113 = vpack.c.bf16 %v103, %v102
  %v114 = vpack.c.bf16 %v105, %v104
  %v115 = vpack.c.bf16 %v107, %v106
  %v124 = vunpack.c.l.b16 %v108
  %v125 = vunpack.c.h.b16 %v108
  %v126 = vunpack.c.l.b16 %v109
  %v127 = vunpack.c.h.b16 %v109
  %v128 = vunpack.c.l.b16 %v110
  %v129 = vunpack.c.h.b16 %v110
  %v130 = vunpack.c.l.b16 %v111
  %v131 = vunpack.c.h.b16 %v111
  %v132 = vunpack.c.l.b16 %v112
  %v133 = vunpack.c.h.b16 %v112
  %v134 = vunpack.c.l.b16 %v113
  %v135 = vunpack.c.h.b16 %v113
  %v136 = vunpack.c.l.b16 %v114
  %v137 = vunpack.c.h.b16 %v114
  %v138 = vunpack.c.l.b16 %v115
  %v139 = vunpack.c.h.b16 %v115
  %v140 = vpack.c.b16 %v124, %v124
  %v141 = vpack.c.b16 %v125, %v125
  %v142 = vpack.c.b16 %v126, %v126
  %v143 = vpack.c.b16 %v127, %v127
  %v144 = vpack.c.b16 %v128, %v128
  %v145 = vpack.c.b16 %v129, %v129
  %v146 = vpack.c.b16 %v130, %v130
  %v147 = vpack.c.b16 %v131, %v131
  %v148 = vpack.c.b16 %v132, %v132
  %v149 = vpack.c.b16 %v133, %v133
  %v150 = vpack.c.b16 %v134, %v134
  %v151 = vpack.c.b16 %v135, %v135
  %v152 = vpack.c.b16 %v136, %v136
  %v153 = vpack.c.b16 %v137, %v137
  %v154 = vpack.c.b16 %v138, %v138
  %v155 = vpack.c.b16 %v139, %v139
  %vm172 = vcmask 519168
  %173 = vst.msk [vmem:[%s3] sm:$0xf] %vm172, %v140
  %174 = vst.msk [vmem:[%s3 + $0x4] sm:$0xf] %vm172, %v141
  %175 = vst.msk [vmem:[%s3 + $0x8] sm:$0xf] %vm172, %v142
  %176 = vst.msk [vmem:[%s3 + $0xc] sm:$0xf] %vm172, %v143
  %177 = vst.msk [vmem:[%s3 + $0x10] sm:$0xf] %vm172, %v144
  %178 = vst.msk [vmem:[%s3 + $0x14] sm:$0xf] %vm172, %v145
  %179 = vst.msk [vmem:[%s3 + $0x18] sm:$0xf] %vm172, %v146
  %180 = vst.msk [vmem:[%s3 + $0x1c] sm:$0xf] %vm172, %v147
  %181 = vst.msk [vmem:[%s3 + $0x20] sm:$0xf] %vm172, %v148
  %182 = vst.msk [vmem:[%s3 + $0x24] sm:$0xf] %vm172, %v149
  %183 = vst.msk [vmem:[%s3 + $0x28] sm:$0xf] %vm172, %v150
  %184 = vst.msk [vmem:[%s3 + $0x2c] sm:$0xf] %vm172, %v151
  %185 = vst.msk [vmem:[%s3 + $0x30] sm:$0xf] %vm172, %v152
  %186 = vst.msk [vmem:[%s3 + $0x34] sm:$0xf] %vm172, %v153
  %187 = vst.msk [vmem:[%s3 + $0x38] sm:$0xf] %vm172, %v154
  %188 = vst.msk [vmem:[%s3 + $0x3c] sm:$0xf] %vm172, %v155
  // Predicated region
  $region14: #{_lambda_.30} parent=0 // pred_check
    _
  $region15: #{_lambda_.30} parent=0 // pred_check_branch
    %190 = sbr.rel (0) target = $region17
  $region16: #{_lambda_.30} parent=0 // pred_region
    _
  $region17: #{_lambda_.30} parent=0 // pred_fallthru
    _
  // Predicated region
  $region18: #{_lambda_.30} parent=0 // pred_check
    _
  $region19: #{_lambda_.30} parent=0 // pred_check_branch
    %192 = sbr.rel (0) target = $region21
  $region20: #{_lambda_.30} parent=0 // pred_region
    _
  $region21: #{_lambda_.30} parent=0 // pred_fallthru
    _

// kernel: _lambda_.29
$region0: #{_lambda_.29}
  #allocation0 [shape = 'u32[]', space=smem, size = 0x4, offset = 0x4, fixed_abs, tag = 'smem constant byte address 0x4 - core index']
  #allocation1 [shape = 'u32[144,128]{1,0:T(1,128)}', space=vmem, size = 0x12000, scoped, tag = 'internal scratch']
  %s0 = inlined_call_operand.vmem [shape: bf16[128,147], index: 0, kind: input, shape index: {}]
  %s1 = inlined_call_operand.vmem [shape: bf16[147,64], index: 1, kind: input, shape index: {}]
  %s2 = inlined_call_operand.vmem [shape: f32[1,64], index: 2, kind: input, shape index: {}]
  %s3 = inlined_call_operand.vmem [shape: bf16[128,64], index: 3, kind: output, shape index: {0}]
  %s4 = inlined_call_operand.vmem [shape: f32[1,2,64], index: 4, kind: output, shape index: {1}]
  %5 = xla_tuple %s3, %s4
  %s6 = sld [smem:[#allocation0]]
  $region30: #{_lambda_.29} parent=0
    _
  %s8 = ssub.s32 1, %s6
  %s9 = scalar_select 0, %s8, %s6
  // Predicated region
  $region2: #{_lambda_.29} parent=0 // pred_check
    _
  $region3: #{_lambda_.29} parent=0 // pred_check_branch
    %11 = sbr.rel (0) target = $region5
  $region4: #{_lambda_.29} parent=0 // pred_region
    _
  $region5: #{_lambda_.29} parent=0 // pred_fallthru
    _
  // Predicated region
  $region6: #{_lambda_.29} parent=0 // pred_check
    _
  $region7: #{_lambda_.29} parent=0 // pred_check_branch
    %13 = sbr.rel (0) target = $region9
  $region8: #{_lambda_.29} parent=0 // pred_region
    _
  $region9: #{_lambda_.29} parent=0 // pred_fallthru
    _
  // Predicated region
  $region10: #{_lambda_.29} parent=0 // pred_check
    _
  $region11: #{_lambda_.29} parent=0 // pred_check_branch
    %15 = sbr.rel (0) target = $region13
  $region12: #{_lambda_.29} parent=0 // pred_region
    _
  $region13: #{_lambda_.29} parent=0 // pred_fallthru
    _
  %v17 = vld [vmem:[%s0] sm:$0xff]
  %v18 = vld [vmem:[%s0 + $0x8] sm:$0xff]
  %v19 = vld [vmem:[%s0 + $0x10] sm:$0xff]
  %v20 = vld [vmem:[%s0 + $0x18] sm:$0xff]
  %v21 = vld [vmem:[%s0 + $0x20] sm:$0xff]
  %v22 = vld [vmem:[%s0 + $0x28] sm:$0xff]
  %v23 = vld [vmem:[%s0 + $0x30] sm:$0xff]
  %v24 = vld [vmem:[%s0 + $0x38] sm:$0xff]
  %v25 = vld [vmem:[%s0 + $0x40] sm:$0xff]
  %v26 = vld [vmem:[%s0 + $0x48] sm:$0xff]
  %v27 = vld [vmem:[%s0 + $0x50] sm:$0xff]
  %v28 = vld [vmem:[%s0 + $0x58] sm:$0xff]
  %v29 = vld [vmem:[%s0 + $0x60] sm:$0xff]
  %v30 = vld [vmem:[%s0 + $0x68] sm:$0xff]
  %v31 = vld [vmem:[%s0 + $0x70] sm:$0xff]
  %v32 = vld [vmem:[%s0 + $0x78] sm:$0xff]
  %v33 = vld [vmem:[%s1] sm:$0xf]
  %v34 = vld [vmem:[%s1 + $0x4] sm:$0xf]
  %v35 = vld [vmem:[%s1 + $0x8] sm:$0xf]
  %v36 = vld [vmem:[%s1 + $0xc] sm:$0xf]
  %v37 = vld [vmem:[%s1 + $0x10] sm:$0xf]
  %v38 = vld [vmem:[%s1 + $0x14] sm:$0xf]
  %v39 = vld [vmem:[%s1 + $0x18] sm:$0xf]
  %v40 = vld [vmem:[%s1 + $0x1c] sm:$0xf]
  %v41 = vld [vmem:[%s1 + $0x20] sm:$0xf]
  %v42 = vld [vmem:[%s1 + $0x24] sm:$0xf]
  %v43 = vld [vmem:[%s1 + $0x28] sm:$0xf]
  %v44 = vld [vmem:[%s1 + $0x2c] sm:$0xf]
  %v45 = vld [vmem:[%s1 + $0x30] sm:$0xf]
  %v46 = vld [vmem:[%s1 + $0x34] sm:$0xf]
  %v47 = vld [vmem:[%s1 + $0x38] sm:$0xf]
  %v48 = vld [vmem:[%s1 + $0x3c] sm:$0xf]
  %v49 = vld [vmem:[%s1 + $0x40] sm:$0xf]
  %v50 = vld [vmem:[%s1 + $0x44] sm:$0xf]
  %v51 = vld [vmem:[%s1 + $0x48] sm:$0x3]
  %v52 = vld [vmem:[%s2] sm:$0x1]
  %v54 = vlaneseq
  %v55 = vshrl.u32 %v54, 7
  %v56 = vsub.s32 0, %v55
  %v57 = vrot.slane %v52, %v56
  %v75 = vunpack.c.l.b16 %v17
  %v76 = vunpack.c.h.b16 %v17
  %v77 = vunpack.c.l.b16 %v18
  %v78 = vunpack.c.h.b16 %v18
  %v79 = vunpack.c.l.b16 %v19
  %v80 = vunpack.c.h.b16 %v19
  %v81 = vunpack.c.l.b16 %v20
  %v82 = vunpack.c.h.b16 %v20
  %v83 = vunpack.c.l.b16 %v21
  %v84 = vunpack.c.h.b16 %v21
  %v85 = vunpack.c.l.b16 %v22
  %v86 = vunpack.c.h.b16 %v22
  %v87 = vunpack.c.l.b16 %v23
  %v88 = vunpack.c.h.b16 %v23
  %v89 = vunpack.c.l.b16 %v24
  %v90 = vunpack.c.h.b16 %v24
  %v91 = vunpack.c.l.b16 %v25
  %v92 = vunpack.c.h.b16 %v25
  %v93 = vunpack.c.l.b16 %v26
  %v94 = vunpack.c.h.b16 %v26
  %v95 = vunpack.c.l.b16 %v27
  %v96 = vunpack.c.h.b16 %v27
  %v97 = vunpack.c.l.b16 %v28
  %v98 = vunpack.c.h.b16 %v28
  %v99 = vunpack.c.l.b16 %v29
  %v100 = vunpack.c.h.b16 %v29
  %v101 = vunpack.c.l.b16 %v30
  %v102 = vunpack.c.h.b16 %v30
  %v103 = vunpack.c.l.b16 %v31
  %v104 = vunpack.c.h.b16 %v31
  %v105 = vunpack.c.l.b16 %v32
  %v106 = vunpack.c.h.b16 %v32
  %v107 = vpack.c.b16 %v77, %v75
  %v108 = vpack.c.b16 %v78, %v76
  %v109 = vpack.c.b16 %v81, %v79
  %v110 = vpack.c.b16 %v82, %v80
  %v111 = vpack.c.b16 %v85, %v83
  %v112 = vpack.c.b16 %v86, %v84
  %v113 = vpack.c.b16 %v89, %v87
  %v114 = vpack.c.b16 %v90, %v88
  %v115 = vpack.c.b16 %v93, %v91
  %v116 = vpack.c.b16 %v94, %v92
  %v117 = vpack.c.b16 %v97, %v95
  %v118 = vpack.c.b16 %v98, %v96
  %v119 = vpack.c.b16 %v101, %v99
  %v120 = vpack.c.b16 %v102, %v100
  %v121 = vpack.c.b16 %v105, %v103
  %v122 = vpack.c.b16 %v106, %v104
  %v150 = vunpack.c.l.b16 %v33
  %v151 = vunpack.c.l.b16 %v34
  %v152 = vunpack.c.l.b16 %v35
  %v153 = vunpack.c.l.b16 %v36
  %v154 = vunpack.c.l.b16 %v37
  %v155 = vunpack.c.l.b16 %v38
  %v156 = vunpack.c.l.b16 %v39
  %v157 = vunpack.c.l.b16 %v40
  %v158 = vunpack.c.l.b16 %v41
  %v159 = vunpack.c.l.b16 %v42
  %v160 = vunpack.c.l.b16 %v43
  %v161 = vunpack.c.l.b16 %v44
  %v162 = vunpack.c.l.b16 %v45
  %v163 = vunpack.c.l.b16 %v46
  %v164 = vunpack.c.l.b16 %v47
  %v165 = vunpack.c.l.b16 %v48
  %v166 = vunpack.c.l.b16 %v49
  %v167 = vunpack.c.l.b16 %v50
  %v168 = vunpack.c.l.b16 %v51
  %v169 = vpack.c.b16 %v151, %v150
  %v170 = vpack.c.b16 %v153, %v152
  %v171 = vpack.c.b16 %v155, %v154
  %v172 = vpack.c.b16 %v157, %v156
  %v173 = vpack.c.b16 %v159, %v158
  %v174 = vpack.c.b16 %v161, %v160
  %v175 = vpack.c.b16 %v163, %v162
  %v176 = vpack.c.b16 %v165, %v164
  %v177 = vpack.c.b16 %v167, %v166
  %v178 = vpack.c.b16 %v168, %v168
  %vm188 = vcmask 154624
  %v190 = vsel %vm188, %v108, 0
  %v193 = vsel %vm188, %v110, 0
  %v196 = vsel %vm188, %v112, 0
  %v199 = vsel %vm188, %v114, 0
  %v202 = vsel %vm188, %v116, 0
  %v205 = vsel %vm188, %v118, 0
  %v208 = vsel %vm188, %v120, 0
  %v211 = vsel %vm188, %v122, 0
  %vm213 = vcmask 1040384
  %vm214 = vcmask 1041408
  %v215 = vsel %vm213, 4294967295, 65535
  %v216 = vsel %vm214, %v215, 0
  %v218 = vand.u32 %v178, %v216
  %220 = vmatprep.subr.bf16.mxu0 0
  %221 = vmatpush1.bf16.msra.mxu0 %v169
  %222 = vmatprep.subr.bf16.mxu0 0
  %223 = vmatpush1.bf16.msra.mxu0 %v170
  %224 = vmatprep.subr.bf16.mxu0 0
  %225 = vmatpush1.bf16.msra.mxu0 %v171
  %226 = vmatprep.subr.bf16.mxu0 0
  %227 = vmatpush1.bf16.msra.mxu0 %v172
  %228 = vmatprep.subr.bf16.mxu0 0
  %229 = vmatpush1.bf16.msra.mxu0 %v173
  %230 = vmatprep.subr.bf16.mxu0 0
  %231 = vmatpush1.bf16.msra.mxu0 %v174
  %232 = vmatprep.subr.bf16.mxu0 0
  %233 = vmatpush1.bf16.msra.mxu0 %v175
  %234 = vmatprep.subr.bf16.mxu0 0
  %235 = vmatpush1.bf16.msra.mxu0 %v176
  %236 = vmatprep.subr.bf16.mxu0 0
  %237 = vmatpush1.bf16.msra.mxu0 %v177
  %238 = vmatprep.subr.bf16.mxu0 0
  %239 = vmatpush1.bf16.msra.mxu0 %v218
  %240 = vmatprep.subr.bf16.mxu0 0
  %241 = vmatpush1.bf16.msra.mxu0 0
  %242 = vmatprep.subr.bf16.mxu0 0
  %243 = vmatpush1.bf16.msra.mxu0 0
  %244 = vmatprep.subr.bf16.mxu0 0
  %245 = vmatpush1.bf16.msra.mxu0 0
  %246 = vmatprep.subr.bf16.mxu0 0
  %247 = vmatpush1.bf16.msra.mxu0 0
  %248 = vmatprep.subr.bf16.mxu0 0
  %249 = vmatpush1.bf16.msra.mxu0 0
  %250 = vmatprep.subr.bf16.mxu0 0
  %251 = vmatpush1.bf16.msra.mxu0 0
  %252 = vmatprep.mubr.bf16.mxu0 %v190
  %253 = vmatmul.mubr.bf16.gmra.mrb[0].mxu0 %v107
  %v254 = vpop.f32.mrb[0].mxu0
  %v255 = vadd.f32 %v57, %v254
  %v256 = vpop.f32.mrb[0].mxu0
  %v257 = vpop.f32.mrb[0].mxu0
  %v258 = vadd.f32 %v57, %v257
  %v259 = vpop.f32.mrb[0].mxu0
  %260 = vmatprep.mubr.bf16.mxu0 %v193
  %261 = vmatmul.mubr.bf16.gmra.mrb[0].mxu0 %v109
  %v262 = vpop.f32.mrb[0].mxu0
  %v263 = vadd.f32 %v57, %v262
  %v264 = vpop.f32.mrb[0].mxu0
  %v265 = vpop.f32.mrb[0].mxu0
  %v266 = vadd.f32 %v57, %v265
  %v267 = vpop.f32.mrb[0].mxu0
  %268 = vmatprep.mubr.bf16.mxu0 %v196
  %269 = vmatmul.mubr.bf16.gmra.mrb[0].mxu0 %v111
  %v270 = vpop.f32.mrb[0].mxu0
  %v271 = vadd.f32 %v57, %v270
  %v272 = vpop.f32.mrb[0].mxu0
  %v273 = vpop.f32.mrb[0].mxu0
  %v274 = vadd.f32 %v57, %v273
  %v275 = vpop.f32.mrb[0].mxu0
  %276 = vmatprep.mubr.bf16.mxu0 %v199
  %277 = vmatmul.mubr.bf16.gmra.mrb[0].mxu0 %v113
  %v278 = vpop.f32.mrb[0].mxu0
  %v279 = vadd.f32 %v57, %v278
  %v280 = vpop.f32.mrb[0].mxu0
  %v281 = vpop.f32.mrb[0].mxu0
  %v282 = vadd.f32 %v57, %v281
  %v283 = vpop.f32.mrb[0].mxu0
  %284 = vmatprep.mubr.bf16.mxu0 %v202
  %285 = vmatmul.mubr.bf16.gmra.mrb[0].mxu0 %v115
  %v286 = vpop.f32.mrb[0].mxu0
  %v287 = vadd.f32 %v57, %v286
  %v288 = vpop.f32.mrb[0].mxu0
  %v289 = vpop.f32.mrb[0].mxu0
  %v290 = vadd.f32 %v57, %v289
  %v291 = vpop.f32.mrb[0].mxu0
  %292 = vmatprep.mubr.bf16.mxu0 %v205
  %293 = vmatmul.mubr.bf16.gmra.mrb[0].mxu0 %v117
  %v294 = vpop.f32.mrb[0].mxu0
  %v295 = vadd.f32 %v57, %v294
  %v296 = vpop.f32.mrb[0].mxu0
  %v297 = vpop.f32.mrb[0].mxu0
  %v298 = vadd.f32 %v57, %v297
  %v299 = vpop.f32.mrb[0].mxu0
  %300 = vmatprep.mubr.bf16.mxu0 %v208
  %301 = vmatmul.mubr.bf16.gmra.mrb[0].mxu0 %v119
  %v302 = vpop.f32.mrb[0].mxu0
  %v303 = vadd.f32 %v57, %v302
  %v304 = vpop.f32.mrb[0].mxu0
  %v305 = vpop.f32.mrb[0].mxu0
  %v306 = vadd.f32 %v57, %v305
  %v307 = vpop.f32.mrb[0].mxu0
  %308 = vmatprep.mubr.bf16.mxu0 %v211
  %309 = vmatmul.mubr.bf16.gmra.mrb[0].mxu0 %v121
  %v310 = vpop.f32.mrb[0].mxu0
  %v311 = vadd.f32 %v57, %v310
  %v312 = vpop.f32.mrb[0].mxu0
  %v313 = vpop.f32.mrb[0].mxu0
  %v314 = vadd.f32 %v57, %v313
  %v315 = vpop.f32.mrb[0].mxu0
  %316 = vdwg.mxu0
  %v317 = vpack.c.bf16 %v258, %v255
  %v318 = vpack.c.bf16 %v266, %v263
  %v319 = vpack.c.bf16 %v274, %v271
  %v320 = vpack.c.bf16 %v282, %v279
  %v321 = vpack.c.bf16 %v290, %v287
  %v322 = vpack.c.bf16 %v298, %v295
  %v323 = vpack.c.bf16 %v306, %v303
  %v324 = vpack.c.bf16 %v314, %v311
  %v333 = vunpack.c.l.b16 %v317
  %v334 = vunpack.c.h.b16 %v317
  %v335 = vunpack.c.l.b16 %v318
  %v336 = vunpack.c.h.b16 %v318
  %v337 = vunpack.c.l.b16 %v319
  %v338 = vunpack.c.h.b16 %v319
  %v339 = vunpack.c.l.b16 %v320
  %v340 = vunpack.c.h.b16 %v320
  %v341 = vunpack.c.l.b16 %v321
  %v342 = vunpack.c.h.b16 %v321
  %v343 = vunpack.c.l.b16 %v322
  %v344 = vunpack.c.h.b16 %v322
  %v345 = vunpack.c.l.b16 %v323
  %v346 = vunpack.c.h.b16 %v323
  %v347 = vunpack.c.l.b16 %v324
  %v348 = vunpack.c.h.b16 %v324
  %v349 = vpack.c.b16 %v333, %v333
  %v350 = vpack.c.b16 %v334, %v334
  %v351 = vpack.c.b16 %v335, %v335
  %v352 = vpack.c.b16 %v336, %v336
  %v353 = vpack.c.b16 %v337, %v337
  %v354 = vpack.c.b16 %v338, %v338
  %v355 = vpack.c.b16 %v339, %v339
  %v356 = vpack.c.b16 %v340, %v340
  %v357 = vpack.c.b16 %v341, %v341
  %v358 = vpack.c.b16 %v342, %v342
  %v359 = vpack.c.b16 %v343, %v343
  %v360 = vpack.c.b16 %v344, %v344
  %v361 = vpack.c.b16 %v345, %v345
  %v362 = vpack.c.b16 %v346, %v346
  %v363 = vpack.c.b16 %v347, %v347
  %v364 = vpack.c.b16 %v348, %v348
  %vm381 = vcmask 519168
  %382 = vst.msk [vmem:[%s3] sm:$0xf] %vm381, %v349
  %383 = vst.msk [vmem:[%s3 + $0x4] sm:$0xf] %vm381, %v350
  %384 = vst.msk [vmem:[%s3 + $0x8] sm:$0xf] %vm381, %v351
  %385 = vst.msk [vmem:[%s3 + $0xc] sm:$0xf] %vm381, %v352
  %386 = vst.msk [vmem:[%s3 + $0x10] sm:$0xf] %vm381, %v353
  %387 = vst.msk [vmem:[%s3 + $0x14] sm:$0xf] %vm381, %v354
  %388 = vst.msk [vmem:[%s3 + $0x18] sm:$0xf] %vm381, %v355
  %389 = vst.msk [vmem:[%s3 + $0x1c] sm:$0xf] %vm381, %v356
  %390 = vst.msk [vmem:[%s3 + $0x20] sm:$0xf] %vm381, %v357
  %391 = vst.msk [vmem:[%s3 + $0x24] sm:$0xf] %vm381, %v358
  %392 = vst.msk [vmem:[%s3 + $0x28] sm:$0xf] %vm381, %v359
  %393 = vst.msk [vmem:[%s3 + $0x2c] sm:$0xf] %vm381, %v360
  %394 = vst.msk [vmem:[%s3 + $0x30] sm:$0xf] %vm381, %v361
  %395 = vst.msk [vmem:[%s3 + $0x34] sm:$0xf] %vm381, %v362
  %396 = vst.msk [vmem:[%s3 + $0x38] sm:$0xf] %vm381, %v363
  %397 = vst.msk [vmem:[%s3 + $0x3c] sm:$0xf] %vm381, %v364
  %v398 = vlaneseq
  %v399 = vshrl.u32 %v398, 7
  %v400 = vadd.s32 %v399, 8
  %v401 = vadd.s32 %v399, 16
  %v402 = vadd.s32 %v399, 24
  %v403 = vadd.s32 %v399, 32
  %v404 = vadd.s32 %v399, 40
  %v405 = vadd.s32 %v399, 48
  %v406 = vadd.s32 %v399, 56
  %v407 = vadd.s32 %v399, 64
  %v408 = vadd.s32 %v399, 72
  %v409 = vadd.s32 %v399, 80
  %v410 = vadd.s32 %v399, 88
  %v411 = vadd.s32 %v399, 96
  %v412 = vadd.s32 %v399, 104
  %v413 = vadd.s32 %v399, 112
  %v414 = vadd.s32 %v399, 120
  %s415 = smul.u32 0, 128
  %v416 = vstv %s415
  %v417 = vadd.s32 %v399, %v416
  %v418 = vadd.s32 %v400, %v416
  %v419 = vadd.s32 %v401, %v416
  %v420 = vadd.s32 %v402, %v416
  %v421 = vadd.s32 %v403, %v416
  %v422 = vadd.s32 %v404, %v416
  %v423 = vadd.s32 %v405, %v416
  %v424 = vadd.s32 %v406, %v416
  %v425 = vadd.s32 %v407, %v416
  %v426 = vadd.s32 %v408, %v416
  %v427 = vadd.s32 %v409, %v416
  %v428 = vadd.s32 %v410, %v416
  %v429 = vadd.s32 %v411, %v416
  %v430 = vadd.s32 %v412, %v416
  %v431 = vadd.s32 %v413, %v416
  %v432 = vadd.s32 %v414, %v416
  %vm433 = vcmp.lt.s32.totalorder %v417, 128
  %vm434 = vcmp.lt.s32.totalorder %v418, 128
  %vm435 = vcmp.lt.s32.totalorder %v419, 128
  %vm436 = vcmp.lt.s32.totalorder %v420, 128
  %vm437 = vcmp.lt.s32.totalorder %v421, 128
  %vm438 = vcmp.lt.s32.totalorder %v422, 128
  %vm439 = vcmp.lt.s32.totalorder %v423, 128
  %vm440 = vcmp.lt.s32.totalorder %v424, 128
  %vm441 = vcmp.lt.s32.totalorder %v425, 128
  %vm442 = vcmp.lt.s32.totalorder %v426, 128
  %vm443 = vcmp.lt.s32.totalorder %v427, 128
  %vm444 = vcmp.lt.s32.totalorder %v428, 128
  %vm445 = vcmp.lt.s32.totalorder %v429, 128
  %vm446 = vcmp.lt.s32.totalorder %v430, 128
  %vm447 = vcmp.lt.s32.totalorder %v431, 128
  %vm448 = vcmp.lt.s32.totalorder %v432, 128
  %v449 = vsel %vm433, %v255, 0.0
  %v450 = vsel %vm434, %v258, 0.0
  %v451 = vsel %vm435, %v263, 0.0
  %v452 = vsel %vm436, %v266, 0.0
  %v453 = vsel %vm437, %v271, 0.0
  %v454 = vsel %vm438, %v274, 0.0
  %v455 = vsel %vm439, %v279, 0.0
  %v456 = vsel %vm440, %v282, 0.0
  %v457 = vsel %vm441, %v287, 0.0
  %v458 = vsel %vm442, %v290, 0.0
  %v459 = vsel %vm443, %v295, 0.0
  %v460 = vsel %vm444, %v298, 0.0
  %v461 = vsel %vm445, %v303, 0.0
  %v462 = vsel %vm446, %v306, 0.0
  %v463 = vsel %vm447, %v311, 0.0
  %v464 = vsel %vm448, %v314, 0.0
  %vm465 = vcmask 523264
  %v466 = vsel %vm465, %v449, 0.0
  %v467 = vsel %vm465, %v450, 0.0
  %v468 = vadd.f32 %v466, %v467
  %v469 = vsel %vm465, %v451, 0.0
  %v470 = vadd.f32 %v468, %v469
  %v471 = vsel %vm465, %v452, 0.0
  %v472 = vadd.f32 %v470, %v471
  %v473 = vsel %vm465, %v453, 0.0
  %v474 = vadd.f32 %v472, %v473
  %v475 = vsel %vm465, %v454, 0.0
  %v476 = vadd.f32 %v474, %v475
  %v477 = vsel %vm465, %v455, 0.0
  %v478 = vadd.f32 %v476, %v477
  %v479 = vsel %vm465, %v456, 0.0
  %v480 = vadd.f32 %v478, %v479
  %v481 = vsel %vm465, %v457, 0.0
  %v482 = vadd.f32 %v480, %v481
  %v483 = vsel %vm465, %v458, 0.0
  %v484 = vadd.f32 %v482, %v483
  %v485 = vsel %vm465, %v459, 0.0
  %v486 = vadd.f32 %v484, %v485
  %v487 = vsel %vm465, %v460, 0.0
  %v488 = vadd.f32 %v486, %v487
  %v489 = vsel %vm465, %v461, 0.0
  %v490 = vadd.f32 %v488, %v489
  %v491 = vsel %vm465, %v462, 0.0
  %v492 = vadd.f32 %v490, %v491
  %v493 = vsel %vm465, %v463, 0.0
  %v494 = vadd.f32 %v492, %v493
  %v495 = vsel %vm465, %v464, 0.0
  %v496 = vadd.f32 %v494, %v495
  %v497 = vrot.slane %v496, 4
  %v498 = vadd.f32 %v496, %v497
  %v499 = vrot.slane %v498, 2
  %v500 = vadd.f32 %v498, %v499
  %v501 = vrot.slane %v500, 1
  %v502 = vadd.f32 %v500, %v501
  %v503 = vmul.f32 %v449, %v449
  %v504 = vmul.f32 %v450, %v450
  %v505 = vmul.f32 %v451, %v451
  %v506 = vmul.f32 %v452, %v452
  %v507 = vmul.f32 %v453, %v453
  %v508 = vmul.f32 %v454, %v454
  %v509 = vmul.f32 %v455, %v455
  %v510 = vmul.f32 %v456, %v456
  %v511 = vmul.f32 %v457, %v457
  %v512 = vmul.f32 %v458, %v458
  %v513 = vmul.f32 %v459, %v459
  %v514 = vmul.f32 %v460, %v460
  %v515 = vmul.f32 %v461, %v461
  %v516 = vmul.f32 %v462, %v462
  %v517 = vmul.f32 %v463, %v463
  %v518 = vmul.f32 %v464, %v464
  %v519 = vsel %vm465, %v503, 0.0
  %v520 = vsel %vm465, %v504, 0.0
  %v521 = vadd.f32 %v519, %v520
  %v522 = vsel %vm465, %v505, 0.0
  %v523 = vadd.f32 %v521, %v522
  %v524 = vsel %vm465, %v506, 0.0
  %v525 = vadd.f32 %v523, %v524
  %v526 = vsel %vm465, %v507, 0.0
  %v527 = vadd.f32 %v525, %v526
  %v528 = vsel %vm465, %v508, 0.0
  %v529 = vadd.f32 %v527, %v528
  %v530 = vsel %vm465, %v509, 0.0
  %v531 = vadd.f32 %v529, %v530
  %v532 = vsel %vm465, %v510, 0.0
  %v533 = vadd.f32 %v531, %v532
  %v534 = vsel %vm465, %v511, 0.0
  %v535 = vadd.f32 %v533, %v534
  %v536 = vsel %vm465, %v512, 0.0
  %v537 = vadd.f32 %v535, %v536
  %v538 = vsel %vm465, %v513, 0.0
  %v539 = vadd.f32 %v537, %v538
  %v540 = vsel %vm465, %v514, 0.0
  %v541 = vadd.f32 %v539, %v540
  %v542 = vsel %vm465, %v515, 0.0
  %v543 = vadd.f32 %v541, %v542
  %v544 = vsel %vm465, %v516, 0.0
  %v545 = vadd.f32 %v543, %v544
  %v546 = vsel %vm465, %v517, 0.0
  %v547 = vadd.f32 %v545, %v546
  %v548 = vsel %vm465, %v518, 0.0
  %v549 = vadd.f32 %v547, %v548
  %v550 = vrot.slane %v549, 4
  %v551 = vadd.f32 %v549, %v550
  %v552 = vrot.slane %v551, 2
  %v553 = vadd.f32 %v551, %v552
  %v554 = vrot.slane %v553, 1
  %v555 = vadd.f32 %v553, %v554
  %v556 = vsel %vm213, %v502, %v555
  %vm557 = vcmask 517120
  %558 = vst.msk [vmem:[%s4] sm:$0x3] %vm557, %v556
  // Predicated region
  $region14: #{_lambda_.29} parent=0 // pred_check
    _
  $region15: #{_lambda_.29} parent=0 // pred_check_branch
    %560 = sbr.rel (0) target = $region17
  $region16: #{_lambda_.29} parent=0 // pred_region
    _
  $region17: #{_lambda_.29} parent=0 // pred_fallthru
    _
  // Predicated region
  $region18: #{_lambda_.29} parent=0 // pred_check
    _
  $region19: #{_lambda_.29} parent=0 // pred_check_branch
    %562 = sbr.rel (0) target = $region21
  $region20: #{_lambda_.29} parent=0 // pred_region
    _
  $region21: #{_lambda_.29} parent=0 // pred_fallthru
    _
  // Predicated region
  $region22: #{_lambda_.29} parent=0 // pred_check
    _
  $region23: #{_lambda_.29} parent=0 // pred_check_branch
    %564 = sbr.rel (0) target = $region25
  $region24: #{_lambda_.29} parent=0 // pred_region
    _
  $region25: #{_lambda_.29} parent=0 // pred_fallthru
    _
  // Predicated region
  $region26: #{_lambda_.29} parent=0 // pred_check
    _
  $region27: #{_lambda_.29} parent=0 // pred_check_branch
    %566 = sbr.rel (0) target = $region29
  $region28: #{_lambda_.29} parent=0 // pred_region
    _
  $region29: #{_lambda_.29} parent=0 // pred_fallthru
    _

// kernel: _lambda_.31
$region0: #{_lambda_.31}
  #allocation0 [shape = 'u32[]', space=smem, size = 0x4, offset = 0x4, fixed_abs, tag = 'smem constant byte address 0x4 - core index']
  #allocation1 [shape = 'u32[144,128]{1,0:T(1,128)}', space=vmem, size = 0x12000, scoped, tag = 'internal scratch']
  %s0 = inlined_call_operand.vmem [shape: bf16[2,10,10,64], index: 0, kind: input, shape index: {}]
  %s1 = inlined_call_operand.vmem [shape: bf16[9,64,64], index: 1, kind: input, shape index: {}]
  %s2 = inlined_call_operand.vmem [shape: f32[1,64], index: 2, kind: input, shape index: {}]
  %s3 = inlined_call_operand.vmem [shape: bf16[128,64], index: 3, kind: output, shape index: {0}]
  %s4 = inlined_call_operand.vmem [shape: f32[2,2,64], index: 4, kind: output, shape index: {1}]
  %5 = xla_tuple %s3, %s4
  %s6 = sld [smem:[#allocation0]]
  $region53: #{_lambda_.31} parent=0
    _
  %s8 = ssub.s32 1, %s6
  %s9 = scalar_select 0, %s8, %s6
  loop: start=0, step=1, limit=4
  $region2: #{_lambda_.31} parent=0 // loop_pre_header
    _
  $region3: #{_lambda_.31} parent=0 // loop_header
    %s11 = sphi 0, %s15
    %p12 = scmp.ge.s32.totalorder %s11, 4
    %s18 = sphi 0, %s30
    %s19 = sphi 0, %s26
    %s20 = sphi 0, %s18
    %s21 = sphi 0, %s19
    %s22 = sphi 0, %s20
    %s23 = sphi 0, %s21
    %s33 = sphi 0, %s35
    %s36 = sphi 0, %s33
    %s37 = sphi 0, %s36
    %s53 = sphi 0, %s37
    %s59 = sphi 0, %s61
    %s62 = sphi 0, %s59
    %s63 = sphi 0, %s62
    %s79 = sphi 0, %s63
    %s85 = sphi 0, %s87
    %s88 = sphi 0, %s85
    %s89 = sphi 0, %s88
    %s105 = sphi 0, %s89
    %s113 = sphi 0, %s115
    %s116 = sphi 0, %s113
    %s117 = sphi 0, %s116
    %s133 = sphi 0, %s117
    %s141 = sphi 0, %s143
    %s144 = sphi 0, %s141
    %s145 = sphi 0, %s144
    %s161 = sphi 0, %s145
  $region4: #{_lambda_.31} parent=0 // loop_header_branch
    %14 = sbr.rel (%p12) target = $region8
  $region5: #{_lambda_.31} parent=0 // loop_body
    %s16 = ssub.s32 %s11, 1
    %s17 = ssub.s32 %s11, 2
    %s24 = sadd.s32 1, %s19
    %p25 = scmp.ge.s32.totalorder %s24, 1
    %s26 = scalar_select %p25, 0, %s24
    %s27 = sadd.s32 1, %s18
    %s28 = scalar_select %p25, %s27, %s18
    %p29 = scmp.ge.s32.totalorder %s28, 2
    %s30 = scalar_select %p29, 0, %s28
    %s31 = ssub.s32 %s18, %s30
    %p32 = scmp.eq.s32.totalorder %s31, 0
    %s34 = sadd.s32 %s33, 1
    %s35 = scalar_select %p32, %s33, %s34
    %p38 = pneg %p32
    %p39 = scmp.eq.s32.totalorder %s11, 1
    %p40 = por %p38, %p39
    %p41 = scmp.ne.s32.totalorder %s33, %s36
    %p42 = scmp.eq.s32.totalorder %s11, 0
    %p43 = por %p41, %p42
    %p44 = scmp.ne.s32.totalorder %s33, %s36
    %p45 = scmp.eq.s32.totalorder %s16, 1
    %p46 = por %p44, %p45
    %p47 = scmp.ne.s32.totalorder %s36, %s37
    %p48 = scmp.eq.s32.totalorder %s16, 0
    %p49 = por %p47, %p48
    %p50 = scmp.ne.s32.totalorder %s36, %s37
    %p51 = scmp.eq.s32.totalorder %s17, 1
    %p52 = por %p50, %p51
    %p54 = scmp.ne.s32.totalorder %s37, %s53
    %p55 = scmp.eq.s32.totalorder %s17, 0
    %p56 = por %p54, %p55
    %s57 = ssub.s32 %s19, %s26
    %p58 = scmp.eq.s32.totalorder %s57, 0
    %s60 = sadd.s32 %s59, 1
    %s61 = scalar_select %p58, %s59, %s60
    %p64 = pneg %p58
    %p65 = scmp.eq.s32.totalorder %s11, 1
    %p66 = por %p64, %p65
    %p67 = scmp.ne.s32.totalorder %s59, %s62
    %p68 = scmp.eq.s32.totalorder %s11, 0
    %p69 = por %p67, %p68
    %p70 = scmp.ne.s32.totalorder %s59, %s62
    %p71 = scmp.eq.s32.totalorder %s16, 1
    %p72 = por %p70, %p71
    %p73 = scmp.ne.s32.totalorder %s62, %s63
    %p74 = scmp.eq.s32.totalorder %s16, 0
    %p75 = por %p73, %p74
    %p76 = scmp.ne.s32.totalorder %s62, %s63
    %p77 = scmp.eq.s32.totalorder %s17, 1
    %p78 = por %p76, %p77
    %p80 = scmp.ne.s32.totalorder %s63, %s79
    %p81 = scmp.eq.s32.totalorder %s17, 0
    %p82 = por %p80, %p81
    %s83 = ssub.s32 %s19, %s26
    %p84 = scmp.eq.s32.totalorder %s83, 0
    %s86 = sadd.s32 %s85, 1
    %s87 = scalar_select %p84, %s85, %s86
    %p90 = pneg %p84
    %p91 = scmp.eq.s32.totalorder %s11, 1
    %p92 = por %p90, %p91
    %p93 = scmp.ne.s32.totalorder %s85, %s88
    %p94 = scmp.eq.s32.totalorder %s11, 0
    %p95 = por %p93, %p94
    %p96 = scmp.ne.s32.totalorder %s85, %s88
    %p97 = scmp.eq.s32.totalorder %s16, 1
    %p98 = por %p96, %p97
    %p99 = scmp.ne.s32.totalorder %s88, %s89
    %p100 = scmp.eq.s32.totalorder %s16, 0
    %p101 = por %p99, %p100
    %p102 = scmp.ne.s32.totalorder %s88, %s89
    %p103 = scmp.eq.s32.totalorder %s17, 1
    %p104 = por %p102, %p103
    %p106 = scmp.ne.s32.totalorder %s89, %s105
    %p107 = scmp.eq.s32.totalorder %s17, 0
    %p108 = por %p106, %p107
    %s109 = ssub.s32 %s18, %s30
    %s110 = ssub.s32 %s19, %s26
    %s111 = sor.u32 %s109, %s110
    %p112 = scmp.eq.s32.totalorder %s111, 0
    %s114 = sadd.s32 %s113, 1
    %s115 = scalar_select %p112, %s113, %s114
    %p118 = pneg %p112
    %p119 = scmp.eq.s32.totalorder %s11, 1
    %p120 = por %p118, %p119
    %p121 = scmp.ne.s32.totalorder %s113, %s116
    %p122 = scmp.eq.s32.totalorder %s11, 0
    %p123 = por %p121, %p122
    %p124 = scmp.ne.s32.totalorder %s113, %s116
    %p125 = scmp.eq.s32.totalorder %s16, 1
    %p126 = por %p124, %p125
    %p127 = scmp.ne.s32.totalorder %s116, %s117
    %p128 = scmp.eq.s32.totalorder %s16, 0
    %p129 = por %p127, %p128
    %p130 = scmp.ne.s32.totalorder %s116, %s117
    %p131 = scmp.eq.s32.totalorder %s17, 1
    %p132 = por %p130, %p131
    %p134 = scmp.ne.s32.totalorder %s117, %s133
    %p135 = scmp.eq.s32.totalorder %s17, 0
    %p136 = por %p134, %p135
    %s137 = ssub.s32 %s18, %s30
    %s138 = ssub.s32 %s19, %s26
    %s139 = sor.u32 %s137, %s138
    %p140 = scmp.eq.s32.totalorder %s139, 0
    %s142 = sadd.s32 %s141, 1
    %s143 = scalar_select %p140, %s141, %s142
    %p146 = pneg %p140
    %p147 = scmp.eq.s32.totalorder %s11, 1
    %p148 = por %p146, %p147
    %p149 = scmp.ne.s32.totalorder %s141, %s144
    %p150 = scmp.eq.s32.totalorder %s11, 0
    %p151 = por %p149, %p150
    %p152 = scmp.ne.s32.totalorder %s141, %s144
    %p153 = scmp.eq.s32.totalorder %s16, 1
    %p154 = por %p152, %p153
    %p155 = scmp.ne.s32.totalorder %s144, %s145
    %p156 = scmp.eq.s32.totalorder %s16, 0
    %p157 = por %p155, %p156
    %p158 = scmp.ne.s32.totalorder %s144, %s145
    %p159 = scmp.eq.s32.totalorder %s17, 1
    %p160 = por %p158, %p159
    %p162 = scmp.ne.s32.totalorder %s145, %s161
    %p163 = scmp.eq.s32.totalorder %s17, 0
    %p164 = por %p162, %p163
    %p165 = scmp.le.s32.totalorder 1, %s11
    %p166 = scmp.lt.s32.totalorder %s11, 3
    %p167 = pnand %p165, %p166
    %p168 = pneg %p167
    // Predicated region
    $region9: #{_lambda_.31} parent=5 // pred_check
      _
    $region10: #{_lambda_.31} parent=5 // pred_check_branch
      %170 = sbr.rel (%p167) target = $region12
    $region11: #{_lambda_.31} parent=5 // pred_region
      %s171 = ssub.s32 %s11, 1
      // Predicated region
      $region13: #{_lambda_.31} parent=11 // pred_check
        %p172 = pneg %p75
      $region14: #{_lambda_.31} parent=11 // pred_check_branch
        %174 = sbr.rel (%p172) target = $region16
      $region15: #{_lambda_.31} parent=11 // pred_region
        %p175 = scmp.lt.s32.totalorder %s21, 0
        %s176 = scalar_select %p175, %s21, 0
        %s177 = smul.addr %s176, 4
        %s178 = scalar_lea.vmem %s1, %s177
      $region16: #{_lambda_.31} parent=11 // pred_fallthru
        _
      // Predicated region
      $region17: #{_lambda_.31} parent=11 // pred_check
        %p179 = pneg %p101
      $region18: #{_lambda_.31} parent=11 // pred_check_branch
        %181 = sbr.rel (%p179) target = $region20
      $region19: #{_lambda_.31} parent=11 // pred_region
        %p182 = scmp.lt.s32.totalorder %s21, 0
        %s183 = scalar_select %p182, %s21, 0
        %s184 = scalar_lea.vmem %s2, %s183
      $region20: #{_lambda_.31} parent=11 // pred_fallthru
        _
    $region12: #{_lambda_.31} parent=5 // pred_fallthru
      _
    %p185 = scmp.lt.s32.totalorder %s11, 2
    // Predicated region
    $region21: #{_lambda_.31} parent=5 // pred_check
      %p186 = pneg %p185
    $region22: #{_lambda_.31} parent=5 // pred_check_branch
      %188 = sbr.rel (%p186) target = $region24
    $region23: #{_lambda_.31} parent=5 // pred_region
      // Predicated region
      $region25: #{_lambda_.31} parent=23 // pred_check
        %p189 = pneg %p43
      $region26: #{_lambda_.31} parent=23 // pred_check_branch
        %191 = sbr.rel (%p189) target = $region28
      $region27: #{_lambda_.31} parent=23 // pred_region
        %p192 = scmp.lt.s32.totalorder %s18, 1
        %s193 = scalar_select %p192, %s18, 1
        %s194 = smul.addr %s193, 20
        %s195 = smul.addr %s194, 4
        %s196 = scalar_lea.vmem %s0, %s195
      $region28: #{_lambda_.31} parent=23 // pred_fallthru
        _
    $region24: #{_lambda_.31} parent=5 // pred_fallthru
      _
    %p197 = scmp.le.s32.totalorder 1, %s11
    %p198 = scmp.lt.s32.totalorder %s11, 3
    %p199 = pnand %p197, %p198
    %p200 = pneg %p199
    // Predicated region
    $region29: #{_lambda_.31} parent=5 // pred_check
      _
    $region30: #{_lambda_.31} parent=5 // pred_check_branch
      %202 = sbr.rel (%p199) target = $region32
    $region31: #{_lambda_.31} parent=5 // pred_region
      %s203 = ssub.s32 %s11, 1
      %p204 = scmp.lt.s32.totalorder %s20, 1
      %s205 = scalar_select %p204, %s20, 1
      %s206 = smul.addr %s205, 20
      %s207 = smul.addr %s206, 4
      %s208 = scalar_lea.vmem %s0, %s207
      %p209 = pneg %p49
      %p210 = pneg %p46
      %p211 = scmp.lt.s32.totalorder %s21, 0
      %s212 = scalar_select %p211, %s21, 0
      %s213 = smul.addr %s212, 4
      %s214 = scalar_lea.vmem %s1, %s213
      %p215 = pneg %p75
      %p216 = pneg %p72
      %p217 = scmp.lt.s32.totalorder %s21, 0
      %s218 = scalar_select %p217, %s21, 0
      %s219 = scalar_lea.vmem %s2, %s218
      %p220 = pneg %p101
      %p221 = pneg %p98
      %p222 = pneg %p129
      %p223 = pneg %p126
      %s224 = smul.u32 8, %s20
      %p225 = scmp.lt.s32.totalorder %s224, 15
      %s226 = scalar_select %p225, %s224, 15
      %p227 = scmp.lt.s32.totalorder %s21, 0
      %s228 = scalar_select %p227, %s21, 0
      %s229 = sadd.s32 %s228, %s226
      %s230 = smul.addr %s229, 4
      %s231 = scalar_lea.vmem %s3, %s230
      %p232 = pneg %p157
      %p233 = pneg %p154
      %p234 = scmp.lt.s32.totalorder %s20, 1
      %s235 = scalar_select %p234, %s20, 1
      %p236 = scmp.lt.s32.totalorder %s21, 0
      %s237 = scalar_select %p236, %s21, 0
      %s238 = sadd.s32 %s237, %s235
      %s239 = smul.addr %s238, 2
      %s240 = scalar_lea.vmem %s4, %s239
      %p241 = scmp.lt.s32.totalorder %s20, 1
      %s242 = scalar_select %p241, %s20, 1
      %s243 = smul.addr %s242, 20
      %s244 = smul.addr %s243, 4
      %s245 = scalar_lea.vmem %s0, %s244
      %p246 = scmp.lt.s32.totalorder %s21, 0
      %s247 = scalar_select %p246, %s21, 0
      %s248 = smul.addr %s247, 4
      %s249 = scalar_lea.vmem %s1, %s248
      %p250 = scmp.lt.s32.totalorder %s21, 0
      %s251 = scalar_select %p250, %s21, 0
      %s252 = scalar_lea.vmem %s2, %s251
      %s253 = smul.u32 8, %s20
      %p254 = scmp.lt.s32.totalorder %s253, 15
      %s255 = scalar_select %p254, %s253, 15
      %p256 = scmp.lt.s32.totalorder %s21, 0
      %s257 = scalar_select %p256, %s21, 0
      %s258 = sadd.s32 %s257, %s255
      %s259 = smul.addr %s258, 4
      %s260 = scalar_lea.vmem %s3, %s259
      %s261 = smul.u32 8, %s20
      %p262 = scmp.lt.s32.totalorder %s20, 1
      %s263 = scalar_select %p262, %s20, 1
      %p264 = scmp.lt.s32.totalorder %s21, 0
      %s265 = scalar_select %p264, %s21, 0
      %s266 = sadd.s32 %s265, %s263
      %s267 = smul.addr %s266, 2
      %s268 = scalar_lea.vmem %s4, %s267
      %v270 = vld [vmem:[%s245] sm:$0xf]
      %v271 = vld [vmem:[%s245 + $0x4] sm:$0x1]
      %v272 = vld [vmem:[%s245 + $0x8] sm:$0xf]
      %v273 = vld [vmem:[%s245 + $0xc] sm:$0x1]
      %v274 = vld [vmem:[%s245 + $0x10] sm:$0xf]
      %v275 = vld [vmem:[%s245 + $0x14] sm:$0x1]
      %v276 = vld [vmem:[%s245 + $0x18] sm:$0xf]
      %v277 = vld [vmem:[%s245 + $0x1c] sm:$0x1]
      %v278 = vld [vmem:[%s245 + $0x20] sm:$0xf]
      %v279 = vld [vmem:[%s245 + $0x24] sm:$0x1]
      %v280 = vld [vmem:[%s245 + $0x28] sm:$0xf]
      %v281 = vld [vmem:[%s245 + $0x2c] sm:$0x1]
      %v282 = vld [vmem:[%s245 + $0x30] sm:$0xf]
      %v283 = vld [vmem:[%s245 + $0x34] sm:$0x1]
      %v284 = vld [vmem:[%s245 + $0x38] sm:$0xf]
      %v285 = vld [vmem:[%s245 + $0x3c] sm:$0x1]
      %v286 = vld [vmem:[%s245 + $0x40] sm:$0xf]
      %v287 = vld [vmem:[%s245 + $0x44] sm:$0x1]
      %v288 = vld [vmem:[%s245 + $0x48] sm:$0xf]
      %v289 = vld [vmem:[%s245 + $0x4c] sm:$0x1]
      %v290 = vld [vmem:[%s249] sm:$0xf]
      %v291 = vld [vmem:[%s249 + $0x4] sm:$0xf]
      %v292 = vld [vmem:[%s249 + $0x8] sm:$0xf]
      %v293 = vld [vmem:[%s249 + $0xc] sm:$0xf]
      %v294 = vld [vmem:[%s249 + $0x10] sm:$0xf]
      %v295 = vld [vmem:[%s249 + $0x14] sm:$0xf]
      %v296 = vld [vmem:[%s249 + $0x18] sm:$0xf]
      %v297 = vld [vmem:[%s249 + $0x1c] sm:$0xf]
      %vm298 = vsmask.f32 3328
      %vm299 = vsmask.f32 7440
      %vm300 = vmor %vm298, %vm299
      %v302 = vshrl.u32 %v270, 16
      %v304 = vrot.slane %v302, 4
      %v305 = vshll.u32 %v270, 16
      %v307 = vrot.slane %v305, 5
      %v308 = vor.u32 %v304, %v307
      %v309 = vrot.slane %v308, 4
      %v311 = vshll.u32 %v271, 16
      %v313 = vrot.slane %v311, 5
      %v314 = vsel %vm300, %v309, %v313
      %v316 = vshrl.u32 %v272, 16
      %v318 = vrot.slane %v316, 4
      %v319 = vshll.u32 %v272, 16
      %v321 = vrot.slane %v319, 5
      %v322 = vor.u32 %v318, %v321
      %v323 = vrot.slane %v322, 4
      %v325 = vshll.u32 %v273, 16
      %v327 = vrot.slane %v325, 5
      %v328 = vsel %vm300, %v323, %v327
      %v330 = vshrl.u32 %v274, 16
      %v332 = vrot.slane %v330, 4
      %v333 = vshll.u32 %v274, 16
      %v335 = vrot.slane %v333, 5
      %v336 = vor.u32 %v332, %v335
      %v337 = vrot.slane %v336, 4
      %v339 = vshll.u32 %v275, 16
      %v341 = vrot.slane %v339, 5
      %v342 = vsel %vm300, %v337, %v341
      %v344 = vshrl.u32 %v276, 16
      %v346 = vrot.slane %v344, 4
      %v347 = vshll.u32 %v276, 16
      %v349 = vrot.slane %v347, 5
      %v350 = vor.u32 %v346, %v349
      %v351 = vrot.slane %v350, 4
      %v353 = vshll.u32 %v277, 16
      %v355 = vrot.slane %v353, 5
      %v356 = vsel %vm300, %v351, %v355
      %v358 = vshrl.u32 %v278, 16
      %v360 = vrot.slane %v358, 4
      %v361 = vshll.u32 %v278, 16
      %v363 = vrot.slane %v361, 5
      %v364 = vor.u32 %v360, %v363
      %v365 = vrot.slane %v364, 4
      %v367 = vshll.u32 %v279, 16
      %v369 = vrot.slane %v367, 5
      %v370 = vsel %vm300, %v365, %v369
      %v372 = vshrl.u32 %v280, 16
      %v374 = vrot.slane %v372, 4
      %v375 = vshll.u32 %v280, 16
      %v377 = vrot.slane %v375, 5
      %v378 = vor.u32 %v374, %v377
      %v379 = vrot.slane %v378, 4
      %v381 = vshll.u32 %v281, 16
      %v383 = vrot.slane %v381, 5
      %v384 = vsel %vm300, %v379, %v383
      %v386 = vshrl.u32 %v282, 16
      %v388 = vrot.slane %v386, 4
      %v389 = vshll.u32 %v282, 16
      %v391 = vrot.slane %v389, 5
      %v392 = vor.u32 %v388, %v391
      %v393 = vrot.slane %v392, 4
      %v395 = vshll.u32 %v283, 16
      %v397 = vrot.slane %v395, 5
      %v398 = vsel %vm300, %v393, %v397
      %v400 = vshrl.u32 %v284, 16
      %v402 = vrot.slane %v400, 4
      %v403 = vshll.u32 %v284, 16
      %v405 = vrot.slane %v403, 5
      %v406 = vor.u32 %v402, %v405
      %v407 = vrot.slane %v406, 4
      %v409 = vshll.u32 %v285, 16
      %v411 = vrot.slane %v409, 5
      %v412 = vsel %vm300, %v407, %v411
      %s413 = scalar_lea.vmem %s249, 32
      %v414 = vld [vmem:[%s413] sm:$0xf]
      %v415 = vld [vmem:[%s413 + $0x4] sm:$0xf]
      %v416 = vld [vmem:[%s413 + $0x8] sm:$0xf]
      %v417 = vld [vmem:[%s413 + $0xc] sm:$0xf]
      %v418 = vld [vmem:[%s413 + $0x10] sm:$0xf]
      %v419 = vld [vmem:[%s413 + $0x14] sm:$0xf]
      %v420 = vld [vmem:[%s413 + $0x18] sm:$0xf]
      %v421 = vld [vmem:[%s413 + $0x1c] sm:$0xf]
      %v422 = vunpack.c.l.b16 %v314
      %v423 = vunpack.c.l.b16 %v328
      %v424 = vunpack.c.l.b16 %v342
      %v425 = vunpack.c.l.b16 %v356
      %v426 = vunpack.c.l.b16 %v370
      %v427 = vunpack.c.l.b16 %v384
      %v428 = vunpack.c.l.b16 %v398
      %v429 = vunpack.c.l.b16 %v412
      %v430 = vpack.c.b16 %v423, %v422
      %v431 = vpack.c.b16 %v425, %v424
      %v432 = vpack.c.b16 %v427, %v426
      %v433 = vpack.c.b16 %v429, %v428
      %v442 = vunpack.c.l.b16 %v414
      %v443 = vunpack.c.l.b16 %v415
      %v444 = vunpack.c.l.b16 %v416
      %v445 = vunpack.c.l.b16 %v417
      %v446 = vunpack.c.l.b16 %v418
      %v447 = vunpack.c.l.b16 %v419
      %v448 = vunpack.c.l.b16 %v420
      %v449 = vunpack.c.l.b16 %v421
      %v450 = vpack.c.b16 %v443, %v442
      %v451 = vpack.c.b16 %v445, %v444
      %v452 = vpack.c.b16 %v447, %v446
      %v453 = vpack.c.b16 %v449, %v448
      %vm458 = vcmask 523264
      %v460 = vsel %vm458, %v430, 0
      %v463 = vsel %vm458, %v431, 0
      %v466 = vsel %vm458, %v432, 0
      %v469 = vsel %vm458, %v433, 0
      %471 = vmatprep.subr.bf16.mxu0 0
      %472 = vmatpush1.bf16.msra.mxu0 %v450
      %473 = vmatprep.subr.bf16.mxu0 0
      %474 = vmatpush1.bf16.msra.mxu0 %v451
      %475 = vmatprep.subr.bf16.mxu0 0
      %476 = vmatpush1.bf16.msra.mxu0 %v452
      %477 = vmatprep.subr.bf16.mxu0 0
      %478 = vmatpush1.bf16.msra.mxu0 %v453
      %479 = vmatprep.subr.bf16.mxu0 0
      %480 = vmatpush1.bf16.msra.mxu0 0
      %481 = vmatprep.subr.bf16.mxu0 0
      %482 = vmatpush1.bf16.msra.mxu0 0
      %483 = vmatprep.subr.bf16.mxu0 0
      %484 = vmatpush1.bf16.msra.mxu0 0
      %485 = vmatprep.subr.bf16.mxu0 0
      %486 = vmatpush1.bf16.msra.mxu0 0
      %487 = vmatprep.subr.bf16.mxu0 0
      %488 = vmatpush1.bf16.msra.mxu0 0
      %489 = vmatprep.subr.bf16.mxu0 0
      %490 = vmatpush1.bf16.msra.mxu0 0
      %491 = vmatprep.subr.bf16.mxu0 0
      %492 = vmatpush1.bf16.msra.mxu0 0
      %493 = vmatprep.subr.bf16.mxu0 0
      %494 = vmatpush1.bf16.msra.mxu0 0
      %495 = vmatprep.subr.bf16.mxu0 0
      %496 = vmatpush1.bf16.msra.mxu0 0
      %497 = vmatprep.subr.bf16.mxu0 0
      %498 = vmatpush1.bf16.msra.mxu0 0
      %499 = vmatprep.subr.bf16.mxu0 0
      %500 = vmatpush1.bf16.msra.mxu0 0
      %501 = vmatprep.subr.bf16.mxu0 0
      %502 = vmatpush1.bf16.msra.mxu0 0
      %503 = vmatprep.mubr.bf16.mxu0 0
      %504 = vmatmul.mubr.bf16.gmra.mrb[0].mxu0 %v460
      %v505 = vpop.f32.mrb[0].mxu0
      %v506 = vadd.f32 0.0, %v505
      %v507 = vpop.f32.mrb[0].mxu0
      %v508 = vpop.f32.mrb[0].mxu0
      %v509 = vadd.f32 0.0, %v508
      %v510 = vpop.f32.mrb[0].mxu0
      %511 = vmatprep.mubr.bf16.mxu0 0
      %512 = vmatmul.mubr.bf16.gmra.mrb[0].mxu0 %v463
      %v513 = vpop.f32.mrb[0].mxu0
      %v514 = vadd.f32 0.0, %v513
      %v515 = vpop.f32.mrb[0].mxu0
      %v516 = vpop.f32.mrb[0].mxu0
      %v517 = vadd.f32 0.0, %v516
      %v518 = vpop.f32.mrb[0].mxu0
      %519 = vmatprep.mubr.bf16.mxu0 0
      %520 = vmatmul.mubr.bf16.gmra.mrb[0].mxu0 %v466
      %v521 = vpop.f32.mrb[0].mxu0
      %v522 = vadd.f32 0.0, %v521
      %v523 = vpop.f32.mrb[0].mxu0
      %v524 = vpop.f32.mrb[0].mxu0
      %v525 = vadd.f32 0.0, %v524
      %v526 = vpop.f32.mrb[0].mxu0
      %527 = vmatprep.mubr.bf16.mxu0 0
      %528 = vmatmul.mubr.bf16.gmra.mrb[0].mxu0 %v469
      %v529 = vpop.f32.mrb[0].mxu0
      %v530 = vadd.f32 0.0, %v529
      %v531 = vpop.f32.mrb[0].mxu0
      %v532 = vpop.f32.mrb[0].mxu0
      %v533 = vadd.f32 0.0, %v532
      %v534 = vpop.f32.mrb[0].mxu0
      %535 = vdwg.mxu0
      %v544 = vunpack.c.l.b16 %v270
      %v545 = vunpack.c.l.b16 %v272
      %v546 = vunpack.c.l.b16 %v274
      %v547 = vunpack.c.l.b16 %v276
      %v548 = vunpack.c.l.b16 %v278
      %v549 = vunpack.c.l.b16 %v280
      %v550 = vunpack.c.l.b16 %v282
      %v551 = vunpack.c.l.b16 %v284
      %v552 = vpack.c.b16 %v545, %v544
      %v553 = vpack.c.b16 %v547, %v546
      %v554 = vpack.c.b16 %v549, %v548
      %v555 = vpack.c.b16 %v551, %v550
      %v564 = vunpack.c.l.b16 %v290
      %v565 = vunpack.c.l.b16 %v291
      %v566 = vunpack.c.l.b16 %v292
      %v567 = vunpack.c.l.b16 %v293
      %v568 = vunpack.c.l.b16 %v294
      %v569 = vunpack.c.l.b16 %v295
      %v570 = vunpack.c.l.b16 %v296
      %v571 = vunpack.c.l.b16 %v297
      %v572 = vpack.c.b16 %v565, %v564
      %v573 = vpack.c.b16 %v567, %v566
      %v574 = vpack.c.b16 %v569, %v568
      %v575 = vpack.c.b16 %v571, %v570
      %v581 = vsel %vm458, %v552, 0
      %v584 = vsel %vm458, %v553, 0
      %v587 = vsel %vm458, %v554, 0
      %v590 = vsel %vm458, %v555, 0
      %592 = vmatprep.subr.bf16.mxu0 0
      %593 = vmatpush1.bf16.msra.mxu0 %v572
      %594 = vmatprep.subr.bf16.mxu0 0
      %595 = vmatpush1.bf16.msra.mxu0 %v573
      %596 = vmatprep.subr.bf16.mxu0 0
      %597 = vmatpush1.bf16.msra.mxu0 %v574
      %598 = vmatprep.subr.bf16.mxu0 0
      %599 = vmatpush1.bf16.msra.mxu0 %v575
      %600 = vmatprep.subr.bf16.mxu0 0
      %601 = vmatpush1.bf16.msra.mxu0 0
      %602 = vmatprep.subr.bf16.mxu0 0
      %603 = vmatpush1.bf16.msra.mxu0 0
      %604 = vmatprep.subr.bf16.mxu0 0
      %605 = vmatpush1.bf16.msra.mxu0 0
      %606 = vmatprep.subr.bf16.mxu0 0
      %607 = vmatpush1.bf16.msra.mxu0 0
      %608 = vmatprep.subr.bf16.mxu0 0
      %609 = vmatpush1.bf16.msra.mxu0 0
      %610 = vmatprep.subr.bf16.mxu0 0
      %611 = vmatpush1.bf16.msra.mxu0 0
      %612 = vmatprep.subr.bf16.mxu0 0
      %613 = vmatpush1.bf16.msra.mxu0 0
      %614 = vmatprep.subr.bf16.mxu0 0
      %615 = vmatpush1.bf16.msra.mxu0 0
      %616 = vmatprep.subr.bf16.mxu0 0
      %617 = vmatpush1.bf16.msra.mxu0 0
      %618 = vmatprep.subr.bf16.mxu0 0
      %619 = vmatpush1.bf16.msra.mxu0 0
      %620 = vmatprep.subr.bf16.mxu0 0
      %621 = vmatpush1.bf16.msra.mxu0 0
      %622 = vmatprep.subr.bf16.mxu0 0
      %623 = vmatpush1.bf16.msra.mxu0 0
      %624 = vmatprep.mubr.bf16.mxu0 0
      %625 = vmatmul.mubr.bf16.gmra.mrb[0].mxu0 %v581
      %v626 = vpop.f32.mrb[0].mxu0
      %v627 = vadd.f32 %v506, %v626
      %v628 = vpop.f32.mrb[0].mxu0
      %v629 = vpop.f32.mrb[0].mxu0
      %v630 = vadd.f32 %v509, %v629
      %v631 = vpop.f32.mrb[0].mxu0
      %632 = vmatprep.mubr.bf16.mxu0 0
      %633 = vmatmul.mubr.bf16.gmra.mrb[0].mxu0 %v584
      %v634 = vpop.f32.mrb[0].mxu0
      %v635 = vadd.f32 %v514, %v634
      %v636 = vpop.f32.mrb[0].mxu0
      %v637 = vpop.f32.mrb[0].mxu0
      %v638 = vadd.f32 %v517, %v637
      %v639 = vpop.f32.mrb[0].mxu0
      %640 = vmatprep.mubr.bf16.mxu0 0
      %641 = vmatmul.mubr.bf16.gmra.mrb[0].mxu0 %v587
      %v642 = vpop.f32.mrb[0].mxu0
      %v643 = vadd.f32 %v522, %v642
      %v644 = vpop.f32.mrb[0].mxu0
      %v645 = vpop.f32.mrb[0].mxu0
      %v646 = vadd.f32 %v525, %v645
      %v647 = vpop.f32.mrb[0].mxu0
      %648 = vmatprep.mubr.bf16.mxu0 0
      %649 = vmatmul.mubr.bf16.gmra.mrb[0].mxu0 %v590
      %v650 = vpop.f32.mrb[0].mxu0
      %v651 = vadd.f32 %v530, %v650
      %v652 = vpop.f32.mrb[0].mxu0
      %v653 = vpop.f32.mrb[0].mxu0
      %v654 = vadd.f32 %v533, %v653
      %v655 = vpop.f32.mrb[0].mxu0
      %656 = vdwg.mxu0
      %vm665 = vcmask 1042432
      %vm666 = vcmask 1046532
      %vm667 = vmor %vm665, %vm666
      %v668 = vrot.slane %v270, 5
      %v669 = vrot.slane %v668, 4
      %v670 = vrot.slane %v271, 5
      %v671 = vsel %vm667, %v669, %v670
      %v672 = vrot.slane %v272, 5
      %v673 = vrot.slane %v672, 4
      %v674 = vrot.slane %v273, 5
      %v675 = vsel %vm667, %v673, %v674
      %v676 = vrot.slane %v274, 5
      %v677 = vrot.slane %v676, 4
      %v678 = vrot.slane %v275, 5
      %v679 = vsel %vm667, %v677, %v678
      %v680 = vrot.slane %v276, 5
      %v681 = vrot.slane %v680, 4
      %v682 = vrot.slane %v277, 5
      %v683 = vsel %vm667, %v681, %v682
      %v684 = vrot.slane %v278, 5
      %v685 = vrot.slane %v684, 4
      %v686 = vrot.slane %v279, 5
      %v687 = vsel %vm667, %v685, %v686
      %v688 = vrot.slane %v280, 5
      %v689 = vrot.slane %v688, 4
      %v690 = vrot.slane %v281, 5
      %v691 = vsel %vm667, %v689, %v690
      %v692 = vrot.slane %v282, 5
      %v693 = vrot.slane %v692, 4
      %v694 = vrot.slane %v283, 5
      %v695 = vsel %vm667, %v693, %v694
      %v696 = vrot.slane %v284, 5
      %v697 = vrot.slane %v696, 4
      %v698 = vrot.slane %v285, 5
      %v699 = vsel %vm667, %v697, %v698
      %s700 = scalar_lea.vmem %s249, 64
      %v701 = vld [vmem:[%s700] sm:$0xf]
      %v702 = vld [vmem:[%s700 + $0x4] sm:$0xf]
      %v703 = vld [vmem:[%s700 + $0x8] sm:$0xf]
      %v704 = vld [vmem:[%s700 + $0xc] sm:$0xf]
      %v705 = vld [vmem:[%s700 + $0x10] sm:$0xf]
      %v706 = vld [vmem:[%s700 + $0x14] sm:$0xf]
      %v707 = vld [vmem:[%s700 + $0x18] sm:$0xf]
      %v708 = vld [vmem:[%s700 + $0x1c] sm:$0xf]
      %v709 = vunpack.c.l.b16 %v671
      %v710 = vunpack.c.l.b16 %v675
      %v711 = vunpack.c.l.b16 %v679
      %v712 = vunpack.c.l.b16 %v683
      %v713 = vunpack.c.l.b16 %v687
      %v714 = vunpack.c.l.b16 %v691
      %v715 = vunpack.c.l.b16 %v695
      %v716 = vunpack.c.l.b16 %v699
      %v717 = vpack.c.b16 %v710, %v709
      %v718 = vpack.c.b16 %v712, %v711
      %v719 = vpack.c.b16 %v714, %v713
      %v720 = vpack.c.b16 %v716, %v715
      %v729 = vunpack.c.l.b16 %v701
      %v730 = vunpack.c.l.b16 %v702
      %v731 = vunpack.c.l.b16 %v703
      %v732 = vunpack.c.l.b16 %v704
      %v733 = vunpack.c.l.b16 %v705
      %v734 = vunpack.c.l.b16 %v706
      %v735 = vunpack.c.l.b16 %v707
      %v736 = vunpack.c.l.b16 %v708
      %v737 = vpack.c.b16 %v730, %v729
      %v738 = vpack.c.b16 %v732, %v731
      %v739 = vpack.c.b16 %v734, %v733
      %v740 = vpack.c.b16 %v736, %v735
      %v746 = vsel %vm458, %v717, 0
      %v749 = vsel %vm458, %v718, 0
      %v752 = vsel %vm458, %v719, 0
      %v755 = vsel %vm458, %v720, 0
      %757 = vmatprep.subr.bf16.mxu0 0
      %758 = vmatpush1.bf16.msra.mxu0 %v737
      %759 = vmatprep.subr.bf16.mxu0 0
      %760 = vmatpush1.bf16.msra.mxu0 %v738
      %761 = vmatprep.subr.bf16.mxu0 0
      %762 = vmatpush1.bf16.msra.mxu0 %v739
      %763 = vmatprep.subr.bf16.mxu0 0
      %764 = vmatpush1.bf16.msra.mxu0 %v740
      %765 = vmatprep.subr.bf16.mxu0 0
      %766 = vmatpush1.bf16.msra.mxu0 0
      %767 = vmatprep.subr.bf16.mxu0 0
      %768 = vmatpush1.bf16.msra.mxu0 0
      %769 = vmatprep.subr.bf16.mxu0 0
      %770 = vmatpush1.bf16.msra.mxu0 0
      %771 = vmatprep.subr.bf16.mxu0 0
      %772 = vmatpush1.bf16.msra.mxu0 0
      %773 = vmatprep.subr.bf16.mxu0 0
      %774 = vmatpush1.bf16.msra.mxu0 0
      %775 = vmatprep.subr.bf16.mxu0 0
      %776 = vmatpush1.bf16.msra.mxu0 0
      %777 = vmatprep.subr.bf16.mxu0 0
      %778 = vmatpush1.bf16.msra.mxu0 0
      %779 = vmatprep.subr.bf16.mxu0 0
      %780 = vmatpush1.bf16.msra.mxu0 0
      %781 = vmatprep.subr.bf16.mxu0 0
      %782 = vmatpush1.bf16.msra.mxu0 0
      %783 = vmatprep.subr.bf16.mxu0 0
      %784 = vmatpush1.bf16.msra.mxu0 0
      %785 = vmatprep.subr.bf16.mxu0 0
      %786 = vmatpush1.bf16.msra.mxu0 0
      %787 = vmatprep.subr.bf16.mxu0 0
      %788 = vmatpush1.bf16.msra.mxu0 0
      %789 = vmatprep.mubr.bf16.mxu0 0
      %790 = vmatmul.mubr.bf16.gmra.mrb[0].mxu0 %v746
      %v791 = vpop.f32.mrb[0].mxu0
      %v792 = vadd.f32 0.0, %v791
      %v793 = vpop.f32.mrb[0].mxu0
      %v794 = vpop.f32.mrb[0].mxu0
      %v795 = vadd.f32 0.0, %v794
      %v796 = vpop.f32.mrb[0].mxu0
      %797 = vmatprep.mubr.bf16.mxu0 0
      %798 = vmatmul.mubr.bf16.gmra.mrb[0].mxu0 %v749
      %v799 = vpop.f32.mrb[0].mxu0
      %v800 = vadd.f32 0.0, %v799
      %v801 = vpop.f32.mrb[0].mxu0
      %v802 = vpop.f32.mrb[0].mxu0
      %v803 = vadd.f32 0.0, %v802
      %v804 = vpop.f32.mrb[0].mxu0
      %805 = vmatprep.mubr.bf16.mxu0 0
      %806 = vmatmul.mubr.bf16.gmra.mrb[0].mxu0 %v752
      %v807 = vpop.f32.mrb[0].mxu0
      %v808 = vadd.f32 0.0, %v807
      %v809 = vpop.f32.mrb[0].mxu0
      %v810 = vpop.f32.mrb[0].mxu0
      %v811 = vadd.f32 0.0, %v810
      %v812 = vpop.f32.mrb[0].mxu0
      %813 = vmatprep.mubr.bf16.mxu0 0
      %814 = vmatmul.mubr.bf16.gmra.mrb[0].mxu0 %v755
      %v815 = vpop.f32.mrb[0].mxu0
      %v816 = vadd.f32 0.0, %v815
      %v817 = vpop.f32.mrb[0].mxu0
      %v818 = vpop.f32.mrb[0].mxu0
      %v819 = vadd.f32 0.0, %v818
      %v820 = vpop.f32.mrb[0].mxu0
      %821 = vdwg.mxu0
      %v822 = vadd.f32 %v627, %v792
      %v823 = vadd.f32 %v630, %v795
      %v824 = vadd.f32 %v635, %v800
      %v825 = vadd.f32 %v638, %v803
      %v826 = vadd.f32 %v643, %v808
      %v827 = vadd.f32 %v646, %v811
      %v828 = vadd.f32 %v651, %v816
      %v829 = vadd.f32 %v654, %v819
      %s830 = scalar_lea.vmem %s249, 96
      %v831 = vld [vmem:[%s830] sm:$0xf]
      %v832 = vld [vmem:[%s830 + $0x4] sm:$0xf]
      %v833 = vld [vmem:[%s830 + $0x8] sm:$0xf]
      %v834 = vld [vmem:[%s830 + $0xc] sm:$0xf]
      %v835 = vld [vmem:[%s830 + $0x10] sm:$0xf]
      %v836 = vld [vmem:[%s830 + $0x14] sm:$0xf]
      %v837 = vld [vmem:[%s830 + $0x18] sm:$0xf]
      %v838 = vld [vmem:[%s830 + $0x1c] sm:$0xf]
      %v840 = vunpack.c.l.b16 %v286
      %v841 = vpack.c.b16 %v546, %v545
      %v842 = vpack.c.b16 %v548, %v547
      %v843 = vpack.c.b16 %v550, %v549
      %v844 = vpack.c.b16 %v840, %v551
      %v853 = vunpack.c.l.b16 %v831
      %v854 = vunpack.c.l.b16 %v832
      %v855 = vunpack.c.l.b16 %v833
      %v856 = vunpack.c.l.b16 %v834
      %v857 = vunpack.c.l.b16 %v835
      %v858 = vunpack.c.l.b16 %v836
      %v859 = vunpack.c.l.b16 %v837
      %v860 = vunpack.c.l.b16 %v838
      %v861 = vpack.c.b16 %v854, %v853
      %v862 = vpack.c.b16 %v856, %v855
      %v863 = vpack.c.b16 %v858, %v857
      %v864 = vpack.c.b16 %v860, %v859
      %v870 = vsel %vm458, %v841, 0
      %v873 = vsel %vm458, %v842, 0
      %v876 = vsel %vm458, %v843, 0
      %v879 = vsel %vm458, %v844, 0
      %881 = vmatprep.subr.bf16.mxu0 0
      %882 = vmatpush1.bf16.msra.mxu0 %v861
      %883 = vmatprep.subr.bf16.mxu0 0
      %884 = vmatpush1.bf16.msra.mxu0 %v862
      %885 = vmatprep.subr.bf16.mxu0 0
      %886 = vmatpush1.bf16.msra.mxu0 %v863
      %887 = vmatprep.subr.bf16.mxu0 0
      %888 = vmatpush1.bf16.msra.mxu0 %v864
      %889 = vmatprep.subr.bf16.mxu0 0
      %890 = vmatpush1.bf16.msra.mxu0 0
      %891 = vmatprep.subr.bf16.mxu0 0
      %892 = vmatpush1.bf16.msra.mxu0 0
      %893 = vmatprep.subr.bf16.mxu0 0
      %894 = vmatpush1.bf16.msra.mxu0 0
      %895 = vmatprep.subr.bf16.mxu0 0
      %896 = vmatpush1.bf16.msra.mxu0 0
      %897 = vmatprep.subr.bf16.mxu0 0
      %898 = vmatpush1.bf16.msra.mxu0 0
      %899 = vmatprep.subr.bf16.mxu0 0
      %900 = vmatpush1.bf16.msra.mxu0 0
      %901 = vmatprep.subr.bf16.mxu0 0
      %902 = vmatpush1.bf16.msra.mxu0 0
      %903 = vmatprep.subr.bf16.mxu0 0
      %904 = vmatpush1.bf16.msra.mxu0 0
      %905 = vmatprep.subr.bf16.mxu0 0
      %906 = vmatpush1.bf16.msra.mxu0 0
      %907 = vmatprep.subr.bf16.mxu0 0
      %908 = vmatpush1.bf16.msra.mxu0 0
      %909 = vmatprep.subr.bf16.mxu0 0
      %910 = vmatpush1.bf16.msra.mxu0 0
      %911 = vmatprep.subr.bf16.mxu0 0
      %912 = vmatpush1.bf16.msra.mxu0 0
      %913 = vmatprep.mubr.bf16.mxu0 0
      %914 = vmatmul.mubr.bf16.gmra.mrb[0].mxu0 %v870
      %v915 = vpop.f32.mrb[0].mxu0
      %v916 = vadd.f32 0.0, %v915
      %v917 = vpop.f32.mrb[0].mxu0
      %v918 = vpop.f32.mrb[0].mxu0
      %v919 = vadd.f32 0.0, %v918
      %v920 = vpop.f32.mrb[0].mxu0
      %921 = vmatprep.mubr.bf16.mxu0 0
      %922 = vmatmul.mubr.bf16.gmra.mrb[0].mxu0 %v873
      %v923 = vpop.f32.mrb[0].mxu0
      %v924 = vadd.f32 0.0, %v923
      %v925 = vpop.f32.mrb[0].mxu0
      %v926 = vpop.f32.mrb[0].mxu0
      %v927 = vadd.f32 0.0, %v926
      %v928 = vpop.f32.mrb[0].mxu0
      %929 = vmatprep.mubr.bf16.mxu0 0
      %930 = vmatmul.mubr.bf16.gmra.mrb[0].mxu0 %v876
      %v931 = vpop.f32.mrb[0].mxu0
      %v932 = vadd.f32 0.0, %v931
      %v933 = vpop.f32.mrb[0].mxu0
      %v934 = vpop.f32.mrb[0].mxu0
      %v935 = vadd.f32 0.0, %v934
      %v936 = vpop.f32.mrb[0].mxu0
      %937 = vmatprep.mubr.bf16.mxu0 0
      %938 = vmatmul.mubr.bf16.gmra.mrb[0].mxu0 %v879
      %v939 = vpop.f32.mrb[0].mxu0
      %v940 = vadd.f32 0.0, %v939
      %v941 = vpop.f32.mrb[0].mxu0
      %v942 = vpop.f32.mrb[0].mxu0
      %v943 = vadd.f32 0.0, %v942
      %v944 = vpop.f32.mrb[0].mxu0
      %945 = vdwg.mxu0
      %v946 = vadd.f32 %v822, %v916
      %v947 = vadd.f32 %v823, %v919
      %v948 = vadd.f32 %v824, %v924
      %v949 = vadd.f32 %v825, %v927
      %v950 = vadd.f32 %v826, %v932
      %v951 = vadd.f32 %v827, %v935
      %v952 = vadd.f32 %v828, %v940
      %v953 = vadd.f32 %v829, %v943
      %v955 = vshrl.u32 %v286, 16
      %v957 = vrot.slane %v955, 4
      %v958 = vshll.u32 %v286, 16
      %v960 = vrot.slane %v958, 5
      %v961 = vor.u32 %v957, %v960
      %v962 = vrot.slane %v961, 4
      %v964 = vshll.u32 %v287, 16
      %v966 = vrot.slane %v964, 5
      %v967 = vsel %vm300, %v962, %v966
      %s968 = scalar_lea.vmem %s249, 128
      %v969 = vld [vmem:[%s968] sm:$0xf]
      %v970 = vld [vmem:[%s968 + $0x4] sm:$0xf]
      %v971 = vld [vmem:[%s968 + $0x8] sm:$0xf]
      %v972 = vld [vmem:[%s968 + $0xc] sm:$0xf]
      %v973 = vld [vmem:[%s968 + $0x10] sm:$0xf]
      %v974 = vld [vmem:[%s968 + $0x14] sm:$0xf]
      %v975 = vld [vmem:[%s968 + $0x18] sm:$0xf]
      %v976 = vld [vmem:[%s968 + $0x1c] sm:$0xf]
      %v977 = vunpack.c.l.b16 %v967
      %v978 = vpack.c.b16 %v424, %v423
      %v979 = vpack.c.b16 %v426, %v425
      %v980 = vpack.c.b16 %v428, %v427
      %v981 = vpack.c.b16 %v977, %v429
      %v990 = vunpack.c.l.b16 %v969
      %v991 = vunpack.c.l.b16 %v970
      %v992 = vunpack.c.l.b16 %v971
      %v993 = vunpack.c.l.b16 %v972
      %v994 = vunpack.c.l.b16 %v973
      %v995 = vunpack.c.l.b16 %v974
      %v996 = vunpack.c.l.b16 %v975
      %v997 = vunpack.c.l.b16 %v976
      %v998 = vpack.c.b16 %v991, %v990
      %v999 = vpack.c.b16 %v993, %v992
      %v1000 = vpack.c.b16 %v995, %v994
      %v1001 = vpack.c.b16 %v997, %v996
      %v1007 = vsel %vm458, %v978, 0
      %v1010 = vsel %vm458, %v979, 0
      %v1013 = vsel %vm458, %v980, 0
      %v1016 = vsel %vm458, %v981, 0
      %1018 = vmatprep.subr.bf16.mxu0 0
      %1019 = vmatpush1.bf16.msra.mxu0 %v998
      %1020 = vmatprep.subr.bf16.mxu0 0
      %1021 = vmatpush1.bf16.msra.mxu0 %v999
      %1022 = vmatprep.subr.bf16.mxu0 0
      %1023 = vmatpush1.bf16.msra.mxu0 %v1000
      %1024 = vmatprep.subr.bf16.mxu0 0
      %1025 = vmatpush1.bf16.msra.mxu0 %v1001
      %1026 = vmatprep.subr.bf16.mxu0 0
      %1027 = vmatpush1.bf16.msra.mxu0 0
      %1028 = vmatprep.subr.bf16.mxu0 0
      %1029 = vmatpush1.bf16.msra.mxu0 0
      %1030 = vmatprep.subr.bf16.mxu0 0
      %1031 = vmatpush1.bf16.msra.mxu0 0
      %1032 = vmatprep.subr.bf16.mxu0 0
      %1033 = vmatpush1.bf16.msra.mxu0 0
      %1034 = vmatprep.subr.bf16.mxu0 0
      %1035 = vmatpush1.bf16.msra.mxu0 0
      %1036 = vmatprep.subr.bf16.mxu0 0
      %1037 = vmatpush1.bf16.msra.mxu0 0
      %1038 = vmatprep.subr.bf16.mxu0 0
      %1039 = vmatpush1.bf16.msra.mxu0 0
      %1040 = vmatprep.subr.bf16.mxu0 0
      %1041 = vmatpush1.bf16.msra.mxu0 0
      %1042 = vmatprep.subr.bf16.mxu0 0
      %1043 = vmatpush1.bf16.msra.mxu0 0
      %1044 = vmatprep.subr.bf16.mxu0 0
      %1045 = vmatpush1.bf16.msra.mxu0 0
      %1046 = vmatprep.subr.bf16.mxu0 0
      %1047 = vmatpush1.bf16.msra.mxu0 0
      %1048 = vmatprep.subr.bf16.mxu0 0
      %1049 = vmatpush1.bf16.msra.mxu0 0
      %1050 = vmatprep.mubr.bf16.mxu0 0
      %1051 = vmatmul.mubr.bf16.gmra.mrb[0].mxu0 %v1007
      %v1052 = vpop.f32.mrb[0].mxu0
      %v1053 = vadd.f32 0.0, %v1052
      %v1054 = vpop.f32.mrb[0].mxu0
      %v1055 = vpop.f32.mrb[0].mxu0
      %v1056 = vadd.f32 0.0, %v1055
      %v1057 = vpop.f32.mrb[0].mxu0
      %1058 = vmatprep.mubr.bf16.mxu0 0
      %1059 = vmatmul.mubr.bf16.gmra.mrb[0].mxu0 %v1010
      %v1060 = vpop.f32.mrb[0].mxu0
      %v1061 = vadd.f32 0.0, %v1060
      %v1062 = vpop.f32.mrb[0].mxu0
      %v1063 = vpop.f32.mrb[0].mxu0
      %v1064 = vadd.f32 0.0, %v1063
      %v1065 = vpop.f32.mrb[0].mxu0
      %1066 = vmatprep.mubr.bf16.mxu0 0
      %1067 = vmatmul.mubr.bf16.gmra.mrb[0].mxu0 %v1013
      %v1068 = vpop.f32.mrb[0].mxu0
      %v1069 = vadd.f32 0.0, %v1068
      %v1070 = vpop.f32.mrb[0].mxu0
      %v1071 = vpop.f32.mrb[0].mxu0
      %v1072 = vadd.f32 0.0, %v1071
      %v1073 = vpop.f32.mrb[0].mxu0
      %1074 = vmatprep.mubr.bf16.mxu0 0
      %1075 = vmatmul.mubr.bf16.gmra.mrb[0].mxu0 %v1016
      %v1076 = vpop.f32.mrb[0].mxu0
      %v1077 = vadd.f32 0.0, %v1076
      %v1078 = vpop.f32.mrb[0].mxu0
      %v1079 = vpop.f32.mrb[0].mxu0
      %v1080 = vadd.f32 0.0, %v1079
      %v1081 = vpop.f32.mrb[0].mxu0
      %1082 = vdwg.mxu0
      %v1083 = vadd.f32 %v946, %v1053
      %v1084 = vadd.f32 %v947, %v1056
      %v1085 = vadd.f32 %v948, %v1061
      %v1086 = vadd.f32 %v949, %v1064
      %v1087 = vadd.f32 %v950, %v1069
      %v1088 = vadd.f32 %v951, %v1072
      %v1089 = vadd.f32 %v952, %v1077
      %v1090 = vadd.f32 %v953, %v1080
      %v1092 = vrot.slane %v286, 5
      %v1093 = vrot.slane %v1092, 4
      %v1094 = vrot.slane %v287, 5
      %v1095 = vsel %vm667, %v1093, %v1094
      %s1096 = scalar_lea.vmem %s249, 160
      %v1097 = vld [vmem:[%s1096] sm:$0xf]
      %v1098 = vld [vmem:[%s1096 + $0x4] sm:$0xf]
      %v1099 = vld [vmem:[%s1096 + $0x8] sm:$0xf]
      %v1100 = vld [vmem:[%s1096 + $0xc] sm:$0xf]
      %v1101 = vld [vmem:[%s1096 + $0x10] sm:$0xf]
      %v1102 = vld [vmem:[%s1096 + $0x14] sm:$0xf]
      %v1103 = vld [vmem:[%s1096 + $0x18] sm:$0xf]
      %v1104 = vld [vmem:[%s1096 + $0x1c] sm:$0xf]
      %v1105 = vunpack.c.l.b16 %v1095
      %v1106 = vpack.c.b16 %v711, %v710
      %v1107 = vpack.c.b16 %v713, %v712
      %v1108 = vpack.c.b16 %v715, %v714
      %v1109 = vpack.c.b16 %v1105, %v716
      %v1118 = vunpack.c.l.b16 %v1097
      %v1119 = vunpack.c.l.b16 %v1098
      %v1120 = vunpack.c.l.b16 %v1099
      %v1121 = vunpack.c.l.b16 %v1100
      %v1122 = vunpack.c.l.b16 %v1101
      %v1123 = vunpack.c.l.b16 %v1102
      %v1124 = vunpack.c.l.b16 %v1103
      %v1125 = vunpack.c.l.b16 %v1104
      %v1126 = vpack.c.b16 %v1119, %v1118
      %v1127 = vpack.c.b16 %v1121, %v1120
      %v1128 = vpack.c.b16 %v1123, %v1122
      %v1129 = vpack.c.b16 %v1125, %v1124
      %v1135 = vsel %vm458, %v1106, 0
      %v1138 = vsel %vm458, %v1107, 0
      %v1141 = vsel %vm458, %v1108, 0
      %v1144 = vsel %vm458, %v1109, 0
      %1146 = vmatprep.subr.bf16.mxu0 0
      %1147 = vmatpush1.bf16.msra.mxu0 %v1126
      %1148 = vmatprep.subr.bf16.mxu0 0
      %1149 = vmatpush1.bf16.msra.mxu0 %v1127
      %1150 = vmatprep.subr.bf16.mxu0 0
      %1151 = vmatpush1.bf16.msra.mxu0 %v1128
      %1152 = vmatprep.subr.bf16.mxu0 0
      %1153 = vmatpush1.bf16.msra.mxu0 %v1129
      %1154 = vmatprep.subr.bf16.mxu0 0
      %1155 = vmatpush1.bf16.msra.mxu0 0
      %1156 = vmatprep.subr.bf16.mxu0 0
      %1157 = vmatpush1.bf16.msra.mxu0 0
      %1158 = vmatprep.subr.bf16.mxu0 0
      %1159 = vmatpush1.bf16.msra.mxu0 0
      %1160 = vmatprep.subr.bf16.mxu0 0
      %1161 = vmatpush1.bf16.msra.mxu0 0
      %1162 = vmatprep.subr.bf16.mxu0 0
      %1163 = vmatpush1.bf16.msra.mxu0 0
      %1164 = vmatprep.subr.bf16.mxu0 0
      %1165 = vmatpush1.bf16.msra.mxu0 0
      %1166 = vmatprep.subr.bf16.mxu0 0
      %1167 = vmatpush1.bf16.msra.mxu0 0
      %1168 = vmatprep.subr.bf16.mxu0 0
      %1169 = vmatpush1.bf16.msra.mxu0 0
      %1170 = vmatprep.subr.bf16.mxu0 0
      %1171 = vmatpush1.bf16.msra.mxu0 0
      %1172 = vmatprep.subr.bf16.mxu0 0
      %1173 = vmatpush1.bf16.msra.mxu0 0
      %1174 = vmatprep.subr.bf16.mxu0 0
      %1175 = vmatpush1.bf16.msra.mxu0 0
      %1176 = vmatprep.subr.bf16.mxu0 0
      %1177 = vmatpush1.bf16.msra.mxu0 0
      %1178 = vmatprep.mubr.bf16.mxu0 0
      %1179 = vmatmul.mubr.bf16.gmra.mrb[0].mxu0 %v1135
      %v1180 = vpop.f32.mrb[0].mxu0
      %v1181 = vadd.f32 0.0, %v1180
      %v1182 = vpop.f32.mrb[0].mxu0
      %v1183 = vpop.f32.mrb[0].mxu0
      %v1184 = vadd.f32 0.0, %v1183
      %v1185 = vpop.f32.mrb[0].mxu0
      %1186 = vmatprep.mubr.bf16.mxu0 0
      %1187 = vmatmul.mubr.bf16.gmra.mrb[0].mxu0 %v1138
      %v1188 = vpop.f32.mrb[0].mxu0
      %v1189 = vadd.f32 0.0, %v1188
      %v1190 = vpop.f32.mrb[0].mxu0
      %v1191 = vpop.f32.mrb[0].mxu0
      %v1192 = vadd.f32 0.0, %v1191
      %v1193 = vpop.f32.mrb[0].mxu0
      %1194 = vmatprep.mubr.bf16.mxu0 0
      %1195 = vmatmul.mubr.bf16.gmra.mrb[0].mxu0 %v1141
      %v1196 = vpop.f32.mrb[0].mxu0
      %v1197 = vadd.f32 0.0, %v1196
      %v1198 = vpop.f32.mrb[0].mxu0
      %v1199 = vpop.f32.mrb[0].mxu0
      %v1200 = vadd.f32 0.0, %v1199
      %v1201 = vpop.f32.mrb[0].mxu0
      %1202 = vmatprep.mubr.bf16.mxu0 0
      %1203 = vmatmul.mubr.bf16.gmra.mrb[0].mxu0 %v1144
      %v1204 = vpop.f32.mrb[0].mxu0
      %v1205 = vadd.f32 0.0, %v1204
      %v1206 = vpop.f32.mrb[0].mxu0
      %v1207 = vpop.f32.mrb[0].mxu0
      %v1208 = vadd.f32 0.0, %v1207
      %v1209 = vpop.f32.mrb[0].mxu0
      %1210 = vdwg.mxu0
      %v1211 = vadd.f32 %v1083, %v1181
      %v1212 = vadd.f32 %v1084, %v1184
      %v1213 = vadd.f32 %v1085, %v1189
      %v1214 = vadd.f32 %v1086, %v1192
      %v1215 = vadd.f32 %v1087, %v1197
      %v1216 = vadd.f32 %v1088, %v1200
      %v1217 = vadd.f32 %v1089, %v1205
      %v1218 = vadd.f32 %v1090, %v1208
      %s1219 = scalar_lea.vmem %s249, 192
      %v1220 = vld [vmem:[%s1219] sm:$0xf]
      %v1221 = vld [vmem:[%s1219 + $0x4] sm:$0xf]
      %v1222 = vld [vmem:[%s1219 + $0x8] sm:$0xf]
      %v1223 = vld [vmem:[%s1219 + $0xc] sm:$0xf]
      %v1224 = vld [vmem:[%s1219 + $0x10] sm:$0xf]
      %v1225 = vld [vmem:[%s1219 + $0x14] sm:$0xf]
      %v1226 = vld [vmem:[%s1219 + $0x18] sm:$0xf]
      %v1227 = vld [vmem:[%s1219 + $0x1c] sm:$0xf]
      %v1229 = vunpack.c.l.b16 %v288
      %v1230 = vpack.c.b16 %v1229, %v840
      %v1239 = vunpack.c.l.b16 %v1220
      %v1240 = vunpack.c.l.b16 %v1221
      %v1241 = vunpack.c.l.b16 %v1222
      %v1242 = vunpack.c.l.b16 %v1223
      %v1243 = vunpack.c.l.b16 %v1224
      %v1244 = vunpack.c.l.b16 %v1225
      %v1245 = vunpack.c.l.b16 %v1226
      %v1246 = vunpack.c.l.b16 %v1227
      %v1247 = vpack.c.b16 %v1240, %v1239
      %v1248 = vpack.c.b16 %v1242, %v1241
      %v1249 = vpack.c.b16 %v1244, %v1243
      %v1250 = vpack.c.b16 %v1246, %v1245
      %v1256 = vsel %vm458, %v1230, 0
      %1258 = vmatprep.subr.bf16.mxu0 0
      %1259 = vmatpush1.bf16.msra.mxu0 %v1247
      %1260 = vmatprep.subr.bf16.mxu0 0
      %1261 = vmatpush1.bf16.msra.mxu0 %v1248
      %1262 = vmatprep.subr.bf16.mxu0 0
      %1263 = vmatpush1.bf16.msra.mxu0 %v1249
      %1264 = vmatprep.subr.bf16.mxu0 0
      %1265 = vmatpush1.bf16.msra.mxu0 %v1250
      %1266 = vmatprep.subr.bf16.mxu0 0
      %1267 = vmatpush1.bf16.msra.mxu0 0
      %1268 = vmatprep.subr.bf16.mxu0 0
      %1269 = vmatpush1.bf16.msra.mxu0 0
      %1270 = vmatprep.subr.bf16.mxu0 0
      %1271 = vmatpush1.bf16.msra.mxu0 0
      %1272 = vmatprep.subr.bf16.mxu0 0
      %1273 = vmatpush1.bf16.msra.mxu0 0
      %1274 = vmatprep.subr.bf16.mxu0 0
      %1275 = vmatpush1.bf16.msra.mxu0 0
      %1276 = vmatprep.subr.bf16.mxu0 0
      %1277 = vmatpush1.bf16.msra.mxu0 0
      %1278 = vmatprep.subr.bf16.mxu0 0
      %1279 = vmatpush1.bf16.msra.mxu0 0
      %1280 = vmatprep.subr.bf16.mxu0 0
      %1281 = vmatpush1.bf16.msra.mxu0 0
      %1282 = vmatprep.subr.bf16.mxu0 0
      %1283 = vmatpush1.bf16.msra.mxu0 0
      %1284 = vmatprep.subr.bf16.mxu0 0
      %1285 = vmatpush1.bf16.msra.mxu0 0
      %1286 = vmatprep.subr.bf16.mxu0 0
      %1287 = vmatpush1.bf16.msra.mxu0 0
      %1288 = vmatprep.subr.bf16.mxu0 0
      %1289 = vmatpush1.bf16.msra.mxu0 0
      %1290 = vmatprep.mubr.bf16.mxu0 0
      %1291 = vmatmul.mubr.bf16.gmra.mrb[0].mxu0 %v584
      %v1292 = vpop.f32.mrb[0].mxu0
      %v1293 = vadd.f32 0.0, %v1292
      %v1294 = vpop.f32.mrb[0].mxu0
      %v1295 = vpop.f32.mrb[0].mxu0
      %v1296 = vadd.f32 0.0, %v1295
      %v1297 = vpop.f32.mrb[0].mxu0
      %1298 = vmatprep.mubr.bf16.mxu0 0
      %1299 = vmatmul.mubr.bf16.gmra.mrb[0].mxu0 %v587
      %v1300 = vpop.f32.mrb[0].mxu0
      %v1301 = vadd.f32 0.0, %v1300
      %v1302 = vpop.f32.mrb[0].mxu0
      %v1303 = vpop.f32.mrb[0].mxu0
      %v1304 = vadd.f32 0.0, %v1303
      %v1305 = vpop.f32.mrb[0].mxu0
      %1306 = vmatprep.mubr.bf16.mxu0 0
      %1307 = vmatmul.mubr.bf16.gmra.mrb[0].mxu0 %v590
      %v1308 = vpop.f32.mrb[0].mxu0
      %v1309 = vadd.f32 0.0, %v1308
      %v1310 = vpop.f32.mrb[0].mxu0
      %v1311 = vpop.f32.mrb[0].mxu0
      %v1312 = vadd.f32 0.0, %v1311
      %v1313 = vpop.f32.mrb[0].mxu0
      %1314 = vmatprep.mubr.bf16.mxu0 0
      %1315 = vmatmul.mubr.bf16.gmra.mrb[0].mxu0 %v1256
      %v1316 = vpop.f32.mrb[0].mxu0
      %v1317 = vadd.f32 0.0, %v1316
      %v1318 = vpop.f32.mrb[0].mxu0
      %v1319 = vpop.f32.mrb[0].mxu0
      %v1320 = vadd.f32 0.0, %v1319
      %v1321 = vpop.f32.mrb[0].mxu0
      %1322 = vdwg.mxu0
      %v1323 = vadd.f32 %v1211, %v1293
      %v1324 = vadd.f32 %v1212, %v1296
      %v1325 = vadd.f32 %v1213, %v1301
      %v1326 = vadd.f32 %v1214, %v1304
      %v1327 = vadd.f32 %v1215, %v1309
      %v1328 = vadd.f32 %v1216, %v1312
      %v1329 = vadd.f32 %v1217, %v1317
      %v1330 = vadd.f32 %v1218, %v1320
      %v1332 = vshrl.u32 %v288, 16
      %v1334 = vrot.slane %v1332, 4
      %v1335 = vshll.u32 %v288, 16
      %v1337 = vrot.slane %v1335, 5
      %v1338 = vor.u32 %v1334, %v1337
      %v1339 = vrot.slane %v1338, 4
      %v1341 = vshll.u32 %v289, 16
      %v1343 = vrot.slane %v1341, 5
      %v1344 = vsel %vm300, %v1339, %v1343
      %s1345 = scalar_lea.vmem %s249, 224
      %v1346 = vld [vmem:[%s1345] sm:$0xf]
      %v1347 = vld [vmem:[%s1345 + $0x4] sm:$0xf]
      %v1348 = vld [vmem:[%s1345 + $0x8] sm:$0xf]
      %v1349 = vld [vmem:[%s1345 + $0xc] sm:$0xf]
      %v1350 = vld [vmem:[%s1345 + $0x10] sm:$0xf]
      %v1351 = vld [vmem:[%s1345 + $0x14] sm:$0xf]
      %v1352 = vld [vmem:[%s1345 + $0x18] sm:$0xf]
      %v1353 = vld [vmem:[%s1345 + $0x1c] sm:$0xf]
      %v1354 = vunpack.c.l.b16 %v1344
      %v1355 = vpack.c.b16 %v1354, %v977
      %v1364 = vunpack.c.l.b16 %v1346
      %v1365 = vunpack.c.l.b16 %v1347
      %v1366 = vunpack.c.l.b16 %v1348
      %v1367 = vunpack.c.l.b16 %v1349
      %v1368 = vunpack.c.l.b16 %v1350
      %v1369 = vunpack.c.l.b16 %v1351
      %v1370 = vunpack.c.l.b16 %v1352
      %v1371 = vunpack.c.l.b16 %v1353
      %v1372 = vpack.c.b16 %v1365, %v1364
      %v1373 = vpack.c.b16 %v1367, %v1366
      %v1374 = vpack.c.b16 %v1369, %v1368
      %v1375 = vpack.c.b16 %v1371, %v1370
      %v1381 = vsel %vm458, %v1355, 0
      %1383 = vmatprep.subr.bf16.mxu0 0
      %1384 = vmatpush1.bf16.msra.mxu0 %v1372
      %1385 = vmatprep.subr.bf16.mxu0 0
      %1386 = vmatpush1.bf16.msra.mxu0 %v1373
      %1387 = vmatprep.subr.bf16.mxu0 0
      %1388 = vmatpush1.bf16.msra.mxu0 %v1374
      %1389 = vmatprep.subr.bf16.mxu0 0
      %1390 = vmatpush1.bf16.msra.mxu0 %v1375
      %1391 = vmatprep.subr.bf16.mxu0 0
      %1392 = vmatpush1.bf16.msra.mxu0 0
      %1393 = vmatprep.subr.bf16.mxu0 0
      %1394 = vmatpush1.bf16.msra.mxu0 0
      %1395 = vmatprep.subr.bf16.mxu0 0
      %1396 = vmatpush1.bf16.msra.mxu0 0
      %1397 = vmatprep.subr.bf16.mxu0 0
      %1398 = vmatpush1.bf16.msra.mxu0 0
      %1399 = vmatprep.subr.bf16.mxu0 0
      %1400 = vmatpush1.bf16.msra.mxu0 0
      %1401 = vmatprep.subr.bf16.mxu0 0
      %1402 = vmatpush1.bf16.msra.mxu0 0
      %1403 = vmatprep.subr.bf16.mxu0 0
      %1404 = vmatpush1.bf16.msra.mxu0 0
      %1405 = vmatprep.subr.bf16.mxu0 0
      %1406 = vmatpush1.bf16.msra.mxu0 0
      %1407 = vmatprep.subr.bf16.mxu0 0
      %1408 = vmatpush1.bf16.msra.mxu0 0
      %1409 = vmatprep.subr.bf16.mxu0 0
      %1410 = vmatpush1.bf16.msra.mxu0 0
      %1411 = vmatprep.subr.bf16.mxu0 0
      %1412 = vmatpush1.bf16.msra.mxu0 0
      %1413 = vmatprep.subr.bf16.mxu0 0
      %1414 = vmatpush1.bf16.msra.mxu0 0
      %1415 = vmatprep.mubr.bf16.mxu0 0
      %1416 = vmatmul.mubr.bf16.gmra.mrb[0].mxu0 %v463
      %v1417 = vpop.f32.mrb[0].mxu0
      %v1418 = vadd.f32 0.0, %v1417
      %v1419 = vpop.f32.mrb[0].mxu0
      %v1420 = vpop.f32.mrb[0].mxu0
      %v1421 = vadd.f32 0.0, %v1420
      %v1422 = vpop.f32.mrb[0].mxu0
      %1423 = vmatprep.mubr.bf16.mxu0 0
      %1424 = vmatmul.mubr.bf16.gmra.mrb[0].mxu0 %v466
      %v1425 = vpop.f32.mrb[0].mxu0
      %v1426 = vadd.f32 0.0, %v1425
      %v1427 = vpop.f32.mrb[0].mxu0
      %v1428 = vpop.f32.mrb[0].mxu0
      %v1429 = vadd.f32 0.0, %v1428
      %v1430 = vpop.f32.mrb[0].mxu0
      %1431 = vmatprep.mubr.bf16.mxu0 0
      %1432 = vmatmul.mubr.bf16.gmra.mrb[0].mxu0 %v469
      %v1433 = vpop.f32.mrb[0].mxu0
      %v1434 = vadd.f32 0.0, %v1433
      %v1435 = vpop.f32.mrb[0].mxu0
      %v1436 = vpop.f32.mrb[0].mxu0
      %v1437 = vadd.f32 0.0, %v1436
      %v1438 = vpop.f32.mrb[0].mxu0
      %1439 = vmatprep.mubr.bf16.mxu0 0
      %1440 = vmatmul.mubr.bf16.gmra.mrb[0].mxu0 %v1381
      %v1441 = vpop.f32.mrb[0].mxu0
      %v1442 = vadd.f32 0.0, %v1441
      %v1443 = vpop.f32.mrb[0].mxu0
      %v1444 = vpop.f32.mrb[0].mxu0
      %v1445 = vadd.f32 0.0, %v1444
      %v1446 = vpop.f32.mrb[0].mxu0
      %1447 = vdwg.mxu0
      %v1448 = vadd.f32 %v1323, %v1418
      %v1449 = vadd.f32 %v1324, %v1421
      %v1450 = vadd.f32 %v1325, %v1426
      %v1451 = vadd.f32 %v1326, %v1429
      %v1452 = vadd.f32 %v1327, %v1434
      %v1453 = vadd.f32 %v1328, %v1437
      %v1454 = vadd.f32 %v1329, %v1442
      %v1455 = vadd.f32 %v1330, %v1445
      %v1457 = vrot.slane %v288, 5
      %v1458 = vrot.slane %v1457, 4
      %v1459 = vrot.slane %v289, 5
      %v1460 = vsel %vm667, %v1458, %v1459
      %s1461 = scalar_lea.vmem %s249, 256
      %v1462 = vld [vmem:[%s1461] sm:$0xf]
      %v1463 = vld [vmem:[%s1461 + $0x4] sm:$0xf]
      %v1464 = vld [vmem:[%s1461 + $0x8] sm:$0xf]
      %v1465 = vld [vmem:[%s1461 + $0xc] sm:$0xf]
      %v1466 = vld [vmem:[%s1461 + $0x10] sm:$0xf]
      %v1467 = vld [vmem:[%s1461 + $0x14] sm:$0xf]
      %v1468 = vld [vmem:[%s1461 + $0x18] sm:$0xf]
      %v1469 = vld [vmem:[%s1461 + $0x1c] sm:$0xf]
      %v1470 = vunpack.c.l.b16 %v1460
      %v1471 = vpack.c.b16 %v1470, %v1105
      %v1480 = vunpack.c.l.b16 %v1462
      %v1481 = vunpack.c.l.b16 %v1463
      %v1482 = vunpack.c.l.b16 %v1464
      %v1483 = vunpack.c.l.b16 %v1465
      %v1484 = vunpack.c.l.b16 %v1466
      %v1485 = vunpack.c.l.b16 %v1467
      %v1486 = vunpack.c.l.b16 %v1468
      %v1487 = vunpack.c.l.b16 %v1469
      %v1488 = vpack.c.b16 %v1481, %v1480
      %v1489 = vpack.c.b16 %v1483, %v1482
      %v1490 = vpack.c.b16 %v1485, %v1484
      %v1491 = vpack.c.b16 %v1487, %v1486
      %v1497 = vsel %vm458, %v1471, 0
      %1499 = vmatprep.subr.bf16.mxu0 0
      %1500 = vmatpush1.bf16.msra.mxu0 %v1488
      %1501 = vmatprep.subr.bf16.mxu0 0
      %1502 = vmatpush1.bf16.msra.mxu0 %v1489
      %1503 = vmatprep.subr.bf16.mxu0 0
      %1504 = vmatpush1.bf16.msra.mxu0 %v1490
      %1505 = vmatprep.subr.bf16.mxu0 0
      %1506 = vmatpush1.bf16.msra.mxu0 %v1491
      %1507 = vmatprep.subr.bf16.mxu0 0
      %1508 = vmatpush1.bf16.msra.mxu0 0
      %1509 = vmatprep.subr.bf16.mxu0 0
      %1510 = vmatpush1.bf16.msra.mxu0 0
      %1511 = vmatprep.subr.bf16.mxu0 0
      %1512 = vmatpush1.bf16.msra.mxu0 0
      %1513 = vmatprep.subr.bf16.mxu0 0
      %1514 = vmatpush1.bf16.msra.mxu0 0
      %1515 = vmatprep.subr.bf16.mxu0 0
      %1516 = vmatpush1.bf16.msra.mxu0 0
      %1517 = vmatprep.subr.bf16.mxu0 0
      %1518 = vmatpush1.bf16.msra.mxu0 0
      %1519 = vmatprep.subr.bf16.mxu0 0
      %1520 = vmatpush1.bf16.msra.mxu0 0
      %1521 = vmatprep.subr.bf16.mxu0 0
      %1522 = vmatpush1.bf16.msra.mxu0 0
      %1523 = vmatprep.subr.bf16.mxu0 0
      %1524 = vmatpush1.bf16.msra.mxu0 0
      %1525 = vmatprep.subr.bf16.mxu0 0
      %1526 = vmatpush1.bf16.msra.mxu0 0
      %1527 = vmatprep.subr.bf16.mxu0 0
      %1528 = vmatpush1.bf16.msra.mxu0 0
      %1529 = vmatprep.subr.bf16.mxu0 0
      %1530 = vmatpush1.bf16.msra.mxu0 0
      %1531 = vmatprep.mubr.bf16.mxu0 0
      %1532 = vmatmul.mubr.bf16.gmra.mrb[0].mxu0 %v749
      %v1533 = vpop.f32.mrb[0].mxu0
      %v1534 = vadd.f32 0.0, %v1533
      %v1535 = vpop.f32.mrb[0].mxu0
      %v1536 = vpop.f32.mrb[0].mxu0
      %v1537 = vadd.f32 0.0, %v1536
      %v1538 = vpop.f32.mrb[0].mxu0
      %1539 = vmatprep.mubr.bf16.mxu0 0
      %1540 = vmatmul.mubr.bf16.gmra.mrb[0].mxu0 %v752
      %v1541 = vpop.f32.mrb[0].mxu0
      %v1542 = vadd.f32 0.0, %v1541
      %v1543 = vpop.f32.mrb[0].mxu0
      %v1544 = vpop.f32.mrb[0].mxu0
      %v1545 = vadd.f32 0.0, %v1544
      %v1546 = vpop.f32.mrb[0].mxu0
      %1547 = vmatprep.mubr.bf16.mxu0 0
      %1548 = vmatmul.mubr.bf16.gmra.mrb[0].mxu0 %v755
      %v1549 = vpop.f32.mrb[0].mxu0
      %v1550 = vadd.f32 0.0, %v1549
      %v1551 = vpop.f32.mrb[0].mxu0
      %v1552 = vpop.f32.mrb[0].mxu0
      %v1553 = vadd.f32 0.0, %v1552
      %v1554 = vpop.f32.mrb[0].mxu0
      %1555 = vmatprep.mubr.bf16.mxu0 0
      %1556 = vmatmul.mubr.bf16.gmra.mrb[0].mxu0 %v1497
      %v1557 = vpop.f32.mrb[0].mxu0
      %v1558 = vadd.f32 0.0, %v1557
      %v1559 = vpop.f32.mrb[0].mxu0
      %v1560 = vpop.f32.mrb[0].mxu0
      %v1561 = vadd.f32 0.0, %v1560
      %v1562 = vpop.f32.mrb[0].mxu0
      %1563 = vdwg.mxu0
      %v1564 = vadd.f32 %v1448, %v1534
      %v1565 = vadd.f32 %v1449, %v1537
      %v1566 = vadd.f32 %v1450, %v1542
      %v1567 = vadd.f32 %v1451, %v1545
      %v1568 = vadd.f32 %v1452, %v1550
      %v1569 = vadd.f32 %v1453, %v1553
      %v1570 = vadd.f32 %v1454, %v1558
      %v1571 = vadd.f32 %v1455, %v1561
      %v1572 = vld [vmem:[%s252] sm:$0x1]
      %v1574 = vlaneseq
      %v1575 = vshrl.u32 %v1574, 7
      %v1576 = vsub.s32 0, %v1575
      %v1577 = vrot.slane %v1572, %v1576
      %v1579 = vadd.f32 %v1564, %v1577
      %v1580 = vadd.f32 %v1565, %v1577
      %v1581 = vadd.f32 %v1566, %v1577
      %v1582 = vadd.f32 %v1567, %v1577
      %v1583 = vadd.f32 %v1568, %v1577
      %v1584 = vadd.f32 %v1569, %v1577
      %v1585 = vadd.f32 %v1570, %v1577
      %v1586 = vadd.f32 %v1571, %v1577
      %v1587 = vpack.c.bf16 %v1580, %v1579
      %v1588 = vpack.c.bf16 %v1582, %v1581
      %v1589 = vpack.c.bf16 %v1584, %v1583
      %v1590 = vpack.c.bf16 %v1586, %v1585
      %v1595 = vunpack.c.l.b16 %v1587
      %v1596 = vunpack.c.h.b16 %v1587
      %v1597 = vunpack.c.l.b16 %v1588
      %v1598 = vunpack.c.h.b16 %v1588
      %v1599 = vunpack.c.l.b16 %v1589
      %v1600 = vunpack.c.h.b16 %v1589
      %v1601 = vunpack.c.l.b16 %v1590
      %v1602 = vunpack.c.h.b16 %v1590
      %v1603 = vpack.c.b16 %v1595, %v1595
      %v1604 = vpack.c.b16 %v1596, %v1596
      %v1605 = vpack.c.b16 %v1597, %v1597
      %v1606 = vpack.c.b16 %v1598, %v1598
      %v1607 = vpack.c.b16 %v1599, %v1599
      %v1608 = vpack.c.b16 %v1600, %v1600
      %v1609 = vpack.c.b16 %v1601, %v1601
      %v1610 = vpack.c.b16 %v1602, %v1602
      %vm1619 = vcmask 519168
      %1620 = vst.msk [vmem:[%s260] sm:$0xf] %vm1619, %v1603
      %1621 = vst.msk [vmem:[%s260 + $0x4] sm:$0xf] %vm1619, %v1604
      %1622 = vst.msk [vmem:[%s260 + $0x8] sm:$0xf] %vm1619, %v1605
      %1623 = vst.msk [vmem:[%s260 + $0xc] sm:$0xf] %vm1619, %v1606
      %1624 = vst.msk [vmem:[%s260 + $0x10] sm:$0xf] %vm1619, %v1607
      %1625 = vst.msk [vmem:[%s260 + $0x14] sm:$0xf] %vm1619, %v1608
      %1626 = vst.msk [vmem:[%s260 + $0x18] sm:$0xf] %vm1619, %v1609
      %1627 = vst.msk [vmem:[%s260 + $0x1c] sm:$0xf] %vm1619, %v1610
      %v1628 = vsel %vm458, %v1579, 0.0
      %v1629 = vsel %vm458, %v1580, 0.0
      %v1630 = vadd.f32 %v1628, %v1629
      %v1631 = vsel %vm458, %v1581, 0.0
      %v1632 = vadd.f32 %v1630, %v1631
      %v1633 = vsel %vm458, %v1582, 0.0
      %v1634 = vadd.f32 %v1632, %v1633
      %v1635 = vsel %vm458, %v1583, 0.0
      %v1636 = vadd.f32 %v1634, %v1635
      %v1637 = vsel %vm458, %v1584, 0.0
      %v1638 = vadd.f32 %v1636, %v1637
      %v1639 = vsel %vm458, %v1585, 0.0
      %v1640 = vadd.f32 %v1638, %v1639
      %v1641 = vsel %vm458, %v1586, 0.0
      %v1642 = vadd.f32 %v1640, %v1641
      %v1643 = vrot.slane %v1642, 4
      %v1644 = vadd.f32 %v1642, %v1643
      %v1645 = vrot.slane %v1644, 2
      %v1646 = vadd.f32 %v1644, %v1645
      %v1647 = vrot.slane %v1646, 1
      %v1648 = vadd.f32 %v1646, %v1647
      %v1649 = vmul.f32 %v1579, %v1579
      %v1650 = vmul.f32 %v1580, %v1580
      %v1651 = vmul.f32 %v1581, %v1581
      %v1652 = vmul.f32 %v1582, %v1582
      %v1653 = vmul.f32 %v1583, %v1583
      %v1654 = vmul.f32 %v1584, %v1584
      %v1655 = vmul.f32 %v1585, %v1585
      %v1656 = vmul.f32 %v1586, %v1586
      %v1657 = vsel %vm458, %v1649, 0.0
      %v1658 = vsel %vm458, %v1650, 0.0
      %v1659 = vadd.f32 %v1657, %v1658
      %v1660 = vsel %vm458, %v1651, 0.0
      %v1661 = vadd.f32 %v1659, %v1660
      %v1662 = vsel %vm458, %v1652, 0.0
      %v1663 = vadd.f32 %v1661, %v1662
      %v1664 = vsel %vm458, %v1653, 0.0
      %v1665 = vadd.f32 %v1663, %v1664
      %v1666 = vsel %vm458, %v1654, 0.0
      %v1667 = vadd.f32 %v1665, %v1666
      %v1668 = vsel %vm458, %v1655, 0.0
      %v1669 = vadd.f32 %v1667, %v1668
      %v1670 = vsel %vm458, %v1656, 0.0
      %v1671 = vadd.f32 %v1669, %v1670
      %v1672 = vrot.slane %v1671, 4
      %v1673 = vadd.f32 %v1671, %v1672
      %v1674 = vrot.slane %v1673, 2
      %v1675 = vadd.f32 %v1673, %v1674
      %v1676 = vrot.slane %v1675, 1
      %v1677 = vadd.f32 %v1675, %v1676
      %vm1678 = vcmask 1040384
      %v1679 = vsel %vm1678, %v1648, %v1677
      %vm1680 = vcmask 517120
      %1681 = vst.msk [vmem:[%s268] sm:$0x3] %vm1680, %v1679
      %s1682 = smul.u32 8, %s20
      %p1683 = scmp.lt.s32.totalorder %s1682, 15
      %s1684 = scalar_select %p1683, %s1682, 15
      %p1685 = scmp.lt.s32.totalorder %s21, 0
      %s1686 = scalar_select %p1685, %s21, 0
      %s1687 = sadd.s32 %s1686, %s1684
      %s1688 = smul.addr %s1687, 4
      %s1689 = scalar_lea.vmem %s3, %s1688
      %p1690 = scmp.lt.s32.totalorder %s20, 1
      %s1691 = scalar_select %p1690, %s20, 1
      %p1692 = scmp.lt.s32.totalorder %s21, 0
      %s1693 = scalar_select %p1692, %s21, 0
      %s1694 = sadd.s32 %s1693, %s1691
      %s1695 = smul.addr %s1694, 2
      %s1696 = scalar_lea.vmem %s4, %s1695
      // Predicated region
      $region33: #{_lambda_.31} parent=31 // pred_check
        %p1697 = pneg %p126
      $region34: #{_lambda_.31} parent=31 // pred_check_branch
        %1699 = sbr.rel (%p1697) target = $region36
      $region35: #{_lambda_.31} parent=31 // pred_region
        %s1700 = smul.u32 8, %s20
      $region36: #{_lambda_.31} parent=31 // pred_fallthru
        _
      // Predicated region
      $region37: #{_lambda_.31} parent=31 // pred_check
        %p1701 = pneg %p154
      $region38: #{_lambda_.31} parent=31 // pred_check_branch
        %1703 = sbr.rel (%p1701) target = $region40
      $region39: #{_lambda_.31} parent=31 // pred_region
        _
      $region40: #{_lambda_.31} parent=31 // pred_fallthru
        _
    $region32: #{_lambda_.31} parent=5 // pred_fallthru
      _
    %p1704 = scmp.le.s32.totalorder 2, %s11
    // Predicated region
    $region41: #{_lambda_.31} parent=5 // pred_check
      %p1705 = pneg %p1704
    $region42: #{_lambda_.31} parent=5 // pred_check_branch
      %1707 = sbr.rel (%p1705) target = $region44
    $region43: #{_lambda_.31} parent=5 // pred_region
      %s1708 = ssub.s32 %s11, 2
      // Predicated region
      $region45: #{_lambda_.31} parent=43 // pred_check
        %p1709 = pneg %p132
      $region46: #{_lambda_.31} parent=43 // pred_check_branch
        %1711 = sbr.rel (%p1709) target = $region48
      $region47: #{_lambda_.31} parent=43 // pred_region
        %s1712 = smul.u32 8, %s22
        %p1713 = scmp.lt.s32.totalorder %s1712, 15
        %s1714 = scalar_select %p1713, %s1712, 15
        %p1715 = scmp.lt.s32.totalorder %s23, 0
        %s1716 = scalar_select %p1715, %s23, 0
        %s1717 = sadd.s32 %s1716, %s1714
        %s1718 = smul.addr %s1717, 4
        %s1719 = scalar_lea.vmem %s3, %s1718
      $region48: #{_lambda_.31} parent=43 // pred_fallthru
        _
      // Predicated region
      $region49: #{_lambda_.31} parent=43 // pred_check
        %p1720 = pneg %p160
      $region50: #{_lambda_.31} parent=43 // pred_check_branch
        %1722 = sbr.rel (%p1720) target = $region52
      $region51: #{_lambda_.31} parent=43 // pred_region
        %p1723 = scmp.lt.s32.totalorder %s22, 1
        %s1724 = scalar_select %p1723, %s22, 1
        %p1725 = scmp.lt.s32.totalorder %s23, 0
        %s1726 = scalar_select %p1725, %s23, 0
        %s1727 = sadd.s32 %s1726, %s1724
        %s1728 = smul.addr %s1727, 2
        %s1729 = scalar_lea.vmem %s4, %s1728
      $region52: #{_lambda_.31} parent=43 // pred_fallthru
        _
    $region44: #{_lambda_.31} parent=5 // pred_fallthru
      _
  $region6: #{_lambda_.31} parent=0 // loop_footer
    %s15 = sadd.s32 1, %s11
  $region7: #{_lambda_.31} parent=0 // loop_footer_branch
    %10 = sbr.rel target = $region3
  $region8: #{_lambda_.31} parent=0 // loop_exit
    _

// kernel: _lambda_.34
$region0: #{_lambda_.34}
  #allocation0 [shape = 'u32[]', space=smem, size = 0x4, offset = 0x4, fixed_abs, tag = 'smem constant byte address 0x4 - core index']
  #allocation1 [shape = 'u32[144,128]{1,0:T(1,128)}', space=vmem, size = 0x12000, scoped, tag = 'internal scratch']
  %s0 = inlined_call_operand.vmem [shape: bf16[128,64], index: 0, kind: input, shape index: {}]
  %s1 = inlined_call_operand.vmem [shape: f32[1,64], index: 1, kind: input, shape index: {}]
  %s2 = inlined_call_operand.vmem [shape: f32[1,64], index: 2, kind: input, shape index: {}]
  %s3 = inlined_call_operand.vmem [shape: bf16[128,64], index: 3, kind: input, shape index: {}]
  %s4 = inlined_call_operand.vmem [shape: f32[1,64], index: 4, kind: input, shape index: {}]
  %s5 = inlined_call_operand.vmem [shape: f32[1,64], index: 5, kind: input, shape index: {}]
  %s6 = inlined_call_operand.vmem [shape: bf16[128,64], index: 6, kind: output, shape index: {}]
  %s7 = sld [smem:[#allocation0]]
  $region34: #{_lambda_.34} parent=0
    _
  %s9 = ssub.s32 1, %s7
  %s10 = scalar_select 0, %s9, %s7
  // Predicated region
  $region2: #{_lambda_.34} parent=0 // pred_check
    _
  $region3: #{_lambda_.34} parent=0 // pred_check_branch
    %12 = sbr.rel (0) target = $region5
  $region4: #{_lambda_.34} parent=0 // pred_region
    _
  $region5: #{_lambda_.34} parent=0 // pred_fallthru
    _
  // Predicated region
  $region6: #{_lambda_.34} parent=0 // pred_check
    _
  $region7: #{_lambda_.34} parent=0 // pred_check_branch
    %14 = sbr.rel (0) target = $region9
  $region8: #{_lambda_.34} parent=0 // pred_region
    _
  $region9: #{_lambda_.34} parent=0 // pred_fallthru
    _
  // Predicated region
  $region10: #{_lambda_.34} parent=0 // pred_check
    _
  $region11: #{_lambda_.34} parent=0 // pred_check_branch
    %16 = sbr.rel (0) target = $region13
  $region12: #{_lambda_.34} parent=0 // pred_region
    _
  $region13: #{_lambda_.34} parent=0 // pred_fallthru
    _
  // Predicated region
  $region14: #{_lambda_.34} parent=0 // pred_check
    _
  $region15: #{_lambda_.34} parent=0 // pred_check_branch
    %18 = sbr.rel (0) target = $region17
  $region16: #{_lambda_.34} parent=0 // pred_region
    _
  $region17: #{_lambda_.34} parent=0 // pred_fallthru
    _
  // Predicated region
  $region18: #{_lambda_.34} parent=0 // pred_check
    _
  $region19: #{_lambda_.34} parent=0 // pred_check_branch
    %20 = sbr.rel (0) target = $region21
  $region20: #{_lambda_.34} parent=0 // pred_region
    _
  $region21: #{_lambda_.34} parent=0 // pred_fallthru
    _
  // Predicated region
  $region22: #{_lambda_.34} parent=0 // pred_check
    _
  $region23: #{_lambda_.34} parent=0 // pred_check_branch
    %22 = sbr.rel (0) target = $region25
  $region24: #{_lambda_.34} parent=0 // pred_region
    _
  $region25: #{_lambda_.34} parent=0 // pred_fallthru
    _
  %v23 = vld [vmem:[%s0] sm:$0xf]
  %v24 = vld [vmem:[%s0 + $0x4] sm:$0xf]
  %v25 = vld [vmem:[%s0 + $0x8] sm:$0xf]
  %v26 = vld [vmem:[%s0 + $0xc] sm:$0xf]
  %v27 = vld [vmem:[%s0 + $0x10] sm:$0xf]
  %v28 = vld [vmem:[%s0 + $0x14] sm:$0xf]
  %v29 = vld [vmem:[%s0 + $0x18] sm:$0xf]
  %v30 = vld [vmem:[%s0 + $0x1c] sm:$0xf]
  %v31 = vld [vmem:[%s0 + $0x20] sm:$0xf]
  %v32 = vld [vmem:[%s0 + $0x24] sm:$0xf]
  %v33 = vld [vmem:[%s0 + $0x28] sm:$0xf]
  %v34 = vld [vmem:[%s0 + $0x2c] sm:$0xf]
  %v35 = vld [vmem:[%s0 + $0x30] sm:$0xf]
  %v36 = vld [vmem:[%s0 + $0x34] sm:$0xf]
  %v37 = vld [vmem:[%s0 + $0x38] sm:$0xf]
  %v38 = vld [vmem:[%s0 + $0x3c] sm:$0xf]
  %v39 = vunpack.c.l.bf16 %v23
  %v40 = vunpack.c.l.bf16 %v24
  %v41 = vunpack.c.l.bf16 %v25
  %v42 = vunpack.c.l.bf16 %v26
  %v43 = vunpack.c.l.bf16 %v27
  %v44 = vunpack.c.l.bf16 %v28
  %v45 = vunpack.c.l.bf16 %v29
  %v46 = vunpack.c.l.bf16 %v30
  %v47 = vunpack.c.l.bf16 %v31
  %v48 = vunpack.c.l.bf16 %v32
  %v49 = vunpack.c.l.bf16 %v33
  %v50 = vunpack.c.l.bf16 %v34
  %v51 = vunpack.c.l.bf16 %v35
  %v52 = vunpack.c.l.bf16 %v36
  %v53 = vunpack.c.l.bf16 %v37
  %v54 = vunpack.c.l.bf16 %v38
  %v55 = vld [vmem:[%s1] sm:$0x1]
  %v57 = vlaneseq
  %v58 = vshrl.u32 %v57, 7
  %v59 = vsub.s32 0, %v58
  %v60 = vrot.slane %v55, %v59
  %v62 = vmul.f32 %v39, %v60
  %v63 = vmul.f32 %v40, %v60
  %v64 = vmul.f32 %v41, %v60
  %v65 = vmul.f32 %v42, %v60
  %v66 = vmul.f32 %v43, %v60
  %v67 = vmul.f32 %v44, %v60
  %v68 = vmul.f32 %v45, %v60
  %v69 = vmul.f32 %v46, %v60
  %v70 = vmul.f32 %v47, %v60
  %v71 = vmul.f32 %v48, %v60
  %v72 = vmul.f32 %v49, %v60
  %v73 = vmul.f32 %v50, %v60
  %v74 = vmul.f32 %v51, %v60
  %v75 = vmul.f32 %v52, %v60
  %v76 = vmul.f32 %v53, %v60
  %v77 = vmul.f32 %v54, %v60
  %v78 = vld [vmem:[%s2] sm:$0x1]
  %v80 = vlaneseq
  %v81 = vshrl.u32 %v80, 7
  %v82 = vsub.s32 0, %v81
  %v83 = vrot.slane %v78, %v82
  %v85 = vadd.f32 %v62, %v83
  %v86 = vadd.f32 %v63, %v83
  %v87 = vadd.f32 %v64, %v83
  %v88 = vadd.f32 %v65, %v83
  %v89 = vadd.f32 %v66, %v83
  %v90 = vadd.f32 %v67, %v83
  %v91 = vadd.f32 %v68, %v83
  %v92 = vadd.f32 %v69, %v83
  %v93 = vadd.f32 %v70, %v83
  %v94 = vadd.f32 %v71, %v83
  %v95 = vadd.f32 %v72, %v83
  %v96 = vadd.f32 %v73, %v83
  %v97 = vadd.f32 %v74, %v83
  %v98 = vadd.f32 %v75, %v83
  %v99 = vadd.f32 %v76, %v83
  %v100 = vadd.f32 %v77, %v83
  %v101 = vmax.f32 %v85, 0.0
  %v102 = vmax.f32 %v86, 0.0
  %v103 = vmax.f32 %v87, 0.0
  %v104 = vmax.f32 %v88, 0.0
  %v105 = vmax.f32 %v89, 0.0
  %v106 = vmax.f32 %v90, 0.0
  %v107 = vmax.f32 %v91, 0.0
  %v108 = vmax.f32 %v92, 0.0
  %v109 = vmax.f32 %v93, 0.0
  %v110 = vmax.f32 %v94, 0.0
  %v111 = vmax.f32 %v95, 0.0
  %v112 = vmax.f32 %v96, 0.0
  %v113 = vmax.f32 %v97, 0.0
  %v114 = vmax.f32 %v98, 0.0
  %v115 = vmax.f32 %v99, 0.0
  %v116 = vmax.f32 %v100, 0.0
  %v117 = vld [vmem:[%s3] sm:$0xf]
  %v118 = vld [vmem:[%s3 + $0x4] sm:$0xf]
  %v119 = vld [vmem:[%s3 + $0x8] sm:$0xf]
  %v120 = vld [vmem:[%s3 + $0xc] sm:$0xf]
  %v121 = vld [vmem:[%s3 + $0x10] sm:$0xf]
  %v122 = vld [vmem:[%s3 + $0x14] sm:$0xf]
  %v123 = vld [vmem:[%s3 + $0x18] sm:$0xf]
  %v124 = vld [vmem:[%s3 + $0x1c] sm:$0xf]
  %v125 = vld [vmem:[%s3 + $0x20] sm:$0xf]
  %v126 = vld [vmem:[%s3 + $0x24] sm:$0xf]
  %v127 = vld [vmem:[%s3 + $0x28] sm:$0xf]
  %v128 = vld [vmem:[%s3 + $0x2c] sm:$0xf]
  %v129 = vld [vmem:[%s3 + $0x30] sm:$0xf]
  %v130 = vld [vmem:[%s3 + $0x34] sm:$0xf]
  %v131 = vld [vmem:[%s3 + $0x38] sm:$0xf]
  %v132 = vld [vmem:[%s3 + $0x3c] sm:$0xf]
  %v133 = vunpack.c.l.bf16 %v117
  %v134 = vunpack.c.l.bf16 %v118
  %v135 = vunpack.c.l.bf16 %v119
  %v136 = vunpack.c.l.bf16 %v120
  %v137 = vunpack.c.l.bf16 %v121
  %v138 = vunpack.c.l.bf16 %v122
  %v139 = vunpack.c.l.bf16 %v123
  %v140 = vunpack.c.l.bf16 %v124
  %v141 = vunpack.c.l.bf16 %v125
  %v142 = vunpack.c.l.bf16 %v126
  %v143 = vunpack.c.l.bf16 %v127
  %v144 = vunpack.c.l.bf16 %v128
  %v145 = vunpack.c.l.bf16 %v129
  %v146 = vunpack.c.l.bf16 %v130
  %v147 = vunpack.c.l.bf16 %v131
  %v148 = vunpack.c.l.bf16 %v132
  %v149 = vld [vmem:[%s4] sm:$0x1]
  %v151 = vlaneseq
  %v152 = vshrl.u32 %v151, 7
  %v153 = vsub.s32 0, %v152
  %v154 = vrot.slane %v149, %v153
  %v156 = vmul.f32 %v133, %v154
  %v157 = vmul.f32 %v134, %v154
  %v158 = vmul.f32 %v135, %v154
  %v159 = vmul.f32 %v136, %v154
  %v160 = vmul.f32 %v137, %v154
  %v161 = vmul.f32 %v138, %v154
  %v162 = vmul.f32 %v139, %v154
  %v163 = vmul.f32 %v140, %v154
  %v164 = vmul.f32 %v141, %v154
  %v165 = vmul.f32 %v142, %v154
  %v166 = vmul.f32 %v143, %v154
  %v167 = vmul.f32 %v144, %v154
  %v168 = vmul.f32 %v145, %v154
  %v169 = vmul.f32 %v146, %v154
  %v170 = vmul.f32 %v147, %v154
  %v171 = vmul.f32 %v148, %v154
  %v172 = vld [vmem:[%s5] sm:$0x1]
  %v174 = vlaneseq
  %v175 = vshrl.u32 %v174, 7
  %v176 = vsub.s32 0, %v175
  %v177 = vrot.slane %v172, %v176
  %v179 = vadd.f32 %v156, %v177
  %v180 = vadd.f32 %v157, %v177
  %v181 = vadd.f32 %v158, %v177
  %v182 = vadd.f32 %v159, %v177
  %v183 = vadd.f32 %v160, %v177
  %v184 = vadd.f32 %v161, %v177
  %v185 = vadd.f32 %v162, %v177
  %v186 = vadd.f32 %v163, %v177
  %v187 = vadd.f32 %v164, %v177
  %v188 = vadd.f32 %v165, %v177
  %v189 = vadd.f32 %v166, %v177
  %v190 = vadd.f32 %v167, %v177
  %v191 = vadd.f32 %v168, %v177
  %v192 = vadd.f32 %v169, %v177
  %v193 = vadd.f32 %v170, %v177
  %v194 = vadd.f32 %v171, %v177
  %v195 = vadd.f32 %v179, %v101
  %v196 = vadd.f32 %v180, %v102
  %v197 = vadd.f32 %v181, %v103
  %v198 = vadd.f32 %v182, %v104
  %v199 = vadd.f32 %v183, %v105
  %v200 = vadd.f32 %v184, %v106
  %v201 = vadd.f32 %v185, %v107
  %v202 = vadd.f32 %v186, %v108
  %v203 = vadd.f32 %v187, %v109
  %v204 = vadd.f32 %v188, %v110
  %v205 = vadd.f32 %v189, %v111
  %v206 = vadd.f32 %v190, %v112
  %v207 = vadd.f32 %v191, %v113
  %v208 = vadd.f32 %v192, %v114
  %v209 = vadd.f32 %v193, %v115
  %v210 = vadd.f32 %v194, %v116
  %v211 = vmax.f32 %v195, 0.0
  %v212 = vmax.f32 %v196, 0.0
  %v213 = vmax.f32 %v197, 0.0
  %v214 = vmax.f32 %v198, 0.0
  %v215 = vmax.f32 %v199, 0.0
  %v216 = vmax.f32 %v200, 0.0
  %v217 = vmax.f32 %v201, 0.0
  %v218 = vmax.f32 %v202, 0.0
  %v219 = vmax.f32 %v203, 0.0
  %v220 = vmax.f32 %v204, 0.0
  %v221 = vmax.f32 %v205, 0.0
  %v222 = vmax.f32 %v206, 0.0
  %v223 = vmax.f32 %v207, 0.0
  %v224 = vmax.f32 %v208, 0.0
  %v225 = vmax.f32 %v209, 0.0
  %v226 = vmax.f32 %v210, 0.0
  %v227 = vpack.c.bf16 %v212, %v211
  %v228 = vpack.c.bf16 %v214, %v213
  %v229 = vpack.c.bf16 %v216, %v215
  %v230 = vpack.c.bf16 %v218, %v217
  %v231 = vpack.c.bf16 %v220, %v219
  %v232 = vpack.c.bf16 %v222, %v221
  %v233 = vpack.c.bf16 %v224, %v223
  %v234 = vpack.c.bf16 %v226, %v225
  %v243 = vunpack.c.l.b16 %v227
  %v244 = vunpack.c.h.b16 %v227
  %v245 = vunpack.c.l.b16 %v228
  %v246 = vunpack.c.h.b16 %v228
  %v247 = vunpack.c.l.b16 %v229
  %v248 = vunpack.c.h.b16 %v229
  %v249 = vunpack.c.l.b16 %v230
  %v250 = vunpack.c.h.b16 %v230
  %v251 = vunpack.c.l.b16 %v231
  %v252 = vunpack.c.h.b16 %v231
  %v253 = vunpack.c.l.b16 %v232
  %v254 = vunpack.c.h.b16 %v232
  %v255 = vunpack.c.l.b16 %v233
  %v256 = vunpack.c.h.b16 %v233
  %v257 = vunpack.c.l.b16 %v234
  %v258 = vunpack.c.h.b16 %v234
  %v259 = vpack.c.b16 %v243, %v243
  %v260 = vpack.c.b16 %v244, %v244
  %v261 = vpack.c.b16 %v245, %v245
  %v262 = vpack.c.b16 %v246, %v246
  %v263 = vpack.c.b16 %v247, %v247
  %v264 = vpack.c.b16 %v248, %v248
  %v265 = vpack.c.b16 %v249, %v249
  %v266 = vpack.c.b16 %v250, %v250
  %v267 = vpack.c.b16 %v251, %v251
  %v268 = vpack.c.b16 %v252, %v252
  %v269 = vpack.c.b16 %v253, %v253
  %v270 = vpack.c.b16 %v254, %v254
  %v271 = vpack.c.b16 %v255, %v255
  %v272 = vpack.c.b16 %v256, %v256
  %v273 = vpack.c.b16 %v257, %v257
  %v274 = vpack.c.b16 %v258, %v258
  %vm291 = vcmask 519168
  %292 = vst.msk [vmem:[%s6] sm:$0xf] %vm291, %v259
  %293 = vst.msk [vmem:[%s6 + $0x4] sm:$0xf] %vm291, %v260
  %294 = vst.msk [vmem:[%s6 + $0x8] sm:$0xf] %vm291, %v261
  %295 = vst.msk [vmem:[%s6 + $0xc] sm:$0xf] %vm291, %v262
  %296 = vst.msk [vmem:[%s6 + $0x10] sm:$0xf] %vm291, %v263
  %297 = vst.msk [vmem:[%s6 + $0x14] sm:$0xf] %vm291, %v264
  %298 = vst.msk [vmem:[%s6 + $0x18] sm:$0xf] %vm291, %v265
  %299 = vst.msk [vmem:[%s6 + $0x1c] sm:$0xf] %vm291, %v266
  %300 = vst.msk [vmem:[%s6 + $0x20] sm:$0xf] %vm291, %v267
  %301 = vst.msk [vmem:[%s6 + $0x24] sm:$0xf] %vm291, %v268
  %302 = vst.msk [vmem:[%s6 + $0x28] sm:$0xf] %vm291, %v269
  %303 = vst.msk [vmem:[%s6 + $0x2c] sm:$0xf] %vm291, %v270
  %304 = vst.msk [vmem:[%s6 + $0x30] sm:$0xf] %vm291, %v271
  %305 = vst.msk [vmem:[%s6 + $0x34] sm:$0xf] %vm291, %v272
  %306 = vst.msk [vmem:[%s6 + $0x38] sm:$0xf] %vm291, %v273
  %307 = vst.msk [vmem:[%s6 + $0x3c] sm:$0xf] %vm291, %v274
  // Predicated region
  $region26: #{_lambda_.34} parent=0 // pred_check
    _
  $region27: #{_lambda_.34} parent=0 // pred_check_branch
    %309 = sbr.rel (0) target = $region29
  $region28: #{_lambda_.34} parent=0 // pred_region
    _
  $region29: #{_lambda_.34} parent=0 // pred_fallthru
    _
  // Predicated region
  $region30: #{_lambda_.34} parent=0 // pred_check
    _
  $region31: #{_lambda_.34} parent=0 // pred_check_branch
    %311 = sbr.rel (0) target = $region33
  $region32: #{_lambda_.34} parent=0 // pred_region
    _
  $region33: #{_lambda_.34} parent=0 // pred_fallthru
    _

// kernel: _lambda_.40
$region0: #{_lambda_.40}
  #allocation0 [shape = 'u32[]', space=smem, size = 0x4, offset = 0x4, fixed_abs, tag = 'smem constant byte address 0x4 - core index']
  #allocation1 [shape = 'u32[144,128]{1,0:T(1,128)}', space=vmem, size = 0x12000, scoped, tag = 'internal scratch']
  %s0 = inlined_call_operand.vmem [shape: bf16[32,128], index: 0, kind: input, shape index: {}]
  %s1 = inlined_call_operand.vmem [shape: f32[1,128], index: 1, kind: input, shape index: {}]
  %s2 = inlined_call_operand.vmem [shape: f32[1,128], index: 2, kind: input, shape index: {}]
  %s3 = inlined_call_operand.vmem [shape: bf16[32,128], index: 3, kind: output, shape index: {}]
  %s4 = sld [smem:[#allocation0]]
  $region22: #{_lambda_.40} parent=0
    _
  %s6 = ssub.s32 1, %s4
  %s7 = scalar_select 0, %s6, %s4
  // Predicated region
  $region2: #{_lambda_.40} parent=0 // pred_check
    _
  $region3: #{_lambda_.40} parent=0 // pred_check_branch
    %9 = sbr.rel (0) target = $region5
  $region4: #{_lambda_.40} parent=0 // pred_region
    _
  $region5: #{_lambda_.40} parent=0 // pred_fallthru
    _
  // Predicated region
  $region6: #{_lambda_.40} parent=0 // pred_check
    _
  $region7: #{_lambda_.40} parent=0 // pred_check_branch
    %11 = sbr.rel (0) target = $region9
  $region8: #{_lambda_.40} parent=0 // pred_region
    _
  $region9: #{_lambda_.40} parent=0 // pred_fallthru
    _
  // Predicated region
  $region10: #{_lambda_.40} parent=0 // pred_check
    _
  $region11: #{_lambda_.40} parent=0 // pred_check_branch
    %13 = sbr.rel (0) target = $region13
  $region12: #{_lambda_.40} parent=0 // pred_region
    _
  $region13: #{_lambda_.40} parent=0 // pred_fallthru
    _
  %v14 = vld [vmem:[%s0] sm:$0xf]
  %v15 = vld [vmem:[%s0 + $0x4] sm:$0xf]
  %v16 = vld [vmem:[%s0 + $0x8] sm:$0xf]
  %v17 = vld [vmem:[%s0 + $0xc] sm:$0xf]
  %v18 = vunpack.c.l.bf16 %v14
  %v19 = vunpack.c.l.bf16 %v15
  %v20 = vunpack.c.l.bf16 %v16
  %v21 = vunpack.c.l.bf16 %v17
  %v22 = vld [vmem:[%s1] sm:$0x1]
  %v24 = vlaneseq
  %v25 = vshrl.u32 %v24, 7
  %v26 = vsub.s32 0, %v25
  %v27 = vrot.slane %v22, %v26
  %v29 = vmul.f32 %v18, %v27
  %v30 = vmul.f32 %v19, %v27
  %v31 = vmul.f32 %v20, %v27
  %v32 = vmul.f32 %v21, %v27
  %v33 = vld [vmem:[%s2] sm:$0x1]
  %v35 = vlaneseq
  %v36 = vshrl.u32 %v35, 7
  %v37 = vsub.s32 0, %v36
  %v38 = vrot.slane %v33, %v37
  %v40 = vadd.f32 %v29, %v38
  %v41 = vadd.f32 %v30, %v38
  %v42 = vadd.f32 %v31, %v38
  %v43 = vadd.f32 %v32, %v38
  %v44 = vmax.f32 %v40, 0.0
  %v45 = vmax.f32 %v41, 0.0
  %v46 = vmax.f32 %v42, 0.0
  %v47 = vmax.f32 %v43, 0.0
  %v48 = vpack.c.bf16 %v45, %v44
  %v49 = vpack.c.bf16 %v47, %v46
  %v52 = vunpack.c.l.b16 %v48
  %v53 = vunpack.c.h.b16 %v48
  %v54 = vunpack.c.l.b16 %v49
  %v55 = vunpack.c.h.b16 %v49
  %v56 = vpack.c.b16 %v52, %v52
  %v57 = vpack.c.b16 %v53, %v53
  %v58 = vpack.c.b16 %v54, %v54
  %v59 = vpack.c.b16 %v55, %v55
  %64 = vst [vmem:[%s3] sm:$0xf] %v56
  %65 = vst [vmem:[%s3 + $0x4] sm:$0xf] %v57
  %66 = vst [vmem:[%s3 + $0x8] sm:$0xf] %v58
  %67 = vst [vmem:[%s3 + $0xc] sm:$0xf] %v59
  // Predicated region
  $region14: #{_lambda_.40} parent=0 // pred_check
    _
  $region15: #{_lambda_.40} parent=0 // pred_check_branch
    %69 = sbr.rel (0) target = $region17
  $region16: #{_lambda_.40} parent=0 // pred_region
    _
  $region17: #{_lambda_.40} parent=0 // pred_fallthru
    _
  // Predicated region
  $region18: #{_lambda_.40} parent=0 // pred_check
    _
  $region19: #{_lambda_.40} parent=0 // pred_check_branch
    %71 = sbr.rel (0) target = $region21
  $region20: #{_lambda_.40} parent=0 // pred_region
    _
  $region21: #{_lambda_.40} parent=0 // pred_fallthru
    _

// kernel: _lambda_.39
$region0: #{_lambda_.39}
  #allocation0 [shape = 'u32[]', space=smem, size = 0x4, offset = 0x4, fixed_abs, tag = 'smem constant byte address 0x4 - core index']
  #allocation1 [shape = 'u32[144,128]{1,0:T(1,128)}', space=vmem, size = 0x12000, scoped, tag = 'internal scratch']
  %s0 = inlined_call_operand.vmem [shape: bf16[32,576], index: 0, kind: input, shape index: {}]
  %s1 = inlined_call_operand.vmem [shape: bf16[576,128], index: 1, kind: input, shape index: {}]
  %s2 = inlined_call_operand.vmem [shape: f32[1,128], index: 2, kind: input, shape index: {}]
  %s3 = inlined_call_operand.vmem [shape: bf16[32,128], index: 3, kind: output, shape index: {0}]
  %s4 = inlined_call_operand.vmem [shape: f32[1,2,128], index: 4, kind: output, shape index: {1}]
  %5 = xla_tuple %s3, %s4
  %s6 = sld [smem:[#allocation0]]
  $region30: #{_lambda_.39} parent=0
    _
  %s8 = ssub.s32 1, %s6
  %s9 = scalar_select 0, %s8, %s6
  // Predicated region
  $region2: #{_lambda_.39} parent=0 // pred_check
    _
  $region3: #{_lambda_.39} parent=0 // pred_check_branch
    %11 = sbr.rel (0) target = $region5
  $region4: #{_lambda_.39} parent=0 // pred_region
    _
  $region5: #{_lambda_.39} parent=0 // pred_fallthru
    _
  // Predicated region
  $region6: #{_lambda_.39} parent=0 // pred_check
    _
  $region7: #{_lambda_.39} parent=0 // pred_check_branch
    %13 = sbr.rel (0) target = $region9
  $region8: #{_lambda_.39} parent=0 // pred_region
    _
  $region9: #{_lambda_.39} parent=0 // pred_fallthru
    _
  // Predicated region
  $region10: #{_lambda_.39} parent=0 // pred_check
    _
  $region11: #{_lambda_.39} parent=0 // pred_check_branch
    %15 = sbr.rel (0) target = $region13
  $region12: #{_lambda_.39} parent=0 // pred_region
    _
  $region13: #{_lambda_.39} parent=0 // pred_fallthru
    _
  %v17 = vld [vmem:[%s0] sm:$0xff]
  %v18 = vld [vmem:[%s0 + $0x8] sm:$0xff]
  %v19 = vld [vmem:[%s0 + $0x10] sm:$0xf]
  %v20 = vld [vmem:[%s0 + $0x14] sm:$0xff]
  %v21 = vld [vmem:[%s0 + $0x1c] sm:$0xff]
  %v22 = vld [vmem:[%s0 + $0x24] sm:$0xf]
  %v23 = vld [vmem:[%s0 + $0x28] sm:$0xff]
  %v24 = vld [vmem:[%s0 + $0x30] sm:$0xff]
  %v25 = vld [vmem:[%s0 + $0x38] sm:$0xf]
  %v26 = vld [vmem:[%s0 + $0x3c] sm:$0xff]
  %v27 = vld [vmem:[%s0 + $0x44] sm:$0xff]
  %v28 = vld [vmem:[%s0 + $0x4c] sm:$0xf]
  %v29 = vld [vmem:[%s1] sm:$0xf]
  %v30 = vld [vmem:[%s1 + $0x4] sm:$0xf]
  %v31 = vld [vmem:[%s1 + $0x8] sm:$0xf]
  %v32 = vld [vmem:[%s1 + $0xc] sm:$0xf]
  %v33 = vld [vmem:[%s1 + $0x10] sm:$0xf]
  %v34 = vld [vmem:[%s1 + $0x14] sm:$0xf]
  %v35 = vld [vmem:[%s1 + $0x18] sm:$0xf]
  %v36 = vld [vmem:[%s1 + $0x1c] sm:$0xf]
  %v37 = vld [vmem:[%s1 + $0x20] sm:$0xf]
  %v38 = vld [vmem:[%s1 + $0x24] sm:$0xf]
  %v39 = vld [vmem:[%s1 + $0x28] sm:$0xf]
  %v40 = vld [vmem:[%s1 + $0x2c] sm:$0xf]
  %v41 = vld [vmem:[%s1 + $0x30] sm:$0xf]
  %v42 = vld [vmem:[%s1 + $0x34] sm:$0xf]
  %v43 = vld [vmem:[%s1 + $0x38] sm:$0xf]
  %v44 = vld [vmem:[%s1 + $0x3c] sm:$0xf]
  %v45 = vld [vmem:[%s1 + $0x40] sm:$0xf]
  %v46 = vld [vmem:[%s1 + $0x44] sm:$0xf]
  %v47 = vld [vmem:[%s1 + $0x48] sm:$0xf]
  %v48 = vld [vmem:[%s1 + $0x4c] sm:$0xf]
  %v49 = vld [vmem:[%s1 + $0x50] sm:$0xf]
  %v50 = vld [vmem:[%s1 + $0x54] sm:$0xf]
  %v51 = vld [vmem:[%s1 + $0x58] sm:$0xf]
  %v52 = vld [vmem:[%s1 + $0x5c] sm:$0xf]
  %v53 = vld [vmem:[%s1 + $0x60] sm:$0xf]
  %v54 = vld [vmem:[%s1 + $0x64] sm:$0xf]
  %v55 = vld [vmem:[%s1 + $0x68] sm:$0xf]
  %v56 = vld [vmem:[%s1 + $0x6c] sm:$0xf]
  %v57 = vld [vmem:[%s1 + $0x70] sm:$0xf]
  %v58 = vld [vmem:[%s1 + $0x74] sm:$0xf]
  %v59 = vld [vmem:[%s1 + $0x78] sm:$0xf]
  %v60 = vld [vmem:[%s1 + $0x7c] sm:$0xf]
  %v61 = vld [vmem:[%s1 + $0x80] sm:$0xf]
  %v62 = vld [vmem:[%s1 + $0x84] sm:$0xf]
  %v63 = vld [vmem:[%s1 + $0x88] sm:$0xf]
  %v64 = vld [vmem:[%s1 + $0x8c] sm:$0xf]
  %v65 = vld [vmem:[%s1 + $0x90] sm:$0xf]
  %v66 = vld [vmem:[%s1 + $0x94] sm:$0xf]
  %v67 = vld [vmem:[%s1 + $0x98] sm:$0xf]
  %v68 = vld [vmem:[%s1 + $0x9c] sm:$0xf]
  %v69 = vld [vmem:[%s1 + $0xa0] sm:$0xf]
  %v70 = vld [vmem:[%s1 + $0xa4] sm:$0xf]
  %v71 = vld [vmem:[%s1 + $0xa8] sm:$0xf]
  %v72 = vld [vmem:[%s1 + $0xac] sm:$0xf]
  %v73 = vld [vmem:[%s1 + $0xb0] sm:$0xf]
  %v74 = vld [vmem:[%s1 + $0xb4] sm:$0xf]
  %v75 = vld [vmem:[%s1 + $0xb8] sm:$0xf]
  %v76 = vld [vmem:[%s1 + $0xbc] sm:$0xf]
  %v77 = vld [vmem:[%s1 + $0xc0] sm:$0xf]
  %v78 = vld [vmem:[%s1 + $0xc4] sm:$0xf]
  %v79 = vld [vmem:[%s1 + $0xc8] sm:$0xf]
  %v80 = vld [vmem:[%s1 + $0xcc] sm:$0xf]
  %v81 = vld [vmem:[%s1 + $0xd0] sm:$0xf]
  %v82 = vld [vmem:[%s1 + $0xd4] sm:$0xf]
  %v83 = vld [vmem:[%s1 + $0xd8] sm:$0xf]
  %v84 = vld [vmem:[%s1 + $0xdc] sm:$0xf]
  %v85 = vld [vmem:[%s1 + $0xe0] sm:$0xf]
  %v86 = vld [vmem:[%s1 + $0xe4] sm:$0xf]
  %v87 = vld [vmem:[%s1 + $0xe8] sm:$0xf]
  %v88 = vld [vmem:[%s1 + $0xec] sm:$0xf]
  %v89 = vld [vmem:[%s1 + $0xf0] sm:$0xf]
  %v90 = vld [vmem:[%s1 + $0xf4] sm:$0xf]
  %v91 = vld [vmem:[%s1 + $0xf8] sm:$0xf]
  %v92 = vld [vmem:[%s1 + $0xfc] sm:$0xf]
  %v93 = vld [vmem:[%s1 + $0x100] sm:$0xf]
  %v94 = vld [vmem:[%s1 + $0x104] sm:$0xf]
  %v95 = vld [vmem:[%s1 + $0x108] sm:$0xf]
  %v96 = vld [vmem:[%s1 + $0x10c] sm:$0xf]
  %v97 = vld [vmem:[%s1 + $0x110] sm:$0xf]
  %v98 = vld [vmem:[%s1 + $0x114] sm:$0xf]
  %v99 = vld [vmem:[%s1 + $0x118] sm:$0xf]
  %v100 = vld [vmem:[%s1 + $0x11c] sm:$0xf]
  %v101 = vld [vmem:[%s2] sm:$0x1]
  %v103 = vlaneseq
  %v104 = vshrl.u32 %v103, 7
  %v105 = vsub.s32 0, %v104
  %v106 = vrot.slane %v101, %v105
  %v120 = vunpack.c.l.b16 %v17
  %v121 = vunpack.c.h.b16 %v17
  %v122 = vunpack.c.l.b16 %v18
  %v123 = vunpack.c.h.b16 %v18
  %v124 = vunpack.c.l.b16 %v19
  %v125 = vunpack.c.l.b16 %v20
  %v126 = vunpack.c.h.b16 %v20
  %v127 = vunpack.c.l.b16 %v21
  %v128 = vunpack.c.h.b16 %v21
  %v129 = vunpack.c.l.b16 %v22
  %v130 = vunpack.c.l.b16 %v23
  %v131 = vunpack.c.h.b16 %v23
  %v132 = vunpack.c.l.b16 %v24
  %v133 = vunpack.c.h.b16 %v24
  %v134 = vunpack.c.l.b16 %v25
  %v135 = vunpack.c.l.b16 %v26
  %v136 = vunpack.c.h.b16 %v26
  %v137 = vunpack.c.l.b16 %v27
  %v138 = vunpack.c.h.b16 %v27
  %v139 = vunpack.c.l.b16 %v28
  %v140 = vpack.c.b16 %v125, %v120
  %v141 = vpack.c.b16 %v126, %v121
  %v142 = vpack.c.b16 %v127, %v122
  %v143 = vpack.c.b16 %v128, %v123
  %v144 = vpack.c.b16 %v129, %v124
  %v145 = vpack.c.b16 %v135, %v130
  %v146 = vpack.c.b16 %v136, %v131
  %v147 = vpack.c.b16 %v137, %v132
  %v148 = vpack.c.b16 %v138, %v133
  %v149 = vpack.c.b16 %v139, %v134
  %v230 = vunpack.c.l.b16 %v29
  %v231 = vunpack.c.l.b16 %v30
  %v232 = vunpack.c.l.b16 %v31
  %v233 = vunpack.c.l.b16 %v32
  %v234 = vunpack.c.l.b16 %v33
  %v235 = vunpack.c.l.b16 %v34
  %v236 = vunpack.c.l.b16 %v35
  %v237 = vunpack.c.l.b16 %v36
  %v238 = vunpack.c.l.b16 %v37
  %v239 = vunpack.c.l.b16 %v38
  %v240 = vunpack.c.l.b16 %v39
  %v241 = vunpack.c.l.b16 %v40
  %v242 = vunpack.c.l.b16 %v41
  %v243 = vunpack.c.l.b16 %v42
  %v244 = vunpack.c.l.b16 %v43
  %v245 = vunpack.c.l.b16 %v44
  %v246 = vunpack.c.l.b16 %v45
  %v247 = vunpack.c.l.b16 %v46
  %v248 = vunpack.c.l.b16 %v47
  %v249 = vunpack.c.l.b16 %v48
  %v250 = vunpack.c.l.b16 %v49
  %v251 = vunpack.c.l.b16 %v50
  %v252 = vunpack.c.l.b16 %v51
  %v253 = vunpack.c.l.b16 %v52
  %v254 = vunpack.c.l.b16 %v53
  %v255 = vunpack.c.l.b16 %v54
  %v256 = vunpack.c.l.b16 %v55
  %v257 = vunpack.c.l.b16 %v56
  %v258 = vunpack.c.l.b16 %v57
  %v259 = vunpack.c.l.b16 %v58
  %v260 = vunpack.c.l.b16 %v59
  %v261 = vunpack.c.l.b16 %v60
  %v262 = vunpack.c.l.b16 %v61
  %v263 = vunpack.c.l.b16 %v62
  %v264 = vunpack.c.l.b16 %v63
  %v265 = vunpack.c.l.b16 %v64
  %v266 = vunpack.c.l.b16 %v65
  %v267 = vunpack.c.l.b16 %v66
  %v268 = vunpack.c.l.b16 %v67
  %v269 = vunpack.c.l.b16 %v68
  %v270 = vunpack.c.l.b16 %v69
  %v271 = vunpack.c.l.b16 %v70
  %v272 = vunpack.c.l.b16 %v71
  %v273 = vunpack.c.l.b16 %v72
  %v274 = vunpack.c.l.b16 %v73
  %v275 = vunpack.c.l.b16 %v74
  %v276 = vunpack.c.l.b16 %v75
  %v277 = vunpack.c.l.b16 %v76
  %v278 = vunpack.c.l.b16 %v77
  %v279 = vunpack.c.l.b16 %v78
  %v280 = vunpack.c.l.b16 %v79
  %v281 = vunpack.c.l.b16 %v80
  %v282 = vunpack.c.l.b16 %v81
  %v283 = vunpack.c.l.b16 %v82
  %v284 = vunpack.c.l.b16 %v83
  %v285 = vunpack.c.l.b16 %v84
  %v286 = vunpack.c.l.b16 %v85
  %v287 = vunpack.c.l.b16 %v86
  %v288 = vunpack.c.l.b16 %v87
  %v289 = vunpack.c.l.b16 %v88
  %v290 = vunpack.c.l.b16 %v89
  %v291 = vunpack.c.l.b16 %v90
  %v292 = vunpack.c.l.b16 %v91
  %v293 = vunpack.c.l.b16 %v92
  %v294 = vunpack.c.l.b16 %v93
  %v295 = vunpack.c.l.b16 %v94
  %v296 = vunpack.c.l.b16 %v95
  %v297 = vunpack.c.l.b16 %v96
  %v298 = vunpack.c.l.b16 %v97
  %v299 = vunpack.c.l.b16 %v98
  %v300 = vunpack.c.l.b16 %v99
  %v301 = vunpack.c.l.b16 %v100
  %v302 = vpack.c.b16 %v231, %v230
  %v303 = vpack.c.b16 %v233, %v232
  %v304 = vpack.c.b16 %v235, %v234
  %v305 = vpack.c.b16 %v237, %v236
  %v306 = vpack.c.b16 %v239, %v238
  %v307 = vpack.c.b16 %v241, %v240
  %v308 = vpack.c.b16 %v243, %v242
  %v309 = vpack.c.b16 %v245, %v244
  %v310 = vpack.c.b16 %v247, %v246
  %v311 = vpack.c.b16 %v249, %v248
  %v312 = vpack.c.b16 %v251, %v250
  %v313 = vpack.c.b16 %v253, %v252
  %v314 = vpack.c.b16 %v255, %v254
  %v315 = vpack.c.b16 %v257, %v256
  %v316 = vpack.c.b16 %v259, %v258
  %v317 = vpack.c.b16 %v261, %v260
  %v318 = vpack.c.b16 %v263, %v262
  %v319 = vpack.c.b16 %v265, %v264
  %v320 = vpack.c.b16 %v267, %v266
  %v321 = vpack.c.b16 %v269, %v268
  %v322 = vpack.c.b16 %v271, %v270
  %v323 = vpack.c.b16 %v273, %v272
  %v324 = vpack.c.b16 %v275, %v274
  %v325 = vpack.c.b16 %v277, %v276
  %v326 = vpack.c.b16 %v279, %v278
  %v327 = vpack.c.b16 %v281, %v280
  %v328 = vpack.c.b16 %v283, %v282
  %v329 = vpack.c.b16 %v285, %v284
  %v330 = vpack.c.b16 %v287, %v286
  %v331 = vpack.c.b16 %v289, %v288
  %v332 = vpack.c.b16 %v291, %v290
  %v333 = vpack.c.b16 %v293, %v292
  %v334 = vpack.c.b16 %v295, %v294
  %v335 = vpack.c.b16 %v297, %v296
  %v336 = vpack.c.b16 %v299, %v298
  %v337 = vpack.c.b16 %v301, %v300
  %vm374 = vcmask 523264
  %v376 = vsel %vm374, %v144, 0
  %v379 = vsel %vm374, %v149, 0
  %381 = vmatprep.subr.bf16.mxu0 0
  %382 = vmatpush1.bf16.msra.mxu0 %v302
  %383 = vmatprep.subr.bf16.mxu0 0
  %384 = vmatpush1.bf16.msra.mxu0 %v303
  %385 = vmatprep.subr.bf16.mxu0 0
  %386 = vmatpush1.bf16.msra.mxu0 %v304
  %387 = vmatprep.subr.bf16.mxu0 0
  %388 = vmatpush1.bf16.msra.mxu0 %v305
  %389 = vmatprep.subr.bf16.mxu0 0
  %390 = vmatpush1.bf16.msra.mxu0 %v306
  %391 = vmatprep.subr.bf16.mxu0 0
  %392 = vmatpush1.bf16.msra.mxu0 %v307
  %393 = vmatprep.subr.bf16.mxu0 0
  %394 = vmatpush1.bf16.msra.mxu0 %v308
  %395 = vmatprep.subr.bf16.mxu0 0
  %396 = vmatpush1.bf16.msra.mxu0 %v309
  %397 = vmatprep.subr.bf16.mxu0 0
  %398 = vmatpush1.bf16.msra.mxu0 %v310
  %399 = vmatprep.subr.bf16.mxu0 0
  %400 = vmatpush1.bf16.msra.mxu0 %v311
  %401 = vmatprep.subr.bf16.mxu0 0
  %402 = vmatpush1.bf16.msra.mxu0 %v312
  %403 = vmatprep.subr.bf16.mxu0 0
  %404 = vmatpush1.bf16.msra.mxu0 %v313
  %405 = vmatprep.subr.bf16.mxu0 0
  %406 = vmatpush1.bf16.msra.mxu0 %v314
  %407 = vmatprep.subr.bf16.mxu0 0
  %408 = vmatpush1.bf16.msra.mxu0 %v315
  %409 = vmatprep.subr.bf16.mxu0 0
  %410 = vmatpush1.bf16.msra.mxu0 %v316
  %411 = vmatprep.subr.bf16.mxu0 0
  %412 = vmatpush1.bf16.msra.mxu0 %v317
  %413 = vmatprep.mubr.bf16.mxu0 %v141
  %414 = vmatmul.mubr.bf16.gmra.mrb[0].mxu0 %v140
  %v415 = vpop.f32.mrb[0].mxu0
  %v416 = vadd.f32 %v106, %v415
  %v417 = vpop.f32.mrb[0].mxu0
  %v418 = vpop.f32.mrb[0].mxu0
  %v419 = vadd.f32 %v106, %v418
  %v420 = vpop.f32.mrb[0].mxu0
  %421 = vmatprep.mubr.bf16.mxu0 %v146
  %422 = vmatmul.mubr.bf16.gmra.mrb[0].mxu0 %v145
  %v423 = vpop.f32.mrb[0].mxu0
  %v424 = vadd.f32 %v106, %v423
  %v425 = vpop.f32.mrb[0].mxu0
  %v426 = vpop.f32.mrb[0].mxu0
  %v427 = vadd.f32 %v106, %v426
  %v428 = vpop.f32.mrb[0].mxu0
  %429 = vdwg.mxu0
  %430 = vmatprep.subr.bf16.mxu0 0
  %431 = vmatpush1.bf16.msra.mxu0 %v318
  %432 = vmatprep.subr.bf16.mxu0 0
  %433 = vmatpush1.bf16.msra.mxu0 %v319
  %434 = vmatprep.subr.bf16.mxu0 0
  %435 = vmatpush1.bf16.msra.mxu0 %v320
  %436 = vmatprep.subr.bf16.mxu0 0
  %437 = vmatpush1.bf16.msra.mxu0 %v321
  %438 = vmatprep.subr.bf16.mxu0 0
  %439 = vmatpush1.bf16.msra.mxu0 %v322
  %440 = vmatprep.subr.bf16.mxu0 0
  %441 = vmatpush1.bf16.msra.mxu0 %v323
  %442 = vmatprep.subr.bf16.mxu0 0
  %443 = vmatpush1.bf16.msra.mxu0 %v324
  %444 = vmatprep.subr.bf16.mxu0 0
  %445 = vmatpush1.bf16.msra.mxu0 %v325
  %446 = vmatprep.subr.bf16.mxu0 0
  %447 = vmatpush1.bf16.msra.mxu0 %v326
  %448 = vmatprep.subr.bf16.mxu0 0
  %449 = vmatpush1.bf16.msra.mxu0 %v327
  %450 = vmatprep.subr.bf16.mxu0 0
  %451 = vmatpush1.bf16.msra.mxu0 %v328
  %452 = vmatprep.subr.bf16.mxu0 0
  %453 = vmatpush1.bf16.msra.mxu0 %v329
  %454 = vmatprep.subr.bf16.mxu0 0
  %455 = vmatpush1.bf16.msra.mxu0 %v330
  %456 = vmatprep.subr.bf16.mxu0 0
  %457 = vmatpush1.bf16.msra.mxu0 %v331
  %458 = vmatprep.subr.bf16.mxu0 0
  %459 = vmatpush1.bf16.msra.mxu0 %v332
  %460 = vmatprep.subr.bf16.mxu0 0
  %461 = vmatpush1.bf16.msra.mxu0 %v333
  %462 = vmatprep.mubr.bf16.mxu0 %v143
  %463 = vmatmul.mubr.bf16.gmra.mrb[0].mxu0 %v142
  %v464 = vpop.f32.mrb[0].mxu0
  %v465 = vadd.f32 %v416, %v464
  %v466 = vpop.f32.mrb[0].mxu0
  %v467 = vpop.f32.mrb[0].mxu0
  %v468 = vadd.f32 %v419, %v467
  %v469 = vpop.f32.mrb[0].mxu0
  %470 = vmatprep.mubr.bf16.mxu0 %v148
  %471 = vmatmul.mubr.bf16.gmra.mrb[0].mxu0 %v147
  %v472 = vpop.f32.mrb[0].mxu0
  %v473 = vadd.f32 %v424, %v472
  %v474 = vpop.f32.mrb[0].mxu0
  %v475 = vpop.f32.mrb[0].mxu0
  %v476 = vadd.f32 %v427, %v475
  %v477 = vpop.f32.mrb[0].mxu0
  %478 = vdwg.mxu0
  %479 = vmatprep.subr.bf16.mxu0 0
  %480 = vmatpush1.bf16.msra.mxu0 %v334
  %481 = vmatprep.subr.bf16.mxu0 0
  %482 = vmatpush1.bf16.msra.mxu0 %v335
  %483 = vmatprep.subr.bf16.mxu0 0
  %484 = vmatpush1.bf16.msra.mxu0 %v336
  %485 = vmatprep.subr.bf16.mxu0 0
  %486 = vmatpush1.bf16.msra.mxu0 %v337
  %487 = vmatprep.subr.bf16.mxu0 0
  %488 = vmatpush1.bf16.msra.mxu0 0
  %489 = vmatprep.subr.bf16.mxu0 0
  %490 = vmatpush1.bf16.msra.mxu0 0
  %491 = vmatprep.subr.bf16.mxu0 0
  %492 = vmatpush1.bf16.msra.mxu0 0
  %493 = vmatprep.subr.bf16.mxu0 0
  %494 = vmatpush1.bf16.msra.mxu0 0
  %495 = vmatprep.subr.bf16.mxu0 0
  %496 = vmatpush1.bf16.msra.mxu0 0
  %497 = vmatprep.subr.bf16.mxu0 0
  %498 = vmatpush1.bf16.msra.mxu0 0
  %499 = vmatprep.subr.bf16.mxu0 0
  %500 = vmatpush1.bf16.msra.mxu0 0
  %501 = vmatprep.subr.bf16.mxu0 0
  %502 = vmatpush1.bf16.msra.mxu0 0
  %503 = vmatprep.subr.bf16.mxu0 0
  %504 = vmatpush1.bf16.msra.mxu0 0
  %505 = vmatprep.subr.bf16.mxu0 0
  %506 = vmatpush1.bf16.msra.mxu0 0
  %507 = vmatprep.subr.bf16.mxu0 0
  %508 = vmatpush1.bf16.msra.mxu0 0
  %509 = vmatprep.subr.bf16.mxu0 0
  %510 = vmatpush1.bf16.msra.mxu0 0
  %511 = vmatprep.mubr.bf16.mxu0 0
  %512 = vmatmul.mubr.bf16.gmra.mrb[0].mxu0 %v376
  %v513 = vpop.f32.mrb[0].mxu0
  %v514 = vadd.f32 %v465, %v513
  %v515 = vpop.f32.mrb[0].mxu0
  %v516 = vpop.f32.mrb[0].mxu0
  %v517 = vadd.f32 %v468, %v516
  %v518 = vpop.f32.mrb[0].mxu0
  %519 = vmatprep.mubr.bf16.mxu0 0
  %520 = vmatmul.mubr.bf16.gmra.mrb[0].mxu0 %v379
  %v521 = vpop.f32.mrb[0].mxu0
  %v522 = vadd.f32 %v473, %v521
  %v523 = vpop.f32.mrb[0].mxu0
  %v524 = vpop.f32.mrb[0].mxu0
  %v525 = vadd.f32 %v476, %v524
  %v526 = vpop.f32.mrb[0].mxu0
  %527 = vdwg.mxu0
  %v528 = vpack.c.bf16 %v517, %v514
  %v529 = vpack.c.bf16 %v525, %v522
  %v532 = vunpack.c.l.b16 %v528
  %v533 = vunpack.c.h.b16 %v528
  %v534 = vunpack.c.l.b16 %v529
  %v535 = vunpack.c.h.b16 %v529
  %v536 = vpack.c.b16 %v532, %v532
  %v537 = vpack.c.b16 %v533, %v533
  %v538 = vpack.c.b16 %v534, %v534
  %v539 = vpack.c.b16 %v535, %v535
  %544 = vst [vmem:[%s3] sm:$0xf] %v536
  %545 = vst [vmem:[%s3 + $0x4] sm:$0xf] %v537
  %546 = vst [vmem:[%s3 + $0x8] sm:$0xf] %v538
  %547 = vst [vmem:[%s3 + $0xc] sm:$0xf] %v539
  %v548 = vlaneseq
  %v549 = vshrl.u32 %v548, 7
  %v550 = vadd.s32 %v549, 8
  %v551 = vadd.s32 %v549, 16
  %v552 = vadd.s32 %v549, 24
  %s553 = smul.u32 0, 32
  %v554 = vstv %s553
  %v555 = vadd.s32 %v549, %v554
  %v556 = vadd.s32 %v550, %v554
  %v557 = vadd.s32 %v551, %v554
  %v558 = vadd.s32 %v552, %v554
  %vm559 = vcmp.lt.s32.totalorder %v555, 32
  %vm560 = vcmp.lt.s32.totalorder %v556, 32
  %vm561 = vcmp.lt.s32.totalorder %v557, 32
  %vm562 = vcmp.lt.s32.totalorder %v558, 32
  %v563 = vsel %vm559, %v514, 0.0
  %v564 = vsel %vm560, %v517, 0.0
  %v565 = vsel %vm561, %v522, 0.0
  %v566 = vsel %vm562, %v525, 0.0
  %v567 = vadd.f32 %v563, %v564
  %v568 = vadd.f32 %v567, %v565
  %v569 = vadd.f32 %v568, %v566
  %v570 = vrot.slane %v569, 4
  %v571 = vadd.f32 %v569, %v570
  %v572 = vrot.slane %v571, 2
  %v573 = vadd.f32 %v571, %v572
  %v574 = vrot.slane %v573, 1
  %v575 = vadd.f32 %v573, %v574
  %v576 = vmul.f32 %v563, %v563
  %v577 = vmul.f32 %v564, %v564
  %v578 = vmul.f32 %v565, %v565
  %v579 = vmul.f32 %v566, %v566
  %v580 = vadd.f32 %v576, %v577
  %v581 = vadd.f32 %v580, %v578
  %v582 = vadd.f32 %v581, %v579
  %v583 = vrot.slane %v582, 4
  %v584 = vadd.f32 %v582, %v583
  %v585 = vrot.slane %v584, 2
  %v586 = vadd.f32 %v584, %v585
  %v587 = vrot.slane %v586, 1
  %v588 = vadd.f32 %v586, %v587
  %vm589 = vcmask 1040384
  %v590 = vsel %vm589, %v575, %v588
  %591 = vst [vmem:[%s4] sm:$0x3] %v590
  // Predicated region
  $region14: #{_lambda_.39} parent=0 // pred_check
    _
  $region15: #{_lambda_.39} parent=0 // pred_check_branch
    %593 = sbr.rel (0) target = $region17
  $region16: #{_lambda_.39} parent=0 // pred_region
    _
  $region17: #{_lambda_.39} parent=0 // pred_fallthru
    _
  // Predicated region
  $region18: #{_lambda_.39} parent=0 // pred_check
    _
  $region19: #{_lambda_.39} parent=0 // pred_check_branch
    %595 = sbr.rel (0) target = $region21
  $region20: #{_lambda_.39} parent=0 // pred_region
    _
  $region21: #{_lambda_.39} parent=0 // pred_fallthru
    _
  // Predicated region
  $region22: #{_lambda_.39} parent=0 // pred_check
    _
  $region23: #{_lambda_.39} parent=0 // pred_check_branch
    %597 = sbr.rel (0) target = $region25
  $region24: #{_lambda_.39} parent=0 // pred_region
    _
  $region25: #{_lambda_.39} parent=0 // pred_fallthru
    _
  // Predicated region
  $region26: #{_lambda_.39} parent=0 // pred_check
    _
  $region27: #{_lambda_.39} parent=0 // pred_check_branch
    %599 = sbr.rel (0) target = $region29
  $region28: #{_lambda_.39} parent=0 // pred_region
    _
  $region29: #{_lambda_.39} parent=0 // pred_fallthru
    _

// kernel: _lambda_.42
$region0: #{_lambda_.42}
  #allocation0 [shape = 'u32[]', space=smem, size = 0x4, offset = 0x4, fixed_abs, tag = 'smem constant byte address 0x4 - core index']
  #allocation1 [shape = 'u32[144,128]{1,0:T(1,128)}', space=vmem, size = 0x12000, scoped, tag = 'internal scratch']
  %s0 = inlined_call_operand.vmem [shape: bf16[32,64], index: 0, kind: input, shape index: {}]
  %s1 = inlined_call_operand.vmem [shape: bf16[64,128], index: 1, kind: input, shape index: {}]
  %s2 = inlined_call_operand.vmem [shape: f32[1,128], index: 2, kind: input, shape index: {}]
  %s3 = inlined_call_operand.vmem [shape: bf16[32,128], index: 3, kind: output, shape index: {0}]
  %s4 = inlined_call_operand.vmem [shape: f32[1,2,128], index: 4, kind: output, shape index: {1}]
  %5 = xla_tuple %s3, %s4
  %s6 = sld [smem:[#allocation0]]
  $region30: #{_lambda_.42} parent=0
    _
  %s8 = ssub.s32 1, %s6
  %s9 = scalar_select 0, %s8, %s6
  // Predicated region
  $region2: #{_lambda_.42} parent=0 // pred_check
    _
  $region3: #{_lambda_.42} parent=0 // pred_check_branch
    %11 = sbr.rel (0) target = $region5
  $region4: #{_lambda_.42} parent=0 // pred_region
    _
  $region5: #{_lambda_.42} parent=0 // pred_fallthru
    _
  // Predicated region
  $region6: #{_lambda_.42} parent=0 // pred_check
    _
  $region7: #{_lambda_.42} parent=0 // pred_check_branch
    %13 = sbr.rel (0) target = $region9
  $region8: #{_lambda_.42} parent=0 // pred_region
    _
  $region9: #{_lambda_.42} parent=0 // pred_fallthru
    _
  // Predicated region
  $region10: #{_lambda_.42} parent=0 // pred_check
    _
  $region11: #{_lambda_.42} parent=0 // pred_check_branch
    %15 = sbr.rel (0) target = $region13
  $region12: #{_lambda_.42} parent=0 // pred_region
    _
  $region13: #{_lambda_.42} parent=0 // pred_fallthru
    _
  %v17 = vld [vmem:[%s0] sm:$0xf]
  %v18 = vld [vmem:[%s0 + $0x4] sm:$0xf]
  %v19 = vld [vmem:[%s0 + $0x8] sm:$0xf]
  %v20 = vld [vmem:[%s0 + $0xc] sm:$0xf]
  %v21 = vld [vmem:[%s1] sm:$0xf]
  %v22 = vld [vmem:[%s1 + $0x4] sm:$0xf]
  %v23 = vld [vmem:[%s1 + $0x8] sm:$0xf]
  %v24 = vld [vmem:[%s1 + $0xc] sm:$0xf]
  %v25 = vld [vmem:[%s1 + $0x10] sm:$0xf]
  %v26 = vld [vmem:[%s1 + $0x14] sm:$0xf]
  %v27 = vld [vmem:[%s1 + $0x18] sm:$0xf]
  %v28 = vld [vmem:[%s1 + $0x1c] sm:$0xf]
  %v29 = vld [vmem:[%s2] sm:$0x1]
  %v31 = vlaneseq
  %v32 = vshrl.u32 %v31, 7
  %v33 = vsub.s32 0, %v32
  %v34 = vrot.slane %v29, %v33
  %v40 = vunpack.c.l.b16 %v17
  %v41 = vunpack.c.l.b16 %v18
  %v42 = vunpack.c.l.b16 %v19
  %v43 = vunpack.c.l.b16 %v20
  %v44 = vpack.c.b16 %v41, %v40
  %v45 = vpack.c.b16 %v43, %v42
  %v54 = vunpack.c.l.b16 %v21
  %v55 = vunpack.c.l.b16 %v22
  %v56 = vunpack.c.l.b16 %v23
  %v57 = vunpack.c.l.b16 %v24
  %v58 = vunpack.c.l.b16 %v25
  %v59 = vunpack.c.l.b16 %v26
  %v60 = vunpack.c.l.b16 %v27
  %v61 = vunpack.c.l.b16 %v28
  %v62 = vpack.c.b16 %v55, %v54
  %v63 = vpack.c.b16 %v57, %v56
  %v64 = vpack.c.b16 %v59, %v58
  %v65 = vpack.c.b16 %v61, %v60
  %vm70 = vcmask 523264
  %v72 = vsel %vm70, %v44, 0
  %v75 = vsel %vm70, %v45, 0
  %77 = vmatprep.subr.bf16.mxu0 0
  %78 = vmatpush1.bf16.msra.mxu0 %v62
  %79 = vmatprep.subr.bf16.mxu0 0
  %80 = vmatpush1.bf16.msra.mxu0 %v63
  %81 = vmatprep.subr.bf16.mxu0 0
  %82 = vmatpush1.bf16.msra.mxu0 %v64
  %83 = vmatprep.subr.bf16.mxu0 0
  %84 = vmatpush1.bf16.msra.mxu0 %v65
  %85 = vmatprep.subr.bf16.mxu0 0
  %86 = vmatpush1.bf16.msra.mxu0 0
  %87 = vmatprep.subr.bf16.mxu0 0
  %88 = vmatpush1.bf16.msra.mxu0 0
  %89 = vmatprep.subr.bf16.mxu0 0
  %90 = vmatpush1.bf16.msra.mxu0 0
  %91 = vmatprep.subr.bf16.mxu0 0
  %92 = vmatpush1.bf16.msra.mxu0 0
  %93 = vmatprep.subr.bf16.mxu0 0
  %94 = vmatpush1.bf16.msra.mxu0 0
  %95 = vmatprep.subr.bf16.mxu0 0
  %96 = vmatpush1.bf16.msra.mxu0 0
  %97 = vmatprep.subr.bf16.mxu0 0
  %98 = vmatpush1.bf16.msra.mxu0 0
  %99 = vmatprep.subr.bf16.mxu0 0
  %100 = vmatpush1.bf16.msra.mxu0 0
  %101 = vmatprep.subr.bf16.mxu0 0
  %102 = vmatpush1.bf16.msra.mxu0 0
  %103 = vmatprep.subr.bf16.mxu0 0
  %104 = vmatpush1.bf16.msra.mxu0 0
  %105 = vmatprep.subr.bf16.mxu0 0
  %106 = vmatpush1.bf16.msra.mxu0 0
  %107 = vmatprep.subr.bf16.mxu0 0
  %108 = vmatpush1.bf16.msra.mxu0 0
  %109 = vmatprep.mubr.bf16.mxu0 0
  %110 = vmatmul.mubr.bf16.gmra.mrb[0].mxu0 %v72
  %v111 = vpop.f32.mrb[0].mxu0
  %v112 = vadd.f32 %v34, %v111
  %v113 = vpop.f32.mrb[0].mxu0
  %v114 = vpop.f32.mrb[0].mxu0
  %v115 = vadd.f32 %v34, %v114
  %v116 = vpop.f32.mrb[0].mxu0
  %117 = vmatprep.mubr.bf16.mxu0 0
  %118 = vmatmul.mubr.bf16.gmra.mrb[0].mxu0 %v75
  %v119 = vpop.f32.mrb[0].mxu0
  %v120 = vadd.f32 %v34, %v119
  %v121 = vpop.f32.mrb[0].mxu0
  %v122 = vpop.f32.mrb[0].mxu0
  %v123 = vadd.f32 %v34, %v122
  %v124 = vpop.f32.mrb[0].mxu0
  %125 = vdwg.mxu0
  %v126 = vpack.c.bf16 %v115, %v112
  %v127 = vpack.c.bf16 %v123, %v120
  %v130 = vunpack.c.l.b16 %v126
  %v131 = vunpack.c.h.b16 %v126
  %v132 = vunpack.c.l.b16 %v127
  %v133 = vunpack.c.h.b16 %v127
  %v134 = vpack.c.b16 %v130, %v130
  %v135 = vpack.c.b16 %v131, %v131
  %v136 = vpack.c.b16 %v132, %v132
  %v137 = vpack.c.b16 %v133, %v133
  %142 = vst [vmem:[%s3] sm:$0xf] %v134
  %143 = vst [vmem:[%s3 + $0x4] sm:$0xf] %v135
  %144 = vst [vmem:[%s3 + $0x8] sm:$0xf] %v136
  %145 = vst [vmem:[%s3 + $0xc] sm:$0xf] %v137
  %v146 = vlaneseq
  %v147 = vshrl.u32 %v146, 7
  %v148 = vadd.s32 %v147, 8
  %v149 = vadd.s32 %v147, 16
  %v150 = vadd.s32 %v147, 24
  %s151 = smul.u32 0, 32
  %v152 = vstv %s151
  %v153 = vadd.s32 %v147, %v152
  %v154 = vadd.s32 %v148, %v152
  %v155 = vadd.s32 %v149, %v152
  %v156 = vadd.s32 %v150, %v152
  %vm157 = vcmp.lt.s32.totalorder %v153, 32
  %vm158 = vcmp.lt.s32.totalorder %v154, 32
  %vm159 = vcmp.lt.s32.totalorder %v155, 32
  %vm160 = vcmp.lt.s32.totalorder %v156, 32
  %v161 = vsel %vm157, %v112, 0.0
  %v162 = vsel %vm158, %v115, 0.0
  %v163 = vsel %vm159, %v120, 0.0
  %v164 = vsel %vm160, %v123, 0.0
  %v165 = vadd.f32 %v161, %v162
  %v166 = vadd.f32 %v165, %v163
  %v167 = vadd.f32 %v166, %v164
  %v168 = vrot.slane %v167, 4
  %v169 = vadd.f32 %v167, %v168
  %v170 = vrot.slane %v169, 2
  %v171 = vadd.f32 %v169, %v170
  %v172 = vrot.slane %v171, 1
  %v173 = vadd.f32 %v171, %v172
  %v174 = vmul.f32 %v161, %v161
  %v175 = vmul.f32 %v162, %v162
  %v176 = vmul.f32 %v163, %v163
  %v177 = vmul.f32 %v164, %v164
  %v178 = vadd.f32 %v174, %v175
  %v179 = vadd.f32 %v178, %v176
  %v180 = vadd.f32 %v179, %v177
  %v181 = vrot.slane %v180, 4
  %v182 = vadd.f32 %v180, %v181
  %v183 = vrot.slane %v182, 2
  %v184 = vadd.f32 %v182, %v183
  %v185 = vrot.slane %v184, 1
  %v186 = vadd.f32 %v184, %v185
  %vm187 = vcmask 1040384
  %v188 = vsel %vm187, %v173, %v186
  %189 = vst [vmem:[%s4] sm:$0x3] %v188
  // Predicated region
  $region14: #{_lambda_.42} parent=0 // pred_check
    _
  $region15: #{_lambda_.42} parent=0 // pred_check_branch
    %191 = sbr.rel (0) target = $region17
  $region16: #{_lambda_.42} parent=0 // pred_region
    _
  $region17: #{_lambda_.42} parent=0 // pred_fallthru
    _
  // Predicated region
  $region18: #{_lambda_.42} parent=0 // pred_check
    _
  $region19: #{_lambda_.42} parent=0 // pred_check_branch
    %193 = sbr.rel (0) target = $region21
  $region20: #{_lambda_.42} parent=0 // pred_region
    _
  $region21: #{_lambda_.42} parent=0 // pred_fallthru
    _
  // Predicated region
  $region22: #{_lambda_.42} parent=0 // pred_check
    _
  $region23: #{_lambda_.42} parent=0 // pred_check_branch
    %195 = sbr.rel (0) target = $region25
  $region24: #{_lambda_.42} parent=0 // pred_region
    _
  $region25: #{_lambda_.42} parent=0 // pred_fallthru
    _
  // Predicated region
  $region26: #{_lambda_.42} parent=0 // pred_check
    _
  $region27: #{_lambda_.42} parent=0 // pred_check_branch
    %197 = sbr.rel (0) target = $region29
  $region28: #{_lambda_.42} parent=0 // pred_region
    _
  $region29: #{_lambda_.42} parent=0 // pred_fallthru
    _

// kernel: _lambda_.43
$region0: #{_lambda_.43}
  #allocation0 [shape = 'u32[]', space=smem, size = 0x4, offset = 0x4, fixed_abs, tag = 'smem constant byte address 0x4 - core index']
  #allocation1 [shape = 'u32[144,128]{1,0:T(1,128)}', space=vmem, size = 0x12000, scoped, tag = 'internal scratch']
  %s0 = inlined_call_operand.vmem [shape: bf16[32,128], index: 0, kind: input, shape index: {}]
  %s1 = inlined_call_operand.vmem [shape: f32[1,128], index: 1, kind: input, shape index: {}]
  %s2 = inlined_call_operand.vmem [shape: f32[1,128], index: 2, kind: input, shape index: {}]
  %s3 = inlined_call_operand.vmem [shape: bf16[32,128], index: 3, kind: input, shape index: {}]
  %s4 = inlined_call_operand.vmem [shape: f32[1,128], index: 4, kind: input, shape index: {}]
  %s5 = inlined_call_operand.vmem [shape: f32[1,128], index: 5, kind: input, shape index: {}]
  %s6 = inlined_call_operand.vmem [shape: bf16[32,128], index: 6, kind: output, shape index: {}]
  %s7 = sld [smem:[#allocation0]]
  $region34: #{_lambda_.43} parent=0
    _
  %s9 = ssub.s32 1, %s7
  %s10 = scalar_select 0, %s9, %s7
  // Predicated region
  $region2: #{_lambda_.43} parent=0 // pred_check
    _
  $region3: #{_lambda_.43} parent=0 // pred_check_branch
    %12 = sbr.rel (0) target = $region5
  $region4: #{_lambda_.43} parent=0 // pred_region
    _
  $region5: #{_lambda_.43} parent=0 // pred_fallthru
    _
  // Predicated region
  $region6: #{_lambda_.43} parent=0 // pred_check
    _
  $region7: #{_lambda_.43} parent=0 // pred_check_branch
    %14 = sbr.rel (0) target = $region9
  $region8: #{_lambda_.43} parent=0 // pred_region
    _
  $region9: #{_lambda_.43} parent=0 // pred_fallthru
    _
  // Predicated region
  $region10: #{_lambda_.43} parent=0 // pred_check
    _
  $region11: #{_lambda_.43} parent=0 // pred_check_branch
    %16 = sbr.rel (0) target = $region13
  $region12: #{_lambda_.43} parent=0 // pred_region
    _
  $region13: #{_lambda_.43} parent=0 // pred_fallthru
    _
  // Predicated region
  $region14: #{_lambda_.43} parent=0 // pred_check
    _
  $region15: #{_lambda_.43} parent=0 // pred_check_branch
    %18 = sbr.rel (0) target = $region17
  $region16: #{_lambda_.43} parent=0 // pred_region
    _
  $region17: #{_lambda_.43} parent=0 // pred_fallthru
    _
  // Predicated region
  $region18: #{_lambda_.43} parent=0 // pred_check
    _
  $region19: #{_lambda_.43} parent=0 // pred_check_branch
    %20 = sbr.rel (0) target = $region21
  $region20: #{_lambda_.43} parent=0 // pred_region
    _
  $region21: #{_lambda_.43} parent=0 // pred_fallthru
    _
  // Predicated region
  $region22: #{_lambda_.43} parent=0 // pred_check
    _
  $region23: #{_lambda_.43} parent=0 // pred_check_branch
    %22 = sbr.rel (0) target = $region25
  $region24: #{_lambda_.43} parent=0 // pred_region
    _
  $region25: #{_lambda_.43} parent=0 // pred_fallthru
    _
  %v23 = vld [vmem:[%s0] sm:$0xf]
  %v24 = vld [vmem:[%s0 + $0x4] sm:$0xf]
  %v25 = vld [vmem:[%s0 + $0x8] sm:$0xf]
  %v26 = vld [vmem:[%s0 + $0xc] sm:$0xf]
  %v27 = vunpack.c.l.bf16 %v23
  %v28 = vunpack.c.l.bf16 %v24
  %v29 = vunpack.c.l.bf16 %v25
  %v30 = vunpack.c.l.bf16 %v26
  %v31 = vld [vmem:[%s1] sm:$0x1]
  %v33 = vlaneseq
  %v34 = vshrl.u32 %v33, 7
  %v35 = vsub.s32 0, %v34
  %v36 = vrot.slane %v31, %v35
  %v38 = vmul.f32 %v27, %v36
  %v39 = vmul.f32 %v28, %v36
  %v40 = vmul.f32 %v29, %v36
  %v41 = vmul.f32 %v30, %v36
  %v42 = vld [vmem:[%s2] sm:$0x1]
  %v44 = vlaneseq
  %v45 = vshrl.u32 %v44, 7
  %v46 = vsub.s32 0, %v45
  %v47 = vrot.slane %v42, %v46
  %v49 = vadd.f32 %v38, %v47
  %v50 = vadd.f32 %v39, %v47
  %v51 = vadd.f32 %v40, %v47
  %v52 = vadd.f32 %v41, %v47
  %v53 = vmax.f32 %v49, 0.0
  %v54 = vmax.f32 %v50, 0.0
  %v55 = vmax.f32 %v51, 0.0
  %v56 = vmax.f32 %v52, 0.0
  %v57 = vld [vmem:[%s3] sm:$0xf]
  %v58 = vld [vmem:[%s3 + $0x4] sm:$0xf]
  %v59 = vld [vmem:[%s3 + $0x8] sm:$0xf]
  %v60 = vld [vmem:[%s3 + $0xc] sm:$0xf]
  %v61 = vunpack.c.l.bf16 %v57
  %v62 = vunpack.c.l.bf16 %v58
  %v63 = vunpack.c.l.bf16 %v59
  %v64 = vunpack.c.l.bf16 %v60
  %v65 = vld [vmem:[%s4] sm:$0x1]
  %v67 = vlaneseq
  %v68 = vshrl.u32 %v67, 7
  %v69 = vsub.s32 0, %v68
  %v70 = vrot.slane %v65, %v69
  %v72 = vmul.f32 %v61, %v70
  %v73 = vmul.f32 %v62, %v70
  %v74 = vmul.f32 %v63, %v70
  %v75 = vmul.f32 %v64, %v70
  %v76 = vld [vmem:[%s5] sm:$0x1]
  %v78 = vlaneseq
  %v79 = vshrl.u32 %v78, 7
  %v80 = vsub.s32 0, %v79
  %v81 = vrot.slane %v76, %v80
  %v83 = vadd.f32 %v72, %v81
  %v84 = vadd.f32 %v73, %v81
  %v85 = vadd.f32 %v74, %v81
  %v86 = vadd.f32 %v75, %v81
  %v87 = vadd.f32 %v83, %v53
  %v88 = vadd.f32 %v84, %v54
  %v89 = vadd.f32 %v85, %v55
  %v90 = vadd.f32 %v86, %v56
  %v91 = vmax.f32 %v87, 0.0
  %v92 = vmax.f32 %v88, 0.0
  %v93 = vmax.f32 %v89, 0.0
  %v94 = vmax.f32 %v90, 0.0
  %v95 = vpack.c.bf16 %v92, %v91
  %v96 = vpack.c.bf16 %v94, %v93
  %v99 = vunpack.c.l.b16 %v95
  %v100 = vunpack.c.h.b16 %v95
  %v101 = vunpack.c.l.b16 %v96
  %v102 = vunpack.c.h.b16 %v96
  %v103 = vpack.c.b16 %v99, %v99
  %v104 = vpack.c.b16 %v100, %v100
  %v105 = vpack.c.b16 %v101, %v101
  %v106 = vpack.c.b16 %v102, %v102
  %111 = vst [vmem:[%s6] sm:$0xf] %v103
  %112 = vst [vmem:[%s6 + $0x4] sm:$0xf] %v104
  %113 = vst [vmem:[%s6 + $0x8] sm:$0xf] %v105
  %114 = vst [vmem:[%s6 + $0xc] sm:$0xf] %v106
  // Predicated region
  $region26: #{_lambda_.43} parent=0 // pred_check
    _
  $region27: #{_lambda_.43} parent=0 // pred_check_branch
    %116 = sbr.rel (0) target = $region29
  $region28: #{_lambda_.43} parent=0 // pred_region
    _
  $region29: #{_lambda_.43} parent=0 // pred_fallthru
    _
  // Predicated region
  $region30: #{_lambda_.43} parent=0 // pred_check
    _
  $region31: #{_lambda_.43} parent=0 // pred_check_branch
    %118 = sbr.rel (0) target = $region33
  $region32: #{_lambda_.43} parent=0 // pred_region
    _
  $region33: #{_lambda_.43} parent=0 // pred_fallthru
    _

// kernel: _lambda_.41
$region0: #{_lambda_.41}
  #allocation0 [shape = 'u32[]', space=smem, size = 0x4, offset = 0x4, fixed_abs, tag = 'smem constant byte address 0x4 - core index']
  #allocation1 [shape = 'u32[144,128]{1,0:T(1,128)}', space=vmem, size = 0x12000, scoped, tag = 'internal scratch']
  %s0 = inlined_call_operand.vmem [shape: bf16[32,1152], index: 0, kind: input, shape index: {}]
  %s1 = inlined_call_operand.vmem [shape: bf16[1152,128], index: 1, kind: input, shape index: {}]
  %s2 = inlined_call_operand.vmem [shape: f32[1,128], index: 2, kind: input, shape index: {}]
  %s3 = inlined_call_operand.vmem [shape: bf16[32,128], index: 3, kind: output, shape index: {0}]
  %s4 = inlined_call_operand.vmem [shape: f32[1,2,128], index: 4, kind: output, shape index: {1}]
  %5 = xla_tuple %s3, %s4
  %s6 = sld [smem:[#allocation0]]
  $region30: #{_lambda_.41} parent=0
    _
  %s8 = ssub.s32 1, %s6
  %s9 = scalar_select 0, %s8, %s6
  // Predicated region
  $region2: #{_lambda_.41} parent=0 // pred_check
    _
  $region3: #{_lambda_.41} parent=0 // pred_check_branch
    %11 = sbr.rel (0) target = $region5
  $region4: #{_lambda_.41} parent=0 // pred_region
    _
  $region5: #{_lambda_.41} parent=0 // pred_fallthru
    _
  // Predicated region
  $region6: #{_lambda_.41} parent=0 // pred_check
    _
  $region7: #{_lambda_.41} parent=0 // pred_check_branch
    %13 = sbr.rel (0) target = $region9
  $region8: #{_lambda_.41} parent=0 // pred_region
    _
  $region9: #{_lambda_.41} parent=0 // pred_fallthru
    _
  // Predicated region
  $region10: #{_lambda_.41} parent=0 // pred_check
    _
  $region11: #{_lambda_.41} parent=0 // pred_check_branch
    %15 = sbr.rel (0) target = $region13
  $region12: #{_lambda_.41} parent=0 // pred_region
    _
  $region13: #{_lambda_.41} parent=0 // pred_fallthru
    _
  %v17 = vld [vmem:[%s0] sm:$0xff]
  %v18 = vld [vmem:[%s0 + $0x8] sm:$0xff]
  %v19 = vld [vmem:[%s0 + $0x10] sm:$0xff]
  %v20 = vld [vmem:[%s0 + $0x18] sm:$0xff]
  %v21 = vld [vmem:[%s0 + $0x20] sm:$0xf]
  %v22 = vld [vmem:[%s0 + $0x24] sm:$0xff]
  %v23 = vld [vmem:[%s0 + $0x2c] sm:$0xff]
  %v24 = vld [vmem:[%s0 + $0x34] sm:$0xff]
  %v25 = vld [vmem:[%s0 + $0x3c] sm:$0xff]
  %v26 = vld [vmem:[%s0 + $0x44] sm:$0xf]
  %v27 = vld [vmem:[%s0 + $0x48] sm:$0xff]
  %v28 = vld [vmem:[%s0 + $0x50] sm:$0xff]
  %v29 = vld [vmem:[%s0 + $0x58] sm:$0xff]
  %v30 = vld [vmem:[%s0 + $0x60] sm:$0xff]
  %v31 = vld [vmem:[%s0 + $0x68] sm:$0xf]
  %v32 = vld [vmem:[%s0 + $0x6c] sm:$0xff]
  %v33 = vld [vmem:[%s0 + $0x74] sm:$0xff]
  %v34 = vld [vmem:[%s0 + $0x7c] sm:$0xff]
  %v35 = vld [vmem:[%s0 + $0x84] sm:$0xff]
  %v36 = vld [vmem:[%s0 + $0x8c] sm:$0xf]
  %v37 = vld [vmem:[%s1] sm:$0xf]
  %v38 = vld [vmem:[%s1 + $0x4] sm:$0xf]
  %v39 = vld [vmem:[%s1 + $0x8] sm:$0xf]
  %v40 = vld [vmem:[%s1 + $0xc] sm:$0xf]
  %v41 = vld [vmem:[%s1 + $0x10] sm:$0xf]
  %v42 = vld [vmem:[%s1 + $0x14] sm:$0xf]
  %v43 = vld [vmem:[%s1 + $0x18] sm:$0xf]
  %v44 = vld [vmem:[%s1 + $0x1c] sm:$0xf]
  %v45 = vld [vmem:[%s1 + $0x20] sm:$0xf]
  %v46 = vld [vmem:[%s1 + $0x24] sm:$0xf]
  %v47 = vld [vmem:[%s1 + $0x28] sm:$0xf]
  %v48 = vld [vmem:[%s1 + $0x2c] sm:$0xf]
  %v49 = vld [vmem:[%s1 + $0x30] sm:$0xf]
  %v50 = vld [vmem:[%s1 + $0x34] sm:$0xf]
  %v51 = vld [vmem:[%s1 + $0x38] sm:$0xf]
  %v52 = vld [vmem:[%s1 + $0x3c] sm:$0xf]
  %v53 = vld [vmem:[%s1 + $0x40] sm:$0xf]
  %v54 = vld [vmem:[%s1 + $0x44] sm:$0xf]
  %v55 = vld [vmem:[%s1 + $0x48] sm:$0xf]
  %v56 = vld [vmem:[%s1 + $0x4c] sm:$0xf]
  %v57 = vld [vmem:[%s1 + $0x50] sm:$0xf]
  %v58 = vld [vmem:[%s1 + $0x54] sm:$0xf]
  %v59 = vld [vmem:[%s1 + $0x58] sm:$0xf]
  %v60 = vld [vmem:[%s1 + $0x5c] sm:$0xf]
  %v61 = vld [vmem:[%s1 + $0x60] sm:$0xf]
  %v62 = vld [vmem:[%s1 + $0x64] sm:$0xf]
  %v63 = vld [vmem:[%s1 + $0x68] sm:$0xf]
  %v64 = vld [vmem:[%s1 + $0x6c] sm:$0xf]
  %v65 = vld [vmem:[%s1 + $0x70] sm:$0xf]
  %v66 = vld [vmem:[%s1 + $0x74] sm:$0xf]
  %v67 = vld [vmem:[%s1 + $0x78] sm:$0xf]
  %v68 = vld [vmem:[%s1 + $0x7c] sm:$0xf]
  %v69 = vld [vmem:[%s1 + $0x80] sm:$0xf]
  %v70 = vld [vmem:[%s1 + $0x84] sm:$0xf]
  %v71 = vld [vmem:[%s1 + $0x88] sm:$0xf]
  %v72 = vld [vmem:[%s1 + $0x8c] sm:$0xf]
  %v73 = vld [vmem:[%s1 + $0x90] sm:$0xf]
  %v74 = vld [vmem:[%s1 + $0x94] sm:$0xf]
  %v75 = vld [vmem:[%s1 + $0x98] sm:$0xf]
  %v76 = vld [vmem:[%s1 + $0x9c] sm:$0xf]
  %v77 = vld [vmem:[%s1 + $0xa0] sm:$0xf]
  %v78 = vld [vmem:[%s1 + $0xa4] sm:$0xf]
  %v79 = vld [vmem:[%s1 + $0xa8] sm:$0xf]
  %v80 = vld [vmem:[%s1 + $0xac] sm:$0xf]
  %v81 = vld [vmem:[%s1 + $0xb0] sm:$0xf]
  %v82 = vld [vmem:[%s1 + $0xb4] sm:$0xf]
  %v83 = vld [vmem:[%s1 + $0xb8] sm:$0xf]
  %v84 = vld [vmem:[%s1 + $0xbc] sm:$0xf]
  %v85 = vld [vmem:[%s1 + $0xc0] sm:$0xf]
  %v86 = vld [vmem:[%s1 + $0xc4] sm:$0xf]
  %v87 = vld [vmem:[%s1 + $0xc8] sm:$0xf]
  %v88 = vld [vmem:[%s1 + $0xcc] sm:$0xf]
  %v89 = vld [vmem:[%s1 + $0xd0] sm:$0xf]
  %v90 = vld [vmem:[%s1 + $0xd4] sm:$0xf]
  %v91 = vld [vmem:[%s1 + $0xd8] sm:$0xf]
  %v92 = vld [vmem:[%s1 + $0xdc] sm:$0xf]
  %v93 = vld [vmem:[%s1 + $0xe0] sm:$0xf]
  %v94 = vld [vmem:[%s1 + $0xe4] sm:$0xf]
  %v95 = vld [vmem:[%s1 + $0xe8] sm:$0xf]
  %v96 = vld [vmem:[%s1 + $0xec] sm:$0xf]
  %v97 = vld [vmem:[%s1 + $0xf0] sm:$0xf]
  %v98 = vld [vmem:[%s1 + $0xf4] sm:$0xf]
  %v99 = vld [vmem:[%s1 + $0xf8] sm:$0xf]
  %v100 = vld [vmem:[%s1 + $0xfc] sm:$0xf]
  %v101 = vld [vmem:[%s1 + $0x100] sm:$0xf]
  %v102 = vld [vmem:[%s1 + $0x104] sm:$0xf]
  %v103 = vld [vmem:[%s1 + $0x108] sm:$0xf]
  %v104 = vld [vmem:[%s1 + $0x10c] sm:$0xf]
  %v105 = vld [vmem:[%s1 + $0x110] sm:$0xf]
  %v106 = vld [vmem:[%s1 + $0x114] sm:$0xf]
  %v107 = vld [vmem:[%s1 + $0x118] sm:$0xf]
  %v108 = vld [vmem:[%s1 + $0x11c] sm:$0xf]
  %v109 = vld [vmem:[%s1 + $0x120] sm:$0xf]
  %v110 = vld [vmem:[%s1 + $0x124] sm:$0xf]
  %v111 = vld [vmem:[%s1 + $0x128] sm:$0xf]
  %v112 = vld [vmem:[%s1 + $0x12c] sm:$0xf]
  %v113 = vld [vmem:[%s1 + $0x130] sm:$0xf]
  %v114 = vld [vmem:[%s1 + $0x134] sm:$0xf]
  %v115 = vld [vmem:[%s1 + $0x138] sm:$0xf]
  %v116 = vld [vmem:[%s1 + $0x13c] sm:$0xf]
  %v117 = vld [vmem:[%s1 + $0x140] sm:$0xf]
  %v118 = vld [vmem:[%s1 + $0x144] sm:$0xf]
  %v119 = vld [vmem:[%s1 + $0x148] sm:$0xf]
  %v120 = vld [vmem:[%s1 + $0x14c] sm:$0xf]
  %v121 = vld [vmem:[%s1 + $0x150] sm:$0xf]
  %v122 = vld [vmem:[%s1 + $0x154] sm:$0xf]
  %v123 = vld [vmem:[%s1 + $0x158] sm:$0xf]
  %v124 = vld [vmem:[%s1 + $0x15c] sm:$0xf]
  %v125 = vld [vmem:[%s1 + $0x160] sm:$0xf]
  %v126 = vld [vmem:[%s1 + $0x164] sm:$0xf]
  %v127 = vld [vmem:[%s1 + $0x168] sm:$0xf]
  %v128 = vld [vmem:[%s1 + $0x16c] sm:$0xf]
  %v129 = vld [vmem:[%s1 + $0x170] sm:$0xf]
  %v130 = vld [vmem:[%s1 + $0x174] sm:$0xf]
  %v131 = vld [vmem:[%s1 + $0x178] sm:$0xf]
  %v132 = vld [vmem:[%s1 + $0x17c] sm:$0xf]
  %v133 = vld [vmem:[%s1 + $0x180] sm:$0xf]
  %v134 = vld [vmem:[%s1 + $0x184] sm:$0xf]
  %v135 = vld [vmem:[%s1 + $0x188] sm:$0xf]
  %v136 = vld [vmem:[%s1 + $0x18c] sm:$0xf]
  %v137 = vld [vmem:[%s1 + $0x190] sm:$0xf]
  %v138 = vld [vmem:[%s1 + $0x194] sm:$0xf]
  %v139 = vld [vmem:[%s1 + $0x198] sm:$0xf]
  %v140 = vld [vmem:[%s1 + $0x19c] sm:$0xf]
  %v141 = vld [vmem:[%s1 + $0x1a0] sm:$0xf]
  %v142 = vld [vmem:[%s1 + $0x1a4] sm:$0xf]
  %v143 = vld [vmem:[%s1 + $0x1a8] sm:$0xf]
  %v144 = vld [vmem:[%s1 + $0x1ac] sm:$0xf]
  %v145 = vld [vmem:[%s1 + $0x1b0] sm:$0xf]
  %v146 = vld [vmem:[%s1 + $0x1b4] sm:$0xf]
  %v147 = vld [vmem:[%s1 + $0x1b8] sm:$0xf]
  %v148 = vld [vmem:[%s1 + $0x1bc] sm:$0xf]
  %v149 = vld [vmem:[%s1 + $0x1c0] sm:$0xf]
  %v150 = vld [vmem:[%s1 + $0x1c4] sm:$0xf]
  %v151 = vld [vmem:[%s1 + $0x1c8] sm:$0xf]
  %v152 = vld [vmem:[%s1 + $0x1cc] sm:$0xf]
  %v153 = vld [vmem:[%s1 + $0x1d0] sm:$0xf]
  %v154 = vld [vmem:[%s1 + $0x1d4] sm:$0xf]
  %v155 = vld [vmem:[%s1 + $0x1d8] sm:$0xf]
  %v156 = vld [vmem:[%s1 + $0x1dc] sm:$0xf]
  %v157 = vld [vmem:[%s1 + $0x1e0] sm:$0xf]
  %v158 = vld [vmem:[%s1 + $0x1e4] sm:$0xf]
  %v159 = vld [vmem:[%s1 + $0x1e8] sm:$0xf]
  %v160 = vld [vmem:[%s1 + $0x1ec] sm:$0xf]
  %v161 = vld [vmem:[%s1 + $0x1f0] sm:$0xf]
  %v162 = vld [vmem:[%s1 + $0x1f4] sm:$0xf]
  %v163 = vld [vmem:[%s1 + $0x1f8] sm:$0xf]
  %v164 = vld [vmem:[%s1 + $0x1fc] sm:$0xf]
  %v165 = vld [vmem:[%s1 + $0x200] sm:$0xf]
  %v166 = vld [vmem:[%s1 + $0x204] sm:$0xf]
  %v167 = vld [vmem:[%s1 + $0x208] sm:$0xf]
  %v168 = vld [vmem:[%s1 + $0x20c] sm:$0xf]
  %v169 = vld [vmem:[%s1 + $0x210] sm:$0xf]
  %v170 = vld [vmem:[%s1 + $0x214] sm:$0xf]
  %v171 = vld [vmem:[%s1 + $0x218] sm:$0xf]
  %v172 = vld [vmem:[%s1 + $0x21c] sm:$0xf]
  %v173 = vld [vmem:[%s1 + $0x220] sm:$0xf]
  %v174 = vld [vmem:[%s1 + $0x224] sm:$0xf]
  %v175 = vld [vmem:[%s1 + $0x228] sm:$0xf]
  %v176 = vld [vmem:[%s1 + $0x22c] sm:$0xf]
  %v177 = vld [vmem:[%s1 + $0x230] sm:$0xf]
  %v178 = vld [vmem:[%s1 + $0x234] sm:$0xf]
  %v179 = vld [vmem:[%s1 + $0x238] sm:$0xf]
  %v180 = vld [vmem:[%s1 + $0x23c] sm:$0xf]
  %v181 = vld [vmem:[%s2] sm:$0x1]
  %v183 = vlaneseq
  %v184 = vshrl.u32 %v183, 7
  %v185 = vsub.s32 0, %v184
  %v186 = vrot.slane %v181, %v185
  %v208 = vunpack.c.l.b16 %v17
  %v209 = vunpack.c.h.b16 %v17
  %v210 = vunpack.c.l.b16 %v18
  %v211 = vunpack.c.h.b16 %v18
  %v212 = vunpack.c.l.b16 %v19
  %v213 = vunpack.c.h.b16 %v19
  %v214 = vunpack.c.l.b16 %v20
  %v215 = vunpack.c.h.b16 %v20
  %v216 = vunpack.c.l.b16 %v21
  %v217 = vunpack.c.l.b16 %v22
  %v218 = vunpack.c.h.b16 %v22
  %v219 = vunpack.c.l.b16 %v23
  %v220 = vunpack.c.h.b16 %v23
  %v221 = vunpack.c.l.b16 %v24
  %v222 = vunpack.c.h.b16 %v24
  %v223 = vunpack.c.l.b16 %v25
  %v224 = vunpack.c.h.b16 %v25
  %v225 = vunpack.c.l.b16 %v26
  %v226 = vunpack.c.l.b16 %v27
  %v227 = vunpack.c.h.b16 %v27
  %v228 = vunpack.c.l.b16 %v28
  %v229 = vunpack.c.h.b16 %v28
  %v230 = vunpack.c.l.b16 %v29
  %v231 = vunpack.c.h.b16 %v29
  %v232 = vunpack.c.l.b16 %v30
  %v233 = vunpack.c.h.b16 %v30
  %v234 = vunpack.c.l.b16 %v31
  %v235 = vunpack.c.l.b16 %v32
  %v236 = vunpack.c.h.b16 %v32
  %v237 = vunpack.c.l.b16 %v33
  %v238 = vunpack.c.h.b16 %v33
  %v239 = vunpack.c.l.b16 %v34
  %v240 = vunpack.c.h.b16 %v34
  %v241 = vunpack.c.l.b16 %v35
  %v242 = vunpack.c.h.b16 %v35
  %v243 = vunpack.c.l.b16 %v36
  %v244 = vpack.c.b16 %v217, %v208
  %v245 = vpack.c.b16 %v218, %v209
  %v246 = vpack.c.b16 %v219, %v210
  %v247 = vpack.c.b16 %v220, %v211
  %v248 = vpack.c.b16 %v221, %v212
  %v249 = vpack.c.b16 %v222, %v213
  %v250 = vpack.c.b16 %v223, %v214
  %v251 = vpack.c.b16 %v224, %v215
  %v252 = vpack.c.b16 %v225, %v216
  %v253 = vpack.c.b16 %v235, %v226
  %v254 = vpack.c.b16 %v236, %v227
  %v255 = vpack.c.b16 %v237, %v228
  %v256 = vpack.c.b16 %v238, %v229
  %v257 = vpack.c.b16 %v239, %v230
  %v258 = vpack.c.b16 %v240, %v231
  %v259 = vpack.c.b16 %v241, %v232
  %v260 = vpack.c.b16 %v242, %v233
  %v261 = vpack.c.b16 %v243, %v234
  %v424 = vunpack.c.l.b16 %v37
  %v425 = vunpack.c.l.b16 %v38
  %v426 = vunpack.c.l.b16 %v39
  %v427 = vunpack.c.l.b16 %v40
  %v428 = vunpack.c.l.b16 %v41
  %v429 = vunpack.c.l.b16 %v42
  %v430 = vunpack.c.l.b16 %v43
  %v431 = vunpack.c.l.b16 %v44
  %v432 = vunpack.c.l.b16 %v45
  %v433 = vunpack.c.l.b16 %v46
  %v434 = vunpack.c.l.b16 %v47
  %v435 = vunpack.c.l.b16 %v48
  %v436 = vunpack.c.l.b16 %v49
  %v437 = vunpack.c.l.b16 %v50
  %v438 = vunpack.c.l.b16 %v51
  %v439 = vunpack.c.l.b16 %v52
  %v440 = vunpack.c.l.b16 %v53
  %v441 = vunpack.c.l.b16 %v54
  %v442 = vunpack.c.l.b16 %v55
  %v443 = vunpack.c.l.b16 %v56
  %v444 = vunpack.c.l.b16 %v57
  %v445 = vunpack.c.l.b16 %v58
  %v446 = vunpack.c.l.b16 %v59
  %v447 = vunpack.c.l.b16 %v60
  %v448 = vunpack.c.l.b16 %v61
  %v449 = vunpack.c.l.b16 %v62
  %v450 = vunpack.c.l.b16 %v63
  %v451 = vunpack.c.l.b16 %v64
  %v452 = vunpack.c.l.b16 %v65
  %v453 = vunpack.c.l.b16 %v66
  %v454 = vunpack.c.l.b16 %v67
  %v455 = vunpack.c.l.b16 %v68
  %v456 = vunpack.c.l.b16 %v69
  %v457 = vunpack.c.l.b16 %v70
  %v458 = vunpack.c.l.b16 %v71
  %v459 = vunpack.c.l.b16 %v72
  %v460 = vunpack.c.l.b16 %v73
  %v461 = vunpack.c.l.b16 %v74
  %v462 = vunpack.c.l.b16 %v75
  %v463 = vunpack.c.l.b16 %v76
  %v464 = vunpack.c.l.b16 %v77
  %v465 = vunpack.c.l.b16 %v78
  %v466 = vunpack.c.l.b16 %v79
  %v467 = vunpack.c.l.b16 %v80
  %v468 = vunpack.c.l.b16 %v81
  %v469 = vunpack.c.l.b16 %v82
  %v470 = vunpack.c.l.b16 %v83
  %v471 = vunpack.c.l.b16 %v84
  %v472 = vunpack.c.l.b16 %v85
  %v473 = vunpack.c.l.b16 %v86
  %v474 = vunpack.c.l.b16 %v87
  %v475 = vunpack.c.l.b16 %v88
  %v476 = vunpack.c.l.b16 %v89
  %v477 = vunpack.c.l.b16 %v90
  %v478 = vunpack.c.l.b16 %v91
  %v479 = vunpack.c.l.b16 %v92
  %v480 = vunpack.c.l.b16 %v93
  %v481 = vunpack.c.l.b16 %v94
  %v482 = vunpack.c.l.b16 %v95
  %v483 = vunpack.c.l.b16 %v96
  %v484 = vunpack.c.l.b16 %v97
  %v485 = vunpack.c.l.b16 %v98
  %v486 = vunpack.c.l.b16 %v99
  %v487 = vunpack.c.l.b16 %v100
  %v488 = vunpack.c.l.b16 %v101
  %v489 = vunpack.c.l.b16 %v102
  %v490 = vunpack.c.l.b16 %v103
  %v491 = vunpack.c.l.b16 %v104
  %v492 = vunpack.c.l.b16 %v105
  %v493 = vunpack.c.l.b16 %v106
  %v494 = vunpack.c.l.b16 %v107
  %v495 = vunpack.c.l.b16 %v108
  %v496 = vunpack.c.l.b16 %v109
  %v497 = vunpack.c.l.b16 %v110
  %v498 = vunpack.c.l.b16 %v111
  %v499 = vunpack.c.l.b16 %v112
  %v500 = vunpack.c.l.b16 %v113
  %v501 = vunpack.c.l.b16 %v114
  %v502 = vunpack.c.l.b16 %v115
  %v503 = vunpack.c.l.b16 %v116
  %v504 = vunpack.c.l.b16 %v117
  %v505 = vunpack.c.l.b16 %v118
  %v506 = vunpack.c.l.b16 %v119
  %v507 = vunpack.c.l.b16 %v120
  %v508 = vunpack.c.l.b16 %v121
  %v509 = vunpack.c.l.b16 %v122
  %v510 = vunpack.c.l.b16 %v123
  %v511 = vunpack.c.l.b16 %v124
  %v512 = vunpack.c.l.b16 %v125
  %v513 = vunpack.c.l.b16 %v126
  %v514 = vunpack.c.l.b16 %v127
  %v515 = vunpack.c.l.b16 %v128
  %v516 = vunpack.c.l.b16 %v129
  %v517 = vunpack.c.l.b16 %v130
  %v518 = vunpack.c.l.b16 %v131
  %v519 = vunpack.c.l.b16 %v132
  %v520 = vunpack.c.l.b16 %v133
  %v521 = vunpack.c.l.b16 %v134
  %v522 = vunpack.c.l.b16 %v135
  %v523 = vunpack.c.l.b16 %v136
  %v524 = vunpack.c.l.b16 %v137
  %v525 = vunpack.c.l.b16 %v138
  %v526 = vunpack.c.l.b16 %v139
  %v527 = vunpack.c.l.b16 %v140
  %v528 = vunpack.c.l.b16 %v141
  %v529 = vunpack.c.l.b16 %v142
  %v530 = vunpack.c.l.b16 %v143
  %v531 = vunpack.c.l.b16 %v144
  %v532 = vunpack.c.l.b16 %v145
  %v533 = vunpack.c.l.b16 %v146
  %v534 = vunpack.c.l.b16 %v147
  %v535 = vunpack.c.l.b16 %v148
  %v536 = vunpack.c.l.b16 %v149
  %v537 = vunpack.c.l.b16 %v150
  %v538 = vunpack.c.l.b16 %v151
  %v539 = vunpack.c.l.b16 %v152
  %v540 = vunpack.c.l.b16 %v153
  %v541 = vunpack.c.l.b16 %v154
  %v542 = vunpack.c.l.b16 %v155
  %v543 = vunpack.c.l.b16 %v156
  %v544 = vunpack.c.l.b16 %v157
  %v545 = vunpack.c.l.b16 %v158
  %v546 = vunpack.c.l.b16 %v159
  %v547 = vunpack.c.l.b16 %v160
  %v548 = vunpack.c.l.b16 %v161
  %v549 = vunpack.c.l.b16 %v162
  %v550 = vunpack.c.l.b16 %v163
  %v551 = vunpack.c.l.b16 %v164
  %v552 = vunpack.c.l.b16 %v165
  %v553 = vunpack.c.l.b16 %v166
  %v554 = vunpack.c.l.b16 %v167
  %v555 = vunpack.c.l.b16 %v168
  %v556 = vunpack.c.l.b16 %v169
  %v557 = vunpack.c.l.b16 %v170
  %v558 = vunpack.c.l.b16 %v171
  %v559 = vunpack.c.l.b16 %v172
  %v560 = vunpack.c.l.b16 %v173
  %v561 = vunpack.c.l.b16 %v174
  %v562 = vunpack.c.l.b16 %v175
  %v563 = vunpack.c.l.b16 %v176
  %v564 = vunpack.c.l.b16 %v177
  %v565 = vunpack.c.l.b16 %v178
  %v566 = vunpack.c.l.b16 %v179
  %v567 = vunpack.c.l.b16 %v180
  %v568 = vpack.c.b16 %v425, %v424
  %v569 = vpack.c.b16 %v427, %v426
  %v570 = vpack.c.b16 %v429, %v428
  %v571 = vpack.c.b16 %v431, %v430
  %v572 = vpack.c.b16 %v433, %v432
  %v573 = vpack.c.b16 %v435, %v434
  %v574 = vpack.c.b16 %v437, %v436
  %v575 = vpack.c.b16 %v439, %v438
  %v576 = vpack.c.b16 %v441, %v440
  %v577 = vpack.c.b16 %v443, %v442
  %v578 = vpack.c.b16 %v445, %v444
  %v579 = vpack.c.b16 %v447, %v446
  %v580 = vpack.c.b16 %v449, %v448
  %v581 = vpack.c.b16 %v451, %v450
  %v582 = vpack.c.b16 %v453, %v452
  %v583 = vpack.c.b16 %v455, %v454
  %v584 = vpack.c.b16 %v457, %v456
  %v585 = vpack.c.b16 %v459, %v458
  %v586 = vpack.c.b16 %v461, %v460
  %v587 = vpack.c.b16 %v463, %v462
  %v588 = vpack.c.b16 %v465, %v464
  %v589 = vpack.c.b16 %v467, %v466
  %v590 = vpack.c.b16 %v469, %v468
  %v591 = vpack.c.b16 %v471, %v470
  %v592 = vpack.c.b16 %v473, %v472
  %v593 = vpack.c.b16 %v475, %v474
  %v594 = vpack.c.b16 %v477, %v476
  %v595 = vpack.c.b16 %v479, %v478
  %v596 = vpack.c.b16 %v481, %v480
  %v597 = vpack.c.b16 %v483, %v482
  %v598 = vpack.c.b16 %v485, %v484
  %v599 = vpack.c.b16 %v487, %v486
  %v600 = vpack.c.b16 %v489, %v488
  %v601 = vpack.c.b16 %v491, %v490
  %v602 = vpack.c.b16 %v493, %v492
  %v603 = vpack.c.b16 %v495, %v494
  %v604 = vpack.c.b16 %v497, %v496
  %v605 = vpack.c.b16 %v499, %v498
  %v606 = vpack.c.b16 %v501, %v500
  %v607 = vpack.c.b16 %v503, %v502
  %v608 = vpack.c.b16 %v505, %v504
  %v609 = vpack.c.b16 %v507, %v506
  %v610 = vpack.c.b16 %v509, %v508
  %v611 = vpack.c.b16 %v511, %v510
  %v612 = vpack.c.b16 %v513, %v512
  %v613 = vpack.c.b16 %v515, %v514
  %v614 = vpack.c.b16 %v517, %v516
  %v615 = vpack.c.b16 %v519, %v518
  %v616 = vpack.c.b16 %v521, %v520
  %v617 = vpack.c.b16 %v523, %v522
  %v618 = vpack.c.b16 %v525, %v524
  %v619 = vpack.c.b16 %v527, %v526
  %v620 = vpack.c.b16 %v529, %v528
  %v621 = vpack.c.b16 %v531, %v530
  %v622 = vpack.c.b16 %v533, %v532
  %v623 = vpack.c.b16 %v535, %v534
  %v624 = vpack.c.b16 %v537, %v536
  %v625 = vpack.c.b16 %v539, %v538
  %v626 = vpack.c.b16 %v541, %v540
  %v627 = vpack.c.b16 %v543, %v542
  %v628 = vpack.c.b16 %v545, %v544
  %v629 = vpack.c.b16 %v547, %v546
  %v630 = vpack.c.b16 %v549, %v548
  %v631 = vpack.c.b16 %v551, %v550
  %v632 = vpack.c.b16 %v553, %v552
  %v633 = vpack.c.b16 %v555, %v554
  %v634 = vpack.c.b16 %v557, %v556
  %v635 = vpack.c.b16 %v559, %v558
  %v636 = vpack.c.b16 %v561, %v560
  %v637 = vpack.c.b16 %v563, %v562
  %v638 = vpack.c.b16 %v565, %v564
  %v639 = vpack.c.b16 %v567, %v566
  %712 = vmatprep.subr.bf16.mxu0 0
  %713 = vmatpush1.bf16.msra.mxu0 %v568
  %714 = vmatprep.subr.bf16.mxu0 0
  %715 = vmatpush1.bf16.msra.mxu0 %v569
  %716 = vmatprep.subr.bf16.mxu0 0
  %717 = vmatpush1.bf16.msra.mxu0 %v570
  %718 = vmatprep.subr.bf16.mxu0 0
  %719 = vmatpush1.bf16.msra.mxu0 %v571
  %720 = vmatprep.subr.bf16.mxu0 0
  %721 = vmatpush1.bf16.msra.mxu0 %v572
  %722 = vmatprep.subr.bf16.mxu0 0
  %723 = vmatpush1.bf16.msra.mxu0 %v573
  %724 = vmatprep.subr.bf16.mxu0 0
  %725 = vmatpush1.bf16.msra.mxu0 %v574
  %726 = vmatprep.subr.bf16.mxu0 0
  %727 = vmatpush1.bf16.msra.mxu0 %v575
  %728 = vmatprep.subr.bf16.mxu0 0
  %729 = vmatpush1.bf16.msra.mxu0 %v576
  %730 = vmatprep.subr.bf16.mxu0 0
  %731 = vmatpush1.bf16.msra.mxu0 %v577
  %732 = vmatprep.subr.bf16.mxu0 0
  %733 = vmatpush1.bf16.msra.mxu0 %v578
  %734 = vmatprep.subr.bf16.mxu0 0
  %735 = vmatpush1.bf16.msra.mxu0 %v579
  %736 = vmatprep.subr.bf16.mxu0 0
  %737 = vmatpush1.bf16.msra.mxu0 %v580
  %738 = vmatprep.subr.bf16.mxu0 0
  %739 = vmatpush1.bf16.msra.mxu0 %v581
  %740 = vmatprep.subr.bf16.mxu0 0
  %741 = vmatpush1.bf16.msra.mxu0 %v582
  %742 = vmatprep.subr.bf16.mxu0 0
  %743 = vmatpush1.bf16.msra.mxu0 %v583
  %744 = vmatprep.mubr.bf16.mxu0 %v245
  %745 = vmatmul.mubr.bf16.gmra.mrb[0].mxu0 %v244
  %v746 = vpop.f32.mrb[0].mxu0
  %v747 = vadd.f32 %v186, %v746
  %v748 = vpop.f32.mrb[0].mxu0
  %v749 = vpop.f32.mrb[0].mxu0
  %v750 = vadd.f32 %v186, %v749
  %v751 = vpop.f32.mrb[0].mxu0
  %752 = vmatprep.mubr.bf16.mxu0 %v254
  %753 = vmatmul.mubr.bf16.gmra.mrb[0].mxu0 %v253
  %v754 = vpop.f32.mrb[0].mxu0
  %v755 = vadd.f32 %v186, %v754
  %v756 = vpop.f32.mrb[0].mxu0
  %v757 = vpop.f32.mrb[0].mxu0
  %v758 = vadd.f32 %v186, %v757
  %v759 = vpop.f32.mrb[0].mxu0
  %760 = vdwg.mxu0
  %761 = vmatprep.subr.bf16.mxu0 0
  %762 = vmatpush1.bf16.msra.mxu0 %v584
  %763 = vmatprep.subr.bf16.mxu0 0
  %764 = vmatpush1.bf16.msra.mxu0 %v585
  %765 = vmatprep.subr.bf16.mxu0 0
  %766 = vmatpush1.bf16.msra.mxu0 %v586
  %767 = vmatprep.subr.bf16.mxu0 0
  %768 = vmatpush1.bf16.msra.mxu0 %v587
  %769 = vmatprep.subr.bf16.mxu0 0
  %770 = vmatpush1.bf16.msra.mxu0 %v588
  %771 = vmatprep.subr.bf16.mxu0 0
  %772 = vmatpush1.bf16.msra.mxu0 %v589
  %773 = vmatprep.subr.bf16.mxu0 0
  %774 = vmatpush1.bf16.msra.mxu0 %v590
  %775 = vmatprep.subr.bf16.mxu0 0
  %776 = vmatpush1.bf16.msra.mxu0 %v591
  %777 = vmatprep.subr.bf16.mxu0 0
  %778 = vmatpush1.bf16.msra.mxu0 %v592
  %779 = vmatprep.subr.bf16.mxu0 0
  %780 = vmatpush1.bf16.msra.mxu0 %v593
  %781 = vmatprep.subr.bf16.mxu0 0
  %782 = vmatpush1.bf16.msra.mxu0 %v594
  %783 = vmatprep.subr.bf16.mxu0 0
  %784 = vmatpush1.bf16.msra.mxu0 %v595
  %785 = vmatprep.subr.bf16.mxu0 0
  %786 = vmatpush1.bf16.msra.mxu0 %v596
  %787 = vmatprep.subr.bf16.mxu0 0
  %788 = vmatpush1.bf16.msra.mxu0 %v597
  %789 = vmatprep.subr.bf16.mxu0 0
  %790 = vmatpush1.bf16.msra.mxu0 %v598
  %791 = vmatprep.subr.bf16.mxu0 0
  %792 = vmatpush1.bf16.msra.mxu0 %v599
  %793 = vmatprep.mubr.bf16.mxu0 %v247
  %794 = vmatmul.mubr.bf16.gmra.mrb[0].mxu0 %v246
  %v795 = vpop.f32.mrb[0].mxu0
  %v796 = vadd.f32 %v747, %v795
  %v797 = vpop.f32.mrb[0].mxu0
  %v798 = vpop.f32.mrb[0].mxu0
  %v799 = vadd.f32 %v750, %v798
  %v800 = vpop.f32.mrb[0].mxu0
  %801 = vmatprep.mubr.bf16.mxu0 %v256
  %802 = vmatmul.mubr.bf16.gmra.mrb[0].mxu0 %v255
  %v803 = vpop.f32.mrb[0].mxu0
  %v804 = vadd.f32 %v755, %v803
  %v805 = vpop.f32.mrb[0].mxu0
  %v806 = vpop.f32.mrb[0].mxu0
  %v807 = vadd.f32 %v758, %v806
  %v808 = vpop.f32.mrb[0].mxu0
  %809 = vdwg.mxu0
  %810 = vmatprep.subr.bf16.mxu0 0
  %811 = vmatpush1.bf16.msra.mxu0 %v600
  %812 = vmatprep.subr.bf16.mxu0 0
  %813 = vmatpush1.bf16.msra.mxu0 %v601
  %814 = vmatprep.subr.bf16.mxu0 0
  %815 = vmatpush1.bf16.msra.mxu0 %v602
  %816 = vmatprep.subr.bf16.mxu0 0
  %817 = vmatpush1.bf16.msra.mxu0 %v603
  %818 = vmatprep.subr.bf16.mxu0 0
  %819 = vmatpush1.bf16.msra.mxu0 %v604
  %820 = vmatprep.subr.bf16.mxu0 0
  %821 = vmatpush1.bf16.msra.mxu0 %v605
  %822 = vmatprep.subr.bf16.mxu0 0
  %823 = vmatpush1.bf16.msra.mxu0 %v606
  %824 = vmatprep.subr.bf16.mxu0 0
  %825 = vmatpush1.bf16.msra.mxu0 %v607
  %826 = vmatprep.subr.bf16.mxu0 0
  %827 = vmatpush1.bf16.msra.mxu0 %v608
  %828 = vmatprep.subr.bf16.mxu0 0
  %829 = vmatpush1.bf16.msra.mxu0 %v609
  %830 = vmatprep.subr.bf16.mxu0 0
  %831 = vmatpush1.bf16.msra.mxu0 %v610
  %832 = vmatprep.subr.bf16.mxu0 0
  %833 = vmatpush1.bf16.msra.mxu0 %v611
  %834 = vmatprep.subr.bf16.mxu0 0
  %835 = vmatpush1.bf16.msra.mxu0 %v612
  %836 = vmatprep.subr.bf16.mxu0 0
  %837 = vmatpush1.bf16.msra.mxu0 %v613
  %838 = vmatprep.subr.bf16.mxu0 0
  %839 = vmatpush1.bf16.msra.mxu0 %v614
  %840 = vmatprep.subr.bf16.mxu0 0
  %841 = vmatpush1.bf16.msra.mxu0 %v615
  %842 = vmatprep.mubr.bf16.mxu0 %v249
  %843 = vmatmul.mubr.bf16.gmra.mrb[0].mxu0 %v248
  %v844 = vpop.f32.mrb[0].mxu0
  %v845 = vadd.f32 %v796, %v844
  %v846 = vpop.f32.mrb[0].mxu0
  %v847 = vpop.f32.mrb[0].mxu0
  %v848 = vadd.f32 %v799, %v847
  %v849 = vpop.f32.mrb[0].mxu0
  %850 = vmatprep.mubr.bf16.mxu0 %v258
  %851 = vmatmul.mubr.bf16.gmra.mrb[0].mxu0 %v257
  %v852 = vpop.f32.mrb[0].mxu0
  %v853 = vadd.f32 %v804, %v852
  %v854 = vpop.f32.mrb[0].mxu0
  %v855 = vpop.f32.mrb[0].mxu0
  %v856 = vadd.f32 %v807, %v855
  %v857 = vpop.f32.mrb[0].mxu0
  %858 = vdwg.mxu0
  %859 = vmatprep.subr.bf16.mxu0 0
  %860 = vmatpush1.bf16.msra.mxu0 %v616
  %861 = vmatprep.subr.bf16.mxu0 0
  %862 = vmatpush1.bf16.msra.mxu0 %v617
  %863 = vmatprep.subr.bf16.mxu0 0
  %864 = vmatpush1.bf16.msra.mxu0 %v618
  %865 = vmatprep.subr.bf16.mxu0 0
  %866 = vmatpush1.bf16.msra.mxu0 %v619
  %867 = vmatprep.subr.bf16.mxu0 0
  %868 = vmatpush1.bf16.msra.mxu0 %v620
  %869 = vmatprep.subr.bf16.mxu0 0
  %870 = vmatpush1.bf16.msra.mxu0 %v621
  %871 = vmatprep.subr.bf16.mxu0 0
  %872 = vmatpush1.bf16.msra.mxu0 %v622
  %873 = vmatprep.subr.bf16.mxu0 0
  %874 = vmatpush1.bf16.msra.mxu0 %v623
  %875 = vmatprep.subr.bf16.mxu0 0
  %876 = vmatpush1.bf16.msra.mxu0 %v624
  %877 = vmatprep.subr.bf16.mxu0 0
  %878 = vmatpush1.bf16.msra.mxu0 %v625
  %879 = vmatprep.subr.bf16.mxu0 0
  %880 = vmatpush1.bf16.msra.mxu0 %v626
  %881 = vmatprep.subr.bf16.mxu0 0
  %882 = vmatpush1.bf16.msra.mxu0 %v627
  %883 = vmatprep.subr.bf16.mxu0 0
  %884 = vmatpush1.bf16.msra.mxu0 %v628
  %885 = vmatprep.subr.bf16.mxu0 0
  %886 = vmatpush1.bf16.msra.mxu0 %v629
  %887 = vmatprep.subr.bf16.mxu0 0
  %888 = vmatpush1.bf16.msra.mxu0 %v630
  %889 = vmatprep.subr.bf16.mxu0 0
  %890 = vmatpush1.bf16.msra.mxu0 %v631
  %891 = vmatprep.mubr.bf16.mxu0 %v251
  %892 = vmatmul.mubr.bf16.gmra.mrb[0].mxu0 %v250
  %v893 = vpop.f32.mrb[0].mxu0
  %v894 = vadd.f32 %v845, %v893
  %v895 = vpop.f32.mrb[0].mxu0
  %v896 = vpop.f32.mrb[0].mxu0
  %v897 = vadd.f32 %v848, %v896
  %v898 = vpop.f32.mrb[0].mxu0
  %899 = vmatprep.mubr.bf16.mxu0 %v260
  %900 = vmatmul.mubr.bf16.gmra.mrb[0].mxu0 %v259
  %v901 = vpop.f32.mrb[0].mxu0
  %v902 = vadd.f32 %v853, %v901
  %v903 = vpop.f32.mrb[0].mxu0
  %v904 = vpop.f32.mrb[0].mxu0
  %v905 = vadd.f32 %v856, %v904
  %v906 = vpop.f32.mrb[0].mxu0
  %907 = vdwg.mxu0
  %908 = vmatprep.subr.bf16.mxu0 0
  %909 = vmatpush1.bf16.msra.mxu0 %v632
  %910 = vmatprep.subr.bf16.mxu0 0
  %911 = vmatpush1.bf16.msra.mxu0 %v633
  %912 = vmatprep.subr.bf16.mxu0 0
  %913 = vmatpush1.bf16.msra.mxu0 %v634
  %914 = vmatprep.subr.bf16.mxu0 0
  %915 = vmatpush1.bf16.msra.mxu0 %v635
  %916 = vmatprep.subr.bf16.mxu0 0
  %917 = vmatpush1.bf16.msra.mxu0 %v636
  %918 = vmatprep.subr.bf16.mxu0 0
  %919 = vmatpush1.bf16.msra.mxu0 %v637
  %920 = vmatprep.subr.bf16.mxu0 0
  %921 = vmatpush1.bf16.msra.mxu0 %v638
  %922 = vmatprep.subr.bf16.mxu0 0
  %923 = vmatpush1.bf16.msra.mxu0 %v639
  %924 = vmatprep.subr.bf16.mxu0 0
  %925 = vmatpush1.bf16.msra.mxu0 0
  %926 = vmatprep.subr.bf16.mxu0 0
  %927 = vmatpush1.bf16.msra.mxu0 0
  %928 = vmatprep.subr.bf16.mxu0 0
  %929 = vmatpush1.bf16.msra.mxu0 0
  %930 = vmatprep.subr.bf16.mxu0 0
  %931 = vmatpush1.bf16.msra.mxu0 0
  %932 = vmatprep.subr.bf16.mxu0 0
  %933 = vmatpush1.bf16.msra.mxu0 0
  %934 = vmatprep.subr.bf16.mxu0 0
  %935 = vmatpush1.bf16.msra.mxu0 0
  %936 = vmatprep.subr.bf16.mxu0 0
  %937 = vmatpush1.bf16.msra.mxu0 0
  %938 = vmatprep.subr.bf16.mxu0 0
  %939 = vmatpush1.bf16.msra.mxu0 0
  %940 = vmatprep.mubr.bf16.mxu0 0
  %941 = vmatmul.mubr.bf16.gmra.mrb[0].mxu0 %v252
  %v942 = vpop.f32.mrb[0].mxu0
  %v943 = vadd.f32 %v894, %v942
  %v944 = vpop.f32.mrb[0].mxu0
  %v945 = vpop.f32.mrb[0].mxu0
  %v946 = vadd.f32 %v897, %v945
  %v947 = vpop.f32.mrb[0].mxu0
  %948 = vmatprep.mubr.bf16.mxu0 0
  %949 = vmatmul.mubr.bf16.gmra.mrb[0].mxu0 %v261
  %v950 = vpop.f32.mrb[0].mxu0
  %v951 = vadd.f32 %v902, %v950
  %v952 = vpop.f32.mrb[0].mxu0
  %v953 = vpop.f32.mrb[0].mxu0
  %v954 = vadd.f32 %v905, %v953
  %v955 = vpop.f32.mrb[0].mxu0
  %956 = vdwg.mxu0
  %v957 = vpack.c.bf16 %v946, %v943
  %v958 = vpack.c.bf16 %v954, %v951
  %v961 = vunpack.c.l.b16 %v957
  %v962 = vunpack.c.h.b16 %v957
  %v963 = vunpack.c.l.b16 %v958
  %v964 = vunpack.c.h.b16 %v958
  %v965 = vpack.c.b16 %v961, %v961
  %v966 = vpack.c.b16 %v962, %v962
  %v967 = vpack.c.b16 %v963, %v963
  %v968 = vpack.c.b16 %v964, %v964
  %973 = vst [vmem:[%s3] sm:$0xf] %v965
  %974 = vst [vmem:[%s3 + $0x4] sm:$0xf] %v966
  %975 = vst [vmem:[%s3 + $0x8] sm:$0xf] %v967
  %976 = vst [vmem:[%s3 + $0xc] sm:$0xf] %v968
  %v977 = vlaneseq
  %v978 = vshrl.u32 %v977, 7
  %v979 = vadd.s32 %v978, 8
  %v980 = vadd.s32 %v978, 16
  %v981 = vadd.s32 %v978, 24
  %s982 = smul.u32 0, 32
  %v983 = vstv %s982
  %v984 = vadd.s32 %v978, %v983
  %v985 = vadd.s32 %v979, %v983
  %v986 = vadd.s32 %v980, %v983
  %v987 = vadd.s32 %v981, %v983
  %vm988 = vcmp.lt.s32.totalorder %v984, 32
  %vm989 = vcmp.lt.s32.totalorder %v985, 32
  %vm990 = vcmp.lt.s32.totalorder %v986, 32
  %vm991 = vcmp.lt.s32.totalorder %v987, 32
  %v992 = vsel %vm988, %v943, 0.0
  %v993 = vsel %vm989, %v946, 0.0
  %v994 = vsel %vm990, %v951, 0.0
  %v995 = vsel %vm991, %v954, 0.0
  %v996 = vadd.f32 %v992, %v993
  %v997 = vadd.f32 %v996, %v994
  %v998 = vadd.f32 %v997, %v995
  %v999 = vrot.slane %v998, 4
  %v1000 = vadd.f32 %v998, %v999
  %v1001 = vrot.slane %v1000, 2
  %v1002 = vadd.f32 %v1000, %v1001
  %v1003 = vrot.slane %v1002, 1
  %v1004 = vadd.f32 %v1002, %v1003
  %v1005 = vmul.f32 %v992, %v992
  %v1006 = vmul.f32 %v993, %v993
  %v1007 = vmul.f32 %v994, %v994
  %v1008 = vmul.f32 %v995, %v995
  %v1009 = vadd.f32 %v1005, %v1006
  %v1010 = vadd.f32 %v1009, %v1007
  %v1011 = vadd.f32 %v1010, %v1008
  %v1012 = vrot.slane %v1011, 4
  %v1013 = vadd.f32 %v1011, %v1012
  %v1014 = vrot.slane %v1013, 2
  %v1015 = vadd.f32 %v1013, %v1014
  %v1016 = vrot.slane %v1015, 1
  %v1017 = vadd.f32 %v1015, %v1016
  %vm1018 = vcmask 1040384
  %v1019 = vsel %vm1018, %v1004, %v1017
  %1020 = vst [vmem:[%s4] sm:$0x3] %v1019
  // Predicated region
  $region14: #{_lambda_.41} parent=0 // pred_check
    _
  $region15: #{_lambda_.41} parent=0 // pred_check_branch
    %1022 = sbr.rel (0) target = $region17
  $region16: #{_lambda_.41} parent=0 // pred_region
    _
  $region17: #{_lambda_.41} parent=0 // pred_fallthru
    _
  // Predicated region
  $region18: #{_lambda_.41} parent=0 // pred_check
    _
  $region19: #{_lambda_.41} parent=0 // pred_check_branch
    %1024 = sbr.rel (0) target = $region21
  $region20: #{_lambda_.41} parent=0 // pred_region
    _
  $region21: #{_lambda_.41} parent=0 // pred_fallthru
    _
  // Predicated region
  $region22: #{_lambda_.41} parent=0 // pred_check
    _
  $region23: #{_lambda_.41} parent=0 // pred_check_branch
    %1026 = sbr.rel (0) target = $region25
  $region24: #{_lambda_.41} parent=0 // pred_region
    _
  $region25: #{_lambda_.41} parent=0 // pred_fallthru
    _
  // Predicated region
  $region26: #{_lambda_.41} parent=0 // pred_check
    _
  $region27: #{_lambda_.41} parent=0 // pred_check_branch
    %1028 = sbr.rel (0) target = $region29
  $region28: #{_lambda_.41} parent=0 // pred_region
    _
  $region29: #{_lambda_.41} parent=0 // pred_fallthru
    _

// kernel: _lambda_.49
$region0: #{_lambda_.49}
  #allocation0 [shape = 'u32[]', space=smem, size = 0x4, offset = 0x4, fixed_abs, tag = 'smem constant byte address 0x4 - core index']
  #allocation1 [shape = 'u32[144,128]{1,0:T(1,128)}', space=vmem, size = 0x12000, scoped, tag = 'internal scratch']
  %s0 = inlined_call_operand.vmem [shape: bf16[8,128], index: 0, kind: input, shape index: {}]
  %s1 = inlined_call_operand.vmem [shape: f32[1,128], index: 1, kind: input, shape index: {}]
  %s2 = inlined_call_operand.vmem [shape: f32[1,128], index: 2, kind: input, shape index: {}]
  %s3 = inlined_call_operand.vmem [shape: bf16[8,128], index: 3, kind: output, shape index: {}]
  %s4 = sld [smem:[#allocation0]]
  $region22: #{_lambda_.49} parent=0
    _
  %s6 = ssub.s32 1, %s4
  %s7 = scalar_select 0, %s6, %s4
  // Predicated region
  $region2: #{_lambda_.49} parent=0 // pred_check
    _
  $region3: #{_lambda_.49} parent=0 // pred_check_branch
    %9 = sbr.rel (0) target = $region5
  $region4: #{_lambda_.49} parent=0 // pred_region
    _
  $region5: #{_lambda_.49} parent=0 // pred_fallthru
    _
  // Predicated region
  $region6: #{_lambda_.49} parent=0 // pred_check
    _
  $region7: #{_lambda_.49} parent=0 // pred_check_branch
    %11 = sbr.rel (0) target = $region9
  $region8: #{_lambda_.49} parent=0 // pred_region
    _
  $region9: #{_lambda_.49} parent=0 // pred_fallthru
    _
  // Predicated region
  $region10: #{_lambda_.49} parent=0 // pred_check
    _
  $region11: #{_lambda_.49} parent=0 // pred_check_branch
    %13 = sbr.rel (0) target = $region13
  $region12: #{_lambda_.49} parent=0 // pred_region
    _
  $region13: #{_lambda_.49} parent=0 // pred_fallthru
    _
  %v14 = vld [vmem:[%s0] sm:$0xf]
  %v15 = vunpack.c.l.bf16 %v14
  %v16 = vld [vmem:[%s1] sm:$0x1]
  %v18 = vlaneseq
  %v19 = vshrl.u32 %v18, 7
  %v20 = vsub.s32 0, %v19
  %v21 = vrot.slane %v16, %v20
  %v23 = vmul.f32 %v15, %v21
  %v24 = vld [vmem:[%s2] sm:$0x1]
  %v26 = vlaneseq
  %v27 = vshrl.u32 %v26, 7
  %v28 = vsub.s32 0, %v27
  %v29 = vrot.slane %v24, %v28
  %v31 = vadd.f32 %v23, %v29
  %v32 = vmax.f32 %v31, 0.0
  %v33 = vpack.c.bf16 %v32, %v32
  %34 = vst [vmem:[%s3] sm:$0xf] %v33
  // Predicated region
  $region14: #{_lambda_.49} parent=0 // pred_check
    _
  $region15: #{_lambda_.49} parent=0 // pred_check_branch
    %36 = sbr.rel (0) target = $region17
  $region16: #{_lambda_.49} parent=0 // pred_region
    _
  $region17: #{_lambda_.49} parent=0 // pred_fallthru
    _
  // Predicated region
  $region18: #{_lambda_.49} parent=0 // pred_check
    _
  $region19: #{_lambda_.49} parent=0 // pred_check_branch
    %38 = sbr.rel (0) target = $region21
  $region20: #{_lambda_.49} parent=0 // pred_region
    _
  $region21: #{_lambda_.49} parent=0 // pred_fallthru
    _

// kernel: _lambda_.48
$region0: #{_lambda_.48}
  #allocation0 [shape = 'u32[]', space=smem, size = 0x4, offset = 0x4, fixed_abs, tag = 'smem constant byte address 0x4 - core index']
  #allocation1 [shape = 'u32[144,128]{1,0:T(1,128)}', space=vmem, size = 0x12000, scoped, tag = 'internal scratch']
  %s0 = inlined_call_operand.vmem [shape: bf16[8,1152], index: 0, kind: input, shape index: {}]
  %s1 = inlined_call_operand.vmem [shape: bf16[1152,128], index: 1, kind: input, shape index: {}]
  %s2 = inlined_call_operand.vmem [shape: f32[1,128], index: 2, kind: input, shape index: {}]
  %s3 = inlined_call_operand.vmem [shape: bf16[8,128], index: 3, kind: output, shape index: {0}]
  %s4 = inlined_call_operand.vmem [shape: f32[1,2,128], index: 4, kind: output, shape index: {1}]
  %5 = xla_tuple %s3, %s4
  %s6 = sld [smem:[#allocation0]]
  $region30: #{_lambda_.48} parent=0
    _
  %s8 = ssub.s32 1, %s6
  %s9 = scalar_select 0, %s8, %s6
  // Predicated region
  $region2: #{_lambda_.48} parent=0 // pred_check
    _
  $region3: #{_lambda_.48} parent=0 // pred_check_branch
    %11 = sbr.rel (0) target = $region5
  $region4: #{_lambda_.48} parent=0 // pred_region
    _
  $region5: #{_lambda_.48} parent=0 // pred_fallthru
    _
  // Predicated region
  $region6: #{_lambda_.48} parent=0 // pred_check
    _
  $region7: #{_lambda_.48} parent=0 // pred_check_branch
    %13 = sbr.rel (0) target = $region9
  $region8: #{_lambda_.48} parent=0 // pred_region
    _
  $region9: #{_lambda_.48} parent=0 // pred_fallthru
    _
  // Predicated region
  $region10: #{_lambda_.48} parent=0 // pred_check
    _
  $region11: #{_lambda_.48} parent=0 // pred_check_branch
    %15 = sbr.rel (0) target = $region13
  $region12: #{_lambda_.48} parent=0 // pred_region
    _
  $region13: #{_lambda_.48} parent=0 // pred_fallthru
    _
  %v17 = vld [vmem:[%s0] sm:$0xff]
  %v18 = vld [vmem:[%s0 + $0x8] sm:$0xff]
  %v19 = vld [vmem:[%s0 + $0x10] sm:$0xff]
  %v20 = vld [vmem:[%s0 + $0x18] sm:$0xff]
  %v21 = vld [vmem:[%s0 + $0x20] sm:$0xf]
  %v22 = vld [vmem:[%s1] sm:$0xf]
  %v23 = vld [vmem:[%s1 + $0x4] sm:$0xf]
  %v24 = vld [vmem:[%s1 + $0x8] sm:$0xf]
  %v25 = vld [vmem:[%s1 + $0xc] sm:$0xf]
  %v26 = vld [vmem:[%s1 + $0x10] sm:$0xf]
  %v27 = vld [vmem:[%s1 + $0x14] sm:$0xf]
  %v28 = vld [vmem:[%s1 + $0x18] sm:$0xf]
  %v29 = vld [vmem:[%s1 + $0x1c] sm:$0xf]
  %v30 = vld [vmem:[%s1 + $0x20] sm:$0xf]
  %v31 = vld [vmem:[%s1 + $0x24] sm:$0xf]
  %v32 = vld [vmem:[%s1 + $0x28] sm:$0xf]
  %v33 = vld [vmem:[%s1 + $0x2c] sm:$0xf]
  %v34 = vld [vmem:[%s1 + $0x30] sm:$0xf]
  %v35 = vld [vmem:[%s1 + $0x34] sm:$0xf]
  %v36 = vld [vmem:[%s1 + $0x38] sm:$0xf]
  %v37 = vld [vmem:[%s1 + $0x3c] sm:$0xf]
  %v38 = vld [vmem:[%s1 + $0x40] sm:$0xf]
  %v39 = vld [vmem:[%s1 + $0x44] sm:$0xf]
  %v40 = vld [vmem:[%s1 + $0x48] sm:$0xf]
  %v41 = vld [vmem:[%s1 + $0x4c] sm:$0xf]
  %v42 = vld [vmem:[%s1 + $0x50] sm:$0xf]
  %v43 = vld [vmem:[%s1 + $0x54] sm:$0xf]
  %v44 = vld [vmem:[%s1 + $0x58] sm:$0xf]
  %v45 = vld [vmem:[%s1 + $0x5c] sm:$0xf]
  %v46 = vld [vmem:[%s1 + $0x60] sm:$0xf]
  %v47 = vld [vmem:[%s1 + $0x64] sm:$0xf]
  %v48 = vld [vmem:[%s1 + $0x68] sm:$0xf]
  %v49 = vld [vmem:[%s1 + $0x6c] sm:$0xf]
  %v50 = vld [vmem:[%s1 + $0x70] sm:$0xf]
  %v51 = vld [vmem:[%s1 + $0x74] sm:$0xf]
  %v52 = vld [vmem:[%s1 + $0x78] sm:$0xf]
  %v53 = vld [vmem:[%s1 + $0x7c] sm:$0xf]
  %v54 = vld [vmem:[%s1 + $0x80] sm:$0xf]
  %v55 = vld [vmem:[%s1 + $0x84] sm:$0xf]
  %v56 = vld [vmem:[%s1 + $0x88] sm:$0xf]
  %v57 = vld [vmem:[%s1 + $0x8c] sm:$0xf]
  %v58 = vld [vmem:[%s1 + $0x90] sm:$0xf]
  %v59 = vld [vmem:[%s1 + $0x94] sm:$0xf]
  %v60 = vld [vmem:[%s1 + $0x98] sm:$0xf]
  %v61 = vld [vmem:[%s1 + $0x9c] sm:$0xf]
  %v62 = vld [vmem:[%s1 + $0xa0] sm:$0xf]
  %v63 = vld [vmem:[%s1 + $0xa4] sm:$0xf]
  %v64 = vld [vmem:[%s1 + $0xa8] sm:$0xf]
  %v65 = vld [vmem:[%s1 + $0xac] sm:$0xf]
  %v66 = vld [vmem:[%s1 + $0xb0] sm:$0xf]
  %v67 = vld [vmem:[%s1 + $0xb4] sm:$0xf]
  %v68 = vld [vmem:[%s1 + $0xb8] sm:$0xf]
  %v69 = vld [vmem:[%s1 + $0xbc] sm:$0xf]
  %v70 = vld [vmem:[%s1 + $0xc0] sm:$0xf]
  %v71 = vld [vmem:[%s1 + $0xc4] sm:$0xf]
  %v72 = vld [vmem:[%s1 + $0xc8] sm:$0xf]
  %v73 = vld [vmem:[%s1 + $0xcc] sm:$0xf]
  %v74 = vld [vmem:[%s1 + $0xd0] sm:$0xf]
  %v75 = vld [vmem:[%s1 + $0xd4] sm:$0xf]
  %v76 = vld [vmem:[%s1 + $0xd8] sm:$0xf]
  %v77 = vld [vmem:[%s1 + $0xdc] sm:$0xf]
  %v78 = vld [vmem:[%s1 + $0xe0] sm:$0xf]
  %v79 = vld [vmem:[%s1 + $0xe4] sm:$0xf]
  %v80 = vld [vmem:[%s1 + $0xe8] sm:$0xf]
  %v81 = vld [vmem:[%s1 + $0xec] sm:$0xf]
  %v82 = vld [vmem:[%s1 + $0xf0] sm:$0xf]
  %v83 = vld [vmem:[%s1 + $0xf4] sm:$0xf]
  %v84 = vld [vmem:[%s1 + $0xf8] sm:$0xf]
  %v85 = vld [vmem:[%s1 + $0xfc] sm:$0xf]
  %v86 = vld [vmem:[%s1 + $0x100] sm:$0xf]
  %v87 = vld [vmem:[%s1 + $0x104] sm:$0xf]
  %v88 = vld [vmem:[%s1 + $0x108] sm:$0xf]
  %v89 = vld [vmem:[%s1 + $0x10c] sm:$0xf]
  %v90 = vld [vmem:[%s1 + $0x110] sm:$0xf]
  %v91 = vld [vmem:[%s1 + $0x114] sm:$0xf]
  %v92 = vld [vmem:[%s1 + $0x118] sm:$0xf]
  %v93 = vld [vmem:[%s1 + $0x11c] sm:$0xf]
  %v94 = vld [vmem:[%s1 + $0x120] sm:$0xf]
  %v95 = vld [vmem:[%s1 + $0x124] sm:$0xf]
  %v96 = vld [vmem:[%s1 + $0x128] sm:$0xf]
  %v97 = vld [vmem:[%s1 + $0x12c] sm:$0xf]
  %v98 = vld [vmem:[%s1 + $0x130] sm:$0xf]
  %v99 = vld [vmem:[%s1 + $0x134] sm:$0xf]
  %v100 = vld [vmem:[%s1 + $0x138] sm:$0xf]
  %v101 = vld [vmem:[%s1 + $0x13c] sm:$0xf]
  %v102 = vld [vmem:[%s1 + $0x140] sm:$0xf]
  %v103 = vld [vmem:[%s1 + $0x144] sm:$0xf]
  %v104 = vld [vmem:[%s1 + $0x148] sm:$0xf]
  %v105 = vld [vmem:[%s1 + $0x14c] sm:$0xf]
  %v106 = vld [vmem:[%s1 + $0x150] sm:$0xf]
  %v107 = vld [vmem:[%s1 + $0x154] sm:$0xf]
  %v108 = vld [vmem:[%s1 + $0x158] sm:$0xf]
  %v109 = vld [vmem:[%s1 + $0x15c] sm:$0xf]
  %v110 = vld [vmem:[%s1 + $0x160] sm:$0xf]
  %v111 = vld [vmem:[%s1 + $0x164] sm:$0xf]
  %v112 = vld [vmem:[%s1 + $0x168] sm:$0xf]
  %v113 = vld [vmem:[%s1 + $0x16c] sm:$0xf]
  %v114 = vld [vmem:[%s1 + $0x170] sm:$0xf]
  %v115 = vld [vmem:[%s1 + $0x174] sm:$0xf]
  %v116 = vld [vmem:[%s1 + $0x178] sm:$0xf]
  %v117 = vld [vmem:[%s1 + $0x17c] sm:$0xf]
  %v118 = vld [vmem:[%s1 + $0x180] sm:$0xf]
  %v119 = vld [vmem:[%s1 + $0x184] sm:$0xf]
  %v120 = vld [vmem:[%s1 + $0x188] sm:$0xf]
  %v121 = vld [vmem:[%s1 + $0x18c] sm:$0xf]
  %v122 = vld [vmem:[%s1 + $0x190] sm:$0xf]
  %v123 = vld [vmem:[%s1 + $0x194] sm:$0xf]
  %v124 = vld [vmem:[%s1 + $0x198] sm:$0xf]
  %v125 = vld [vmem:[%s1 + $0x19c] sm:$0xf]
  %v126 = vld [vmem:[%s1 + $0x1a0] sm:$0xf]
  %v127 = vld [vmem:[%s1 + $0x1a4] sm:$0xf]
  %v128 = vld [vmem:[%s1 + $0x1a8] sm:$0xf]
  %v129 = vld [vmem:[%s1 + $0x1ac] sm:$0xf]
  %v130 = vld [vmem:[%s1 + $0x1b0] sm:$0xf]
  %v131 = vld [vmem:[%s1 + $0x1b4] sm:$0xf]
  %v132 = vld [vmem:[%s1 + $0x1b8] sm:$0xf]
  %v133 = vld [vmem:[%s1 + $0x1bc] sm:$0xf]
  %v134 = vld [vmem:[%s1 + $0x1c0] sm:$0xf]
  %v135 = vld [vmem:[%s1 + $0x1c4] sm:$0xf]
  %v136 = vld [vmem:[%s1 + $0x1c8] sm:$0xf]
  %v137 = vld [vmem:[%s1 + $0x1cc] sm:$0xf]
  %v138 = vld [vmem:[%s1 + $0x1d0] sm:$0xf]
  %v139 = vld [vmem:[%s1 + $0x1d4] sm:$0xf]
  %v140 = vld [vmem:[%s1 + $0x1d8] sm:$0xf]
  %v141 = vld [vmem:[%s1 + $0x1dc] sm:$0xf]
  %v142 = vld [vmem:[%s1 + $0x1e0] sm:$0xf]
  %v143 = vld [vmem:[%s1 + $0x1e4] sm:$0xf]
  %v144 = vld [vmem:[%s1 + $0x1e8] sm:$0xf]
  %v145 = vld [vmem:[%s1 + $0x1ec] sm:$0xf]
  %v146 = vld [vmem:[%s1 + $0x1f0] sm:$0xf]
  %v147 = vld [vmem:[%s1 + $0x1f4] sm:$0xf]
  %v148 = vld [vmem:[%s1 + $0x1f8] sm:$0xf]
  %v149 = vld [vmem:[%s1 + $0x1fc] sm:$0xf]
  %v150 = vld [vmem:[%s1 + $0x200] sm:$0xf]
  %v151 = vld [vmem:[%s1 + $0x204] sm:$0xf]
  %v152 = vld [vmem:[%s1 + $0x208] sm:$0xf]
  %v153 = vld [vmem:[%s1 + $0x20c] sm:$0xf]
  %v154 = vld [vmem:[%s1 + $0x210] sm:$0xf]
  %v155 = vld [vmem:[%s1 + $0x214] sm:$0xf]
  %v156 = vld [vmem:[%s1 + $0x218] sm:$0xf]
  %v157 = vld [vmem:[%s1 + $0x21c] sm:$0xf]
  %v158 = vld [vmem:[%s1 + $0x220] sm:$0xf]
  %v159 = vld [vmem:[%s1 + $0x224] sm:$0xf]
  %v160 = vld [vmem:[%s1 + $0x228] sm:$0xf]
  %v161 = vld [vmem:[%s1 + $0x22c] sm:$0xf]
  %v162 = vld [vmem:[%s1 + $0x230] sm:$0xf]
  %v163 = vld [vmem:[%s1 + $0x234] sm:$0xf]
  %v164 = vld [vmem:[%s1 + $0x238] sm:$0xf]
  %v165 = vld [vmem:[%s1 + $0x23c] sm:$0xf]
  %v166 = vld [vmem:[%s2] sm:$0x1]
  %v168 = vlaneseq
  %v169 = vshrl.u32 %v168, 7
  %v170 = vsub.s32 0, %v169
  %v171 = vrot.slane %v166, %v170
  %v178 = vunpack.c.l.b16 %v17
  %v179 = vunpack.c.h.b16 %v17
  %v180 = vunpack.c.l.b16 %v18
  %v181 = vunpack.c.h.b16 %v18
  %v182 = vunpack.c.l.b16 %v19
  %v183 = vunpack.c.h.b16 %v19
  %v184 = vunpack.c.l.b16 %v20
  %v185 = vunpack.c.h.b16 %v20
  %v186 = vunpack.c.l.b16 %v21
  %v187 = vpack.c.b16 %v178, %v178
  %v188 = vpack.c.b16 %v179, %v179
  %v189 = vpack.c.b16 %v180, %v180
  %v190 = vpack.c.b16 %v181, %v181
  %v191 = vpack.c.b16 %v182, %v182
  %v192 = vpack.c.b16 %v183, %v183
  %v193 = vpack.c.b16 %v184, %v184
  %v194 = vpack.c.b16 %v185, %v185
  %v195 = vpack.c.b16 %v186, %v186
  %v349 = vunpack.c.l.b16 %v22
  %v350 = vunpack.c.l.b16 %v23
  %v351 = vunpack.c.l.b16 %v24
  %v352 = vunpack.c.l.b16 %v25
  %v353 = vunpack.c.l.b16 %v26
  %v354 = vunpack.c.l.b16 %v27
  %v355 = vunpack.c.l.b16 %v28
  %v356 = vunpack.c.l.b16 %v29
  %v357 = vunpack.c.l.b16 %v30
  %v358 = vunpack.c.l.b16 %v31
  %v359 = vunpack.c.l.b16 %v32
  %v360 = vunpack.c.l.b16 %v33
  %v361 = vunpack.c.l.b16 %v34
  %v362 = vunpack.c.l.b16 %v35
  %v363 = vunpack.c.l.b16 %v36
  %v364 = vunpack.c.l.b16 %v37
  %v365 = vunpack.c.l.b16 %v38
  %v366 = vunpack.c.l.b16 %v39
  %v367 = vunpack.c.l.b16 %v40
  %v368 = vunpack.c.l.b16 %v41
  %v369 = vunpack.c.l.b16 %v42
  %v370 = vunpack.c.l.b16 %v43
  %v371 = vunpack.c.l.b16 %v44
  %v372 = vunpack.c.l.b16 %v45
  %v373 = vunpack.c.l.b16 %v46
  %v374 = vunpack.c.l.b16 %v47
  %v375 = vunpack.c.l.b16 %v48
  %v376 = vunpack.c.l.b16 %v49
  %v377 = vunpack.c.l.b16 %v50
  %v378 = vunpack.c.l.b16 %v51
  %v379 = vunpack.c.l.b16 %v52
  %v380 = vunpack.c.l.b16 %v53
  %v381 = vunpack.c.l.b16 %v54
  %v382 = vunpack.c.l.b16 %v55
  %v383 = vunpack.c.l.b16 %v56
  %v384 = vunpack.c.l.b16 %v57
  %v385 = vunpack.c.l.b16 %v58
  %v386 = vunpack.c.l.b16 %v59
  %v387 = vunpack.c.l.b16 %v60
  %v388 = vunpack.c.l.b16 %v61
  %v389 = vunpack.c.l.b16 %v62
  %v390 = vunpack.c.l.b16 %v63
  %v391 = vunpack.c.l.b16 %v64
  %v392 = vunpack.c.l.b16 %v65
  %v393 = vunpack.c.l.b16 %v66
  %v394 = vunpack.c.l.b16 %v67
  %v395 = vunpack.c.l.b16 %v68
  %v396 = vunpack.c.l.b16 %v69
  %v397 = vunpack.c.l.b16 %v70
  %v398 = vunpack.c.l.b16 %v71
  %v399 = vunpack.c.l.b16 %v72
  %v400 = vunpack.c.l.b16 %v73
  %v401 = vunpack.c.l.b16 %v74
  %v402 = vunpack.c.l.b16 %v75
  %v403 = vunpack.c.l.b16 %v76
  %v404 = vunpack.c.l.b16 %v77
  %v405 = vunpack.c.l.b16 %v78
  %v406 = vunpack.c.l.b16 %v79
  %v407 = vunpack.c.l.b16 %v80
  %v408 = vunpack.c.l.b16 %v81
  %v409 = vunpack.c.l.b16 %v82
  %v410 = vunpack.c.l.b16 %v83
  %v411 = vunpack.c.l.b16 %v84
  %v412 = vunpack.c.l.b16 %v85
  %v413 = vunpack.c.l.b16 %v86
  %v414 = vunpack.c.l.b16 %v87
  %v415 = vunpack.c.l.b16 %v88
  %v416 = vunpack.c.l.b16 %v89
  %v417 = vunpack.c.l.b16 %v90
  %v418 = vunpack.c.l.b16 %v91
  %v419 = vunpack.c.l.b16 %v92
  %v420 = vunpack.c.l.b16 %v93
  %v421 = vunpack.c.l.b16 %v94
  %v422 = vunpack.c.l.b16 %v95
  %v423 = vunpack.c.l.b16 %v96
  %v424 = vunpack.c.l.b16 %v97
  %v425 = vunpack.c.l.b16 %v98
  %v426 = vunpack.c.l.b16 %v99
  %v427 = vunpack.c.l.b16 %v100
  %v428 = vunpack.c.l.b16 %v101
  %v429 = vunpack.c.l.b16 %v102
  %v430 = vunpack.c.l.b16 %v103
  %v431 = vunpack.c.l.b16 %v104
  %v432 = vunpack.c.l.b16 %v105
  %v433 = vunpack.c.l.b16 %v106
  %v434 = vunpack.c.l.b16 %v107
  %v435 = vunpack.c.l.b16 %v108
  %v436 = vunpack.c.l.b16 %v109
  %v437 = vunpack.c.l.b16 %v110
  %v438 = vunpack.c.l.b16 %v111
  %v439 = vunpack.c.l.b16 %v112
  %v440 = vunpack.c.l.b16 %v113
  %v441 = vunpack.c.l.b16 %v114
  %v442 = vunpack.c.l.b16 %v115
  %v443 = vunpack.c.l.b16 %v116
  %v444 = vunpack.c.l.b16 %v117
  %v445 = vunpack.c.l.b16 %v118
  %v446 = vunpack.c.l.b16 %v119
  %v447 = vunpack.c.l.b16 %v120
  %v448 = vunpack.c.l.b16 %v121
  %v449 = vunpack.c.l.b16 %v122
  %v450 = vunpack.c.l.b16 %v123
  %v451 = vunpack.c.l.b16 %v124
  %v452 = vunpack.c.l.b16 %v125
  %v453 = vunpack.c.l.b16 %v126
  %v454 = vunpack.c.l.b16 %v127
  %v455 = vunpack.c.l.b16 %v128
  %v456 = vunpack.c.l.b16 %v129
  %v457 = vunpack.c.l.b16 %v130
  %v458 = vunpack.c.l.b16 %v131
  %v459 = vunpack.c.l.b16 %v132
  %v460 = vunpack.c.l.b16 %v133
  %v461 = vunpack.c.l.b16 %v134
  %v462 = vunpack.c.l.b16 %v135
  %v463 = vunpack.c.l.b16 %v136
  %v464 = vunpack.c.l.b16 %v137
  %v465 = vunpack.c.l.b16 %v138
  %v466 = vunpack.c.l.b16 %v139
  %v467 = vunpack.c.l.b16 %v140
  %v468 = vunpack.c.l.b16 %v141
  %v469 = vunpack.c.l.b16 %v142
  %v470 = vunpack.c.l.b16 %v143
  %v471 = vunpack.c.l.b16 %v144
  %v472 = vunpack.c.l.b16 %v145
  %v473 = vunpack.c.l.b16 %v146
  %v474 = vunpack.c.l.b16 %v147
  %v475 = vunpack.c.l.b16 %v148
  %v476 = vunpack.c.l.b16 %v149
  %v477 = vunpack.c.l.b16 %v150
  %v478 = vunpack.c.l.b16 %v151
  %v479 = vunpack.c.l.b16 %v152
  %v480 = vunpack.c.l.b16 %v153
  %v481 = vunpack.c.l.b16 %v154
  %v482 = vunpack.c.l.b16 %v155
  %v483 = vunpack.c.l.b16 %v156
  %v484 = vunpack.c.l.b16 %v157
  %v485 = vunpack.c.l.b16 %v158
  %v486 = vunpack.c.l.b16 %v159
  %v487 = vunpack.c.l.b16 %v160
  %v488 = vunpack.c.l.b16 %v161
  %v489 = vunpack.c.l.b16 %v162
  %v490 = vunpack.c.l.b16 %v163
  %v491 = vunpack.c.l.b16 %v164
  %v492 = vunpack.c.l.b16 %v165
  %v493 = vpack.c.b16 %v350, %v349
  %v494 = vpack.c.b16 %v352, %v351
  %v495 = vpack.c.b16 %v354, %v353
  %v496 = vpack.c.b16 %v356, %v355
  %v497 = vpack.c.b16 %v358, %v357
  %v498 = vpack.c.b16 %v360, %v359
  %v499 = vpack.c.b16 %v362, %v361
  %v500 = vpack.c.b16 %v364, %v363
  %v501 = vpack.c.b16 %v366, %v365
  %v502 = vpack.c.b16 %v368, %v367
  %v503 = vpack.c.b16 %v370, %v369
  %v504 = vpack.c.b16 %v372, %v371
  %v505 = vpack.c.b16 %v374, %v373
  %v506 = vpack.c.b16 %v376, %v375
  %v507 = vpack.c.b16 %v378, %v377
  %v508 = vpack.c.b16 %v380, %v379
  %v509 = vpack.c.b16 %v382, %v381
  %v510 = vpack.c.b16 %v384, %v383
  %v511 = vpack.c.b16 %v386, %v385
  %v512 = vpack.c.b16 %v388, %v387
  %v513 = vpack.c.b16 %v390, %v389
  %v514 = vpack.c.b16 %v392, %v391
  %v515 = vpack.c.b16 %v394, %v393
  %v516 = vpack.c.b16 %v396, %v395
  %v517 = vpack.c.b16 %v398, %v397
  %v518 = vpack.c.b16 %v400, %v399
  %v519 = vpack.c.b16 %v402, %v401
  %v520 = vpack.c.b16 %v404, %v403
  %v521 = vpack.c.b16 %v406, %v405
  %v522 = vpack.c.b16 %v408, %v407
  %v523 = vpack.c.b16 %v410, %v409
  %v524 = vpack.c.b16 %v412, %v411
  %v525 = vpack.c.b16 %v414, %v413
  %v526 = vpack.c.b16 %v416, %v415
  %v527 = vpack.c.b16 %v418, %v417
  %v528 = vpack.c.b16 %v420, %v419
  %v529 = vpack.c.b16 %v422, %v421
  %v530 = vpack.c.b16 %v424, %v423
  %v531 = vpack.c.b16 %v426, %v425
  %v532 = vpack.c.b16 %v428, %v427
  %v533 = vpack.c.b16 %v430, %v429
  %v534 = vpack.c.b16 %v432, %v431
  %v535 = vpack.c.b16 %v434, %v433
  %v536 = vpack.c.b16 %v436, %v435
  %v537 = vpack.c.b16 %v438, %v437
  %v538 = vpack.c.b16 %v440, %v439
  %v539 = vpack.c.b16 %v442, %v441
  %v540 = vpack.c.b16 %v444, %v443
  %v541 = vpack.c.b16 %v446, %v445
  %v542 = vpack.c.b16 %v448, %v447
  %v543 = vpack.c.b16 %v450, %v449
  %v544 = vpack.c.b16 %v452, %v451
  %v545 = vpack.c.b16 %v454, %v453
  %v546 = vpack.c.b16 %v456, %v455
  %v547 = vpack.c.b16 %v458, %v457
  %v548 = vpack.c.b16 %v460, %v459
  %v549 = vpack.c.b16 %v462, %v461
  %v550 = vpack.c.b16 %v464, %v463
  %v551 = vpack.c.b16 %v466, %v465
  %v552 = vpack.c.b16 %v468, %v467
  %v553 = vpack.c.b16 %v470, %v469
  %v554 = vpack.c.b16 %v472, %v471
  %v555 = vpack.c.b16 %v474, %v473
  %v556 = vpack.c.b16 %v476, %v475
  %v557 = vpack.c.b16 %v478, %v477
  %v558 = vpack.c.b16 %v480, %v479
  %v559 = vpack.c.b16 %v482, %v481
  %v560 = vpack.c.b16 %v484, %v483
  %v561 = vpack.c.b16 %v486, %v485
  %v562 = vpack.c.b16 %v488, %v487
  %v563 = vpack.c.b16 %v490, %v489
  %v564 = vpack.c.b16 %v492, %v491
  %637 = vmatprep.subr.bf16.mxu0 0
  %638 = vmatpush1.bf16.msra.mxu0 %v493
  %639 = vmatprep.subr.bf16.mxu0 0
  %640 = vmatpush1.bf16.msra.mxu0 %v494
  %641 = vmatprep.subr.bf16.mxu0 0
  %642 = vmatpush1.bf16.msra.mxu0 %v495
  %643 = vmatprep.subr.bf16.mxu0 0
  %644 = vmatpush1.bf16.msra.mxu0 %v496
  %645 = vmatprep.subr.bf16.mxu0 0
  %646 = vmatpush1.bf16.msra.mxu0 %v497
  %647 = vmatprep.subr.bf16.mxu0 0
  %648 = vmatpush1.bf16.msra.mxu0 %v498
  %649 = vmatprep.subr.bf16.mxu0 0
  %650 = vmatpush1.bf16.msra.mxu0 %v499
  %651 = vmatprep.subr.bf16.mxu0 0
  %652 = vmatpush1.bf16.msra.mxu0 %v500
  %653 = vmatprep.subr.bf16.mxu0 0
  %654 = vmatpush1.bf16.msra.mxu0 %v501
  %655 = vmatprep.subr.bf16.mxu0 0
  %656 = vmatpush1.bf16.msra.mxu0 %v502
  %657 = vmatprep.subr.bf16.mxu0 0
  %658 = vmatpush1.bf16.msra.mxu0 %v503
  %659 = vmatprep.subr.bf16.mxu0 0
  %660 = vmatpush1.bf16.msra.mxu0 %v504
  %661 = vmatprep.subr.bf16.mxu0 0
  %662 = vmatpush1.bf16.msra.mxu0 %v505
  %663 = vmatprep.subr.bf16.mxu0 0
  %664 = vmatpush1.bf16.msra.mxu0 %v506
  %665 = vmatprep.subr.bf16.mxu0 0
  %666 = vmatpush1.bf16.msra.mxu0 %v507
  %667 = vmatprep.subr.bf16.mxu0 0
  %668 = vmatpush1.bf16.msra.mxu0 %v508
  %669 = vmatprep.mubr.bf16.mxu0 %v188
  %670 = vmatmul.mubr.bf16.gmra.mrb[0].mxu0 %v187
  %v671 = vpop.f32.mrb[0].mxu0
  %v672 = vadd.f32 %v171, %v671
  %v673 = vpop.f32.mrb[0].mxu0
  %v674 = vpop.f32.mrb[0].mxu0
  %v675 = vpop.f32.mrb[0].mxu0
  %676 = vdwg.mxu0
  %677 = vmatprep.subr.bf16.mxu0 0
  %678 = vmatpush1.bf16.msra.mxu0 %v509
  %679 = vmatprep.subr.bf16.mxu0 0
  %680 = vmatpush1.bf16.msra.mxu0 %v510
  %681 = vmatprep.subr.bf16.mxu0 0
  %682 = vmatpush1.bf16.msra.mxu0 %v511
  %683 = vmatprep.subr.bf16.mxu0 0
  %684 = vmatpush1.bf16.msra.mxu0 %v512
  %685 = vmatprep.subr.bf16.mxu0 0
  %686 = vmatpush1.bf16.msra.mxu0 %v513
  %687 = vmatprep.subr.bf16.mxu0 0
  %688 = vmatpush1.bf16.msra.mxu0 %v514
  %689 = vmatprep.subr.bf16.mxu0 0
  %690 = vmatpush1.bf16.msra.mxu0 %v515
  %691 = vmatprep.subr.bf16.mxu0 0
  %692 = vmatpush1.bf16.msra.mxu0 %v516
  %693 = vmatprep.subr.bf16.mxu0 0
  %694 = vmatpush1.bf16.msra.mxu0 %v517
  %695 = vmatprep.subr.bf16.mxu0 0
  %696 = vmatpush1.bf16.msra.mxu0 %v518
  %697 = vmatprep.subr.bf16.mxu0 0
  %698 = vmatpush1.bf16.msra.mxu0 %v519
  %699 = vmatprep.subr.bf16.mxu0 0
  %700 = vmatpush1.bf16.msra.mxu0 %v520
  %701 = vmatprep.subr.bf16.mxu0 0
  %702 = vmatpush1.bf16.msra.mxu0 %v521
  %703 = vmatprep.subr.bf16.mxu0 0
  %704 = vmatpush1.bf16.msra.mxu0 %v522
  %705 = vmatprep.subr.bf16.mxu0 0
  %706 = vmatpush1.bf16.msra.mxu0 %v523
  %707 = vmatprep.subr.bf16.mxu0 0
  %708 = vmatpush1.bf16.msra.mxu0 %v524
  %709 = vmatprep.mubr.bf16.mxu0 %v190
  %710 = vmatmul.mubr.bf16.gmra.mrb[0].mxu0 %v189
  %v711 = vpop.f32.mrb[0].mxu0
  %v712 = vadd.f32 %v672, %v711
  %v713 = vpop.f32.mrb[0].mxu0
  %v714 = vpop.f32.mrb[0].mxu0
  %v715 = vpop.f32.mrb[0].mxu0
  %716 = vdwg.mxu0
  %717 = vmatprep.subr.bf16.mxu0 0
  %718 = vmatpush1.bf16.msra.mxu0 %v525
  %719 = vmatprep.subr.bf16.mxu0 0
  %720 = vmatpush1.bf16.msra.mxu0 %v526
  %721 = vmatprep.subr.bf16.mxu0 0
  %722 = vmatpush1.bf16.msra.mxu0 %v527
  %723 = vmatprep.subr.bf16.mxu0 0
  %724 = vmatpush1.bf16.msra.mxu0 %v528
  %725 = vmatprep.subr.bf16.mxu0 0
  %726 = vmatpush1.bf16.msra.mxu0 %v529
  %727 = vmatprep.subr.bf16.mxu0 0
  %728 = vmatpush1.bf16.msra.mxu0 %v530
  %729 = vmatprep.subr.bf16.mxu0 0
  %730 = vmatpush1.bf16.msra.mxu0 %v531
  %731 = vmatprep.subr.bf16.mxu0 0
  %732 = vmatpush1.bf16.msra.mxu0 %v532
  %733 = vmatprep.subr.bf16.mxu0 0
  %734 = vmatpush1.bf16.msra.mxu0 %v533
  %735 = vmatprep.subr.bf16.mxu0 0
  %736 = vmatpush1.bf16.msra.mxu0 %v534
  %737 = vmatprep.subr.bf16.mxu0 0
  %738 = vmatpush1.bf16.msra.mxu0 %v535
  %739 = vmatprep.subr.bf16.mxu0 0
  %740 = vmatpush1.bf16.msra.mxu0 %v536
  %741 = vmatprep.subr.bf16.mxu0 0
  %742 = vmatpush1.bf16.msra.mxu0 %v537
  %743 = vmatprep.subr.bf16.mxu0 0
  %744 = vmatpush1.bf16.msra.mxu0 %v538
  %745 = vmatprep.subr.bf16.mxu0 0
  %746 = vmatpush1.bf16.msra.mxu0 %v539
  %747 = vmatprep.subr.bf16.mxu0 0
  %748 = vmatpush1.bf16.msra.mxu0 %v540
  %749 = vmatprep.mubr.bf16.mxu0 %v192
  %750 = vmatmul.mubr.bf16.gmra.mrb[0].mxu0 %v191
  %v751 = vpop.f32.mrb[0].mxu0
  %v752 = vadd.f32 %v712, %v751
  %v753 = vpop.f32.mrb[0].mxu0
  %v754 = vpop.f32.mrb[0].mxu0
  %v755 = vpop.f32.mrb[0].mxu0
  %756 = vdwg.mxu0
  %757 = vmatprep.subr.bf16.mxu0 0
  %758 = vmatpush1.bf16.msra.mxu0 %v541
  %759 = vmatprep.subr.bf16.mxu0 0
  %760 = vmatpush1.bf16.msra.mxu0 %v542
  %761 = vmatprep.subr.bf16.mxu0 0
  %762 = vmatpush1.bf16.msra.mxu0 %v543
  %763 = vmatprep.subr.bf16.mxu0 0
  %764 = vmatpush1.bf16.msra.mxu0 %v544
  %765 = vmatprep.subr.bf16.mxu0 0
  %766 = vmatpush1.bf16.msra.mxu0 %v545
  %767 = vmatprep.subr.bf16.mxu0 0
  %768 = vmatpush1.bf16.msra.mxu0 %v546
  %769 = vmatprep.subr.bf16.mxu0 0
  %770 = vmatpush1.bf16.msra.mxu0 %v547
  %771 = vmatprep.subr.bf16.mxu0 0
  %772 = vmatpush1.bf16.msra.mxu0 %v548
  %773 = vmatprep.subr.bf16.mxu0 0
  %774 = vmatpush1.bf16.msra.mxu0 %v549
  %775 = vmatprep.subr.bf16.mxu0 0
  %776 = vmatpush1.bf16.msra.mxu0 %v550
  %777 = vmatprep.subr.bf16.mxu0 0
  %778 = vmatpush1.bf16.msra.mxu0 %v551
  %779 = vmatprep.subr.bf16.mxu0 0
  %780 = vmatpush1.bf16.msra.mxu0 %v552
  %781 = vmatprep.subr.bf16.mxu0 0
  %782 = vmatpush1.bf16.msra.mxu0 %v553
  %783 = vmatprep.subr.bf16.mxu0 0
  %784 = vmatpush1.bf16.msra.mxu0 %v554
  %785 = vmatprep.subr.bf16.mxu0 0
  %786 = vmatpush1.bf16.msra.mxu0 %v555
  %787 = vmatprep.subr.bf16.mxu0 0
  %788 = vmatpush1.bf16.msra.mxu0 %v556
  %789 = vmatprep.mubr.bf16.mxu0 %v194
  %790 = vmatmul.mubr.bf16.gmra.mrb[0].mxu0 %v193
  %v791 = vpop.f32.mrb[0].mxu0
  %v792 = vadd.f32 %v752, %v791
  %v793 = vpop.f32.mrb[0].mxu0
  %v794 = vpop.f32.mrb[0].mxu0
  %v795 = vpop.f32.mrb[0].mxu0
  %796 = vdwg.mxu0
  %797 = vmatprep.subr.bf16.mxu0 0
  %798 = vmatpush1.bf16.msra.mxu0 %v557
  %799 = vmatprep.subr.bf16.mxu0 0
  %800 = vmatpush1.bf16.msra.mxu0 %v558
  %801 = vmatprep.subr.bf16.mxu0 0
  %802 = vmatpush1.bf16.msra.mxu0 %v559
  %803 = vmatprep.subr.bf16.mxu0 0
  %804 = vmatpush1.bf16.msra.mxu0 %v560
  %805 = vmatprep.subr.bf16.mxu0 0
  %806 = vmatpush1.bf16.msra.mxu0 %v561
  %807 = vmatprep.subr.bf16.mxu0 0
  %808 = vmatpush1.bf16.msra.mxu0 %v562
  %809 = vmatprep.subr.bf16.mxu0 0
  %810 = vmatpush1.bf16.msra.mxu0 %v563
  %811 = vmatprep.subr.bf16.mxu0 0
  %812 = vmatpush1.bf16.msra.mxu0 %v564
  %813 = vmatprep.subr.bf16.mxu0 0
  %814 = vmatpush1.bf16.msra.mxu0 0
  %815 = vmatprep.subr.bf16.mxu0 0
  %816 = vmatpush1.bf16.msra.mxu0 0
  %817 = vmatprep.subr.bf16.mxu0 0
  %818 = vmatpush1.bf16.msra.mxu0 0
  %819 = vmatprep.subr.bf16.mxu0 0
  %820 = vmatpush1.bf16.msra.mxu0 0
  %821 = vmatprep.subr.bf16.mxu0 0
  %822 = vmatpush1.bf16.msra.mxu0 0
  %823 = vmatprep.subr.bf16.mxu0 0
  %824 = vmatpush1.bf16.msra.mxu0 0
  %825 = vmatprep.subr.bf16.mxu0 0
  %826 = vmatpush1.bf16.msra.mxu0 0
  %827 = vmatprep.subr.bf16.mxu0 0
  %828 = vmatpush1.bf16.msra.mxu0 0
  %829 = vmatprep.mubr.bf16.mxu0 0
  %830 = vmatmul.mubr.bf16.gmra.mrb[0].mxu0 %v195
  %v831 = vpop.f32.mrb[0].mxu0
  %v832 = vadd.f32 %v792, %v831
  %v833 = vpop.f32.mrb[0].mxu0
  %v834 = vpop.f32.mrb[0].mxu0
  %v835 = vpop.f32.mrb[0].mxu0
  %836 = vdwg.mxu0
  %v837 = vpack.c.bf16 %v832, %v832
  %838 = vst [vmem:[%s3] sm:$0xf] %v837
  %v839 = vlaneseq
  %v840 = vshrl.u32 %v839, 7
  %s841 = smul.u32 0, 8
  %v842 = vstv %s841
  %v843 = vadd.s32 %v840, %v842
  %vm844 = vcmp.lt.s32.totalorder %v843, 8
  %v845 = vsel %vm844, %v832, 0.0
  %v846 = vrot.slane %v845, 4
  %v847 = vadd.f32 %v845, %v846
  %v848 = vrot.slane %v847, 2
  %v849 = vadd.f32 %v847, %v848
  %v850 = vrot.slane %v849, 1
  %v851 = vadd.f32 %v849, %v850
  %v852 = vmul.f32 %v845, %v845
  %v853 = vrot.slane %v852, 4
  %v854 = vadd.f32 %v852, %v853
  %v855 = vrot.slane %v854, 2
  %v856 = vadd.f32 %v854, %v855
  %v857 = vrot.slane %v856, 1
  %v858 = vadd.f32 %v856, %v857
  %vm859 = vcmask 1040384
  %v860 = vsel %vm859, %v851, %v858
  %861 = vst [vmem:[%s4] sm:$0x3] %v860
  // Predicated region
  $region14: #{_lambda_.48} parent=0 // pred_check
    _
  $region15: #{_lambda_.48} parent=0 // pred_check_branch
    %863 = sbr.rel (0) target = $region17
  $region16: #{_lambda_.48} parent=0 // pred_region
    _
  $region17: #{_lambda_.48} parent=0 // pred_fallthru
    _
  // Predicated region
  $region18: #{_lambda_.48} parent=0 // pred_check
    _
  $region19: #{_lambda_.48} parent=0 // pred_check_branch
    %865 = sbr.rel (0) target = $region21
  $region20: #{_lambda_.48} parent=0 // pred_region
    _
  $region21: #{_lambda_.48} parent=0 // pred_fallthru
    _
  // Predicated region
  $region22: #{_lambda_.48} parent=0 // pred_check
    _
  $region23: #{_lambda_.48} parent=0 // pred_check_branch
    %867 = sbr.rel (0) target = $region25
  $region24: #{_lambda_.48} parent=0 // pred_region
    _
  $region25: #{_lambda_.48} parent=0 // pred_fallthru
    _
  // Predicated region
  $region26: #{_lambda_.48} parent=0 // pred_check
    _
  $region27: #{_lambda_.48} parent=0 // pred_check_branch
    %869 = sbr.rel (0) target = $region29
  $region28: #{_lambda_.48} parent=0 // pred_region
    _
  $region29: #{_lambda_.48} parent=0 // pred_fallthru
    _

// kernel: _lambda_.52
$region0: #{_lambda_.52}
  #allocation0 [shape = 'u32[]', space=smem, size = 0x4, offset = 0x4, fixed_abs, tag = 'smem constant byte address 0x4 - core index']
  #allocation1 [shape = 'u32[144,128]{1,0:T(1,128)}', space=vmem, size = 0x12000, scoped, tag = 'internal scratch']
  %s0 = inlined_call_operand.vmem [shape: bf16[8,128], index: 0, kind: input, shape index: {}]
  %s1 = inlined_call_operand.vmem [shape: f32[1,128], index: 1, kind: input, shape index: {}]
  %s2 = inlined_call_operand.vmem [shape: f32[1,128], index: 2, kind: input, shape index: {}]
  %s3 = inlined_call_operand.vmem [shape: bf16[8,128], index: 3, kind: input, shape index: {}]
  %s4 = inlined_call_operand.vmem [shape: f32[1,128], index: 4, kind: input, shape index: {}]
  %s5 = inlined_call_operand.vmem [shape: f32[1,128], index: 5, kind: input, shape index: {}]
  %s6 = inlined_call_operand.vmem [shape: bf16[8,128], index: 6, kind: output, shape index: {}]
  %s7 = sld [smem:[#allocation0]]
  $region34: #{_lambda_.52} parent=0
    _
  %s9 = ssub.s32 1, %s7
  %s10 = scalar_select 0, %s9, %s7
  // Predicated region
  $region2: #{_lambda_.52} parent=0 // pred_check
    _
  $region3: #{_lambda_.52} parent=0 // pred_check_branch
    %12 = sbr.rel (0) target = $region5
  $region4: #{_lambda_.52} parent=0 // pred_region
    _
  $region5: #{_lambda_.52} parent=0 // pred_fallthru
    _
  // Predicated region
  $region6: #{_lambda_.52} parent=0 // pred_check
    _
  $region7: #{_lambda_.52} parent=0 // pred_check_branch
    %14 = sbr.rel (0) target = $region9
  $region8: #{_lambda_.52} parent=0 // pred_region
    _
  $region9: #{_lambda_.52} parent=0 // pred_fallthru
    _
  // Predicated region
  $region10: #{_lambda_.52} parent=0 // pred_check
    _
  $region11: #{_lambda_.52} parent=0 // pred_check_branch
    %16 = sbr.rel (0) target = $region13
  $region12: #{_lambda_.52} parent=0 // pred_region
    _
  $region13: #{_lambda_.52} parent=0 // pred_fallthru
    _
  // Predicated region
  $region14: #{_lambda_.52} parent=0 // pred_check
    _
  $region15: #{_lambda_.52} parent=0 // pred_check_branch
    %18 = sbr.rel (0) target = $region17
  $region16: #{_lambda_.52} parent=0 // pred_region
    _
  $region17: #{_lambda_.52} parent=0 // pred_fallthru
    _
  // Predicated region
  $region18: #{_lambda_.52} parent=0 // pred_check
    _
  $region19: #{_lambda_.52} parent=0 // pred_check_branch
    %20 = sbr.rel (0) target = $region21
  $region20: #{_lambda_.52} parent=0 // pred_region
    _
  $region21: #{_lambda_.52} parent=0 // pred_fallthru
    _
  // Predicated region
  $region22: #{_lambda_.52} parent=0 // pred_check
    _
  $region23: #{_lambda_.52} parent=0 // pred_check_branch
    %22 = sbr.rel (0) target = $region25
  $region24: #{_lambda_.52} parent=0 // pred_region
    _
  $region25: #{_lambda_.52} parent=0 // pred_fallthru
    _
  %v23 = vld [vmem:[%s0] sm:$0xf]
  %v24 = vunpack.c.l.bf16 %v23
  %v25 = vld [vmem:[%s1] sm:$0x1]
  %v27 = vlaneseq
  %v28 = vshrl.u32 %v27, 7
  %v29 = vsub.s32 0, %v28
  %v30 = vrot.slane %v25, %v29
  %v32 = vmul.f32 %v24, %v30
  %v33 = vld [vmem:[%s2] sm:$0x1]
  %v35 = vlaneseq
  %v36 = vshrl.u32 %v35, 7
  %v37 = vsub.s32 0, %v36
  %v38 = vrot.slane %v33, %v37
  %v40 = vadd.f32 %v32, %v38
  %v41 = vmax.f32 %v40, 0.0
  %v42 = vld [vmem:[%s3] sm:$0xf]
  %v43 = vunpack.c.l.bf16 %v42
  %v44 = vld [vmem:[%s4] sm:$0x1]
  %v46 = vlaneseq
  %v47 = vshrl.u32 %v46, 7
  %v48 = vsub.s32 0, %v47
  %v49 = vrot.slane %v44, %v48
  %v51 = vmul.f32 %v43, %v49
  %v52 = vld [vmem:[%s5] sm:$0x1]
  %v54 = vlaneseq
  %v55 = vshrl.u32 %v54, 7
  %v56 = vsub.s32 0, %v55
  %v57 = vrot.slane %v52, %v56
  %v59 = vadd.f32 %v51, %v57
  %v60 = vadd.f32 %v59, %v41
  %v61 = vmax.f32 %v60, 0.0
  %v62 = vpack.c.bf16 %v61, %v61
  %63 = vst [vmem:[%s6] sm:$0xf] %v62
  // Predicated region
  $region26: #{_lambda_.52} parent=0 // pred_check
    _
  $region27: #{_lambda_.52} parent=0 // pred_check_branch
    %65 = sbr.rel (0) target = $region29
  $region28: #{_lambda_.52} parent=0 // pred_region
    _
  $region29: #{_lambda_.52} parent=0 // pred_fallthru
    _
  // Predicated region
  $region30: #{_lambda_.52} parent=0 // pred_check
    _
  $region31: #{_lambda_.52} parent=0 // pred_check_branch
    %67 = sbr.rel (0) target = $region33
  $region32: #{_lambda_.52} parent=0 // pred_region
    _
  $region33: #{_lambda_.52} parent=0 // pred_fallthru
    _

// kernel: _lambda_.51
$region0: #{_lambda_.51}
  #allocation0 [shape = 'u32[]', space=smem, size = 0x4, offset = 0x4, fixed_abs, tag = 'smem constant byte address 0x4 - core index']
  #allocation1 [shape = 'u32[144,128]{1,0:T(1,128)}', space=vmem, size = 0x12000, scoped, tag = 'internal scratch']
  %s0 = inlined_call_operand.vmem [shape: bf16[8,128], index: 0, kind: input, shape index: {}]
  %s1 = inlined_call_operand.vmem [shape: bf16[128,128], index: 1, kind: input, shape index: {}]
  %s2 = inlined_call_operand.vmem [shape: f32[1,128], index: 2, kind: input, shape index: {}]
  %s3 = inlined_call_operand.vmem [shape: bf16[8,128], index: 3, kind: output, shape index: {0}]
  %s4 = inlined_call_operand.vmem [shape: f32[1,2,128], index: 4, kind: output, shape index: {1}]
  %5 = xla_tuple %s3, %s4
  %s6 = sld [smem:[#allocation0]]
  $region30: #{_lambda_.51} parent=0
    _
  %s8 = ssub.s32 1, %s6
  %s9 = scalar_select 0, %s8, %s6
  // Predicated region
  $region2: #{_lambda_.51} parent=0 // pred_check
    _
  $region3: #{_lambda_.51} parent=0 // pred_check_branch
    %11 = sbr.rel (0) target = $region5
  $region4: #{_lambda_.51} parent=0 // pred_region
    _
  $region5: #{_lambda_.51} parent=0 // pred_fallthru
    _
  // Predicated region
  $region6: #{_lambda_.51} parent=0 // pred_check
    _
  $region7: #{_lambda_.51} parent=0 // pred_check_branch
    %13 = sbr.rel (0) target = $region9
  $region8: #{_lambda_.51} parent=0 // pred_region
    _
  $region9: #{_lambda_.51} parent=0 // pred_fallthru
    _
  // Predicated region
  $region10: #{_lambda_.51} parent=0 // pred_check
    _
  $region11: #{_lambda_.51} parent=0 // pred_check_branch
    %15 = sbr.rel (0) target = $region13
  $region12: #{_lambda_.51} parent=0 // pred_region
    _
  $region13: #{_lambda_.51} parent=0 // pred_fallthru
    _
  %v17 = vld [vmem:[%s0] sm:$0xf]
  %v18 = vld [vmem:[%s1] sm:$0xf]
  %v19 = vld [vmem:[%s1 + $0x4] sm:$0xf]
  %v20 = vld [vmem:[%s1 + $0x8] sm:$0xf]
  %v21 = vld [vmem:[%s1 + $0xc] sm:$0xf]
  %v22 = vld [vmem:[%s1 + $0x10] sm:$0xf]
  %v23 = vld [vmem:[%s1 + $0x14] sm:$0xf]
  %v24 = vld [vmem:[%s1 + $0x18] sm:$0xf]
  %v25 = vld [vmem:[%s1 + $0x1c] sm:$0xf]
  %v26 = vld [vmem:[%s1 + $0x20] sm:$0xf]
  %v27 = vld [vmem:[%s1 + $0x24] sm:$0xf]
  %v28 = vld [vmem:[%s1 + $0x28] sm:$0xf]
  %v29 = vld [vmem:[%s1 + $0x2c] sm:$0xf]
  %v30 = vld [vmem:[%s1 + $0x30] sm:$0xf]
  %v31 = vld [vmem:[%s1 + $0x34] sm:$0xf]
  %v32 = vld [vmem:[%s1 + $0x38] sm:$0xf]
  %v33 = vld [vmem:[%s1 + $0x3c] sm:$0xf]
  %v34 = vld [vmem:[%s2] sm:$0x1]
  %v36 = vlaneseq
  %v37 = vshrl.u32 %v36, 7
  %v38 = vsub.s32 0, %v37
  %v39 = vrot.slane %v34, %v38
  %v57 = vunpack.c.l.b16 %v18
  %v58 = vunpack.c.l.b16 %v19
  %v59 = vunpack.c.l.b16 %v20
  %v60 = vunpack.c.l.b16 %v21
  %v61 = vunpack.c.l.b16 %v22
  %v62 = vunpack.c.l.b16 %v23
  %v63 = vunpack.c.l.b16 %v24
  %v64 = vunpack.c.l.b16 %v25
  %v65 = vunpack.c.l.b16 %v26
  %v66 = vunpack.c.l.b16 %v27
  %v67 = vunpack.c.l.b16 %v28
  %v68 = vunpack.c.l.b16 %v29
  %v69 = vunpack.c.l.b16 %v30
  %v70 = vunpack.c.l.b16 %v31
  %v71 = vunpack.c.l.b16 %v32
  %v72 = vunpack.c.l.b16 %v33
  %v73 = vpack.c.b16 %v58, %v57
  %v74 = vpack.c.b16 %v60, %v59
  %v75 = vpack.c.b16 %v62, %v61
  %v76 = vpack.c.b16 %v64, %v63
  %v77 = vpack.c.b16 %v66, %v65
  %v78 = vpack.c.b16 %v68, %v67
  %v79 = vpack.c.b16 %v70, %v69
  %v80 = vpack.c.b16 %v72, %v71
  %89 = vmatprep.subr.bf16.mxu0 0
  %90 = vmatpush1.bf16.msra.mxu0 %v73
  %91 = vmatprep.subr.bf16.mxu0 0
  %92 = vmatpush1.bf16.msra.mxu0 %v74
  %93 = vmatprep.subr.bf16.mxu0 0
  %94 = vmatpush1.bf16.msra.mxu0 %v75
  %95 = vmatprep.subr.bf16.mxu0 0
  %96 = vmatpush1.bf16.msra.mxu0 %v76
  %97 = vmatprep.subr.bf16.mxu0 0
  %98 = vmatpush1.bf16.msra.mxu0 %v77
  %99 = vmatprep.subr.bf16.mxu0 0
  %100 = vmatpush1.bf16.msra.mxu0 %v78
  %101 = vmatprep.subr.bf16.mxu0 0
  %102 = vmatpush1.bf16.msra.mxu0 %v79
  %103 = vmatprep.subr.bf16.mxu0 0
  %104 = vmatpush1.bf16.msra.mxu0 %v80
  %105 = vmatprep.subr.bf16.mxu0 0
  %106 = vmatpush1.bf16.msra.mxu0 0
  %107 = vmatprep.subr.bf16.mxu0 0
  %108 = vmatpush1.bf16.msra.mxu0 0
  %109 = vmatprep.subr.bf16.mxu0 0
  %110 = vmatpush1.bf16.msra.mxu0 0
  %111 = vmatprep.subr.bf16.mxu0 0
  %112 = vmatpush1.bf16.msra.mxu0 0
  %113 = vmatprep.subr.bf16.mxu0 0
  %114 = vmatpush1.bf16.msra.mxu0 0
  %115 = vmatprep.subr.bf16.mxu0 0
  %116 = vmatpush1.bf16.msra.mxu0 0
  %117 = vmatprep.subr.bf16.mxu0 0
  %118 = vmatpush1.bf16.msra.mxu0 0
  %119 = vmatprep.subr.bf16.mxu0 0
  %120 = vmatpush1.bf16.msra.mxu0 0
  %121 = vmatprep.mubr.bf16.mxu0 0
  %122 = vmatmul.mubr.bf16.gmra.mrb[0].mxu0 %v17
  %v123 = vpop.f32.mrb[0].mxu0
  %v124 = vadd.f32 %v39, %v123
  %v125 = vpop.f32.mrb[0].mxu0
  %v126 = vpop.f32.mrb[0].mxu0
  %v127 = vpop.f32.mrb[0].mxu0
  %128 = vdwg.mxu0
  %v129 = vpack.c.bf16 %v124, %v124
  %130 = vst [vmem:[%s3] sm:$0xf] %v129
  %v131 = vlaneseq
  %v132 = vshrl.u32 %v131, 7
  %s133 = smul.u32 0, 8
  %v134 = vstv %s133
  %v135 = vadd.s32 %v132, %v134
  %vm136 = vcmp.lt.s32.totalorder %v135, 8
  %v137 = vsel %vm136, %v124, 0.0
  %v138 = vrot.slane %v137, 4
  %v139 = vadd.f32 %v137, %v138
  %v140 = vrot.slane %v139, 2
  %v141 = vadd.f32 %v139, %v140
  %v142 = vrot.slane %v141, 1
  %v143 = vadd.f32 %v141, %v142
  %v144 = vmul.f32 %v137, %v137
  %v145 = vrot.slane %v144, 4
  %v146 = vadd.f32 %v144, %v145
  %v147 = vrot.slane %v146, 2
  %v148 = vadd.f32 %v146, %v147
  %v149 = vrot.slane %v148, 1
  %v150 = vadd.f32 %v148, %v149
  %vm151 = vcmask 1040384
  %v152 = vsel %vm151, %v143, %v150
  %153 = vst [vmem:[%s4] sm:$0x3] %v152
  // Predicated region
  $region14: #{_lambda_.51} parent=0 // pred_check
    _
  $region15: #{_lambda_.51} parent=0 // pred_check_branch
    %155 = sbr.rel (0) target = $region17
  $region16: #{_lambda_.51} parent=0 // pred_region
    _
  $region17: #{_lambda_.51} parent=0 // pred_fallthru
    _
  // Predicated region
  $region18: #{_lambda_.51} parent=0 // pred_check
    _
  $region19: #{_lambda_.51} parent=0 // pred_check_branch
    %157 = sbr.rel (0) target = $region21
  $region20: #{_lambda_.51} parent=0 // pred_region
    _
  $region21: #{_lambda_.51} parent=0 // pred_fallthru
    _
  // Predicated region
  $region22: #{_lambda_.51} parent=0 // pred_check
    _
  $region23: #{_lambda_.51} parent=0 // pred_check_branch
    %159 = sbr.rel (0) target = $region25
  $region24: #{_lambda_.51} parent=0 // pred_region
    _
  $region25: #{_lambda_.51} parent=0 // pred_fallthru
    _
  // Predicated region
  $region26: #{_lambda_.51} parent=0 // pred_check
    _
  $region27: #{_lambda_.51} parent=0 // pred_check_branch
    %161 = sbr.rel (0) target = $region29
  $region28: #{_lambda_.51} parent=0 // pred_region
    _
  $region29: #{_lambda_.51} parent=0 // pred_fallthru
    _

// kernel: _lambda_.57
$region0: #{_lambda_.57}
  #allocation0 [shape = 'u32[]', space=smem, size = 0x4, offset = 0x4, fixed_abs, tag = 'smem constant byte address 0x4 - core index']
  #allocation1 [shape = 'u32[144,128]{1,0:T(1,128)}', space=vmem, size = 0x12000, scoped, tag = 'internal scratch']
  %s0 = inlined_call_operand.vmem [shape: bf16[8,128], index: 0, kind: input, shape index: {}]
  %s1 = inlined_call_operand.vmem [shape: bf16[128,128], index: 1, kind: input, shape index: {}]
  %s2 = inlined_call_operand.vmem [shape: f32[1,128], index: 2, kind: input, shape index: {}]
  %s3 = inlined_call_operand.hbm [shape: f32[8,128], index: 3, kind: output, shape index: {0}]
  %s4 = inlined_call_operand.hbm [shape: f32[1,2,128], index: 4, kind: output, shape index: {1}]
  %5 = xla_tuple %s3, %s4
  %s6 = sld [smem:[#allocation0]]
  $region30: #{_lambda_.57} parent=0
    _
  %s8 = ssub.s32 1, %s6
  %s9 = scalar_select 0, %s8, %s6
  $region1: #{_lambda_.57} parent=0
    #allocation2 [shape = 'u8[4096]{0}', space=vmem, size = 0x1000, scoped, tag = 'output window, operand 0, single buffered']
    #allocation3 [shape = 's32[1]{0}', space=sflag, size = 0x4, scoped, tag = 'scoped memory for _lambda_.57']
    #allocation4 [shape = 'u8[1024]{0}', space=vmem, size = 0x400, scoped, tag = 'output window, operand 1, single buffered']
    #allocation5 [shape = 's32[1]{0}', space=sflag, size = 0x4, scoped, tag = 'scoped memory for _lambda_.57']
    %10 = vsyncpa [#allocation3], 0
    %11 = vsyncpa [#allocation5], 0
    // Predicated region
    $region2: #{_lambda_.57} parent=1 // pred_check
      _
    $region3: #{_lambda_.57} parent=1 // pred_check_branch
      %13 = sbr.rel (0) target = $region5
    $region4: #{_lambda_.57} parent=1 // pred_region
      _
    $region5: #{_lambda_.57} parent=1 // pred_fallthru
      _
    // Predicated region
    $region6: #{_lambda_.57} parent=1 // pred_check
      _
    $region7: #{_lambda_.57} parent=1 // pred_check_branch
      %15 = sbr.rel (0) target = $region9
    $region8: #{_lambda_.57} parent=1 // pred_region
      _
    $region9: #{_lambda_.57} parent=1 // pred_fallthru
      _
    // Predicated region
    $region10: #{_lambda_.57} parent=1 // pred_check
      _
    $region11: #{_lambda_.57} parent=1 // pred_check_branch
      %17 = sbr.rel (0) target = $region13
    $region12: #{_lambda_.57} parent=1 // pred_region
      _
    $region13: #{_lambda_.57} parent=1 // pred_fallthru
      _
    %v19 = vld [vmem:[%s0] sm:$0xf]
    %v20 = vld [vmem:[%s1] sm:$0xf]
    %v21 = vld [vmem:[%s1 + $0x4] sm:$0xf]
    %v22 = vld [vmem:[%s1 + $0x8] sm:$0xf]
    %v23 = vld [vmem:[%s1 + $0xc] sm:$0xf]
    %v24 = vld [vmem:[%s1 + $0x10] sm:$0xf]
    %v25 = vld [vmem:[%s1 + $0x14] sm:$0xf]
    %v26 = vld [vmem:[%s1 + $0x18] sm:$0xf]
    %v27 = vld [vmem:[%s1 + $0x1c] sm:$0xf]
    %v28 = vld [vmem:[%s1 + $0x20] sm:$0xf]
    %v29 = vld [vmem:[%s1 + $0x24] sm:$0xf]
    %v30 = vld [vmem:[%s1 + $0x28] sm:$0xf]
    %v31 = vld [vmem:[%s1 + $0x2c] sm:$0xf]
    %v32 = vld [vmem:[%s1 + $0x30] sm:$0xf]
    %v33 = vld [vmem:[%s1 + $0x34] sm:$0xf]
    %v34 = vld [vmem:[%s1 + $0x38] sm:$0xf]
    %v35 = vld [vmem:[%s1 + $0x3c] sm:$0xf]
    %v36 = vld [vmem:[%s2] sm:$0x1]
    %v38 = vlaneseq
    %v39 = vshrl.u32 %v38, 7
    %v40 = vsub.s32 0, %v39
    %v41 = vrot.slane %v36, %v40
    %v59 = vunpack.c.l.b16 %v20
    %v60 = vunpack.c.l.b16 %v21
    %v61 = vunpack.c.l.b16 %v22
    %v62 = vunpack.c.l.b16 %v23
    %v63 = vunpack.c.l.b16 %v24
    %v64 = vunpack.c.l.b16 %v25
    %v65 = vunpack.c.l.b16 %v26
    %v66 = vunpack.c.l.b16 %v27
    %v67 = vunpack.c.l.b16 %v28
    %v68 = vunpack.c.l.b16 %v29
    %v69 = vunpack.c.l.b16 %v30
    %v70 = vunpack.c.l.b16 %v31
    %v71 = vunpack.c.l.b16 %v32
    %v72 = vunpack.c.l.b16 %v33
    %v73 = vunpack.c.l.b16 %v34
    %v74 = vunpack.c.l.b16 %v35
    %v75 = vpack.c.b16 %v60, %v59
    %v76 = vpack.c.b16 %v62, %v61
    %v77 = vpack.c.b16 %v64, %v63
    %v78 = vpack.c.b16 %v66, %v65
    %v79 = vpack.c.b16 %v68, %v67
    %v80 = vpack.c.b16 %v70, %v69
    %v81 = vpack.c.b16 %v72, %v71
    %v82 = vpack.c.b16 %v74, %v73
    %91 = vmatprep.subr.bf16.mxu0 0
    %92 = vmatpush1.bf16.msra.mxu0 %v75
    %93 = vmatprep.subr.bf16.mxu0 0
    %94 = vmatpush1.bf16.msra.mxu0 %v76
    %95 = vmatprep.subr.bf16.mxu0 0
    %96 = vmatpush1.bf16.msra.mxu0 %v77
    %97 = vmatprep.subr.bf16.mxu0 0
    %98 = vmatpush1.bf16.msra.mxu0 %v78
    %99 = vmatprep.subr.bf16.mxu0 0
    %100 = vmatpush1.bf16.msra.mxu0 %v79
    %101 = vmatprep.subr.bf16.mxu0 0
    %102 = vmatpush1.bf16.msra.mxu0 %v80
    %103 = vmatprep.subr.bf16.mxu0 0
    %104 = vmatpush1.bf16.msra.mxu0 %v81
    %105 = vmatprep.subr.bf16.mxu0 0
    %106 = vmatpush1.bf16.msra.mxu0 %v82
    %107 = vmatprep.subr.bf16.mxu0 0
    %108 = vmatpush1.bf16.msra.mxu0 0
    %109 = vmatprep.subr.bf16.mxu0 0
    %110 = vmatpush1.bf16.msra.mxu0 0
    %111 = vmatprep.subr.bf16.mxu0 0
    %112 = vmatpush1.bf16.msra.mxu0 0
    %113 = vmatprep.subr.bf16.mxu0 0
    %114 = vmatpush1.bf16.msra.mxu0 0
    %115 = vmatprep.subr.bf16.mxu0 0
    %116 = vmatpush1.bf16.msra.mxu0 0
    %117 = vmatprep.subr.bf16.mxu0 0
    %118 = vmatpush1.bf16.msra.mxu0 0
    %119 = vmatprep.subr.bf16.mxu0 0
    %120 = vmatpush1.bf16.msra.mxu0 0
    %121 = vmatprep.subr.bf16.mxu0 0
    %122 = vmatpush1.bf16.msra.mxu0 0
    %123 = vmatprep.mubr.bf16.mxu0 0
    %124 = vmatmul.mubr.bf16.gmra.mrb[0].mxu0 %v19
    %v125 = vpop.f32.mrb[0].mxu0
    %v126 = vadd.f32 %v41, %v125
    %v127 = vpop.f32.mrb[0].mxu0
    %v128 = vpop.f32.mrb[0].mxu0
    %v129 = vpop.f32.mrb[0].mxu0
    %130 = vdwg.mxu0
    %131 = vst [vmem:[#allocation2] sm:$0xff] %v126
    %v132 = vlaneseq
    %v133 = vshrl.u32 %v132, 7
    %s134 = smul.u32 0, 8
    %v135 = vstv %s134
    %v136 = vadd.s32 %v133, %v135
    %vm137 = vcmp.lt.s32.totalorder %v136, 8
    %v138 = vsel %vm137, %v126, 0.0
    %v139 = vrot.slane %v138, 4
    %v140 = vadd.f32 %v138, %v139
    %v141 = vrot.slane %v140, 2
    %v142 = vadd.f32 %v140, %v141
    %v143 = vrot.slane %v142, 1
    %v144 = vadd.f32 %v142, %v143
    %v145 = vmul.f32 %v138, %v138
    %v146 = vrot.slane %v145, 4
    %v147 = vadd.f32 %v145, %v146
    %v148 = vrot.slane %v147, 2
    %v149 = vadd.f32 %v147, %v148
    %v150 = vrot.slane %v149, 1
    %v151 = vadd.f32 %v149, %v150
    %vm152 = vcmask 1040384
    %v153 = vsel %vm152, %v144, %v151
    %154 = vst [vmem:[#allocation4] sm:$0x3] %v153
    // Predicated region
    $region14: #{_lambda_.57} parent=1 // pred_check
      _
    $region15: #{_lambda_.57} parent=1 // pred_check_branch
      %156 = sbr.rel (0) target = $region17
    $region16: #{_lambda_.57} parent=1 // pred_region
      %s158 = ssub.s32 128, 128
      %159 = vsyncadd [#allocation3], %s158
      %s161 = sshll.u32 [#allocation2], 4
      %s162 = int_to_ptr.vmem [resolvable:$true] %s161
      %164 = dma.vmem_to_hbm [thread:$0]  %s162, 128, %s3, [#allocation3]
    $region17: #{_lambda_.57} parent=1 // pred_fallthru
      _
    // Predicated region
    $region18: #{_lambda_.57} parent=1 // pred_check
      _
    $region19: #{_lambda_.57} parent=1 // pred_check_branch
      %166 = sbr.rel (0) target = $region21
    $region20: #{_lambda_.57} parent=1 // pred_region
      %s168 = ssub.s32 32, 32
      %169 = vsyncadd [#allocation5], %s168
      %s171 = sshll.u32 [#allocation4], 4
      %s172 = int_to_ptr.vmem [resolvable:$true] %s171
      %174 = dma.vmem_to_hbm [thread:$0]  %s172, 32, %s4, [#allocation5]
    $region21: #{_lambda_.57} parent=1 // pred_fallthru
      _
    // Predicated region
    $region22: #{_lambda_.57} parent=1 // pred_check
      _
    $region23: #{_lambda_.57} parent=1 // pred_check_branch
      %176 = sbr.rel (0) target = $region25
    $region24: #{_lambda_.57} parent=1 // pred_region
      %177 = dma.done [#allocation3], 128
    $region25: #{_lambda_.57} parent=1 // pred_fallthru
      _
    // Predicated region
    $region26: #{_lambda_.57} parent=1 // pred_check
      _
    $region27: #{_lambda_.57} parent=1 // pred_check_branch
      %179 = sbr.rel (0) target = $region29
    $region28: #{_lambda_.57} parent=1 // pred_region
      %180 = dma.done [#allocation5], 32
    $region29: #{_lambda_.57} parent=1 // pred_fallthru
      _
    %181 = vsyncpa [#allocation3], 1
    %182 = vsyncpa [#allocation5], 1

</llo_original>
